<compile_context>
chip_gen: v6e
topology: v6e:2x2x1
jax: 0.10.0
libtpu: 0.0.40
codegen_flags: <defaults>
</compile_context>

<pallas_src>
import functools
import math

import numpy as np
import jax
import jax.numpy as jnp
from jax.experimental import pallas as pl
from jax.experimental.pallas import tpu as pltpu


def _pick_window_block(num_total_windows, n, c, num_heads,
                       vmem_budget=8 * 1024 * 1024, max_wb=16):
    """Largest divisor of the window count fitting a per-step VMEM budget."""
    def step_bytes(wb):
        x_blk = wb * n * c * 2                 # bf16 activations
        out_blk = wb * n * c * 4               # f32 output
        scratch = wb * n * c * 2               # bf16 proj-input scratch
        bm_blk = num_heads * wb * n * n * 4    # f32 fused bias + mask block
        return 2 * (x_blk + out_blk + bm_blk) + scratch   # double-buffered IO

    divs = [d for d in range(1, num_total_windows + 1)
            if num_total_windows % d == 0]
    best = 1
    for d in divs:
        if d <= max_wb and step_bytes(d) <= vmem_budget:
            best = d
    # Keep >= 2 grid steps when possible so the "parallel" window axis can be
    # sharded across TensorCores on multi-core parts (v7x); no-op on v5e/v6e.
    if num_total_windows // best < 2:
        for d in reversed(divs):
            if d < best and num_total_windows // d >= 2:
                best = d
                break
    return best


# ----------------------------------------------------------------------------
# Pallas kernel: WB shifted windows of multi-head cosine attention per step.
# ----------------------------------------------------------------------------
def _window_attn_kernel(x_ref, qkvw_ref, qkvb_ref, projw_ref, projb_ref,
                        bm_ref, scale_ref, o_ref, acc_ref, *, num_heads, wb, n):
    C = o_ref.shape[-1]
    D = C // num_heads

    # --- QKV projection: one (WB*N, C) x (C, 3C) bf16 matmul, f32 accumulation.
    x = x_ref[...]                                           # (WB*N, C) bf16
    qkv = jnp.dot(x, qkvw_ref[...], preferred_element_type=jnp.float32)
    qkv = qkv + qkvb_ref[...]                                # (WB*N, 3C) f32

    for h in range(num_heads):                               # static unroll (heads are few)
        qh = qkv[:, h * D:(h + 1) * D]                       # (WB*N, D) f32
        kh = qkv[:, C + h * D:C + (h + 1) * D]
        vh = qkv[:, 2 * C + h * D:2 * C + (h + 1) * D]

        # Swin V2 cosine attention: F.normalize(eps=1e-12) == x * rsqrt(max(|x|^2, 1e-24))
        q_inv = jax.lax.rsqrt(
            jnp.maximum(jnp.sum(qh * qh, axis=-1, keepdims=True), 1e-24))
        k_inv = jax.lax.rsqrt(
            jnp.maximum(jnp.sum(kh * kh, axis=-1, keepdims=True), 1e-24))
        # fold the per-head logit scale (exp(clamp(logit_scale))) into q
        qn = (qh * (q_inv * scale_ref[h])).reshape(wb, n, D)
        kn = (kh * k_inv).reshape(wb, n, D)
        vh = vh.reshape(wb, n, D)

        # per-window cosine logits, f32 operands / f32 accumulation
        attn = jnp.einsum('wnd,wmd->wnm', qn, kn,
                          preferred_element_type=jnp.float32)     # (WB, N, N)
        attn = attn + bm_ref[h]                                   # fused bias + shift mask

        # softmax in f32; denominator reciprocal on the EUP
        attn = attn - jnp.max(attn, axis=-1, keepdims=True)
        p = jnp.exp(attn)
        p = p * pl.reciprocal(jnp.sum(p, axis=-1, keepdims=True), approx=True)

        oh = jnp.einsum('wnm,wmd->wnd',
                        p.astype(jnp.bfloat16), vh.astype(jnp.bfloat16),
                        preferred_element_type=jnp.float32)       # (WB, N, D)
        # write this head's output directly into its columns of the proj input
        acc_ref[:, h * D:(h + 1) * D] = oh.reshape(wb * n, D).astype(jnp.bfloat16)

    # --- output projection: (WB*N, C) x (C, C) bf16 matmul, f32 accumulation.
    y = jnp.dot(acc_ref[...], projw_ref[...],
                preferred_element_type=jnp.float32)
    y = y + projb_ref[...]
    o_ref[...] = y.astype(o_ref.dtype)


def _window_core_pallas(xw, qkv_w_t, qkv_b2, proj_w_t, proj_b2, fused_bm, scale,
                        num_heads, num_windows):
    BW, N, C = xw.shape
    wb = _pick_window_block(BW, N, C, num_heads)
    grid = BW // wb

    # Tile the fused bias+mask table so that each block of WB consecutive global
    # windows maps onto a contiguous block of the table:
    #   table[m] = fused[m % num_windows],  block index = i % n_period.
    L = wb * num_windows // math.gcd(wb, num_windows)
    reps = L // num_windows
    n_period = L // wb
    bm = jnp.tile(fused_bm, (1, reps, 1, 1)) if reps > 1 else fused_bm  # (H, L, N, N)

    # bf16 activations halve the input DMA and feed bf16 MXU matmuls.
    x2 = xw.astype(jnp.bfloat16).reshape(BW * N, C)

    kernel = functools.partial(_window_attn_kernel,
                               num_heads=num_heads, wb=wb, n=N)
    # NOTE: weight/bias/table inputs have constant index maps so they are only
    # DMA'd once; at production channel widths keep them bf16 and size
    # vmem_limit_bytes so the double-buffered constants still fit (v7x: 64 MiB).
    out = pl.pallas_call(
        kernel,
        out_shape=jax.ShapeDtypeStruct((BW * N, C), jnp.float32),
        grid=(grid,),
        in_specs=[
            pl.BlockSpec((wb * N, C), lambda i: (i, 0)),             # activations (bf16)
            pl.BlockSpec((C, 3 * C), lambda i: (0, 0)),              # qkv W^T (bf16, pre-transposed)
            pl.BlockSpec((1, 3 * C), lambda i: (0, 0)),              # qkv bias (f32)
            pl.BlockSpec((C, C), lambda i: (0, 0)),                  # proj W^T (bf16, pre-transposed)
            pl.BlockSpec((1, C), lambda i: (0, 0)),                  # proj bias (f32)
            pl.BlockSpec((num_heads, wb, N, N),
                         lambda i, _p=n_period: (0, i % _p, 0, 0)),  # fused bias+mask (f32)
            pl.BlockSpec(memory_space=pltpu.MemorySpace.SMEM),       # per-head logit scale
        ],
        out_specs=pl.BlockSpec((wb * N, C), lambda i: (i, 0)),
        scratch_shapes=[pltpu.VMEM((wb * N, C), jnp.bfloat16)],      # proj input buffer
        compiler_params=pltpu.CompilerParams(
            dimension_semantics=("parallel",),
            vmem_limit_bytes=48 * 1024 * 1024),
    )(x2, qkv_w_t, qkv_b2, proj_w_t, proj_b2, bm, scale)
    return out.reshape(BW, N, C)


def _window_core_ref(xw, qkv_w_t, qkv_b2, proj_w_t, proj_b2, fused_bm, scale,
                     num_heads, num_windows):
    """Pure-JAX reference with the same mixed-precision policy as the kernel."""
    BW, N, C = xw.shape
    D = C // num_heads
    x = xw.astype(jnp.bfloat16).reshape(BW * N, C)
    qkv = jnp.dot(x, qkv_w_t, preferred_element_type=jnp.float32) + qkv_b2
    qkv = qkv.reshape(BW, N, 3, num_heads, D).transpose(2, 0, 3, 1, 4)
    q, k, v = qkv[0], qkv[1], qkv[2]                                  # (BW, H, N, D) f32
    qn = q * jax.lax.rsqrt(jnp.maximum(jnp.sum(q * q, -1, keepdims=True), 1e-24))
    kn = k * jax.lax.rsqrt(jnp.maximum(jnp.sum(k * k, -1, keepdims=True), 1e-24))
    qn = qn * scale.reshape(1, num_heads, 1, 1)
    attn = jnp.einsum('bhnd,bhmd->bhnm', qn, kn,
                      precision=jax.lax.Precision.HIGHEST)
    widx = jnp.arange(BW) % num_windows
    attn = attn + fused_bm.transpose(1, 0, 2, 3)[widx]                # (BW, H, N, N)
    attn = jax.nn.softmax(attn, axis=-1)
    out = jnp.einsum('bhnm,bhmd->bhnd',
                     attn.astype(jnp.bfloat16), v.astype(jnp.bfloat16),
                     preferred_element_type=jnp.float32)
    out = out.transpose(0, 2, 1, 3).reshape(BW * N, C)
    y = jnp.dot(out.astype(jnp.bfloat16), proj_w_t,
                preferred_element_type=jnp.float32) + proj_b2
    return y.reshape(BW, N, C)


# ----------------------------------------------------------------------------
# Parameter setup & glue (plain JAX / numpy)
# ----------------------------------------------------------------------------
def init_params(key, dim, num_heads):
    k1, k2, k3, k4, k5, k6, k7 = jax.random.split(key, 7)
    qkv_b = jax.random.normal(k2, (3 * dim,), jnp.float32) * 0.02
    # Swin V2: zero the key bias (middle third)
    qkv_b = qkv_b.at[dim:2 * dim].set(0.0)
    return dict(
        qkv_w=jax.random.normal(k1, (3 * dim, dim), jnp.float32) * 0.02,
        qkv_b=qkv_b,
        proj_w=jax.random.normal(k3, (dim, dim), jnp.float32) * 0.02,
        proj_b=jax.random.normal(k4, (dim,), jnp.float32) * 0.02,
        logit_scale=jnp.log(10.0) * jnp.ones((num_heads, 1, 1), jnp.float32),
        cpb_w1=jax.random.normal(k5, (512, 2), jnp.float32) * 0.1,
        cpb_b1=jax.random.normal(k6, (512,), jnp.float32) * 0.1,
        cpb_w2=jax.random.normal(k7, (num_heads, 512), jnp.float32) * 0.1,
    )


def _relative_position_bias(params, window_size, num_heads):
    ws0, ws1 = window_size
    # relative_coords_table (Swin V2 log-spaced coords)
    rh = np.arange(-(ws0 - 1), ws0, dtype=np.float32)
    rw = np.arange(-(ws1 - 1), ws1, dtype=np.float32)
    table = np.stack(np.meshgrid(rh, rw, indexing='ij'))              # (2, 2ws0-1, 2ws1-1)
    table = table.transpose(1, 2, 0)[None].copy()                     # (1, ., ., 2)
    table[..., 0] /= (ws0 - 1)
    table[..., 1] /= (ws1 - 1)
    table *= 8.0
    table = np.sign(table) * np.log2(np.abs(table) + 1.0) / 3.0

    # relative_position_index
    ch = np.arange(ws0)
    cw = np.arange(ws1)
    coords = np.stack(np.meshgrid(ch, cw, indexing='ij'))             # (2, ws0, ws1)
    cf = coords.reshape(2, -1)
    rc = (cf[:, :, None] - cf[:, None, :]).transpose(1, 2, 0)         # (N, N, 2)
    rc[..., 0] += ws0 - 1
    rc[..., 1] += ws1 - 1
    rc[..., 0] *= 2 * ws1 - 1
    rpi = rc.sum(-1).reshape(-1)                                      # (N*N,)

    # cpb_mlp: Linear(2,512)+ReLU+Linear(512,num_heads, no bias)
    t = jnp.asarray(table)
    h = jnp.maximum(t @ params['cpb_w1'].T + params['cpb_b1'], 0.0)
    bias_table = (h @ params['cpb_w2'].T).reshape(-1, num_heads)

    N = ws0 * ws1
    bias = bias_table[jnp.asarray(rpi)].reshape(N, N, num_heads).transpose(2, 0, 1)
    bias = 16.0 * jax.nn.sigmoid(bias)                                # (H, N, N)
    return bias


def shifted_window_attention_v2(x, params, window_size, shift_size, num_heads,
                                use_pallas=True):
    B, H, W, C = x.shape
    ws0, ws1 = window_size
    pad_r = (ws1 - W % ws1) % ws1
    pad_b = (ws0 - H % ws0) % ws0
    x = jnp.pad(x, ((0, 0), (0, pad_b), (0, pad_r), (0, 0)))
    pad_H, pad_W = H + pad_b, W + pad_r

    shift_size = list(shift_size)
    if ws0 >= pad_H:
        shift_size[0] = 0
    if ws1 >= pad_W:
        shift_size[1] = 0
    shifted = sum(shift_size) > 0
    if shifted:
        x = jnp.roll(x, shift=(-shift_size[0], -shift_size[1]), axis=(1, 2))

    nH, nW = pad_H // ws0, pad_W // ws1
    num_windows = nH * nW
    N = ws0 * ws1
    xw = x.reshape(B, nH, ws0, nW, ws1, C).transpose(0, 1, 3, 2, 4, 5)
    xw = xw.reshape(B * num_windows, N, C)

    # relative position bias via cpb_mlp
    bias = _relative_position_bias(params, window_size, num_heads)    # (H, N, N)

    # shifted-window attention mask (static, numpy)
    if shifted:
        mask_img = np.zeros((pad_H, pad_W), dtype=np.float32)
        h_slices = ((0, -ws0), (-ws0, -shift_size[0]), (-shift_size[0], None))
        w_slices = ((0, -ws1), (-ws1, -shift_size[1]), (-shift_size[1], None))
        cnt = 0
        for hs in h_slices:
            for ws_ in w_slices:
                mask_img[hs[0]:hs[1], ws_[0]:ws_[1]] = cnt
                cnt += 1
        m = mask_img.reshape(nH, ws0, nW, ws1).transpose(0, 2, 1, 3)
        m = m.reshape(num_windows, N)
        diff = m[:, None, :] - m[:, :, None]
        attn_mask = np.where(diff != 0, -100.0, 0.0).astype(np.float32)
    else:
        attn_mask = np.zeros((num_windows, N, N), dtype=np.float32)

    # Fused bias + per-window shift mask table: (H, num_windows, N, N), f32.
    fused_bm = bias[:, None, :, :] + jnp.asarray(attn_mask)[None, :, :, :]

    # cosine-attention logit scale: exp(clamp(logit_scale, max=log(100)))
    scale = jnp.exp(jnp.minimum(params['logit_scale'], math.log(100.0)))
    scale = scale.reshape(num_heads).astype(jnp.float32)

    # Pre-transpose + bf16-cast the weights once on the host.
    qkv_w_t = params['qkv_w'].T.astype(jnp.bfloat16)                  # (C, 3C)
    proj_w_t = params['proj_w'].T.astype(jnp.bfloat16)                # (C, C)
    qkv_b2 = params['qkv_b'].reshape(1, -1).astype(jnp.float32)
    proj_b2 = params['proj_b'].reshape(1, -1).astype(jnp.float32)

    core = _window_core_pallas if use_pallas else _window_core_ref
    out_w = core(xw, qkv_w_t, qkv_b2, proj_w_t, proj_b2, fused_bm, scale,
                 num_heads, num_windows)

    out = out_w.reshape(B, nH, nW, ws0, ws1, C).transpose(0, 1, 3, 2, 4, 5)
    out = out.reshape(B, pad_H, pad_W, C)
    if shifted:
        out = jnp.roll(out, shift=(shift_size[0], shift_size[1]), axis=(1, 2))
    return out[:, :H, :W, :]


# TODO(synk): attention_dropout / dropout are 0.0 in this configuration, so no
# dropout is applied (matches F.dropout with p=0).

if __name__ == "__main__":
    B, H, W, C = 2, 16, 16, 32
    window_size = [8, 8]
    shift_size = [4, 4]
    num_heads = 4

    key = jax.random.PRNGKey(0)
    pkey, xkey = jax.random.split(key)
    params = init_params(pkey, C, num_heads)
    x = jax.random.normal(xkey, (B, H, W, C), jnp.float32)

    out = shifted_window_attention_v2(x, params, window_size, shift_size,
                                      num_heads, use_pallas=True)
    out = jax.block_until_ready(out)

    ref = shifted_window_attention_v2(x, params, window_size, shift_size,
                                      num_heads, use_pallas=False)
    ref = jax.block_until_ready(ref)

    assert out.shape == (B, H, W, C)
    np.testing.assert_allclose(np.asarray(out), np.asarray(ref),
                               rtol=1e-2, atol=1e-3)
    print("KERNEL_OK")
</pallas_src>

<mosaic_0001>
module attributes {stable_mosaic.version = 11 : i64} {
  func.func @_window_attn_kernel(%arg0: i32, %arg1: memref<256x32xbf16, #tpu.memory_space<vmem>>, %arg2: memref<32x96xbf16, #tpu.memory_space<vmem>>, %arg3: memref<1x96xf32, #tpu.memory_space<vmem>>, %arg4: memref<32x32xbf16, #tpu.memory_space<vmem>>, %arg5: memref<1x32xf32, #tpu.memory_space<vmem>>, %arg6: memref<4x4x64x64xf32, #tpu.memory_space<vmem>>, %arg7: memref<4xf32, #tpu.memory_space<smem>>, %arg8: memref<256x32xf32, #tpu.memory_space<vmem>>, %arg9: memref<256x32xbf16, #tpu.memory_space<vmem>>) attributes {dimension_semantics = [#tpu.dimension_semantics<parallel>], iteration_bounds = array<i64: 2>, scalar_prefetch = 0 : i64, scratch_operands = 1 : i64, tpu.core_type = #tpu.core_type<tc>, window_params = [{transform_indices = @transform_0, window_bounds = array<i64: 256, 32>}, {pipeline_mode = #tpu.pipeline_mode<synchronous>, transform_indices = @transform_1, window_bounds = array<i64: 32, 96>}, {pipeline_mode = #tpu.pipeline_mode<synchronous>, transform_indices = @transform_2, window_bounds = array<i64: 1, 96>}, {pipeline_mode = #tpu.pipeline_mode<synchronous>, transform_indices = @transform_3, window_bounds = array<i64: 32, 32>}, {pipeline_mode = #tpu.pipeline_mode<synchronous>, transform_indices = @transform_4, window_bounds = array<i64: 1, 32>}, {transform_indices = @transform_5, window_bounds = array<i64: 4, 4, 64, 64>}, {transform_indices = @transform_6, window_bounds = array<i64: 4>}, {transform_indices = @transform_7, window_bounds = array<i64: 256, 32>}]} {
    %c0 = arith.constant 0 : index
    %c0_0 = arith.constant 0 : index
    %0 = vector.load %arg1[%c0, %c0_0] : memref<256x32xbf16, #tpu.memory_space<vmem>>, vector<256x32xbf16>
    %c0_1 = arith.constant 0 : index
    %c0_2 = arith.constant 0 : index
    %1 = vector.load %arg2[%c0_1, %c0_2] : memref<32x96xbf16, #tpu.memory_space<vmem>>, vector<32x96xbf16>
    %cst = arith.constant dense<0.000000e+00> : vector<256x96xf32>
    %2 = tpu.matmul %0, %1, %cst {dimension_numbers = #tpu.dot_dimension_numbers<[1], [0], [0], [1], [0, 0, 1, 1], [], []>} : vector<256x32xbf16>, vector<32x96xbf16>, vector<256x96xf32> -> vector<256x96xf32>
    %c0_3 = arith.constant 0 : index
    %c0_4 = arith.constant 0 : index
    %3 = vector.load %arg3[%c0_3, %c0_4] : memref<1x96xf32, #tpu.memory_space<vmem>>, vector<1x96xf32>
    %4 = vector.broadcast %3 : vector<1x96xf32> to vector<256x96xf32>
    %5 = arith.addf %2, %4 : vector<256x96xf32>
    %6 = vector.extract_strided_slice %5 {offsets = [0, 0], sizes = [256, 8], strides = [1, 1]} : vector<256x96xf32> to vector<256x8xf32>
    %7 = vector.extract_strided_slice %5 {offsets = [0, 32], sizes = [256, 8], strides = [1, 1]} : vector<256x96xf32> to vector<256x8xf32>
    %8 = vector.extract_strided_slice %5 {offsets = [0, 64], sizes = [256, 8], strides = [1, 1]} : vector<256x96xf32> to vector<256x8xf32>
    %9 = arith.mulf %6, %6 : vector<256x8xf32>
    %cst_5 = arith.constant dense<0.000000e+00> : vector<256xf32>
    %10 = vector.multi_reduction <add>, %9, %cst_5 [1] : vector<256x8xf32> to vector<256xf32>
    %11 = vector.shape_cast %10 : vector<256xf32> to vector<256x1xf32>
    %cst_6 = arith.constant 1.000000e-24 : f32
    %12 = vector.broadcast %cst_6 : f32 to vector<256x1xf32>
    %13 = arith.maximumf %11, %12 : vector<256x1xf32>
    %14 = math.rsqrt %13 : vector<256x1xf32>
    %15 = arith.mulf %7, %7 : vector<256x8xf32>
    %cst_7 = arith.constant dense<0.000000e+00> : vector<256xf32>
    %16 = vector.multi_reduction <add>, %15, %cst_7 [1] : vector<256x8xf32> to vector<256xf32>
    %17 = vector.shape_cast %16 : vector<256xf32> to vector<256x1xf32>
    %cst_8 = arith.constant 1.000000e-24 : f32
    %18 = vector.broadcast %cst_8 : f32 to vector<256x1xf32>
    %19 = arith.maximumf %17, %18 : vector<256x1xf32>
    %20 = math.rsqrt %19 : vector<256x1xf32>
    %c0_9 = arith.constant 0 : index
    %21 = memref.load %arg7[%c0_9] : memref<4xf32, #tpu.memory_space<smem>>
    %22 = vector.broadcast %21 : f32 to vector<256x1xf32>
    %23 = arith.mulf %14, %22 : vector<256x1xf32>
    %24 = vector.broadcast %23 : vector<256x1xf32> to vector<256x8xf32>
    %25 = arith.mulf %6, %24 : vector<256x8xf32>
    %26 = vector.shape_cast %25 : vector<256x8xf32> to vector<4x64x8xf32>
    %27 = vector.broadcast %20 : vector<256x1xf32> to vector<256x8xf32>
    %28 = arith.mulf %7, %27 : vector<256x8xf32>
    %29 = vector.shape_cast %28 : vector<256x8xf32> to vector<4x64x8xf32>
    %30 = vector.shape_cast %8 : vector<256x8xf32> to vector<4x64x8xf32>
    "tpu.trace_start"() <{level = 10 : i32, message = "wnd,wmd->wnm"}> : () -> ()
    %cst_10 = arith.constant dense<0.000000e+00> : vector<4x64x64xf32>
    %31 = tpu.matmul %26, %29, %cst_10 {dimension_numbers = #tpu.dot_dimension_numbers<[2], [2], [1], [1], [0, 0, 0, 1, 1, 1], [0], [0]>} : vector<4x64x8xf32>, vector<4x64x8xf32>, vector<4x64x64xf32> -> vector<4x64x64xf32>
    "tpu.trace_stop"() : () -> ()
    %c0_11 = arith.constant 0 : index
    %c0_12 = arith.constant 0 : index
    %c0_13 = arith.constant 0 : index
    %c0_14 = arith.constant 0 : index
    %32 = vector.load %arg6[%c0_11, %c0_12, %c0_13, %c0_14] : memref<4x4x64x64xf32, #tpu.memory_space<vmem>>, vector<1x4x64x64xf32>
    %33 = vector.shape_cast %32 : vector<1x4x64x64xf32> to vector<4x64x64xf32>
    %34 = arith.addf %31, %33 : vector<4x64x64xf32>
    %cst_15 = arith.constant dense<0xFF800000> : vector<4x64xf32>
    %35 = vector.multi_reduction <maximumf>, %34, %cst_15 [2] : vector<4x64x64xf32> to vector<4x64xf32>
    %36 = vector.shape_cast %35 : vector<4x64xf32> to vector<4x64x1xf32>
    %37 = vector.broadcast %36 : vector<4x64x1xf32> to vector<4x64x64xf32>
    %38 = arith.subf %34, %37 : vector<4x64x64xf32>
    %39 = math.exp %38 : vector<4x64x64xf32>
    %cst_16 = arith.constant dense<0.000000e+00> : vector<4x64xf32>
    %40 = vector.multi_reduction <add>, %39, %cst_16 [2] : vector<4x64x64xf32> to vector<4x64xf32>
    %41 = vector.shape_cast %40 : vector<4x64xf32> to vector<4x64x1xf32>
    %42 = tpu.reciprocal %41 {approx = true} : vector<4x64x1xf32> -> vector<4x64x1xf32>
    %43 = vector.broadcast %42 : vector<4x64x1xf32> to vector<4x64x64xf32>
    %44 = arith.mulf %39, %43 : vector<4x64x64xf32>
    %45 = arith.truncf %44 : vector<4x64x64xf32> to vector<4x64x64xbf16>
    %46 = arith.truncf %30 : vector<4x64x8xf32> to vector<4x64x8xbf16>
    "tpu.trace_start"() <{level = 10 : i32, message = "wnm,wmd->wnd"}> : () -> ()
    %cst_17 = arith.constant dense<0.000000e+00> : vector<4x64x8xf32>
    %47 = tpu.matmul %45, %46, %cst_17 {dimension_numbers = #tpu.dot_dimension_numbers<[2], [1], [1], [2], [0, 0, 0, 1, 1, 2], [0], [0]>} : vector<4x64x64xbf16>, vector<4x64x8xbf16>, vector<4x64x8xf32> -> vector<4x64x8xf32>
    "tpu.trace_stop"() : () -> ()
    %48 = vector.shape_cast %47 : vector<4x64x8xf32> to vector<256x8xf32>
    %49 = arith.truncf %48 : vector<256x8xf32> to vector<256x8xbf16>
    %c0_18 = arith.constant 0 : index
    %c0_19 = arith.constant 0 : index
    %50 = vector.load %arg9[%c0_18, %c0_19] : memref<256x32xbf16, #tpu.memory_space<vmem>>, vector<256x8xbf16>
    tpu.vector_store %arg9[%c0_18, %c0_19], %49 {strides = array<i32>} : memref<256x32xbf16, #tpu.memory_space<vmem>>, vector<256x8xbf16>,
    %51 = vector.extract_strided_slice %5 {offsets = [0, 8], sizes = [256, 8], strides = [1, 1]} : vector<256x96xf32> to vector<256x8xf32>
    %52 = vector.extract_strided_slice %5 {offsets = [0, 40], sizes = [256, 8], strides = [1, 1]} : vector<256x96xf32> to vector<256x8xf32>
    %53 = vector.extract_strided_slice %5 {offsets = [0, 72], sizes = [256, 8], strides = [1, 1]} : vector<256x96xf32> to vector<256x8xf32>
    %54 = arith.mulf %51, %51 : vector<256x8xf32>
    %cst_20 = arith.constant dense<0.000000e+00> : vector<256xf32>
    %55 = vector.multi_reduction <add>, %54, %cst_20 [1] : vector<256x8xf32> to vector<256xf32>
    %56 = vector.shape_cast %55 : vector<256xf32> to vector<256x1xf32>
    %cst_21 = arith.constant 1.000000e-24 : f32
    %57 = vector.broadcast %cst_21 : f32 to vector<256x1xf32>
    %58 = arith.maximumf %56, %57 : vector<256x1xf32>
    %59 = math.rsqrt %58 : vector<256x1xf32>
    %60 = arith.mulf %52, %52 : vector<256x8xf32>
    %cst_22 = arith.constant dense<0.000000e+00> : vector<256xf32>
    %61 = vector.multi_reduction <add>, %60, %cst_22 [1] : vector<256x8xf32> to vector<256xf32>
    %62 = vector.shape_cast %61 : vector<256xf32> to vector<256x1xf32>
    %cst_23 = arith.constant 1.000000e-24 : f32
    %63 = vector.broadcast %cst_23 : f32 to vector<256x1xf32>
    %64 = arith.maximumf %62, %63 : vector<256x1xf32>
    %65 = math.rsqrt %64 : vector<256x1xf32>
    %c1 = arith.constant 1 : index
    %66 = memref.load %arg7[%c1] : memref<4xf32, #tpu.memory_space<smem>>
    %67 = vector.broadcast %66 : f32 to vector<256x1xf32>
    %68 = arith.mulf %59, %67 : vector<256x1xf32>
    %69 = vector.broadcast %68 : vector<256x1xf32> to vector<256x8xf32>
    %70 = arith.mulf %51, %69 : vector<256x8xf32>
    %71 = vector.shape_cast %70 : vector<256x8xf32> to vector<4x64x8xf32>
    %72 = vector.broadcast %65 : vector<256x1xf32> to vector<256x8xf32>
    %73 = arith.mulf %52, %72 : vector<256x8xf32>
    %74 = vector.shape_cast %73 : vector<256x8xf32> to vector<4x64x8xf32>
    %75 = vector.shape_cast %53 : vector<256x8xf32> to vector<4x64x8xf32>
    "tpu.trace_start"() <{level = 10 : i32, message = "wnd,wmd->wnm"}> : () -> ()
    %cst_24 = arith.constant dense<0.000000e+00> : vector<4x64x64xf32>
    %76 = tpu.matmul %71, %74, %cst_24 {dimension_numbers = #tpu.dot_dimension_numbers<[2], [2], [1], [1], [0, 0, 0, 1, 1, 1], [0], [0]>} : vector<4x64x8xf32>, vector<4x64x8xf32>, vector<4x64x64xf32> -> vector<4x64x64xf32>
    "tpu.trace_stop"() : () -> ()
    %c1_25 = arith.constant 1 : index
    %c0_26 = arith.constant 0 : index
    %c0_27 = arith.constant 0 : index
    %c0_28 = arith.constant 0 : index
    %77 = vector.load %arg6[%c1_25, %c0_26, %c0_27, %c0_28] : memref<4x4x64x64xf32, #tpu.memory_space<vmem>>, vector<1x4x64x64xf32>
    %78 = vector.shape_cast %77 : vector<1x4x64x64xf32> to vector<4x64x64xf32>
    %79 = arith.addf %76, %78 : vector<4x64x64xf32>
    %cst_29 = arith.constant dense<0xFF800000> : vector<4x64xf32>
    %80 = vector.multi_reduction <maximumf>, %79, %cst_29 [2] : vector<4x64x64xf32> to vector<4x64xf32>
    %81 = vector.shape_cast %80 : vector<4x64xf32> to vector<4x64x1xf32>
    %82 = vector.broadcast %81 : vector<4x64x1xf32> to vector<4x64x64xf32>
    %83 = arith.subf %79, %82 : vector<4x64x64xf32>
    %84 = math.exp %83 : vector<4x64x64xf32>
    %cst_30 = arith.constant dense<0.000000e+00> : vector<4x64xf32>
    %85 = vector.multi_reduction <add>, %84, %cst_30 [2] : vector<4x64x64xf32> to vector<4x64xf32>
    %86 = vector.shape_cast %85 : vector<4x64xf32> to vector<4x64x1xf32>
    %87 = tpu.reciprocal %86 {approx = true} : vector<4x64x1xf32> -> vector<4x64x1xf32>
    %88 = vector.broadcast %87 : vector<4x64x1xf32> to vector<4x64x64xf32>
    %89 = arith.mulf %84, %88 : vector<4x64x64xf32>
    %90 = arith.truncf %89 : vector<4x64x64xf32> to vector<4x64x64xbf16>
    %91 = arith.truncf %75 : vector<4x64x8xf32> to vector<4x64x8xbf16>
    "tpu.trace_start"() <{level = 10 : i32, message = "wnm,wmd->wnd"}> : () -> ()
    %cst_31 = arith.constant dense<0.000000e+00> : vector<4x64x8xf32>
    %92 = tpu.matmul %90, %91, %cst_31 {dimension_numbers = #tpu.dot_dimension_numbers<[2], [1], [1], [2], [0, 0, 0, 1, 1, 2], [0], [0]>} : vector<4x64x64xbf16>, vector<4x64x8xbf16>, vector<4x64x8xf32> -> vector<4x64x8xf32>
    "tpu.trace_stop"() : () -> ()
    %93 = vector.shape_cast %92 : vector<4x64x8xf32> to vector<256x8xf32>
    %94 = arith.truncf %93 : vector<256x8xf32> to vector<256x8xbf16>
    %c0_32 = arith.constant 0 : index
    %c8 = arith.constant 8 : index
    %95 = vector.load %arg9[%c0_32, %c8] : memref<256x32xbf16, #tpu.memory_space<vmem>>, vector<256x8xbf16>
    tpu.vector_store %arg9[%c0_32, %c8], %94 {strides = array<i32>} : memref<256x32xbf16, #tpu.memory_space<vmem>>, vector<256x8xbf16>,
    %96 = vector.extract_strided_slice %5 {offsets = [0, 16], sizes = [256, 8], strides = [1, 1]} : vector<256x96xf32> to vector<256x8xf32>
    %97 = vector.extract_strided_slice %5 {offsets = [0, 48], sizes = [256, 8], strides = [1, 1]} : vector<256x96xf32> to vector<256x8xf32>
    %98 = vector.extract_strided_slice %5 {offsets = [0, 80], sizes = [256, 8], strides = [1, 1]} : vector<256x96xf32> to vector<256x8xf32>
    %99 = arith.mulf %96, %96 : vector<256x8xf32>
    %cst_33 = arith.constant dense<0.000000e+00> : vector<256xf32>
    %100 = vector.multi_reduction <add>, %99, %cst_33 [1] : vector<256x8xf32> to vector<256xf32>
    %101 = vector.shape_cast %100 : vector<256xf32> to vector<256x1xf32>
    %cst_34 = arith.constant 1.000000e-24 : f32
    %102 = vector.broadcast %cst_34 : f32 to vector<256x1xf32>
    %103 = arith.maximumf %101, %102 : vector<256x1xf32>
    %104 = math.rsqrt %103 : vector<256x1xf32>
    %105 = arith.mulf %97, %97 : vector<256x8xf32>
    %cst_35 = arith.constant dense<0.000000e+00> : vector<256xf32>
    %106 = vector.multi_reduction <add>, %105, %cst_35 [1] : vector<256x8xf32> to vector<256xf32>
    %107 = vector.shape_cast %106 : vector<256xf32> to vector<256x1xf32>
    %cst_36 = arith.constant 1.000000e-24 : f32
    %108 = vector.broadcast %cst_36 : f32 to vector<256x1xf32>
    %109 = arith.maximumf %107, %108 : vector<256x1xf32>
    %110 = math.rsqrt %109 : vector<256x1xf32>
    %c2 = arith.constant 2 : index
    %111 = memref.load %arg7[%c2] : memref<4xf32, #tpu.memory_space<smem>>
    %112 = vector.broadcast %111 : f32 to vector<256x1xf32>
    %113 = arith.mulf %104, %112 : vector<256x1xf32>
    %114 = vector.broadcast %113 : vector<256x1xf32> to vector<256x8xf32>
    %115 = arith.mulf %96, %114 : vector<256x8xf32>
    %116 = vector.shape_cast %115 : vector<256x8xf32> to vector<4x64x8xf32>
    %117 = vector.broadcast %110 : vector<256x1xf32> to vector<256x8xf32>
    %118 = arith.mulf %97, %117 : vector<256x8xf32>
    %119 = vector.shape_cast %118 : vector<256x8xf32> to vector<4x64x8xf32>
    %120 = vector.shape_cast %98 : vector<256x8xf32> to vector<4x64x8xf32>
    "tpu.trace_start"() <{level = 10 : i32, message = "wnd,wmd->wnm"}> : () -> ()
    %cst_37 = arith.constant dense<0.000000e+00> : vector<4x64x64xf32>
    %121 = tpu.matmul %116, %119, %cst_37 {dimension_numbers = #tpu.dot_dimension_numbers<[2], [2], [1], [1], [0, 0, 0, 1, 1, 1], [0], [0]>} : vector<4x64x8xf32>, vector<4x64x8xf32>, vector<4x64x64xf32> -> vector<4x64x64xf32>
    "tpu.trace_stop"() : () -> ()
    %c2_38 = arith.constant 2 : index
    %c0_39 = arith.constant 0 : index
    %c0_40 = arith.constant 0 : index
    %c0_41 = arith.constant 0 : index
    %122 = vector.load %arg6[%c2_38, %c0_39, %c0_40, %c0_41] : memref<4x4x64x64xf32, #tpu.memory_space<vmem>>, vector<1x4x64x64xf32>
    %123 = vector.shape_cast %122 : vector<1x4x64x64xf32> to vector<4x64x64xf32>
    %124 = arith.addf %121, %123 : vector<4x64x64xf32>
    %cst_42 = arith.constant dense<0xFF800000> : vector<4x64xf32>
    %125 = vector.multi_reduction <maximumf>, %124, %cst_42 [2] : vector<4x64x64xf32> to vector<4x64xf32>
    %126 = vector.shape_cast %125 : vector<4x64xf32> to vector<4x64x1xf32>
    %127 = vector.broadcast %126 : vector<4x64x1xf32> to vector<4x64x64xf32>
    %128 = arith.subf %124, %127 : vector<4x64x64xf32>
    %129 = math.exp %128 : vector<4x64x64xf32>
    %cst_43 = arith.constant dense<0.000000e+00> : vector<4x64xf32>
    %130 = vector.multi_reduction <add>, %129, %cst_43 [2] : vector<4x64x64xf32> to vector<4x64xf32>
    %131 = vector.shape_cast %130 : vector<4x64xf32> to vector<4x64x1xf32>
    %132 = tpu.reciprocal %131 {approx = true} : vector<4x64x1xf32> -> vector<4x64x1xf32>
    %133 = vector.broadcast %132 : vector<4x64x1xf32> to vector<4x64x64xf32>
    %134 = arith.mulf %129, %133 : vector<4x64x64xf32>
    %135 = arith.truncf %134 : vector<4x64x64xf32> to vector<4x64x64xbf16>
    %136 = arith.truncf %120 : vector<4x64x8xf32> to vector<4x64x8xbf16>
    "tpu.trace_start"() <{level = 10 : i32, message = "wnm,wmd->wnd"}> : () -> ()
    %cst_44 = arith.constant dense<0.000000e+00> : vector<4x64x8xf32>
    %137 = tpu.matmul %135, %136, %cst_44 {dimension_numbers = #tpu.dot_dimension_numbers<[2], [1], [1], [2], [0, 0, 0, 1, 1, 2], [0], [0]>} : vector<4x64x64xbf16>, vector<4x64x8xbf16>, vector<4x64x8xf32> -> vector<4x64x8xf32>
    "tpu.trace_stop"() : () -> ()
    %138 = vector.shape_cast %137 : vector<4x64x8xf32> to vector<256x8xf32>
    %139 = arith.truncf %138 : vector<256x8xf32> to vector<256x8xbf16>
    %c0_45 = arith.constant 0 : index
    %c16 = arith.constant 16 : index
    %140 = vector.load %arg9[%c0_45, %c16] : memref<256x32xbf16, #tpu.memory_space<vmem>>, vector<256x8xbf16>
    tpu.vector_store %arg9[%c0_45, %c16], %139 {strides = array<i32>} : memref<256x32xbf16, #tpu.memory_space<vmem>>, vector<256x8xbf16>,
    %141 = vector.extract_strided_slice %5 {offsets = [0, 24], sizes = [256, 8], strides = [1, 1]} : vector<256x96xf32> to vector<256x8xf32>
    %142 = vector.extract_strided_slice %5 {offsets = [0, 56], sizes = [256, 8], strides = [1, 1]} : vector<256x96xf32> to vector<256x8xf32>
    %143 = vector.extract_strided_slice %5 {offsets = [0, 88], sizes = [256, 8], strides = [1, 1]} : vector<256x96xf32> to vector<256x8xf32>
    %144 = arith.mulf %141, %141 : vector<256x8xf32>
    %cst_46 = arith.constant dense<0.000000e+00> : vector<256xf32>
    %145 = vector.multi_reduction <add>, %144, %cst_46 [1] : vector<256x8xf32> to vector<256xf32>
    %146 = vector.shape_cast %145 : vector<256xf32> to vector<256x1xf32>
    %cst_47 = arith.constant 1.000000e-24 : f32
    %147 = vector.broadcast %cst_47 : f32 to vector<256x1xf32>
    %148 = arith.maximumf %146, %147 : vector<256x1xf32>
    %149 = math.rsqrt %148 : vector<256x1xf32>
    %150 = arith.mulf %142, %142 : vector<256x8xf32>
    %cst_48 = arith.constant dense<0.000000e+00> : vector<256xf32>
    %151 = vector.multi_reduction <add>, %150, %cst_48 [1] : vector<256x8xf32> to vector<256xf32>
    %152 = vector.shape_cast %151 : vector<256xf32> to vector<256x1xf32>
    %cst_49 = arith.constant 1.000000e-24 : f32
    %153 = vector.broadcast %cst_49 : f32 to vector<256x1xf32>
    %154 = arith.maximumf %152, %153 : vector<256x1xf32>
    %155 = math.rsqrt %154 : vector<256x1xf32>
    %c3 = arith.constant 3 : index
    %156 = memref.load %arg7[%c3] : memref<4xf32, #tpu.memory_space<smem>>
    %157 = vector.broadcast %156 : f32 to vector<256x1xf32>
    %158 = arith.mulf %149, %157 : vector<256x1xf32>
    %159 = vector.broadcast %158 : vector<256x1xf32> to vector<256x8xf32>
    %160 = arith.mulf %141, %159 : vector<256x8xf32>
    %161 = vector.shape_cast %160 : vector<256x8xf32> to vector<4x64x8xf32>
    %162 = vector.broadcast %155 : vector<256x1xf32> to vector<256x8xf32>
    %163 = arith.mulf %142, %162 : vector<256x8xf32>
    %164 = vector.shape_cast %163 : vector<256x8xf32> to vector<4x64x8xf32>
    %165 = vector.shape_cast %143 : vector<256x8xf32> to vector<4x64x8xf32>
    "tpu.trace_start"() <{level = 10 : i32, message = "wnd,wmd->wnm"}> : () -> ()
    %cst_50 = arith.constant dense<0.000000e+00> : vector<4x64x64xf32>
    %166 = tpu.matmul %161, %164, %cst_50 {dimension_numbers = #tpu.dot_dimension_numbers<[2], [2], [1], [1], [0, 0, 0, 1, 1, 1], [0], [0]>} : vector<4x64x8xf32>, vector<4x64x8xf32>, vector<4x64x64xf32> -> vector<4x64x64xf32>
    "tpu.trace_stop"() : () -> ()
    %c3_51 = arith.constant 3 : index
    %c0_52 = arith.constant 0 : index
    %c0_53 = arith.constant 0 : index
    %c0_54 = arith.constant 0 : index
    %167 = vector.load %arg6[%c3_51, %c0_52, %c0_53, %c0_54] : memref<4x4x64x64xf32, #tpu.memory_space<vmem>>, vector<1x4x64x64xf32>
    %168 = vector.shape_cast %167 : vector<1x4x64x64xf32> to vector<4x64x64xf32>
    %169 = arith.addf %166, %168 : vector<4x64x64xf32>
    %cst_55 = arith.constant dense<0xFF800000> : vector<4x64xf32>
    %170 = vector.multi_reduction <maximumf>, %169, %cst_55 [2] : vector<4x64x64xf32> to vector<4x64xf32>
    %171 = vector.shape_cast %170 : vector<4x64xf32> to vector<4x64x1xf32>
    %172 = vector.broadcast %171 : vector<4x64x1xf32> to vector<4x64x64xf32>
    %173 = arith.subf %169, %172 : vector<4x64x64xf32>
    %174 = math.exp %173 : vector<4x64x64xf32>
    %cst_56 = arith.constant dense<0.000000e+00> : vector<4x64xf32>
    %175 = vector.multi_reduction <add>, %174, %cst_56 [2] : vector<4x64x64xf32> to vector<4x64xf32>
    %176 = vector.shape_cast %175 : vector<4x64xf32> to vector<4x64x1xf32>
    %177 = tpu.reciprocal %176 {approx = true} : vector<4x64x1xf32> -> vector<4x64x1xf32>
    %178 = vector.broadcast %177 : vector<4x64x1xf32> to vector<4x64x64xf32>
    %179 = arith.mulf %174, %178 : vector<4x64x64xf32>
    %180 = arith.truncf %179 : vector<4x64x64xf32> to vector<4x64x64xbf16>
    %181 = arith.truncf %165 : vector<4x64x8xf32> to vector<4x64x8xbf16>
    "tpu.trace_start"() <{level = 10 : i32, message = "wnm,wmd->wnd"}> : () -> ()
    %cst_57 = arith.constant dense<0.000000e+00> : vector<4x64x8xf32>
    %182 = tpu.matmul %180, %181, %cst_57 {dimension_numbers = #tpu.dot_dimension_numbers<[2], [1], [1], [2], [0, 0, 0, 1, 1, 2], [0], [0]>} : vector<4x64x64xbf16>, vector<4x64x8xbf16>, vector<4x64x8xf32> -> vector<4x64x8xf32>
    "tpu.trace_stop"() : () -> ()
    %183 = vector.shape_cast %182 : vector<4x64x8xf32> to vector<256x8xf32>
    %184 = arith.truncf %183 : vector<256x8xf32> to vector<256x8xbf16>
    %c0_58 = arith.constant 0 : index
    %c24 = arith.constant 24 : index
    %185 = vector.load %arg9[%c0_58, %c24] : memref<256x32xbf16, #tpu.memory_space<vmem>>, vector<256x8xbf16>
    tpu.vector_store %arg9[%c0_58, %c24], %184 {strides = array<i32>} : memref<256x32xbf16, #tpu.memory_space<vmem>>, vector<256x8xbf16>,
    %c0_59 = arith.constant 0 : index
    %c0_60 = arith.constant 0 : index
    %186 = vector.load %arg9[%c0_59, %c0_60] : memref<256x32xbf16, #tpu.memory_space<vmem>>, vector<256x32xbf16>
    %c0_61 = arith.constant 0 : index
    %c0_62 = arith.constant 0 : index
    %187 = vector.load %arg4[%c0_61, %c0_62] : memref<32x32xbf16, #tpu.memory_space<vmem>>, vector<32x32xbf16>
    %cst_63 = arith.constant dense<0.000000e+00> : vector<256x32xf32>
    %188 = tpu.matmul %186, %187, %cst_63 {dimension_numbers = #tpu.dot_dimension_numbers<[1], [0], [0], [1], [0, 0, 1, 1], [], []>} : vector<256x32xbf16>, vector<32x32xbf16>, vector<256x32xf32> -> vector<256x32xf32>
    %c0_64 = arith.constant 0 : index
    %c0_65 = arith.constant 0 : index
    %189 = vector.load %arg5[%c0_64, %c0_65] : memref<1x32xf32, #tpu.memory_space<vmem>>, vector<1x32xf32>
    %190 = vector.broadcast %189 : vector<1x32xf32> to vector<256x32xf32>
    %191 = arith.addf %188, %190 : vector<256x32xf32>
    %c0_66 = arith.constant 0 : index
    %c0_67 = arith.constant 0 : index
    %192 = vector.load %arg8[%c0_66, %c0_67] : memref<256x32xf32, #tpu.memory_space<vmem>>, vector<256x32xf32>
    tpu.vector_store %arg8[%c0_66, %c0_67], %191 {strides = array<i32>} : memref<256x32xf32, #tpu.memory_space<vmem>>, vector<256x32xf32>,
    return
  }
  func.func @transform_0(%arg0: i32) -> (i32, i32) {
    %c0_i32 = arith.constant 0 : i32
    %c0_i32_0 = arith.constant 0 : i32
    return %arg0, %c0_i32 : i32, i32
  }
  func.func @transform_1(%arg0: i32) -> (i32, i32) {
    %c0_i32 = arith.constant 0 : i32
    %c0_i32_0 = arith.constant 0 : i32
    %c0_i32_1 = arith.constant 0 : i32
    return %c0_i32, %c0_i32_0 : i32, i32
  }
  func.func @transform_2(%arg0: i32) -> (i32, i32) {
    %c0_i32 = arith.constant 0 : i32
    %c0_i32_0 = arith.constant 0 : i32
    %c0_i32_1 = arith.constant 0 : i32
    return %c0_i32, %c0_i32_0 : i32, i32
  }
  func.func @transform_3(%arg0: i32) -> (i32, i32) {
    %c0_i32 = arith.constant 0 : i32
    %c0_i32_0 = arith.constant 0 : i32
    %c0_i32_1 = arith.constant 0 : i32
    return %c0_i32, %c0_i32_0 : i32, i32
  }
  func.func @transform_4(%arg0: i32) -> (i32, i32) {
    %c0_i32 = arith.constant 0 : i32
    %c0_i32_0 = arith.constant 0 : i32
    %c0_i32_1 = arith.constant 0 : i32
    return %c0_i32, %c0_i32_0 : i32, i32
  }
  func.func @transform_5(%arg0: i32) -> (i32, i32, i32, i32) {
    %c1_i32 = arith.constant 1 : i32
    %c0_i32 = arith.constant 0 : i32
    %0 = arith.cmpi eq, %c1_i32, %c0_i32 : i32
    %c1_i32_0 = arith.constant 1 : i32
    %1 = arith.select %0, %c1_i32_0, %c1_i32 : i32
    %2 = arith.remsi %arg0, %1 : i32
    %c0_i32_1 = arith.constant 0 : i32
    %3 = arith.cmpi ne, %2, %c0_i32_1 : i32
    %c0_i32_2 = arith.constant 0 : i32
    %4 = arith.cmpi slt, %2, %c0_i32_2 : i32
    %c0_i32_3 = arith.constant 0 : i32
    %5 = arith.cmpi slt, %1, %c0_i32_3 : i32
    %6 = arith.xori %4, %5 : i1
    %7 = arith.andi %6, %3 : i1
    %8 = arith.addi %2, %1 : i32
    %9 = arith.select %7, %8, %2 : i32
    %c0_i32_4 = arith.constant 0 : i32
    %c0_i32_5 = arith.constant 0 : i32
    %c0_i32_6 = arith.constant 0 : i32
    %c0_i32_7 = arith.constant 0 : i32
    return %c0_i32_4, %9, %c0_i32_5, %c0_i32_6 : i32, i32, i32, i32
  }
  func.func @transform_6(%arg0: i32) -> i32 {
    %c0_i32 = arith.constant 0 : i32
    %c0_i32_0 = arith.constant 0 : i32
    return %c0_i32 : i32
  }
  func.func @transform_7(%arg0: i32) -> (i32, i32) {
    %c0_i32 = arith.constant 0 : i32
    %c0_i32_0 = arith.constant 0 : i32
    return %arg0, %c0_i32 : i32, i32
  }
}

</mosaic_0001>

<llo_original>
// kernel: tpu_custom_call.1
$region0: #{tpu_custom_call.1}
  #allocation0 [shape = 'u32[]', space=smem, size = 0x4, offset = 0x4, fixed_abs, tag = 'smem constant byte address 0x4 - core index']
  #allocation1 [shape = 'u32[144,128]{1,0:T(1,128)}', space=vmem, size = 0x12000, scoped, tag = 'internal scratch']
  #allocation2 [shape = 'bf16[256,32]{1,0:T(8,128)(2,1)}', space=vmem, size = 0x10000, scoped, tag = 'scratch operand']
  %s0 = inlined_call_operand.vmem [shape: bf16[512,32], index: 0, kind: input, shape index: {}]
  %s1 = inlined_call_operand.vmem [shape: bf16[32,96], index: 1, kind: input, shape index: {}]
  %s2 = inlined_call_operand.vmem [shape: f32[1,96], index: 2, kind: input, shape index: {}]
  %s3 = inlined_call_operand.vmem [shape: bf16[32,32], index: 3, kind: input, shape index: {}]
  %s4 = inlined_call_operand.vmem [shape: f32[1,32], index: 4, kind: input, shape index: {}]
  %s5 = inlined_call_operand.hbm [shape: f32[4,4,64,64], index: 5, kind: input, shape index: {}]
  %s6 = inlined_call_operand.vmem [shape: f32[4], index: 6, kind: input, shape index: {}]
  %s7 = inlined_call_operand.vmem [shape: f32[512,32], index: 7, kind: output, shape index: {}]
  %s8 = sld [smem:[#allocation0]]
  $region69: #{tpu_custom_call.1} parent=0
    _
  %s10 = ssub.s32 1, %s8
  %s11 = scalar_select 0, %s10, %s8
  $region1: #{tpu_custom_call.1} parent=0
    #allocation3 [shape = 'u8[524288]{0}', space=vmem, size = 0x80000, scoped, tag = 'input window, operand 5, single buffered']
    #allocation4 [shape = 's32[2]{0}', space=sflag, size = 0x8, scoped, tag = 'scoped memory for tpu_custom_call.1']
    #allocation5 [shape = 's32[2]{0}', space=sflag, size = 0x8, scoped, tag = 'scoped memory for tpu_custom_call.1']
    #allocation6 [shape = 'u8[512]{0}', space=smem, size = 0x200, scoped, tag = 'input window, operand 6, single buffered']
    %12 = vsyncpa [#allocation4], 0
    %13 = vsyncpa [#allocation5], 0
    loop: start=0, step=1, limit=4
    $region2: #{tpu_custom_call.1} parent=1 // loop_pre_header
      _
    $region3: #{tpu_custom_call.1} parent=1 // loop_header
      %s15 = sphi 0, %s19
      %p16 = scmp.ge.s32.totalorder %s15, 4
      %s25 = sphi 0, %s27
      %s28 = sphi 0, %s25
      %s29 = sphi 0, %s28
      %s45 = sphi 0, %s29
      %s49 = sphi 0, %s49
      %s51 = sphi 0, %s49
      %s52 = sphi 0, %s51
      %s66 = sphi 0, %s52
      %s70 = sphi 0, %s70
      %s72 = sphi 0, %s70
      %s73 = sphi 0, %s72
      %s87 = sphi 0, %s73
      %s91 = sphi 0, %s91
      %s93 = sphi 0, %s91
      %s94 = sphi 0, %s93
      %s108 = sphi 0, %s94
      %s112 = sphi 0, %s112
      %s114 = sphi 0, %s112
      %s115 = sphi 0, %s114
      %s129 = sphi 0, %s115
      %s133 = sphi 0, %s133
      %s135 = sphi 0, %s133
      %s136 = sphi 0, %s135
      %s150 = sphi 0, %s136
      %s154 = sphi 0, %s154
      %s156 = sphi 0, %s154
      %s157 = sphi 0, %s156
      %s171 = sphi 0, %s157
      %s177 = sphi 0, %s179
      %s180 = sphi 0, %s177
      %s181 = sphi 0, %s180
      %s197 = sphi 0, %s181
    $region4: #{tpu_custom_call.1} parent=1 // loop_header_branch
      %18 = sbr.rel (%p16) target = $region8
    $region5: #{tpu_custom_call.1} parent=1 // loop_body
      %s20 = ssub.s32 %s15, 1
      %s21 = ssub.s32 %s15, 2
      %s22 = sadd.s32 %s15, 1
      %s23 = ssub.s32 %s15, %s22
      %p24 = scmp.eq.s32.totalorder %s23, 0
      %s26 = sadd.s32 %s25, 1
      %s27 = scalar_select %p24, %s25, %s26
      %p30 = pneg %p24
      %p31 = scmp.eq.s32.totalorder %s15, 1
      %p32 = por %p30, %p31
      %p33 = scmp.ne.s32.totalorder %s25, %s28
      %p34 = scmp.eq.s32.totalorder %s15, 0
      %p35 = por %p33, %p34
      %p36 = scmp.ne.s32.totalorder %s25, %s28
      %p37 = scmp.eq.s32.totalorder %s20, 1
      %p38 = por %p36, %p37
      %p39 = scmp.ne.s32.totalorder %s28, %s29
      %p40 = scmp.eq.s32.totalorder %s20, 0
      %p41 = por %p39, %p40
      %p42 = scmp.ne.s32.totalorder %s28, %s29
      %p43 = scmp.eq.s32.totalorder %s21, 1
      %p44 = por %p42, %p43
      %p46 = scmp.ne.s32.totalorder %s29, %s45
      %p47 = scmp.eq.s32.totalorder %s21, 0
      %p48 = por %p46, %p47
      %s50 = sadd.s32 %s49, 1
      %p53 = scmp.eq.s32.totalorder %s15, 1
      %p54 = scmp.ne.s32.totalorder %s49, %s51
      %p55 = scmp.eq.s32.totalorder %s15, 0
      %p56 = por %p54, %p55
      %p57 = scmp.ne.s32.totalorder %s49, %s51
      %p58 = scmp.eq.s32.totalorder %s20, 1
      %p59 = por %p57, %p58
      %p60 = scmp.ne.s32.totalorder %s51, %s52
      %p61 = scmp.eq.s32.totalorder %s20, 0
      %p62 = por %p60, %p61
      %p63 = scmp.ne.s32.totalorder %s51, %s52
      %p64 = scmp.eq.s32.totalorder %s21, 1
      %p65 = por %p63, %p64
      %p67 = scmp.ne.s32.totalorder %s52, %s66
      %p68 = scmp.eq.s32.totalorder %s21, 0
      %p69 = por %p67, %p68
      %s71 = sadd.s32 %s70, 1
      %p74 = scmp.eq.s32.totalorder %s15, 1
      %p75 = scmp.ne.s32.totalorder %s70, %s72
      %p76 = scmp.eq.s32.totalorder %s15, 0
      %p77 = por %p75, %p76
      %p78 = scmp.ne.s32.totalorder %s70, %s72
      %p79 = scmp.eq.s32.totalorder %s20, 1
      %p80 = por %p78, %p79
      %p81 = scmp.ne.s32.totalorder %s72, %s73
      %p82 = scmp.eq.s32.totalorder %s20, 0
      %p83 = por %p81, %p82
      %p84 = scmp.ne.s32.totalorder %s72, %s73
      %p85 = scmp.eq.s32.totalorder %s21, 1
      %p86 = por %p84, %p85
      %p88 = scmp.ne.s32.totalorder %s73, %s87
      %p89 = scmp.eq.s32.totalorder %s21, 0
      %p90 = por %p88, %p89
      %s92 = sadd.s32 %s91, 1
      %p95 = scmp.eq.s32.totalorder %s15, 1
      %p96 = scmp.ne.s32.totalorder %s91, %s93
      %p97 = scmp.eq.s32.totalorder %s15, 0
      %p98 = por %p96, %p97
      %p99 = scmp.ne.s32.totalorder %s91, %s93
      %p100 = scmp.eq.s32.totalorder %s20, 1
      %p101 = por %p99, %p100
      %p102 = scmp.ne.s32.totalorder %s93, %s94
      %p103 = scmp.eq.s32.totalorder %s20, 0
      %p104 = por %p102, %p103
      %p105 = scmp.ne.s32.totalorder %s93, %s94
      %p106 = scmp.eq.s32.totalorder %s21, 1
      %p107 = por %p105, %p106
      %p109 = scmp.ne.s32.totalorder %s94, %s108
      %p110 = scmp.eq.s32.totalorder %s21, 0
      %p111 = por %p109, %p110
      %s113 = sadd.s32 %s112, 1
      %p116 = scmp.eq.s32.totalorder %s15, 1
      %p117 = scmp.ne.s32.totalorder %s112, %s114
      %p118 = scmp.eq.s32.totalorder %s15, 0
      %p119 = por %p117, %p118
      %p120 = scmp.ne.s32.totalorder %s112, %s114
      %p121 = scmp.eq.s32.totalorder %s20, 1
      %p122 = por %p120, %p121
      %p123 = scmp.ne.s32.totalorder %s114, %s115
      %p124 = scmp.eq.s32.totalorder %s20, 0
      %p125 = por %p123, %p124
      %p126 = scmp.ne.s32.totalorder %s114, %s115
      %p127 = scmp.eq.s32.totalorder %s21, 1
      %p128 = por %p126, %p127
      %p130 = scmp.ne.s32.totalorder %s115, %s129
      %p131 = scmp.eq.s32.totalorder %s21, 0
      %p132 = por %p130, %p131
      %s134 = sadd.s32 %s133, 1
      %p137 = scmp.eq.s32.totalorder %s15, 1
      %p138 = scmp.ne.s32.totalorder %s133, %s135
      %p139 = scmp.eq.s32.totalorder %s15, 0
      %p140 = por %p138, %p139
      %p141 = scmp.ne.s32.totalorder %s133, %s135
      %p142 = scmp.eq.s32.totalorder %s20, 1
      %p143 = por %p141, %p142
      %p144 = scmp.ne.s32.totalorder %s135, %s136
      %p145 = scmp.eq.s32.totalorder %s20, 0
      %p146 = por %p144, %p145
      %p147 = scmp.ne.s32.totalorder %s135, %s136
      %p148 = scmp.eq.s32.totalorder %s21, 1
      %p149 = por %p147, %p148
      %p151 = scmp.ne.s32.totalorder %s136, %s150
      %p152 = scmp.eq.s32.totalorder %s21, 0
      %p153 = por %p151, %p152
      %s155 = sadd.s32 %s154, 1
      %p158 = scmp.eq.s32.totalorder %s15, 1
      %p159 = scmp.ne.s32.totalorder %s154, %s156
      %p160 = scmp.eq.s32.totalorder %s15, 0
      %p161 = por %p159, %p160
      %p162 = scmp.ne.s32.totalorder %s154, %s156
      %p163 = scmp.eq.s32.totalorder %s20, 1
      %p164 = por %p162, %p163
      %p165 = scmp.ne.s32.totalorder %s156, %s157
      %p166 = scmp.eq.s32.totalorder %s20, 0
      %p167 = por %p165, %p166
      %p168 = scmp.ne.s32.totalorder %s156, %s157
      %p169 = scmp.eq.s32.totalorder %s21, 1
      %p170 = por %p168, %p169
      %p172 = scmp.ne.s32.totalorder %s157, %s171
      %p173 = scmp.eq.s32.totalorder %s21, 0
      %p174 = por %p172, %p173
      %s175 = ssub.s32 %s15, %s22
      %p176 = scmp.eq.s32.totalorder %s175, 0
      %s178 = sadd.s32 %s177, 1
      %s179 = scalar_select %p176, %s177, %s178
      %p182 = pneg %p176
      %p183 = scmp.eq.s32.totalorder %s15, 1
      %p184 = por %p182, %p183
      %p185 = scmp.ne.s32.totalorder %s177, %s180
      %p186 = scmp.eq.s32.totalorder %s15, 0
      %p187 = por %p185, %p186
      %p188 = scmp.ne.s32.totalorder %s177, %s180
      %p189 = scmp.eq.s32.totalorder %s20, 1
      %p190 = por %p188, %p189
      %p191 = scmp.ne.s32.totalorder %s180, %s181
      %p192 = scmp.eq.s32.totalorder %s20, 0
      %p193 = por %p191, %p192
      %p194 = scmp.ne.s32.totalorder %s180, %s181
      %p195 = scmp.eq.s32.totalorder %s21, 1
      %p196 = por %p194, %p195
      %p198 = scmp.ne.s32.totalorder %s181, %s197
      %p199 = scmp.eq.s32.totalorder %s21, 0
      %p200 = por %p198, %p199
      %p201 = scmp.le.s32.totalorder 1, %s15
      %p202 = scmp.lt.s32.totalorder %s15, 3
      %p203 = pnand %p201, %p202
      %p204 = pneg %p203
      // Predicated region
      $region9: #{tpu_custom_call.1} parent=5 // pred_check
        _
      $region10: #{tpu_custom_call.1} parent=5 // pred_check_branch
        %206 = sbr.rel (%p203) target = $region12
      $region11: #{tpu_custom_call.1} parent=5 // pred_region
        %s207 = ssub.s32 %s15, 1
        // Predicated region
        $region13: #{tpu_custom_call.1} parent=11 // pred_check
          %p208 = pneg %p62
        $region14: #{tpu_custom_call.1} parent=11 // pred_check_branch
          %210 = sbr.rel (%p208) target = $region16
        $region15: #{tpu_custom_call.1} parent=11 // pred_region
          _
        $region16: #{tpu_custom_call.1} parent=11 // pred_fallthru
          _
        // Predicated region
        $region17: #{tpu_custom_call.1} parent=11 // pred_check
          %p211 = pneg %p83
        $region18: #{tpu_custom_call.1} parent=11 // pred_check_branch
          %213 = sbr.rel (%p211) target = $region20
        $region19: #{tpu_custom_call.1} parent=11 // pred_region
          _
        $region20: #{tpu_custom_call.1} parent=11 // pred_fallthru
          _
        // Predicated region
        $region21: #{tpu_custom_call.1} parent=11 // pred_check
          %p214 = pneg %p104
        $region22: #{tpu_custom_call.1} parent=11 // pred_check_branch
          %216 = sbr.rel (%p214) target = $region24
        $region23: #{tpu_custom_call.1} parent=11 // pred_region
          _
        $region24: #{tpu_custom_call.1} parent=11 // pred_fallthru
          _
        // Predicated region
        $region25: #{tpu_custom_call.1} parent=11 // pred_check
          %p217 = pneg %p125
        $region26: #{tpu_custom_call.1} parent=11 // pred_check_branch
          %219 = sbr.rel (%p217) target = $region28
        $region27: #{tpu_custom_call.1} parent=11 // pred_region
          _
        $region28: #{tpu_custom_call.1} parent=11 // pred_fallthru
          _
        // Predicated region
        $region29: #{tpu_custom_call.1} parent=11 // pred_check
          %p220 = pneg %p146
        $region30: #{tpu_custom_call.1} parent=11 // pred_check_branch
          %222 = sbr.rel (%p220) target = $region32
        $region31: #{tpu_custom_call.1} parent=11 // pred_region
          %s224 = ssub.s32 16384, 16384
          %225 = vsyncadd [#allocation4], %s224
          %s226 = sshll.u32 [#allocation3], 4
          %s227 = int_to_ptr.vmem [resolvable:$true] %s226
          %232 = dma.hbm_to_vmem [thread:$0]  %s5, 16384, %s227, [#allocation4], 128, 128, 8
        $region32: #{tpu_custom_call.1} parent=11 // pred_fallthru
          _
        // Predicated region
        $region33: #{tpu_custom_call.1} parent=11 // pred_check
          %p233 = pneg %p167
        $region34: #{tpu_custom_call.1} parent=11 // pred_check_branch
          %235 = sbr.rel (%p233) target = $region36
        $region35: #{tpu_custom_call.1} parent=11 // pred_region
          %s237 = ssub.s32 16, 16
          %238 = vsyncadd [#allocation5], %s237
          %s240 = sshll.u32 %s6, 4
          %s241 = int_to_ptr.vmem [resolvable:$true] %s240
          %243 = dma.vmem_to_smem %s241, 16, [#allocation6], [#allocation5]
        $region36: #{tpu_custom_call.1} parent=11 // pred_fallthru
          _
      $region12: #{tpu_custom_call.1} parent=5 // pred_fallthru
        _
      %p244 = scmp.lt.s32.totalorder %s15, 2
      // Predicated region
      $region37: #{tpu_custom_call.1} parent=5 // pred_check
        %p245 = pneg %p244
      $region38: #{tpu_custom_call.1} parent=5 // pred_check_branch
        %247 = sbr.rel (%p245) target = $region40
      $region39: #{tpu_custom_call.1} parent=5 // pred_region
        // Predicated region
        $region41: #{tpu_custom_call.1} parent=39 // pred_check
          %p248 = pneg %p35
        $region42: #{tpu_custom_call.1} parent=39 // pred_check_branch
          %250 = sbr.rel (%p248) target = $region44
        $region43: #{tpu_custom_call.1} parent=39 // pred_region
          %s251 = smul.u32 32, %s15
          %p252 = scmp.lt.s32.totalorder %s251, 63
          %s253 = scalar_select %p252, %s251, 63
          %s254 = smul.addr %s253, 4
          %s255 = scalar_lea.vmem %s0, %s254
          %s256 = smul.u32 32, %s15
        $region44: #{tpu_custom_call.1} parent=39 // pred_fallthru
          _
      $region40: #{tpu_custom_call.1} parent=5 // pred_fallthru
        _
      %p257 = scmp.le.s32.totalorder 1, %s15
      %p258 = scmp.lt.s32.totalorder %s15, 3
      %p259 = pnand %p257, %p258
      %p260 = pneg %p259
      // Predicated region
      $region45: #{tpu_custom_call.1} parent=5 // pred_check
        _
      $region46: #{tpu_custom_call.1} parent=5 // pred_check_branch
        %262 = sbr.rel (%p259) target = $region48
      $region47: #{tpu_custom_call.1} parent=5 // pred_region
        %s263 = ssub.s32 %s15, 1
        // Predicated region
        $region49: #{tpu_custom_call.1} parent=47 // pred_check
          %p264 = pneg %p146
        $region50: #{tpu_custom_call.1} parent=47 // pred_check_branch
          %266 = sbr.rel (%p264) target = $region52
        $region51: #{tpu_custom_call.1} parent=47 // pred_region
          %267 = dma.done [#allocation4], 16384
        $region52: #{tpu_custom_call.1} parent=47 // pred_fallthru
          _
        // Predicated region
        $region53: #{tpu_custom_call.1} parent=47 // pred_check
          %p268 = pneg %p167
        $region54: #{tpu_custom_call.1} parent=47 // pred_check_branch
          %270 = sbr.rel (%p268) target = $region56
        $region55: #{tpu_custom_call.1} parent=47 // pred_region
          %271 = dma.done [#allocation5], 16
        $region56: #{tpu_custom_call.1} parent=47 // pred_fallthru
          _
        %272 = sfence
        %s273 = smul.u32 32, %s20
        %p274 = scmp.lt.s32.totalorder %s273, 63
        %s275 = scalar_select %p274, %s273, 63
        %s276 = smul.addr %s275, 4
        %s277 = scalar_lea.vmem %s0, %s276
        %p278 = pneg %p41
        %p279 = pneg %p38
        %p280 = pneg %p62
        %p281 = pneg %p59
        %p282 = pneg %p83
        %p283 = pneg %p80
        %p284 = pneg %p104
        %p285 = pneg %p101
        %p286 = pneg %p125
        %p287 = pneg %p122
        %p288 = pneg %p146
        %p289 = pneg %p143
        %p290 = pneg %p167
        %p291 = pneg %p164
        %p292 = pneg %p193
        %p293 = pneg %p190
        %s294 = smul.u32 32, %s20
        %p295 = scmp.lt.s32.totalorder %s294, 63
        %s296 = scalar_select %p295, %s294, 63
        %s297 = smul.addr %s296, 8
        %s298 = scalar_lea.vmem %s7, %s297
        %s299 = smul.u32 32, %s20
        %p300 = scmp.lt.s32.totalorder %s299, 63
        %s301 = scalar_select %p300, %s299, 63
        %s302 = smul.addr %s301, 4
        %s303 = scalar_lea.vmem %s0, %s302
        %s304 = smul.u32 32, %s20
        %s305 = smul.u32 32, %s20
        %p306 = scmp.lt.s32.totalorder %s305, 63
        %s307 = scalar_select %p306, %s305, 63
        %s308 = smul.addr %s307, 8
        %s309 = scalar_lea.vmem %s7, %s308
        %s310 = smul.u32 32, %s20
        %v312 = vld [vmem:[%s303] sm:$0xf]
        %v313 = vld [vmem:[%s303 + $0x4] sm:$0xf]
        %v314 = vld [vmem:[%s303 + $0x8] sm:$0xf]
        %v315 = vld [vmem:[%s303 + $0xc] sm:$0xf]
        %v316 = vld [vmem:[%s303 + $0x10] sm:$0xf]
        %v317 = vld [vmem:[%s303 + $0x14] sm:$0xf]
        %v318 = vld [vmem:[%s303 + $0x18] sm:$0xf]
        %v319 = vld [vmem:[%s303 + $0x1c] sm:$0xf]
        %v320 = vld [vmem:[%s303 + $0x20] sm:$0xf]
        %v321 = vld [vmem:[%s303 + $0x24] sm:$0xf]
        %v322 = vld [vmem:[%s303 + $0x28] sm:$0xf]
        %v323 = vld [vmem:[%s303 + $0x2c] sm:$0xf]
        %v324 = vld [vmem:[%s303 + $0x30] sm:$0xf]
        %v325 = vld [vmem:[%s303 + $0x34] sm:$0xf]
        %v326 = vld [vmem:[%s303 + $0x38] sm:$0xf]
        %v327 = vld [vmem:[%s303 + $0x3c] sm:$0xf]
        %v328 = vld [vmem:[%s303 + $0x40] sm:$0xf]
        %v329 = vld [vmem:[%s303 + $0x44] sm:$0xf]
        %v330 = vld [vmem:[%s303 + $0x48] sm:$0xf]
        %v331 = vld [vmem:[%s303 + $0x4c] sm:$0xf]
        %v332 = vld [vmem:[%s303 + $0x50] sm:$0xf]
        %v333 = vld [vmem:[%s303 + $0x54] sm:$0xf]
        %v334 = vld [vmem:[%s303 + $0x58] sm:$0xf]
        %v335 = vld [vmem:[%s303 + $0x5c] sm:$0xf]
        %v336 = vld [vmem:[%s303 + $0x60] sm:$0xf]
        %v337 = vld [vmem:[%s303 + $0x64] sm:$0xf]
        %v338 = vld [vmem:[%s303 + $0x68] sm:$0xf]
        %v339 = vld [vmem:[%s303 + $0x6c] sm:$0xf]
        %v340 = vld [vmem:[%s303 + $0x70] sm:$0xf]
        %v341 = vld [vmem:[%s303 + $0x74] sm:$0xf]
        %v342 = vld [vmem:[%s303 + $0x78] sm:$0xf]
        %v343 = vld [vmem:[%s303 + $0x7c] sm:$0xf]
        %v344 = vld [vmem:[%s1] sm:$0xf]
        %v345 = vld [vmem:[%s1 + $0x4] sm:$0xf]
        %v346 = vld [vmem:[%s1 + $0x8] sm:$0xf]
        %v347 = vld [vmem:[%s1 + $0xc] sm:$0xf]
        %v348 = vld [vmem:[%s2] sm:$0x1]
        %v350 = vlaneseq
        %v351 = vshrl.u32 %v350, 7
        %v352 = vsub.s32 0, %v351
        %v353 = vrot.slane %v348, %v352
        %v387 = vunpack.c.l.b16 %v312
        %v388 = vunpack.c.l.b16 %v313
        %v389 = vunpack.c.l.b16 %v314
        %v390 = vunpack.c.l.b16 %v315
        %v391 = vunpack.c.l.b16 %v316
        %v392 = vunpack.c.l.b16 %v317
        %v393 = vunpack.c.l.b16 %v318
        %v394 = vunpack.c.l.b16 %v319
        %v395 = vunpack.c.l.b16 %v320
        %v396 = vunpack.c.l.b16 %v321
        %v397 = vunpack.c.l.b16 %v322
        %v398 = vunpack.c.l.b16 %v323
        %v399 = vunpack.c.l.b16 %v324
        %v400 = vunpack.c.l.b16 %v325
        %v401 = vunpack.c.l.b16 %v326
        %v402 = vunpack.c.l.b16 %v327
        %v403 = vunpack.c.l.b16 %v328
        %v404 = vunpack.c.l.b16 %v329
        %v405 = vunpack.c.l.b16 %v330
        %v406 = vunpack.c.l.b16 %v331
        %v407 = vunpack.c.l.b16 %v332
        %v408 = vunpack.c.l.b16 %v333
        %v409 = vunpack.c.l.b16 %v334
        %v410 = vunpack.c.l.b16 %v335
        %v411 = vunpack.c.l.b16 %v336
        %v412 = vunpack.c.l.b16 %v337
        %v413 = vunpack.c.l.b16 %v338
        %v414 = vunpack.c.l.b16 %v339
        %v415 = vunpack.c.l.b16 %v340
        %v416 = vunpack.c.l.b16 %v341
        %v417 = vunpack.c.l.b16 %v342
        %v418 = vunpack.c.l.b16 %v343
        %v419 = vpack.c.b16 %v388, %v387
        %v420 = vpack.c.b16 %v390, %v389
        %v421 = vpack.c.b16 %v392, %v391
        %v422 = vpack.c.b16 %v394, %v393
        %v423 = vpack.c.b16 %v396, %v395
        %v424 = vpack.c.b16 %v398, %v397
        %v425 = vpack.c.b16 %v400, %v399
        %v426 = vpack.c.b16 %v402, %v401
        %v427 = vpack.c.b16 %v404, %v403
        %v428 = vpack.c.b16 %v406, %v405
        %v429 = vpack.c.b16 %v408, %v407
        %v430 = vpack.c.b16 %v410, %v409
        %v431 = vpack.c.b16 %v412, %v411
        %v432 = vpack.c.b16 %v414, %v413
        %v433 = vpack.c.b16 %v416, %v415
        %v434 = vpack.c.b16 %v418, %v417
        %v439 = vunpack.c.l.b16 %v344
        %v440 = vunpack.c.l.b16 %v345
        %v441 = vunpack.c.l.b16 %v346
        %v442 = vunpack.c.l.b16 %v347
        %v443 = vpack.c.b16 %v440, %v439
        %v444 = vpack.c.b16 %v442, %v441
        %vm447 = vcmask 261120
        %v449 = vsel %vm447, %v419, 0
        %v452 = vsel %vm447, %v420, 0
        %v455 = vsel %vm447, %v421, 0
        %v458 = vsel %vm447, %v422, 0
        %v461 = vsel %vm447, %v423, 0
        %v464 = vsel %vm447, %v424, 0
        %v467 = vsel %vm447, %v425, 0
        %v470 = vsel %vm447, %v426, 0
        %v473 = vsel %vm447, %v427, 0
        %v476 = vsel %vm447, %v428, 0
        %v479 = vsel %vm447, %v429, 0
        %v482 = vsel %vm447, %v430, 0
        %v485 = vsel %vm447, %v431, 0
        %v488 = vsel %vm447, %v432, 0
        %v491 = vsel %vm447, %v433, 0
        %v494 = vsel %vm447, %v434, 0
        %496 = vmatprep.subr.bf16.mxu0 0
        %497 = vmatpush1.bf16.msra.mxu0 0
        %498 = vmatprep.subr.bf16.mxu0 0
        %499 = vmatpush1.bf16.msra.mxu0 0
        %500 = vmatprep.subr.bf16.mxu0 0
        %501 = vmatpush1.bf16.msra.mxu0 0
        %502 = vmatprep.subr.bf16.mxu0 0
        %503 = vmatpush1.bf16.msra.mxu0 0
        %504 = vmatprep.subr.bf16.mxu0 0
        %505 = vmatpush1.bf16.msra.mxu0 0
        %506 = vmatprep.subr.bf16.mxu0 0
        %507 = vmatpush1.bf16.msra.mxu0 0
        %508 = vmatprep.subr.bf16.mxu0 0
        %509 = vmatpush1.bf16.msra.mxu0 %v444
        %510 = vmatprep.subr.bf16.mxu0 0
        %511 = vmatpush1.bf16.msra.mxu0 %v443
        %512 = vmatprep.subr.bf16.mxu0 0
        %513 = vmatpush2.bf16.msra.mxu0 0
        %514 = vmatprep.subr.bf16.mxu0 0
        %515 = vmatpush2.bf16.msra.mxu0 0
        %516 = vmatprep.subr.bf16.mxu0 0
        %517 = vmatpush2.bf16.msra.mxu0 0
        %518 = vmatprep.subr.bf16.mxu0 0
        %519 = vmatpush2.bf16.msra.mxu0 0
        %520 = vmatprep.subr.bf16.mxu0 0
        %521 = vmatpush2.bf16.msra.mxu0 0
        %522 = vmatprep.subr.bf16.mxu0 0
        %523 = vmatpush2.bf16.msra.mxu0 0
        %524 = vmatprep.subr.bf16.mxu0 0
        %525 = vmatpush2.bf16.msra.mxu0 0
        %526 = vmatprep.subr.bf16.mxu0 0
        %527 = vmatpush2.bf16.msra.mxu0 0
        %528 = vmatprep.mubr.bf16.mxu0 0
        %529 = vmatmul.mubr.bf16.gmra.mxu0 %v449
        %v530 = vpop.f32.mrf.mxu0
        %v531 = vadd.f32 %v353, %v530
        %v532 = vpop.f32.mrf.mxu0
        %v533 = vpop.f32.mrf.mxu0
        %v534 = vadd.f32 %v353, %v533
        %v535 = vpop.f32.mrf.mxu0
        %536 = vmatprep.mubr.bf16.mxu0 0
        %537 = vmatmul.mubr.bf16.gmra.mxu0 %v452
        %v538 = vpop.f32.mrf.mxu0
        %v539 = vadd.f32 %v353, %v538
        %v540 = vpop.f32.mrf.mxu0
        %v541 = vpop.f32.mrf.mxu0
        %v542 = vadd.f32 %v353, %v541
        %v543 = vpop.f32.mrf.mxu0
        %544 = vmatprep.mubr.bf16.mxu0 0
        %545 = vmatmul.mubr.bf16.gmra.mxu0 %v455
        %v546 = vpop.f32.mrf.mxu0
        %v547 = vadd.f32 %v353, %v546
        %v548 = vpop.f32.mrf.mxu0
        %v549 = vpop.f32.mrf.mxu0
        %v550 = vadd.f32 %v353, %v549
        %v551 = vpop.f32.mrf.mxu0
        %552 = vmatprep.mubr.bf16.mxu0 0
        %553 = vmatmul.mubr.bf16.gmra.mxu0 %v458
        %v554 = vpop.f32.mrf.mxu0
        %v555 = vadd.f32 %v353, %v554
        %v556 = vpop.f32.mrf.mxu0
        %v557 = vpop.f32.mrf.mxu0
        %v558 = vadd.f32 %v353, %v557
        %v559 = vpop.f32.mrf.mxu0
        %560 = vmatprep.mubr.bf16.mxu0 0
        %561 = vmatmul.mubr.bf16.gmra.mxu0 %v461
        %v562 = vpop.f32.mrf.mxu0
        %v563 = vadd.f32 %v353, %v562
        %v564 = vpop.f32.mrf.mxu0
        %v565 = vpop.f32.mrf.mxu0
        %v566 = vadd.f32 %v353, %v565
        %v567 = vpop.f32.mrf.mxu0
        %568 = vmatprep.mubr.bf16.mxu0 0
        %569 = vmatmul.mubr.bf16.gmra.mxu0 %v464
        %v570 = vpop.f32.mrf.mxu0
        %v571 = vadd.f32 %v353, %v570
        %v572 = vpop.f32.mrf.mxu0
        %v573 = vpop.f32.mrf.mxu0
        %v574 = vadd.f32 %v353, %v573
        %v575 = vpop.f32.mrf.mxu0
        %576 = vmatprep.mubr.bf16.mxu0 0
        %577 = vmatmul.mubr.bf16.gmra.mxu0 %v467
        %v578 = vpop.f32.mrf.mxu0
        %v579 = vadd.f32 %v353, %v578
        %v580 = vpop.f32.mrf.mxu0
        %v581 = vpop.f32.mrf.mxu0
        %v582 = vadd.f32 %v353, %v581
        %v583 = vpop.f32.mrf.mxu0
        %584 = vmatprep.mubr.bf16.mxu0 0
        %585 = vmatmul.mubr.bf16.gmra.mxu0 %v470
        %v586 = vpop.f32.mrf.mxu0
        %v587 = vadd.f32 %v353, %v586
        %v588 = vpop.f32.mrf.mxu0
        %v589 = vpop.f32.mrf.mxu0
        %v590 = vadd.f32 %v353, %v589
        %v591 = vpop.f32.mrf.mxu0
        %592 = vmatprep.mubr.bf16.mxu0 0
        %593 = vmatmul.mubr.bf16.gmra.mxu0 %v473
        %v594 = vpop.f32.mrf.mxu0
        %v595 = vadd.f32 %v353, %v594
        %v596 = vpop.f32.mrf.mxu0
        %v597 = vpop.f32.mrf.mxu0
        %v598 = vadd.f32 %v353, %v597
        %v599 = vpop.f32.mrf.mxu0
        %600 = vmatprep.mubr.bf16.mxu0 0
        %601 = vmatmul.mubr.bf16.gmra.mxu0 %v476
        %v602 = vpop.f32.mrf.mxu0
        %v603 = vadd.f32 %v353, %v602
        %v604 = vpop.f32.mrf.mxu0
        %v605 = vpop.f32.mrf.mxu0
        %v606 = vadd.f32 %v353, %v605
        %v607 = vpop.f32.mrf.mxu0
        %608 = vmatprep.mubr.bf16.mxu0 0
        %609 = vmatmul.mubr.bf16.gmra.mxu0 %v479
        %v610 = vpop.f32.mrf.mxu0
        %v611 = vadd.f32 %v353, %v610
        %v612 = vpop.f32.mrf.mxu0
        %v613 = vpop.f32.mrf.mxu0
        %v614 = vadd.f32 %v353, %v613
        %v615 = vpop.f32.mrf.mxu0
        %616 = vmatprep.mubr.bf16.mxu0 0
        %617 = vmatmul.mubr.bf16.gmra.mxu0 %v482
        %v618 = vpop.f32.mrf.mxu0
        %v619 = vadd.f32 %v353, %v618
        %v620 = vpop.f32.mrf.mxu0
        %v621 = vpop.f32.mrf.mxu0
        %v622 = vadd.f32 %v353, %v621
        %v623 = vpop.f32.mrf.mxu0
        %624 = vmatprep.mubr.bf16.mxu0 0
        %625 = vmatmul.mubr.bf16.gmra.mxu0 %v485
        %v626 = vpop.f32.mrf.mxu0
        %v627 = vadd.f32 %v353, %v626
        %v628 = vpop.f32.mrf.mxu0
        %v629 = vpop.f32.mrf.mxu0
        %v630 = vadd.f32 %v353, %v629
        %v631 = vpop.f32.mrf.mxu0
        %632 = vmatprep.mubr.bf16.mxu0 0
        %633 = vmatmul.mubr.bf16.gmra.mxu0 %v488
        %v634 = vpop.f32.mrf.mxu0
        %v635 = vadd.f32 %v353, %v634
        %v636 = vpop.f32.mrf.mxu0
        %v637 = vpop.f32.mrf.mxu0
        %v638 = vadd.f32 %v353, %v637
        %v639 = vpop.f32.mrf.mxu0
        %640 = vmatprep.mubr.bf16.mxu0 0
        %641 = vmatmul.mubr.bf16.gmra.mxu0 %v491
        %v642 = vpop.f32.mrf.mxu0
        %v643 = vadd.f32 %v353, %v642
        %v644 = vpop.f32.mrf.mxu0
        %v645 = vpop.f32.mrf.mxu0
        %v646 = vadd.f32 %v353, %v645
        %v647 = vpop.f32.mrf.mxu0
        %648 = vmatprep.mubr.bf16.mxu0 0
        %649 = vmatmul.mubr.bf16.gmra.mxu0 %v494
        %v650 = vpop.f32.mrf.mxu0
        %v651 = vadd.f32 %v353, %v650
        %v652 = vpop.f32.mrf.mxu0
        %v653 = vpop.f32.mrf.mxu0
        %v654 = vadd.f32 %v353, %v653
        %v655 = vpop.f32.mrf.mxu0
        %656 = vdwg.mxu0
        %v657 = vmul.f32 %v531, %v531
        %v658 = vmul.f32 %v534, %v534
        %v659 = vmul.f32 %v539, %v539
        %v660 = vmul.f32 %v542, %v542
        %v661 = vmul.f32 %v547, %v547
        %v662 = vmul.f32 %v550, %v550
        %v663 = vmul.f32 %v555, %v555
        %v664 = vmul.f32 %v558, %v558
        %v665 = vmul.f32 %v563, %v563
        %v666 = vmul.f32 %v566, %v566
        %v667 = vmul.f32 %v571, %v571
        %v668 = vmul.f32 %v574, %v574
        %v669 = vmul.f32 %v579, %v579
        %v670 = vmul.f32 %v582, %v582
        %v671 = vmul.f32 %v587, %v587
        %v672 = vmul.f32 %v590, %v590
        %v673 = vmul.f32 %v595, %v595
        %v674 = vmul.f32 %v598, %v598
        %v675 = vmul.f32 %v603, %v603
        %v676 = vmul.f32 %v606, %v606
        %v677 = vmul.f32 %v611, %v611
        %v678 = vmul.f32 %v614, %v614
        %v679 = vmul.f32 %v619, %v619
        %v680 = vmul.f32 %v622, %v622
        %v681 = vmul.f32 %v627, %v627
        %v682 = vmul.f32 %v630, %v630
        %v683 = vmul.f32 %v635, %v635
        %v684 = vmul.f32 %v638, %v638
        %v685 = vmul.f32 %v643, %v643
        %v686 = vmul.f32 %v646, %v646
        %v687 = vmul.f32 %v651, %v651
        %v688 = vmul.f32 %v654, %v654
        %vm689 = vcmask 64512
        %v690 = vsel %vm689, %v657, 0.0
        %691 = vadd.xlane.f32.xlu0 %v690
        %v692 = vpop.xlane.xlu0 %691
        %v693 = vsel %vm689, %v658, 0.0
        %694 = vadd.xlane.f32.xlu0 %v693
        %v695 = vpop.xlane.xlu0 %694
        %v696 = vsel %vm689, %v659, 0.0
        %697 = vadd.xlane.f32.xlu0 %v696
        %v698 = vpop.xlane.xlu0 %697
        %v699 = vsel %vm689, %v660, 0.0
        %700 = vadd.xlane.f32.xlu0 %v699
        %v701 = vpop.xlane.xlu0 %700
        %v702 = vsel %vm689, %v661, 0.0
        %703 = vadd.xlane.f32.xlu0 %v702
        %v704 = vpop.xlane.xlu0 %703
        %v705 = vsel %vm689, %v662, 0.0
        %706 = vadd.xlane.f32.xlu0 %v705
        %v707 = vpop.xlane.xlu0 %706
        %v708 = vsel %vm689, %v663, 0.0
        %709 = vadd.xlane.f32.xlu0 %v708
        %v710 = vpop.xlane.xlu0 %709
        %v711 = vsel %vm689, %v664, 0.0
        %712 = vadd.xlane.f32.xlu0 %v711
        %v713 = vpop.xlane.xlu0 %712
        %v714 = vsel %vm689, %v665, 0.0
        %715 = vadd.xlane.f32.xlu0 %v714
        %v716 = vpop.xlane.xlu0 %715
        %v717 = vsel %vm689, %v666, 0.0
        %718 = vadd.xlane.f32.xlu0 %v717
        %v719 = vpop.xlane.xlu0 %718
        %v720 = vsel %vm689, %v667, 0.0
        %721 = vadd.xlane.f32.xlu0 %v720
        %v722 = vpop.xlane.xlu0 %721
        %v723 = vsel %vm689, %v668, 0.0
        %724 = vadd.xlane.f32.xlu0 %v723
        %v725 = vpop.xlane.xlu0 %724
        %v726 = vsel %vm689, %v669, 0.0
        %727 = vadd.xlane.f32.xlu0 %v726
        %v728 = vpop.xlane.xlu0 %727
        %v729 = vsel %vm689, %v670, 0.0
        %730 = vadd.xlane.f32.xlu0 %v729
        %v731 = vpop.xlane.xlu0 %730
        %v732 = vsel %vm689, %v671, 0.0
        %733 = vadd.xlane.f32.xlu0 %v732
        %v734 = vpop.xlane.xlu0 %733
        %v735 = vsel %vm689, %v672, 0.0
        %736 = vadd.xlane.f32.xlu0 %v735
        %v737 = vpop.xlane.xlu0 %736
        %v738 = vsel %vm689, %v673, 0.0
        %739 = vadd.xlane.f32.xlu0 %v738
        %v740 = vpop.xlane.xlu0 %739
        %v741 = vsel %vm689, %v674, 0.0
        %742 = vadd.xlane.f32.xlu0 %v741
        %v743 = vpop.xlane.xlu0 %742
        %v744 = vsel %vm689, %v675, 0.0
        %745 = vadd.xlane.f32.xlu0 %v744
        %v746 = vpop.xlane.xlu0 %745
        %v747 = vsel %vm689, %v676, 0.0
        %748 = vadd.xlane.f32.xlu0 %v747
        %v749 = vpop.xlane.xlu0 %748
        %v750 = vsel %vm689, %v677, 0.0
        %751 = vadd.xlane.f32.xlu0 %v750
        %v752 = vpop.xlane.xlu0 %751
        %v753 = vsel %vm689, %v678, 0.0
        %754 = vadd.xlane.f32.xlu0 %v753
        %v755 = vpop.xlane.xlu0 %754
        %v756 = vsel %vm689, %v679, 0.0
        %757 = vadd.xlane.f32.xlu0 %v756
        %v758 = vpop.xlane.xlu0 %757
        %v759 = vsel %vm689, %v680, 0.0
        %760 = vadd.xlane.f32.xlu0 %v759
        %v761 = vpop.xlane.xlu0 %760
        %v762 = vsel %vm689, %v681, 0.0
        %763 = vadd.xlane.f32.xlu0 %v762
        %v764 = vpop.xlane.xlu0 %763
        %v765 = vsel %vm689, %v682, 0.0
        %766 = vadd.xlane.f32.xlu0 %v765
        %v767 = vpop.xlane.xlu0 %766
        %v768 = vsel %vm689, %v683, 0.0
        %769 = vadd.xlane.f32.xlu0 %v768
        %v770 = vpop.xlane.xlu0 %769
        %v771 = vsel %vm689, %v684, 0.0
        %772 = vadd.xlane.f32.xlu0 %v771
        %v773 = vpop.xlane.xlu0 %772
        %v774 = vsel %vm689, %v685, 0.0
        %775 = vadd.xlane.f32.xlu0 %v774
        %v776 = vpop.xlane.xlu0 %775
        %v777 = vsel %vm689, %v686, 0.0
        %778 = vadd.xlane.f32.xlu0 %v777
        %v779 = vpop.xlane.xlu0 %778
        %v780 = vsel %vm689, %v687, 0.0
        %781 = vadd.xlane.f32.xlu0 %v780
        %v782 = vpop.xlane.xlu0 %781
        %v783 = vsel %vm689, %v688, 0.0
        %784 = vadd.xlane.f32.xlu0 %v783
        %v785 = vpop.xlane.xlu0 %784
        %v786 = vmax.f32 %v692, 1e-24
        %v787 = vmax.f32 %v695, 1e-24
        %v788 = vmax.f32 %v698, 1e-24
        %v789 = vmax.f32 %v701, 1e-24
        %v790 = vmax.f32 %v704, 1e-24
        %v791 = vmax.f32 %v707, 1e-24
        %v792 = vmax.f32 %v710, 1e-24
        %v793 = vmax.f32 %v713, 1e-24
        %v794 = vmax.f32 %v716, 1e-24
        %v795 = vmax.f32 %v719, 1e-24
        %v796 = vmax.f32 %v722, 1e-24
        %v797 = vmax.f32 %v725, 1e-24
        %v798 = vmax.f32 %v728, 1e-24
        %v799 = vmax.f32 %v731, 1e-24
        %v800 = vmax.f32 %v734, 1e-24
        %v801 = vmax.f32 %v737, 1e-24
        %v802 = vmax.f32 %v740, 1e-24
        %v803 = vmax.f32 %v743, 1e-24
        %v804 = vmax.f32 %v746, 1e-24
        %v805 = vmax.f32 %v749, 1e-24
        %v806 = vmax.f32 %v752, 1e-24
        %v807 = vmax.f32 %v755, 1e-24
        %v808 = vmax.f32 %v758, 1e-24
        %v809 = vmax.f32 %v761, 1e-24
        %v810 = vmax.f32 %v764, 1e-24
        %v811 = vmax.f32 %v767, 1e-24
        %v812 = vmax.f32 %v770, 1e-24
        %v813 = vmax.f32 %v773, 1e-24
        %v814 = vmax.f32 %v776, 1e-24
        %v815 = vmax.f32 %v779, 1e-24
        %v816 = vmax.f32 %v782, 1e-24
        %v817 = vmax.f32 %v785, 1e-24
        %v818 = vrsqrt.pop %v786
        %v819 = vrsqrt.pop %v787
        %v820 = vrsqrt.pop %v788
        %v821 = vrsqrt.pop %v789
        %v822 = vrsqrt.pop %v790
        %v823 = vrsqrt.pop %v791
        %v824 = vrsqrt.pop %v792
        %v825 = vrsqrt.pop %v793
        %v826 = vrsqrt.pop %v794
        %v827 = vrsqrt.pop %v795
        %v828 = vrsqrt.pop %v796
        %v829 = vrsqrt.pop %v797
        %v830 = vrsqrt.pop %v798
        %v831 = vrsqrt.pop %v799
        %v832 = vrsqrt.pop %v800
        %v833 = vrsqrt.pop %v801
        %v834 = vrsqrt.pop %v802
        %v835 = vrsqrt.pop %v803
        %v836 = vrsqrt.pop %v804
        %v837 = vrsqrt.pop %v805
        %v838 = vrsqrt.pop %v806
        %v839 = vrsqrt.pop %v807
        %v840 = vrsqrt.pop %v808
        %v841 = vrsqrt.pop %v809
        %v842 = vrsqrt.pop %v810
        %v843 = vrsqrt.pop %v811
        %v844 = vrsqrt.pop %v812
        %v845 = vrsqrt.pop %v813
        %v846 = vrsqrt.pop %v814
        %v847 = vrsqrt.pop %v815
        %v848 = vrsqrt.pop %v816
        %v849 = vrsqrt.pop %v817
        %882 = vrot.lane.b32.xlu0 %v657, 96
        %v883 = vpop.permute.xlu0 %882
        %884 = vrot.lane.b32.xlu0 %v658, 96
        %v885 = vpop.permute.xlu0 %884
        %886 = vrot.lane.b32.xlu0 %v659, 96
        %v887 = vpop.permute.xlu0 %886
        %888 = vrot.lane.b32.xlu0 %v660, 96
        %v889 = vpop.permute.xlu0 %888
        %890 = vrot.lane.b32.xlu0 %v661, 96
        %v891 = vpop.permute.xlu0 %890
        %892 = vrot.lane.b32.xlu0 %v662, 96
        %v893 = vpop.permute.xlu0 %892
        %894 = vrot.lane.b32.xlu0 %v663, 96
        %v895 = vpop.permute.xlu0 %894
        %896 = vrot.lane.b32.xlu0 %v664, 96
        %v897 = vpop.permute.xlu0 %896
        %898 = vrot.lane.b32.xlu0 %v665, 96
        %v899 = vpop.permute.xlu0 %898
        %900 = vrot.lane.b32.xlu0 %v666, 96
        %v901 = vpop.permute.xlu0 %900
        %902 = vrot.lane.b32.xlu0 %v667, 96
        %v903 = vpop.permute.xlu0 %902
        %904 = vrot.lane.b32.xlu0 %v668, 96
        %v905 = vpop.permute.xlu0 %904
        %906 = vrot.lane.b32.xlu0 %v669, 96
        %v907 = vpop.permute.xlu0 %906
        %908 = vrot.lane.b32.xlu0 %v670, 96
        %v909 = vpop.permute.xlu0 %908
        %910 = vrot.lane.b32.xlu0 %v671, 96
        %v911 = vpop.permute.xlu0 %910
        %912 = vrot.lane.b32.xlu0 %v672, 96
        %v913 = vpop.permute.xlu0 %912
        %914 = vrot.lane.b32.xlu0 %v673, 96
        %v915 = vpop.permute.xlu0 %914
        %916 = vrot.lane.b32.xlu0 %v674, 96
        %v917 = vpop.permute.xlu0 %916
        %918 = vrot.lane.b32.xlu0 %v675, 96
        %v919 = vpop.permute.xlu0 %918
        %920 = vrot.lane.b32.xlu0 %v676, 96
        %v921 = vpop.permute.xlu0 %920
        %922 = vrot.lane.b32.xlu0 %v677, 96
        %v923 = vpop.permute.xlu0 %922
        %924 = vrot.lane.b32.xlu0 %v678, 96
        %v925 = vpop.permute.xlu0 %924
        %926 = vrot.lane.b32.xlu0 %v679, 96
        %v927 = vpop.permute.xlu0 %926
        %928 = vrot.lane.b32.xlu0 %v680, 96
        %v929 = vpop.permute.xlu0 %928
        %930 = vrot.lane.b32.xlu0 %v681, 96
        %v931 = vpop.permute.xlu0 %930
        %932 = vrot.lane.b32.xlu0 %v682, 96
        %v933 = vpop.permute.xlu0 %932
        %934 = vrot.lane.b32.xlu0 %v683, 96
        %v935 = vpop.permute.xlu0 %934
        %936 = vrot.lane.b32.xlu0 %v684, 96
        %v937 = vpop.permute.xlu0 %936
        %938 = vrot.lane.b32.xlu0 %v685, 96
        %v939 = vpop.permute.xlu0 %938
        %940 = vrot.lane.b32.xlu0 %v686, 96
        %v941 = vpop.permute.xlu0 %940
        %942 = vrot.lane.b32.xlu0 %v687, 96
        %v943 = vpop.permute.xlu0 %942
        %944 = vrot.lane.b32.xlu0 %v688, 96
        %v945 = vpop.permute.xlu0 %944
        %v978 = vsel %vm689, %v883, 0.0
        %979 = vadd.xlane.f32.xlu0 %v978
        %v980 = vpop.xlane.xlu0 %979
        %v981 = vsel %vm689, %v885, 0.0
        %982 = vadd.xlane.f32.xlu0 %v981
        %v983 = vpop.xlane.xlu0 %982
        %v984 = vsel %vm689, %v887, 0.0
        %985 = vadd.xlane.f32.xlu0 %v984
        %v986 = vpop.xlane.xlu0 %985
        %v987 = vsel %vm689, %v889, 0.0
        %988 = vadd.xlane.f32.xlu0 %v987
        %v989 = vpop.xlane.xlu0 %988
        %v990 = vsel %vm689, %v891, 0.0
        %991 = vadd.xlane.f32.xlu0 %v990
        %v992 = vpop.xlane.xlu0 %991
        %v993 = vsel %vm689, %v893, 0.0
        %994 = vadd.xlane.f32.xlu0 %v993
        %v995 = vpop.xlane.xlu0 %994
        %v996 = vsel %vm689, %v895, 0.0
        %997 = vadd.xlane.f32.xlu0 %v996
        %v998 = vpop.xlane.xlu0 %997
        %v999 = vsel %vm689, %v897, 0.0
        %1000 = vadd.xlane.f32.xlu0 %v999
        %v1001 = vpop.xlane.xlu0 %1000
        %v1002 = vsel %vm689, %v899, 0.0
        %1003 = vadd.xlane.f32.xlu0 %v1002
        %v1004 = vpop.xlane.xlu0 %1003
        %v1005 = vsel %vm689, %v901, 0.0
        %1006 = vadd.xlane.f32.xlu0 %v1005
        %v1007 = vpop.xlane.xlu0 %1006
        %v1008 = vsel %vm689, %v903, 0.0
        %1009 = vadd.xlane.f32.xlu0 %v1008
        %v1010 = vpop.xlane.xlu0 %1009
        %v1011 = vsel %vm689, %v905, 0.0
        %1012 = vadd.xlane.f32.xlu0 %v1011
        %v1013 = vpop.xlane.xlu0 %1012
        %v1014 = vsel %vm689, %v907, 0.0
        %1015 = vadd.xlane.f32.xlu0 %v1014
        %v1016 = vpop.xlane.xlu0 %1015
        %v1017 = vsel %vm689, %v909, 0.0
        %1018 = vadd.xlane.f32.xlu0 %v1017
        %v1019 = vpop.xlane.xlu0 %1018
        %v1020 = vsel %vm689, %v911, 0.0
        %1021 = vadd.xlane.f32.xlu0 %v1020
        %v1022 = vpop.xlane.xlu0 %1021
        %v1023 = vsel %vm689, %v913, 0.0
        %1024 = vadd.xlane.f32.xlu0 %v1023
        %v1025 = vpop.xlane.xlu0 %1024
        %v1026 = vsel %vm689, %v915, 0.0
        %1027 = vadd.xlane.f32.xlu0 %v1026
        %v1028 = vpop.xlane.xlu0 %1027
        %v1029 = vsel %vm689, %v917, 0.0
        %1030 = vadd.xlane.f32.xlu0 %v1029
        %v1031 = vpop.xlane.xlu0 %1030
        %v1032 = vsel %vm689, %v919, 0.0
        %1033 = vadd.xlane.f32.xlu0 %v1032
        %v1034 = vpop.xlane.xlu0 %1033
        %v1035 = vsel %vm689, %v921, 0.0
        %1036 = vadd.xlane.f32.xlu0 %v1035
        %v1037 = vpop.xlane.xlu0 %1036
        %v1038 = vsel %vm689, %v923, 0.0
        %1039 = vadd.xlane.f32.xlu0 %v1038
        %v1040 = vpop.xlane.xlu0 %1039
        %v1041 = vsel %vm689, %v925, 0.0
        %1042 = vadd.xlane.f32.xlu0 %v1041
        %v1043 = vpop.xlane.xlu0 %1042
        %v1044 = vsel %vm689, %v927, 0.0
        %1045 = vadd.xlane.f32.xlu0 %v1044
        %v1046 = vpop.xlane.xlu0 %1045
        %v1047 = vsel %vm689, %v929, 0.0
        %1048 = vadd.xlane.f32.xlu0 %v1047
        %v1049 = vpop.xlane.xlu0 %1048
        %v1050 = vsel %vm689, %v931, 0.0
        %1051 = vadd.xlane.f32.xlu0 %v1050
        %v1052 = vpop.xlane.xlu0 %1051
        %v1053 = vsel %vm689, %v933, 0.0
        %1054 = vadd.xlane.f32.xlu0 %v1053
        %v1055 = vpop.xlane.xlu0 %1054
        %v1056 = vsel %vm689, %v935, 0.0
        %1057 = vadd.xlane.f32.xlu0 %v1056
        %v1058 = vpop.xlane.xlu0 %1057
        %v1059 = vsel %vm689, %v937, 0.0
        %1060 = vadd.xlane.f32.xlu0 %v1059
        %v1061 = vpop.xlane.xlu0 %1060
        %v1062 = vsel %vm689, %v939, 0.0
        %1063 = vadd.xlane.f32.xlu0 %v1062
        %v1064 = vpop.xlane.xlu0 %1063
        %v1065 = vsel %vm689, %v941, 0.0
        %1066 = vadd.xlane.f32.xlu0 %v1065
        %v1067 = vpop.xlane.xlu0 %1066
        %v1068 = vsel %vm689, %v943, 0.0
        %1069 = vadd.xlane.f32.xlu0 %v1068
        %v1070 = vpop.xlane.xlu0 %1069
        %v1071 = vsel %vm689, %v945, 0.0
        %1072 = vadd.xlane.f32.xlu0 %v1071
        %v1073 = vpop.xlane.xlu0 %1072
        %v1074 = vmax.f32 %v980, 1e-24
        %v1075 = vmax.f32 %v983, 1e-24
        %v1076 = vmax.f32 %v986, 1e-24
        %v1077 = vmax.f32 %v989, 1e-24
        %v1078 = vmax.f32 %v992, 1e-24
        %v1079 = vmax.f32 %v995, 1e-24
        %v1080 = vmax.f32 %v998, 1e-24
        %v1081 = vmax.f32 %v1001, 1e-24
        %v1082 = vmax.f32 %v1004, 1e-24
        %v1083 = vmax.f32 %v1007, 1e-24
        %v1084 = vmax.f32 %v1010, 1e-24
        %v1085 = vmax.f32 %v1013, 1e-24
        %v1086 = vmax.f32 %v1016, 1e-24
        %v1087 = vmax.f32 %v1019, 1e-24
        %v1088 = vmax.f32 %v1022, 1e-24
        %v1089 = vmax.f32 %v1025, 1e-24
        %v1090 = vmax.f32 %v1028, 1e-24
        %v1091 = vmax.f32 %v1031, 1e-24
        %v1092 = vmax.f32 %v1034, 1e-24
        %v1093 = vmax.f32 %v1037, 1e-24
        %v1094 = vmax.f32 %v1040, 1e-24
        %v1095 = vmax.f32 %v1043, 1e-24
        %v1096 = vmax.f32 %v1046, 1e-24
        %v1097 = vmax.f32 %v1049, 1e-24
        %v1098 = vmax.f32 %v1052, 1e-24
        %v1099 = vmax.f32 %v1055, 1e-24
        %v1100 = vmax.f32 %v1058, 1e-24
        %v1101 = vmax.f32 %v1061, 1e-24
        %v1102 = vmax.f32 %v1064, 1e-24
        %v1103 = vmax.f32 %v1067, 1e-24
        %v1104 = vmax.f32 %v1070, 1e-24
        %v1105 = vmax.f32 %v1073, 1e-24
        %v1106 = vrsqrt.pop %v1074
        %v1107 = vrsqrt.pop %v1075
        %v1108 = vrsqrt.pop %v1076
        %v1109 = vrsqrt.pop %v1077
        %v1110 = vrsqrt.pop %v1078
        %v1111 = vrsqrt.pop %v1079
        %v1112 = vrsqrt.pop %v1080
        %v1113 = vrsqrt.pop %v1081
        %v1114 = vrsqrt.pop %v1082
        %v1115 = vrsqrt.pop %v1083
        %v1116 = vrsqrt.pop %v1084
        %v1117 = vrsqrt.pop %v1085
        %v1118 = vrsqrt.pop %v1086
        %v1119 = vrsqrt.pop %v1087
        %v1120 = vrsqrt.pop %v1088
        %v1121 = vrsqrt.pop %v1089
        %v1122 = vrsqrt.pop %v1090
        %v1123 = vrsqrt.pop %v1091
        %v1124 = vrsqrt.pop %v1092
        %v1125 = vrsqrt.pop %v1093
        %v1126 = vrsqrt.pop %v1094
        %v1127 = vrsqrt.pop %v1095
        %v1128 = vrsqrt.pop %v1096
        %v1129 = vrsqrt.pop %v1097
        %v1130 = vrsqrt.pop %v1098
        %v1131 = vrsqrt.pop %v1099
        %v1132 = vrsqrt.pop %v1100
        %v1133 = vrsqrt.pop %v1101
        %v1134 = vrsqrt.pop %v1102
        %v1135 = vrsqrt.pop %v1103
        %v1136 = vrsqrt.pop %v1104
        %v1137 = vrsqrt.pop %v1105
        %s1138 = sld [smem:[#allocation6]]
        %v1139 = vstv %s1138
        %v1140 = vmul.f32 %v818, %v1139
        %v1141 = vmul.f32 %v819, %v1139
        %v1142 = vmul.f32 %v820, %v1139
        %v1143 = vmul.f32 %v821, %v1139
        %v1144 = vmul.f32 %v822, %v1139
        %v1145 = vmul.f32 %v823, %v1139
        %v1146 = vmul.f32 %v824, %v1139
        %v1147 = vmul.f32 %v825, %v1139
        %v1148 = vmul.f32 %v826, %v1139
        %v1149 = vmul.f32 %v827, %v1139
        %v1150 = vmul.f32 %v828, %v1139
        %v1151 = vmul.f32 %v829, %v1139
        %v1152 = vmul.f32 %v830, %v1139
        %v1153 = vmul.f32 %v831, %v1139
        %v1154 = vmul.f32 %v832, %v1139
        %v1155 = vmul.f32 %v833, %v1139
        %v1156 = vmul.f32 %v834, %v1139
        %v1157 = vmul.f32 %v835, %v1139
        %v1158 = vmul.f32 %v836, %v1139
        %v1159 = vmul.f32 %v837, %v1139
        %v1160 = vmul.f32 %v838, %v1139
        %v1161 = vmul.f32 %v839, %v1139
        %v1162 = vmul.f32 %v840, %v1139
        %v1163 = vmul.f32 %v841, %v1139
        %v1164 = vmul.f32 %v842, %v1139
        %v1165 = vmul.f32 %v843, %v1139
        %v1166 = vmul.f32 %v844, %v1139
        %v1167 = vmul.f32 %v845, %v1139
        %v1168 = vmul.f32 %v846, %v1139
        %v1169 = vmul.f32 %v847, %v1139
        %v1170 = vmul.f32 %v848, %v1139
        %v1171 = vmul.f32 %v849, %v1139
        %v1172 = vmul.f32 %v531, %v1140
        %v1173 = vmul.f32 %v534, %v1141
        %v1174 = vmul.f32 %v539, %v1142
        %v1175 = vmul.f32 %v542, %v1143
        %v1176 = vmul.f32 %v547, %v1144
        %v1177 = vmul.f32 %v550, %v1145
        %v1178 = vmul.f32 %v555, %v1146
        %v1179 = vmul.f32 %v558, %v1147
        %v1180 = vmul.f32 %v563, %v1148
        %v1181 = vmul.f32 %v566, %v1149
        %v1182 = vmul.f32 %v571, %v1150
        %v1183 = vmul.f32 %v574, %v1151
        %v1184 = vmul.f32 %v579, %v1152
        %v1185 = vmul.f32 %v582, %v1153
        %v1186 = vmul.f32 %v587, %v1154
        %v1187 = vmul.f32 %v590, %v1155
        %v1188 = vmul.f32 %v595, %v1156
        %v1189 = vmul.f32 %v598, %v1157
        %v1190 = vmul.f32 %v603, %v1158
        %v1191 = vmul.f32 %v606, %v1159
        %v1192 = vmul.f32 %v611, %v1160
        %v1193 = vmul.f32 %v614, %v1161
        %v1194 = vmul.f32 %v619, %v1162
        %v1195 = vmul.f32 %v622, %v1163
        %v1196 = vmul.f32 %v627, %v1164
        %v1197 = vmul.f32 %v630, %v1165
        %v1198 = vmul.f32 %v635, %v1166
        %v1199 = vmul.f32 %v638, %v1167
        %v1200 = vmul.f32 %v643, %v1168
        %v1201 = vmul.f32 %v646, %v1169
        %v1202 = vmul.f32 %v651, %v1170
        %v1203 = vmul.f32 %v654, %v1171
        %v1204 = vmul.f32 %v531, %v1106
        %v1205 = vmul.f32 %v534, %v1107
        %v1206 = vmul.f32 %v539, %v1108
        %v1207 = vmul.f32 %v542, %v1109
        %v1208 = vmul.f32 %v547, %v1110
        %v1209 = vmul.f32 %v550, %v1111
        %v1210 = vmul.f32 %v555, %v1112
        %v1211 = vmul.f32 %v558, %v1113
        %v1212 = vmul.f32 %v563, %v1114
        %v1213 = vmul.f32 %v566, %v1115
        %v1214 = vmul.f32 %v571, %v1116
        %v1215 = vmul.f32 %v574, %v1117
        %v1216 = vmul.f32 %v579, %v1118
        %v1217 = vmul.f32 %v582, %v1119
        %v1218 = vmul.f32 %v587, %v1120
        %v1219 = vmul.f32 %v590, %v1121
        %v1220 = vmul.f32 %v595, %v1122
        %v1221 = vmul.f32 %v598, %v1123
        %v1222 = vmul.f32 %v603, %v1124
        %v1223 = vmul.f32 %v606, %v1125
        %v1224 = vmul.f32 %v611, %v1126
        %v1225 = vmul.f32 %v614, %v1127
        %v1226 = vmul.f32 %v619, %v1128
        %v1227 = vmul.f32 %v622, %v1129
        %v1228 = vmul.f32 %v627, %v1130
        %v1229 = vmul.f32 %v630, %v1131
        %v1230 = vmul.f32 %v635, %v1132
        %v1231 = vmul.f32 %v638, %v1133
        %v1232 = vmul.f32 %v643, %v1134
        %v1233 = vmul.f32 %v646, %v1135
        %v1234 = vmul.f32 %v651, %v1136
        %v1235 = vmul.f32 %v654, %v1137
        %v1236 = vld [vmem:[#allocation3] sm:$0xff]
        %v1237 = vld [vmem:[#allocation3 + $0x8] sm:$0xff]
        %v1238 = vld [vmem:[#allocation3 + $0x10] sm:$0xff]
        %v1239 = vld [vmem:[#allocation3 + $0x18] sm:$0xff]
        %v1240 = vld [vmem:[#allocation3 + $0x20] sm:$0xff]
        %v1241 = vld [vmem:[#allocation3 + $0x28] sm:$0xff]
        %v1242 = vld [vmem:[#allocation3 + $0x30] sm:$0xff]
        %v1243 = vld [vmem:[#allocation3 + $0x38] sm:$0xff]
        %v1244 = vld [vmem:[#allocation3 + $0x40] sm:$0xff]
        %v1245 = vld [vmem:[#allocation3 + $0x48] sm:$0xff]
        %v1246 = vld [vmem:[#allocation3 + $0x50] sm:$0xff]
        %v1247 = vld [vmem:[#allocation3 + $0x58] sm:$0xff]
        %v1248 = vld [vmem:[#allocation3 + $0x60] sm:$0xff]
        %v1249 = vld [vmem:[#allocation3 + $0x68] sm:$0xff]
        %v1250 = vld [vmem:[#allocation3 + $0x70] sm:$0xff]
        %v1251 = vld [vmem:[#allocation3 + $0x78] sm:$0xff]
        %v1252 = vld [vmem:[#allocation3 + $0x80] sm:$0xff]
        %v1253 = vld [vmem:[#allocation3 + $0x88] sm:$0xff]
        %v1254 = vld [vmem:[#allocation3 + $0x90] sm:$0xff]
        %v1255 = vld [vmem:[#allocation3 + $0x98] sm:$0xff]
        %v1256 = vld [vmem:[#allocation3 + $0xa0] sm:$0xff]
        %v1257 = vld [vmem:[#allocation3 + $0xa8] sm:$0xff]
        %v1258 = vld [vmem:[#allocation3 + $0xb0] sm:$0xff]
        %v1259 = vld [vmem:[#allocation3 + $0xb8] sm:$0xff]
        %v1260 = vld [vmem:[#allocation3 + $0xc0] sm:$0xff]
        %v1261 = vld [vmem:[#allocation3 + $0xc8] sm:$0xff]
        %v1262 = vld [vmem:[#allocation3 + $0xd0] sm:$0xff]
        %v1263 = vld [vmem:[#allocation3 + $0xd8] sm:$0xff]
        %v1264 = vld [vmem:[#allocation3 + $0xe0] sm:$0xff]
        %v1265 = vld [vmem:[#allocation3 + $0xe8] sm:$0xff]
        %v1266 = vld [vmem:[#allocation3 + $0xf0] sm:$0xff]
        %v1267 = vld [vmem:[#allocation3 + $0xf8] sm:$0xff]
        %1276 = vrot.lane.b32.xlu0 %v1204, 96
        %v1277 = vpop.permute.xlu0 %1276
        %1278 = vrot.lane.b32.xlu0 %v1205, 96
        %v1279 = vpop.permute.xlu0 %1278
        %1280 = vrot.lane.b32.xlu0 %v1206, 96
        %v1281 = vpop.permute.xlu0 %1280
        %1282 = vrot.lane.b32.xlu0 %v1207, 96
        %v1283 = vpop.permute.xlu0 %1282
        %1284 = vrot.lane.b32.xlu0 %v1208, 96
        %v1285 = vpop.permute.xlu0 %1284
        %1286 = vrot.lane.b32.xlu0 %v1209, 96
        %v1287 = vpop.permute.xlu0 %1286
        %1288 = vrot.lane.b32.xlu0 %v1210, 96
        %v1289 = vpop.permute.xlu0 %1288
        %1290 = vrot.lane.b32.xlu0 %v1211, 96
        %v1291 = vpop.permute.xlu0 %1290
        %v1293 = vsel %vm689, %v1172, 0
        %v1296 = vsel %vm689, %v1173, 0
        %v1299 = vsel %vm689, %v1174, 0
        %v1302 = vsel %vm689, %v1175, 0
        %v1305 = vsel %vm689, %v1176, 0
        %v1308 = vsel %vm689, %v1177, 0
        %v1311 = vsel %vm689, %v1178, 0
        %v1314 = vsel %vm689, %v1179, 0
        %v1316 = vsel %vm689, %v1277, 0
        %v1318 = vsel %vm689, %v1279, 0
        %v1320 = vsel %vm689, %v1281, 0
        %v1322 = vsel %vm689, %v1283, 0
        %v1324 = vsel %vm689, %v1285, 0
        %v1326 = vsel %vm689, %v1287, 0
        %v1328 = vsel %vm689, %v1289, 0
        %v1330 = vsel %vm689, %v1291, 0
        %1332 = vmatprep.subr.mxu0 0.0
        %1333 = vmatpush1.xpose.msra.mxu0 0.0
        %1334 = vmatprep.subr.mxu0 0.0
        %1335 = vmatpush1.xpose.msra.mxu0 0.0
        %1336 = vmatprep.subr.mxu0 0.0
        %1337 = vmatpush1.xpose.msra.mxu0 0.0
        %1338 = vmatprep.subr.mxu0 0.0
        %1339 = vmatpush1.xpose.msra.mxu0 0.0
        %1340 = vmatprep.subr.mxu0 0.0
        %1341 = vmatpush1.xpose.msra.mxu0 0.0
        %1342 = vmatprep.subr.mxu0 0.0
        %1343 = vmatpush1.xpose.msra.mxu0 0.0
        %1344 = vmatprep.subr.mxu0 0.0
        %1345 = vmatpush1.xpose.msra.mxu0 0.0
        %1346 = vmatprep.subr.mxu0 0.0
        %1347 = vmatpush1.xpose.msra.mxu0 0.0
        %1348 = vmatprep.subr.mxu0 0.0
        %1349 = vmatpush1.xpose.msra.mxu0 %v1330
        %1350 = vmatprep.subr.mxu0 0.0
        %1351 = vmatpush1.xpose.msra.mxu0 %v1328
        %1352 = vmatprep.subr.mxu0 0.0
        %1353 = vmatpush1.xpose.msra.mxu0 %v1326
        %1354 = vmatprep.subr.mxu0 0.0
        %1355 = vmatpush1.xpose.msra.mxu0 %v1324
        %1356 = vmatprep.subr.mxu0 0.0
        %1357 = vmatpush1.xpose.msra.mxu0 %v1322
        %1358 = vmatprep.subr.mxu0 0.0
        %1359 = vmatpush1.xpose.msra.mxu0 %v1320
        %1360 = vmatprep.subr.mxu0 0.0
        %1361 = vmatpush1.xpose.msra.mxu0 %v1318
        %1362 = vmatprep.subr.mxu0 0.0
        %1363 = vmatpush1.xpose.msra.mxu0 %v1316
        %1364 = vmatprep.subr.mxu0 0.0
        %1365 = vmatpush2.xpose.msra.mxu0 0.0
        %1366 = vmatprep.subr.mxu0 0.0
        %1367 = vmatpush2.xpose.msra.mxu0 0.0
        %1368 = vmatprep.subr.mxu0 0.0
        %1369 = vmatpush2.xpose.msra.mxu0 0.0
        %1370 = vmatprep.subr.mxu0 0.0
        %1371 = vmatpush2.xpose.msra.mxu0 0.0
        %1372 = vmatprep.subr.mxu0 0.0
        %1373 = vmatpush2.xpose.msra.mxu0 0.0
        %1374 = vmatprep.subr.mxu0 0.0
        %1375 = vmatpush2.xpose.msra.mxu0 0.0
        %1376 = vmatprep.subr.mxu0 0.0
        %1377 = vmatpush2.xpose.msra.mxu0 0.0
        %1378 = vmatprep.subr.mxu0 0.0
        %1379 = vmatpush2.xpose.msra.mxu0 0.0
        %1380 = vmatprep.subr.mxu0 0.0
        %1381 = vmatpush2.xpose.msra.mxu0 0.0
        %1382 = vmatprep.subr.mxu0 0.0
        %1383 = vmatpush2.xpose.msra.mxu0 0.0
        %1384 = vmatprep.subr.mxu0 0.0
        %1385 = vmatpush2.xpose.msra.mxu0 0.0
        %1386 = vmatprep.subr.mxu0 0.0
        %1387 = vmatpush2.xpose.msra.mxu0 0.0
        %1388 = vmatprep.subr.mxu0 0.0
        %1389 = vmatpush2.xpose.msra.mxu0 0.0
        %1390 = vmatprep.subr.mxu0 0.0
        %1391 = vmatpush2.xpose.msra.mxu0 0.0
        %1392 = vmatprep.subr.mxu0 0.0
        %1393 = vmatpush2.xpose.msra.mxu0 0.0
        %1394 = vmatprep.subr.mxu0 0.0
        %1395 = vmatpush2.xpose.msra.mxu0 0.0
        %1396 = vmatprep.mubr.f32.mxu0 0.0
        %1397 = vmatmul.mubr.f32.gmra.mxu0 %v1293
        %v1398 = vpop.f32.mrf.mxu0
        %v1399 = vadd.f32 %v1236, %v1398
        %v1400 = vpop.f32.mrf.mxu0
        %1401 = vmatprep.mubr.f32.mxu0 0.0
        %1402 = vmatmul.mubr.f32.gmra.mxu0 %v1296
        %v1403 = vpop.f32.mrf.mxu0
        %v1404 = vadd.f32 %v1237, %v1403
        %v1405 = vpop.f32.mrf.mxu0
        %1406 = vmatprep.mubr.f32.mxu0 0.0
        %1407 = vmatmul.mubr.f32.gmra.mxu0 %v1299
        %v1408 = vpop.f32.mrf.mxu0
        %v1409 = vadd.f32 %v1238, %v1408
        %v1410 = vpop.f32.mrf.mxu0
        %1411 = vmatprep.mubr.f32.mxu0 0.0
        %1412 = vmatmul.mubr.f32.gmra.mxu0 %v1302
        %v1413 = vpop.f32.mrf.mxu0
        %v1414 = vadd.f32 %v1239, %v1413
        %v1415 = vpop.f32.mrf.mxu0
        %1416 = vmatprep.mubr.f32.mxu0 0.0
        %1417 = vmatmul.mubr.f32.gmra.mxu0 %v1305
        %v1418 = vpop.f32.mrf.mxu0
        %v1419 = vadd.f32 %v1240, %v1418
        %v1420 = vpop.f32.mrf.mxu0
        %1421 = vmatprep.mubr.f32.mxu0 0.0
        %1422 = vmatmul.mubr.f32.gmra.mxu0 %v1308
        %v1423 = vpop.f32.mrf.mxu0
        %v1424 = vadd.f32 %v1241, %v1423
        %v1425 = vpop.f32.mrf.mxu0
        %1426 = vmatprep.mubr.f32.mxu0 0.0
        %1427 = vmatmul.mubr.f32.gmra.mxu0 %v1311
        %v1428 = vpop.f32.mrf.mxu0
        %v1429 = vadd.f32 %v1242, %v1428
        %v1430 = vpop.f32.mrf.mxu0
        %1431 = vmatprep.mubr.f32.mxu0 0.0
        %1432 = vmatmul.mubr.f32.gmra.mxu0 %v1314
        %v1433 = vpop.f32.mrf.mxu0
        %v1434 = vadd.f32 %v1243, %v1433
        %v1435 = vpop.f32.mrf.mxu0
        %1436 = vdwg.mxu0
        %1445 = vrot.lane.b32.xlu0 %v1212, 96
        %v1446 = vpop.permute.xlu0 %1445
        %1447 = vrot.lane.b32.xlu0 %v1213, 96
        %v1448 = vpop.permute.xlu0 %1447
        %1449 = vrot.lane.b32.xlu0 %v1214, 96
        %v1450 = vpop.permute.xlu0 %1449
        %1451 = vrot.lane.b32.xlu0 %v1215, 96
        %v1452 = vpop.permute.xlu0 %1451
        %1453 = vrot.lane.b32.xlu0 %v1216, 96
        %v1454 = vpop.permute.xlu0 %1453
        %1455 = vrot.lane.b32.xlu0 %v1217, 96
        %v1456 = vpop.permute.xlu0 %1455
        %1457 = vrot.lane.b32.xlu0 %v1218, 96
        %v1458 = vpop.permute.xlu0 %1457
        %1459 = vrot.lane.b32.xlu0 %v1219, 96
        %v1460 = vpop.permute.xlu0 %1459
        %v1462 = vsel %vm689, %v1180, 0
        %v1465 = vsel %vm689, %v1181, 0
        %v1468 = vsel %vm689, %v1182, 0
        %v1471 = vsel %vm689, %v1183, 0
        %v1474 = vsel %vm689, %v1184, 0
        %v1477 = vsel %vm689, %v1185, 0
        %v1480 = vsel %vm689, %v1186, 0
        %v1483 = vsel %vm689, %v1187, 0
        %v1485 = vsel %vm689, %v1446, 0
        %v1487 = vsel %vm689, %v1448, 0
        %v1489 = vsel %vm689, %v1450, 0
        %v1491 = vsel %vm689, %v1452, 0
        %v1493 = vsel %vm689, %v1454, 0
        %v1495 = vsel %vm689, %v1456, 0
        %v1497 = vsel %vm689, %v1458, 0
        %v1499 = vsel %vm689, %v1460, 0
        %1501 = vmatprep.subr.mxu0 0.0
        %1502 = vmatpush1.xpose.msra.mxu0 0.0
        %1503 = vmatprep.subr.mxu0 0.0
        %1504 = vmatpush1.xpose.msra.mxu0 0.0
        %1505 = vmatprep.subr.mxu0 0.0
        %1506 = vmatpush1.xpose.msra.mxu0 0.0
        %1507 = vmatprep.subr.mxu0 0.0
        %1508 = vmatpush1.xpose.msra.mxu0 0.0
        %1509 = vmatprep.subr.mxu0 0.0
        %1510 = vmatpush1.xpose.msra.mxu0 0.0
        %1511 = vmatprep.subr.mxu0 0.0
        %1512 = vmatpush1.xpose.msra.mxu0 0.0
        %1513 = vmatprep.subr.mxu0 0.0
        %1514 = vmatpush1.xpose.msra.mxu0 0.0
        %1515 = vmatprep.subr.mxu0 0.0
        %1516 = vmatpush1.xpose.msra.mxu0 0.0
        %1517 = vmatprep.subr.mxu0 0.0
        %1518 = vmatpush1.xpose.msra.mxu0 %v1499
        %1519 = vmatprep.subr.mxu0 0.0
        %1520 = vmatpush1.xpose.msra.mxu0 %v1497
        %1521 = vmatprep.subr.mxu0 0.0
        %1522 = vmatpush1.xpose.msra.mxu0 %v1495
        %1523 = vmatprep.subr.mxu0 0.0
        %1524 = vmatpush1.xpose.msra.mxu0 %v1493
        %1525 = vmatprep.subr.mxu0 0.0
        %1526 = vmatpush1.xpose.msra.mxu0 %v1491
        %1527 = vmatprep.subr.mxu0 0.0
        %1528 = vmatpush1.xpose.msra.mxu0 %v1489
        %1529 = vmatprep.subr.mxu0 0.0
        %1530 = vmatpush1.xpose.msra.mxu0 %v1487
        %1531 = vmatprep.subr.mxu0 0.0
        %1532 = vmatpush1.xpose.msra.mxu0 %v1485
        %1533 = vmatprep.subr.mxu0 0.0
        %1534 = vmatpush2.xpose.msra.mxu0 0.0
        %1535 = vmatprep.subr.mxu0 0.0
        %1536 = vmatpush2.xpose.msra.mxu0 0.0
        %1537 = vmatprep.subr.mxu0 0.0
        %1538 = vmatpush2.xpose.msra.mxu0 0.0
        %1539 = vmatprep.subr.mxu0 0.0
        %1540 = vmatpush2.xpose.msra.mxu0 0.0
        %1541 = vmatprep.subr.mxu0 0.0
        %1542 = vmatpush2.xpose.msra.mxu0 0.0
        %1543 = vmatprep.subr.mxu0 0.0
        %1544 = vmatpush2.xpose.msra.mxu0 0.0
        %1545 = vmatprep.subr.mxu0 0.0
        %1546 = vmatpush2.xpose.msra.mxu0 0.0
        %1547 = vmatprep.subr.mxu0 0.0
        %1548 = vmatpush2.xpose.msra.mxu0 0.0
        %1549 = vmatprep.subr.mxu0 0.0
        %1550 = vmatpush2.xpose.msra.mxu0 0.0
        %1551 = vmatprep.subr.mxu0 0.0
        %1552 = vmatpush2.xpose.msra.mxu0 0.0
        %1553 = vmatprep.subr.mxu0 0.0
        %1554 = vmatpush2.xpose.msra.mxu0 0.0
        %1555 = vmatprep.subr.mxu0 0.0
        %1556 = vmatpush2.xpose.msra.mxu0 0.0
        %1557 = vmatprep.subr.mxu0 0.0
        %1558 = vmatpush2.xpose.msra.mxu0 0.0
        %1559 = vmatprep.subr.mxu0 0.0
        %1560 = vmatpush2.xpose.msra.mxu0 0.0
        %1561 = vmatprep.subr.mxu0 0.0
        %1562 = vmatpush2.xpose.msra.mxu0 0.0
        %1563 = vmatprep.subr.mxu0 0.0
        %1564 = vmatpush2.xpose.msra.mxu0 0.0
        %1565 = vmatprep.mubr.f32.mxu0 0.0
        %1566 = vmatmul.mubr.f32.gmra.mxu0 %v1462
        %v1567 = vpop.f32.mrf.mxu0
        %v1568 = vadd.f32 %v1244, %v1567
        %v1569 = vpop.f32.mrf.mxu0
        %1570 = vmatprep.mubr.f32.mxu0 0.0
        %1571 = vmatmul.mubr.f32.gmra.mxu0 %v1465
        %v1572 = vpop.f32.mrf.mxu0
        %v1573 = vadd.f32 %v1245, %v1572
        %v1574 = vpop.f32.mrf.mxu0
        %1575 = vmatprep.mubr.f32.mxu0 0.0
        %1576 = vmatmul.mubr.f32.gmra.mxu0 %v1468
        %v1577 = vpop.f32.mrf.mxu0
        %v1578 = vadd.f32 %v1246, %v1577
        %v1579 = vpop.f32.mrf.mxu0
        %1580 = vmatprep.mubr.f32.mxu0 0.0
        %1581 = vmatmul.mubr.f32.gmra.mxu0 %v1471
        %v1582 = vpop.f32.mrf.mxu0
        %v1583 = vadd.f32 %v1247, %v1582
        %v1584 = vpop.f32.mrf.mxu0
        %1585 = vmatprep.mubr.f32.mxu0 0.0
        %1586 = vmatmul.mubr.f32.gmra.mxu0 %v1474
        %v1587 = vpop.f32.mrf.mxu0
        %v1588 = vadd.f32 %v1248, %v1587
        %v1589 = vpop.f32.mrf.mxu0
        %1590 = vmatprep.mubr.f32.mxu0 0.0
        %1591 = vmatmul.mubr.f32.gmra.mxu0 %v1477
        %v1592 = vpop.f32.mrf.mxu0
        %v1593 = vadd.f32 %v1249, %v1592
        %v1594 = vpop.f32.mrf.mxu0
        %1595 = vmatprep.mubr.f32.mxu0 0.0
        %1596 = vmatmul.mubr.f32.gmra.mxu0 %v1480
        %v1597 = vpop.f32.mrf.mxu0
        %v1598 = vadd.f32 %v1250, %v1597
        %v1599 = vpop.f32.mrf.mxu0
        %1600 = vmatprep.mubr.f32.mxu0 0.0
        %1601 = vmatmul.mubr.f32.gmra.mxu0 %v1483
        %v1602 = vpop.f32.mrf.mxu0
        %v1603 = vadd.f32 %v1251, %v1602
        %v1604 = vpop.f32.mrf.mxu0
        %1605 = vdwg.mxu0
        %1614 = vrot.lane.b32.xlu0 %v1220, 96
        %v1615 = vpop.permute.xlu0 %1614
        %1616 = vrot.lane.b32.xlu0 %v1221, 96
        %v1617 = vpop.permute.xlu0 %1616
        %1618 = vrot.lane.b32.xlu0 %v1222, 96
        %v1619 = vpop.permute.xlu0 %1618
        %1620 = vrot.lane.b32.xlu0 %v1223, 96
        %v1621 = vpop.permute.xlu0 %1620
        %1622 = vrot.lane.b32.xlu0 %v1224, 96
        %v1623 = vpop.permute.xlu0 %1622
        %1624 = vrot.lane.b32.xlu0 %v1225, 96
        %v1625 = vpop.permute.xlu0 %1624
        %1626 = vrot.lane.b32.xlu0 %v1226, 96
        %v1627 = vpop.permute.xlu0 %1626
        %1628 = vrot.lane.b32.xlu0 %v1227, 96
        %v1629 = vpop.permute.xlu0 %1628
        %v1631 = vsel %vm689, %v1188, 0
        %v1634 = vsel %vm689, %v1189, 0
        %v1637 = vsel %vm689, %v1190, 0
        %v1640 = vsel %vm689, %v1191, 0
        %v1643 = vsel %vm689, %v1192, 0
        %v1646 = vsel %vm689, %v1193, 0
        %v1649 = vsel %vm689, %v1194, 0
        %v1652 = vsel %vm689, %v1195, 0
        %v1654 = vsel %vm689, %v1615, 0
        %v1656 = vsel %vm689, %v1617, 0
        %v1658 = vsel %vm689, %v1619, 0
        %v1660 = vsel %vm689, %v1621, 0
        %v1662 = vsel %vm689, %v1623, 0
        %v1664 = vsel %vm689, %v1625, 0
        %v1666 = vsel %vm689, %v1627, 0
        %v1668 = vsel %vm689, %v1629, 0
        %1670 = vmatprep.subr.mxu0 0.0
        %1671 = vmatpush1.xpose.msra.mxu0 0.0
        %1672 = vmatprep.subr.mxu0 0.0
        %1673 = vmatpush1.xpose.msra.mxu0 0.0
        %1674 = vmatprep.subr.mxu0 0.0
        %1675 = vmatpush1.xpose.msra.mxu0 0.0
        %1676 = vmatprep.subr.mxu0 0.0
        %1677 = vmatpush1.xpose.msra.mxu0 0.0
        %1678 = vmatprep.subr.mxu0 0.0
        %1679 = vmatpush1.xpose.msra.mxu0 0.0
        %1680 = vmatprep.subr.mxu0 0.0
        %1681 = vmatpush1.xpose.msra.mxu0 0.0
        %1682 = vmatprep.subr.mxu0 0.0
        %1683 = vmatpush1.xpose.msra.mxu0 0.0
        %1684 = vmatprep.subr.mxu0 0.0
        %1685 = vmatpush1.xpose.msra.mxu0 0.0
        %1686 = vmatprep.subr.mxu0 0.0
        %1687 = vmatpush1.xpose.msra.mxu0 %v1668
        %1688 = vmatprep.subr.mxu0 0.0
        %1689 = vmatpush1.xpose.msra.mxu0 %v1666
        %1690 = vmatprep.subr.mxu0 0.0
        %1691 = vmatpush1.xpose.msra.mxu0 %v1664
        %1692 = vmatprep.subr.mxu0 0.0
        %1693 = vmatpush1.xpose.msra.mxu0 %v1662
        %1694 = vmatprep.subr.mxu0 0.0
        %1695 = vmatpush1.xpose.msra.mxu0 %v1660
        %1696 = vmatprep.subr.mxu0 0.0
        %1697 = vmatpush1.xpose.msra.mxu0 %v1658
        %1698 = vmatprep.subr.mxu0 0.0
        %1699 = vmatpush1.xpose.msra.mxu0 %v1656
        %1700 = vmatprep.subr.mxu0 0.0
        %1701 = vmatpush1.xpose.msra.mxu0 %v1654
        %1702 = vmatprep.subr.mxu0 0.0
        %1703 = vmatpush2.xpose.msra.mxu0 0.0
        %1704 = vmatprep.subr.mxu0 0.0
        %1705 = vmatpush2.xpose.msra.mxu0 0.0
        %1706 = vmatprep.subr.mxu0 0.0
        %1707 = vmatpush2.xpose.msra.mxu0 0.0
        %1708 = vmatprep.subr.mxu0 0.0
        %1709 = vmatpush2.xpose.msra.mxu0 0.0
        %1710 = vmatprep.subr.mxu0 0.0
        %1711 = vmatpush2.xpose.msra.mxu0 0.0
        %1712 = vmatprep.subr.mxu0 0.0
        %1713 = vmatpush2.xpose.msra.mxu0 0.0
        %1714 = vmatprep.subr.mxu0 0.0
        %1715 = vmatpush2.xpose.msra.mxu0 0.0
        %1716 = vmatprep.subr.mxu0 0.0
        %1717 = vmatpush2.xpose.msra.mxu0 0.0
        %1718 = vmatprep.subr.mxu0 0.0
        %1719 = vmatpush2.xpose.msra.mxu0 0.0
        %1720 = vmatprep.subr.mxu0 0.0
        %1721 = vmatpush2.xpose.msra.mxu0 0.0
        %1722 = vmatprep.subr.mxu0 0.0
        %1723 = vmatpush2.xpose.msra.mxu0 0.0
        %1724 = vmatprep.subr.mxu0 0.0
        %1725 = vmatpush2.xpose.msra.mxu0 0.0
        %1726 = vmatprep.subr.mxu0 0.0
        %1727 = vmatpush2.xpose.msra.mxu0 0.0
        %1728 = vmatprep.subr.mxu0 0.0
        %1729 = vmatpush2.xpose.msra.mxu0 0.0
        %1730 = vmatprep.subr.mxu0 0.0
        %1731 = vmatpush2.xpose.msra.mxu0 0.0
        %1732 = vmatprep.subr.mxu0 0.0
        %1733 = vmatpush2.xpose.msra.mxu0 0.0
        %1734 = vmatprep.mubr.f32.mxu0 0.0
        %1735 = vmatmul.mubr.f32.gmra.mxu0 %v1631
        %v1736 = vpop.f32.mrf.mxu0
        %v1737 = vadd.f32 %v1252, %v1736
        %v1738 = vpop.f32.mrf.mxu0
        %1739 = vmatprep.mubr.f32.mxu0 0.0
        %1740 = vmatmul.mubr.f32.gmra.mxu0 %v1634
        %v1741 = vpop.f32.mrf.mxu0
        %v1742 = vadd.f32 %v1253, %v1741
        %v1743 = vpop.f32.mrf.mxu0
        %1744 = vmatprep.mubr.f32.mxu0 0.0
        %1745 = vmatmul.mubr.f32.gmra.mxu0 %v1637
        %v1746 = vpop.f32.mrf.mxu0
        %v1747 = vadd.f32 %v1254, %v1746
        %v1748 = vpop.f32.mrf.mxu0
        %1749 = vmatprep.mubr.f32.mxu0 0.0
        %1750 = vmatmul.mubr.f32.gmra.mxu0 %v1640
        %v1751 = vpop.f32.mrf.mxu0
        %v1752 = vadd.f32 %v1255, %v1751
        %v1753 = vpop.f32.mrf.mxu0
        %1754 = vmatprep.mubr.f32.mxu0 0.0
        %1755 = vmatmul.mubr.f32.gmra.mxu0 %v1643
        %v1756 = vpop.f32.mrf.mxu0
        %v1757 = vadd.f32 %v1256, %v1756
        %v1758 = vpop.f32.mrf.mxu0
        %1759 = vmatprep.mubr.f32.mxu0 0.0
        %1760 = vmatmul.mubr.f32.gmra.mxu0 %v1646
        %v1761 = vpop.f32.mrf.mxu0
        %v1762 = vadd.f32 %v1257, %v1761
        %v1763 = vpop.f32.mrf.mxu0
        %1764 = vmatprep.mubr.f32.mxu0 0.0
        %1765 = vmatmul.mubr.f32.gmra.mxu0 %v1649
        %v1766 = vpop.f32.mrf.mxu0
        %v1767 = vadd.f32 %v1258, %v1766
        %v1768 = vpop.f32.mrf.mxu0
        %1769 = vmatprep.mubr.f32.mxu0 0.0
        %1770 = vmatmul.mubr.f32.gmra.mxu0 %v1652
        %v1771 = vpop.f32.mrf.mxu0
        %v1772 = vadd.f32 %v1259, %v1771
        %v1773 = vpop.f32.mrf.mxu0
        %1774 = vdwg.mxu0
        %1783 = vrot.lane.b32.xlu0 %v1228, 96
        %v1784 = vpop.permute.xlu0 %1783
        %1785 = vrot.lane.b32.xlu0 %v1229, 96
        %v1786 = vpop.permute.xlu0 %1785
        %1787 = vrot.lane.b32.xlu0 %v1230, 96
        %v1788 = vpop.permute.xlu0 %1787
        %1789 = vrot.lane.b32.xlu0 %v1231, 96
        %v1790 = vpop.permute.xlu0 %1789
        %1791 = vrot.lane.b32.xlu0 %v1232, 96
        %v1792 = vpop.permute.xlu0 %1791
        %1793 = vrot.lane.b32.xlu0 %v1233, 96
        %v1794 = vpop.permute.xlu0 %1793
        %1795 = vrot.lane.b32.xlu0 %v1234, 96
        %v1796 = vpop.permute.xlu0 %1795
        %1797 = vrot.lane.b32.xlu0 %v1235, 96
        %v1798 = vpop.permute.xlu0 %1797
        %v1800 = vsel %vm689, %v1196, 0
        %v1803 = vsel %vm689, %v1197, 0
        %v1806 = vsel %vm689, %v1198, 0
        %v1809 = vsel %vm689, %v1199, 0
        %v1812 = vsel %vm689, %v1200, 0
        %v1815 = vsel %vm689, %v1201, 0
        %v1818 = vsel %vm689, %v1202, 0
        %v1821 = vsel %vm689, %v1203, 0
        %v1823 = vsel %vm689, %v1784, 0
        %v1825 = vsel %vm689, %v1786, 0
        %v1827 = vsel %vm689, %v1788, 0
        %v1829 = vsel %vm689, %v1790, 0
        %v1831 = vsel %vm689, %v1792, 0
        %v1833 = vsel %vm689, %v1794, 0
        %v1835 = vsel %vm689, %v1796, 0
        %v1837 = vsel %vm689, %v1798, 0
        %1839 = vmatprep.subr.mxu0 0.0
        %1840 = vmatpush1.xpose.msra.mxu0 0.0
        %1841 = vmatprep.subr.mxu0 0.0
        %1842 = vmatpush1.xpose.msra.mxu0 0.0
        %1843 = vmatprep.subr.mxu0 0.0
        %1844 = vmatpush1.xpose.msra.mxu0 0.0
        %1845 = vmatprep.subr.mxu0 0.0
        %1846 = vmatpush1.xpose.msra.mxu0 0.0
        %1847 = vmatprep.subr.mxu0 0.0
        %1848 = vmatpush1.xpose.msra.mxu0 0.0
        %1849 = vmatprep.subr.mxu0 0.0
        %1850 = vmatpush1.xpose.msra.mxu0 0.0
        %1851 = vmatprep.subr.mxu0 0.0
        %1852 = vmatpush1.xpose.msra.mxu0 0.0
        %1853 = vmatprep.subr.mxu0 0.0
        %1854 = vmatpush1.xpose.msra.mxu0 0.0
        %1855 = vmatprep.subr.mxu0 0.0
        %1856 = vmatpush1.xpose.msra.mxu0 %v1837
        %1857 = vmatprep.subr.mxu0 0.0
        %1858 = vmatpush1.xpose.msra.mxu0 %v1835
        %1859 = vmatprep.subr.mxu0 0.0
        %1860 = vmatpush1.xpose.msra.mxu0 %v1833
        %1861 = vmatprep.subr.mxu0 0.0
        %1862 = vmatpush1.xpose.msra.mxu0 %v1831
        %1863 = vmatprep.subr.mxu0 0.0
        %1864 = vmatpush1.xpose.msra.mxu0 %v1829
        %1865 = vmatprep.subr.mxu0 0.0
        %1866 = vmatpush1.xpose.msra.mxu0 %v1827
        %1867 = vmatprep.subr.mxu0 0.0
        %1868 = vmatpush1.xpose.msra.mxu0 %v1825
        %1869 = vmatprep.subr.mxu0 0.0
        %1870 = vmatpush1.xpose.msra.mxu0 %v1823
        %1871 = vmatprep.subr.mxu0 0.0
        %1872 = vmatpush2.xpose.msra.mxu0 0.0
        %1873 = vmatprep.subr.mxu0 0.0
        %1874 = vmatpush2.xpose.msra.mxu0 0.0
        %1875 = vmatprep.subr.mxu0 0.0
        %1876 = vmatpush2.xpose.msra.mxu0 0.0
        %1877 = vmatprep.subr.mxu0 0.0
        %1878 = vmatpush2.xpose.msra.mxu0 0.0
        %1879 = vmatprep.subr.mxu0 0.0
        %1880 = vmatpush2.xpose.msra.mxu0 0.0
        %1881 = vmatprep.subr.mxu0 0.0
        %1882 = vmatpush2.xpose.msra.mxu0 0.0
        %1883 = vmatprep.subr.mxu0 0.0
        %1884 = vmatpush2.xpose.msra.mxu0 0.0
        %1885 = vmatprep.subr.mxu0 0.0
        %1886 = vmatpush2.xpose.msra.mxu0 0.0
        %1887 = vmatprep.subr.mxu0 0.0
        %1888 = vmatpush2.xpose.msra.mxu0 0.0
        %1889 = vmatprep.subr.mxu0 0.0
        %1890 = vmatpush2.xpose.msra.mxu0 0.0
        %1891 = vmatprep.subr.mxu0 0.0
        %1892 = vmatpush2.xpose.msra.mxu0 0.0
        %1893 = vmatprep.subr.mxu0 0.0
        %1894 = vmatpush2.xpose.msra.mxu0 0.0
        %1895 = vmatprep.subr.mxu0 0.0
        %1896 = vmatpush2.xpose.msra.mxu0 0.0
        %1897 = vmatprep.subr.mxu0 0.0
        %1898 = vmatpush2.xpose.msra.mxu0 0.0
        %1899 = vmatprep.subr.mxu0 0.0
        %1900 = vmatpush2.xpose.msra.mxu0 0.0
        %1901 = vmatprep.subr.mxu0 0.0
        %1902 = vmatpush2.xpose.msra.mxu0 0.0
        %1903 = vmatprep.mubr.f32.mxu0 0.0
        %1904 = vmatmul.mubr.f32.gmra.mxu0 %v1800
        %v1905 = vpop.f32.mrf.mxu0
        %v1906 = vadd.f32 %v1260, %v1905
        %v1907 = vpop.f32.mrf.mxu0
        %1908 = vmatprep.mubr.f32.mxu0 0.0
        %1909 = vmatmul.mubr.f32.gmra.mxu0 %v1803
        %v1910 = vpop.f32.mrf.mxu0
        %v1911 = vadd.f32 %v1261, %v1910
        %v1912 = vpop.f32.mrf.mxu0
        %1913 = vmatprep.mubr.f32.mxu0 0.0
        %1914 = vmatmul.mubr.f32.gmra.mxu0 %v1806
        %v1915 = vpop.f32.mrf.mxu0
        %v1916 = vadd.f32 %v1262, %v1915
        %v1917 = vpop.f32.mrf.mxu0
        %1918 = vmatprep.mubr.f32.mxu0 0.0
        %1919 = vmatmul.mubr.f32.gmra.mxu0 %v1809
        %v1920 = vpop.f32.mrf.mxu0
        %v1921 = vadd.f32 %v1263, %v1920
        %v1922 = vpop.f32.mrf.mxu0
        %1923 = vmatprep.mubr.f32.mxu0 0.0
        %1924 = vmatmul.mubr.f32.gmra.mxu0 %v1812
        %v1925 = vpop.f32.mrf.mxu0
        %v1926 = vadd.f32 %v1264, %v1925
        %v1927 = vpop.f32.mrf.mxu0
        %1928 = vmatprep.mubr.f32.mxu0 0.0
        %1929 = vmatmul.mubr.f32.gmra.mxu0 %v1815
        %v1930 = vpop.f32.mrf.mxu0
        %v1931 = vadd.f32 %v1265, %v1930
        %v1932 = vpop.f32.mrf.mxu0
        %1933 = vmatprep.mubr.f32.mxu0 0.0
        %1934 = vmatmul.mubr.f32.gmra.mxu0 %v1818
        %v1935 = vpop.f32.mrf.mxu0
        %v1936 = vadd.f32 %v1266, %v1935
        %v1937 = vpop.f32.mrf.mxu0
        %1938 = vmatprep.mubr.f32.mxu0 0.0
        %1939 = vmatmul.mubr.f32.gmra.mxu0 %v1821
        %v1940 = vpop.f32.mrf.mxu0
        %v1941 = vadd.f32 %v1267, %v1940
        %v1942 = vpop.f32.mrf.mxu0
        %1943 = vdwg.mxu0
        %vm1944 = vcmask 523264
        %v1945 = vsel %vm1944, %v1399, -inf
        %1946 = vmax.xlane.f32.xlu0 %v1945
        %v1947 = vpop.xlane.xlu0 %1946
        %v1948 = vsel %vm1944, %v1404, -inf
        %1949 = vmax.xlane.f32.xlu0 %v1948
        %v1950 = vpop.xlane.xlu0 %1949
        %v1951 = vsel %vm1944, %v1409, -inf
        %1952 = vmax.xlane.f32.xlu0 %v1951
        %v1953 = vpop.xlane.xlu0 %1952
        %v1954 = vsel %vm1944, %v1414, -inf
        %1955 = vmax.xlane.f32.xlu0 %v1954
        %v1956 = vpop.xlane.xlu0 %1955
        %v1957 = vsel %vm1944, %v1419, -inf
        %1958 = vmax.xlane.f32.xlu0 %v1957
        %v1959 = vpop.xlane.xlu0 %1958
        %v1960 = vsel %vm1944, %v1424, -inf
        %1961 = vmax.xlane.f32.xlu0 %v1960
        %v1962 = vpop.xlane.xlu0 %1961
        %v1963 = vsel %vm1944, %v1429, -inf
        %1964 = vmax.xlane.f32.xlu0 %v1963
        %v1965 = vpop.xlane.xlu0 %1964
        %v1966 = vsel %vm1944, %v1434, -inf
        %1967 = vmax.xlane.f32.xlu0 %v1966
        %v1968 = vpop.xlane.xlu0 %1967
        %v1969 = vsel %vm1944, %v1568, -inf
        %1970 = vmax.xlane.f32.xlu0 %v1969
        %v1971 = vpop.xlane.xlu0 %1970
        %v1972 = vsel %vm1944, %v1573, -inf
        %1973 = vmax.xlane.f32.xlu0 %v1972
        %v1974 = vpop.xlane.xlu0 %1973
        %v1975 = vsel %vm1944, %v1578, -inf
        %1976 = vmax.xlane.f32.xlu0 %v1975
        %v1977 = vpop.xlane.xlu0 %1976
        %v1978 = vsel %vm1944, %v1583, -inf
        %1979 = vmax.xlane.f32.xlu0 %v1978
        %v1980 = vpop.xlane.xlu0 %1979
        %v1981 = vsel %vm1944, %v1588, -inf
        %1982 = vmax.xlane.f32.xlu0 %v1981
        %v1983 = vpop.xlane.xlu0 %1982
        %v1984 = vsel %vm1944, %v1593, -inf
        %1985 = vmax.xlane.f32.xlu0 %v1984
        %v1986 = vpop.xlane.xlu0 %1985
        %v1987 = vsel %vm1944, %v1598, -inf
        %1988 = vmax.xlane.f32.xlu0 %v1987
        %v1989 = vpop.xlane.xlu0 %1988
        %v1990 = vsel %vm1944, %v1603, -inf
        %1991 = vmax.xlane.f32.xlu0 %v1990
        %v1992 = vpop.xlane.xlu0 %1991
        %v1993 = vsel %vm1944, %v1737, -inf
        %1994 = vmax.xlane.f32.xlu0 %v1993
        %v1995 = vpop.xlane.xlu0 %1994
        %v1996 = vsel %vm1944, %v1742, -inf
        %1997 = vmax.xlane.f32.xlu0 %v1996
        %v1998 = vpop.xlane.xlu0 %1997
        %v1999 = vsel %vm1944, %v1747, -inf
        %2000 = vmax.xlane.f32.xlu0 %v1999
        %v2001 = vpop.xlane.xlu0 %2000
        %v2002 = vsel %vm1944, %v1752, -inf
        %2003 = vmax.xlane.f32.xlu0 %v2002
        %v2004 = vpop.xlane.xlu0 %2003
        %v2005 = vsel %vm1944, %v1757, -inf
        %2006 = vmax.xlane.f32.xlu0 %v2005
        %v2007 = vpop.xlane.xlu0 %2006
        %v2008 = vsel %vm1944, %v1762, -inf
        %2009 = vmax.xlane.f32.xlu0 %v2008
        %v2010 = vpop.xlane.xlu0 %2009
        %v2011 = vsel %vm1944, %v1767, -inf
        %2012 = vmax.xlane.f32.xlu0 %v2011
        %v2013 = vpop.xlane.xlu0 %2012
        %v2014 = vsel %vm1944, %v1772, -inf
        %2015 = vmax.xlane.f32.xlu0 %v2014
        %v2016 = vpop.xlane.xlu0 %2015
        %v2017 = vsel %vm1944, %v1906, -inf
        %2018 = vmax.xlane.f32.xlu0 %v2017
        %v2019 = vpop.xlane.xlu0 %2018
        %v2020 = vsel %vm1944, %v1911, -inf
        %2021 = vmax.xlane.f32.xlu0 %v2020
        %v2022 = vpop.xlane.xlu0 %2021
        %v2023 = vsel %vm1944, %v1916, -inf
        %2024 = vmax.xlane.f32.xlu0 %v2023
        %v2025 = vpop.xlane.xlu0 %2024
        %v2026 = vsel %vm1944, %v1921, -inf
        %2027 = vmax.xlane.f32.xlu0 %v2026
        %v2028 = vpop.xlane.xlu0 %2027
        %v2029 = vsel %vm1944, %v1926, -inf
        %2030 = vmax.xlane.f32.xlu0 %v2029
        %v2031 = vpop.xlane.xlu0 %2030
        %v2032 = vsel %vm1944, %v1931, -inf
        %2033 = vmax.xlane.f32.xlu0 %v2032
        %v2034 = vpop.xlane.xlu0 %2033
        %v2035 = vsel %vm1944, %v1936, -inf
        %2036 = vmax.xlane.f32.xlu0 %v2035
        %v2037 = vpop.xlane.xlu0 %2036
        %v2038 = vsel %vm1944, %v1941, -inf
        %2039 = vmax.xlane.f32.xlu0 %v2038
        %v2040 = vpop.xlane.xlu0 %2039
        %v2041 = vsub.f32 %v1399, %v1947
        %v2042 = vsub.f32 %v1404, %v1950
        %v2043 = vsub.f32 %v1409, %v1953
        %v2044 = vsub.f32 %v1414, %v1956
        %v2045 = vsub.f32 %v1419, %v1959
        %v2046 = vsub.f32 %v1424, %v1962
        %v2047 = vsub.f32 %v1429, %v1965
        %v2048 = vsub.f32 %v1434, %v1968
        %v2049 = vsub.f32 %v1568, %v1971
        %v2050 = vsub.f32 %v1573, %v1974
        %v2051 = vsub.f32 %v1578, %v1977
        %v2052 = vsub.f32 %v1583, %v1980
        %v2053 = vsub.f32 %v1588, %v1983
        %v2054 = vsub.f32 %v1593, %v1986
        %v2055 = vsub.f32 %v1598, %v1989
        %v2056 = vsub.f32 %v1603, %v1992
        %v2057 = vsub.f32 %v1737, %v1995
        %v2058 = vsub.f32 %v1742, %v1998
        %v2059 = vsub.f32 %v1747, %v2001
        %v2060 = vsub.f32 %v1752, %v2004
        %v2061 = vsub.f32 %v1757, %v2007
        %v2062 = vsub.f32 %v1762, %v2010
        %v2063 = vsub.f32 %v1767, %v2013
        %v2064 = vsub.f32 %v1772, %v2016
        %v2065 = vsub.f32 %v1906, %v2019
        %v2066 = vsub.f32 %v1911, %v2022
        %v2067 = vsub.f32 %v1916, %v2025
        %v2068 = vsub.f32 %v1921, %v2028
        %v2069 = vsub.f32 %v1926, %v2031
        %v2070 = vsub.f32 %v1931, %v2034
        %v2071 = vsub.f32 %v1936, %v2037
        %v2072 = vsub.f32 %v1941, %v2040
        %v2073 = vmul.f32 %v2041, 1.442695
        %v2074 = vpow.pop %v2073
        %v2075 = vmul.f32 %v2042, 1.442695
        %v2076 = vpow.pop %v2075
        %v2077 = vmul.f32 %v2043, 1.442695
        %v2078 = vpow.pop %v2077
        %v2079 = vmul.f32 %v2044, 1.442695
        %v2080 = vpow.pop %v2079
        %v2081 = vmul.f32 %v2045, 1.442695
        %v2082 = vpow.pop %v2081
        %v2083 = vmul.f32 %v2046, 1.442695
        %v2084 = vpow.pop %v2083
        %v2085 = vmul.f32 %v2047, 1.442695
        %v2086 = vpow.pop %v2085
        %v2087 = vmul.f32 %v2048, 1.442695
        %v2088 = vpow.pop %v2087
        %v2089 = vmul.f32 %v2049, 1.442695
        %v2090 = vpow.pop %v2089
        %v2091 = vmul.f32 %v2050, 1.442695
        %v2092 = vpow.pop %v2091
        %v2093 = vmul.f32 %v2051, 1.442695
        %v2094 = vpow.pop %v2093
        %v2095 = vmul.f32 %v2052, 1.442695
        %v2096 = vpow.pop %v2095
        %v2097 = vmul.f32 %v2053, 1.442695
        %v2098 = vpow.pop %v2097
        %v2099 = vmul.f32 %v2054, 1.442695
        %v2100 = vpow.pop %v2099
        %v2101 = vmul.f32 %v2055, 1.442695
        %v2102 = vpow.pop %v2101
        %v2103 = vmul.f32 %v2056, 1.442695
        %v2104 = vpow.pop %v2103
        %v2105 = vmul.f32 %v2057, 1.442695
        %v2106 = vpow.pop %v2105
        %v2107 = vmul.f32 %v2058, 1.442695
        %v2108 = vpow.pop %v2107
        %v2109 = vmul.f32 %v2059, 1.442695
        %v2110 = vpow.pop %v2109
        %v2111 = vmul.f32 %v2060, 1.442695
        %v2112 = vpow.pop %v2111
        %v2113 = vmul.f32 %v2061, 1.442695
        %v2114 = vpow.pop %v2113
        %v2115 = vmul.f32 %v2062, 1.442695
        %v2116 = vpow.pop %v2115
        %v2117 = vmul.f32 %v2063, 1.442695
        %v2118 = vpow.pop %v2117
        %v2119 = vmul.f32 %v2064, 1.442695
        %v2120 = vpow.pop %v2119
        %v2121 = vmul.f32 %v2065, 1.442695
        %v2122 = vpow.pop %v2121
        %v2123 = vmul.f32 %v2066, 1.442695
        %v2124 = vpow.pop %v2123
        %v2125 = vmul.f32 %v2067, 1.442695
        %v2126 = vpow.pop %v2125
        %v2127 = vmul.f32 %v2068, 1.442695
        %v2128 = vpow.pop %v2127
        %v2129 = vmul.f32 %v2069, 1.442695
        %v2130 = vpow.pop %v2129
        %v2131 = vmul.f32 %v2070, 1.442695
        %v2132 = vpow.pop %v2131
        %v2133 = vmul.f32 %v2071, 1.442695
        %v2134 = vpow.pop %v2133
        %v2135 = vmul.f32 %v2072, 1.442695
        %v2136 = vpow.pop %v2135
        %v2137 = vsel %vm1944, %v2074, 0.0
        %2138 = vadd.xlane.f32.xlu0 %v2137
        %v2139 = vpop.xlane.xlu0 %2138
        %v2140 = vsel %vm1944, %v2076, 0.0
        %2141 = vadd.xlane.f32.xlu0 %v2140
        %v2142 = vpop.xlane.xlu0 %2141
        %v2143 = vsel %vm1944, %v2078, 0.0
        %2144 = vadd.xlane.f32.xlu0 %v2143
        %v2145 = vpop.xlane.xlu0 %2144
        %v2146 = vsel %vm1944, %v2080, 0.0
        %2147 = vadd.xlane.f32.xlu0 %v2146
        %v2148 = vpop.xlane.xlu0 %2147
        %v2149 = vsel %vm1944, %v2082, 0.0
        %2150 = vadd.xlane.f32.xlu0 %v2149
        %v2151 = vpop.xlane.xlu0 %2150
        %v2152 = vsel %vm1944, %v2084, 0.0
        %2153 = vadd.xlane.f32.xlu0 %v2152
        %v2154 = vpop.xlane.xlu0 %2153
        %v2155 = vsel %vm1944, %v2086, 0.0
        %2156 = vadd.xlane.f32.xlu0 %v2155
        %v2157 = vpop.xlane.xlu0 %2156
        %v2158 = vsel %vm1944, %v2088, 0.0
        %2159 = vadd.xlane.f32.xlu0 %v2158
        %v2160 = vpop.xlane.xlu0 %2159
        %v2161 = vsel %vm1944, %v2090, 0.0
        %2162 = vadd.xlane.f32.xlu0 %v2161
        %v2163 = vpop.xlane.xlu0 %2162
        %v2164 = vsel %vm1944, %v2092, 0.0
        %2165 = vadd.xlane.f32.xlu0 %v2164
        %v2166 = vpop.xlane.xlu0 %2165
        %v2167 = vsel %vm1944, %v2094, 0.0
        %2168 = vadd.xlane.f32.xlu0 %v2167
        %v2169 = vpop.xlane.xlu0 %2168
        %v2170 = vsel %vm1944, %v2096, 0.0
        %2171 = vadd.xlane.f32.xlu0 %v2170
        %v2172 = vpop.xlane.xlu0 %2171
        %v2173 = vsel %vm1944, %v2098, 0.0
        %2174 = vadd.xlane.f32.xlu0 %v2173
        %v2175 = vpop.xlane.xlu0 %2174
        %v2176 = vsel %vm1944, %v2100, 0.0
        %2177 = vadd.xlane.f32.xlu0 %v2176
        %v2178 = vpop.xlane.xlu0 %2177
        %v2179 = vsel %vm1944, %v2102, 0.0
        %2180 = vadd.xlane.f32.xlu0 %v2179
        %v2181 = vpop.xlane.xlu0 %2180
        %v2182 = vsel %vm1944, %v2104, 0.0
        %2183 = vadd.xlane.f32.xlu0 %v2182
        %v2184 = vpop.xlane.xlu0 %2183
        %v2185 = vsel %vm1944, %v2106, 0.0
        %2186 = vadd.xlane.f32.xlu0 %v2185
        %v2187 = vpop.xlane.xlu0 %2186
        %v2188 = vsel %vm1944, %v2108, 0.0
        %2189 = vadd.xlane.f32.xlu0 %v2188
        %v2190 = vpop.xlane.xlu0 %2189
        %v2191 = vsel %vm1944, %v2110, 0.0
        %2192 = vadd.xlane.f32.xlu0 %v2191
        %v2193 = vpop.xlane.xlu0 %2192
        %v2194 = vsel %vm1944, %v2112, 0.0
        %2195 = vadd.xlane.f32.xlu0 %v2194
        %v2196 = vpop.xlane.xlu0 %2195
        %v2197 = vsel %vm1944, %v2114, 0.0
        %2198 = vadd.xlane.f32.xlu0 %v2197
        %v2199 = vpop.xlane.xlu0 %2198
        %v2200 = vsel %vm1944, %v2116, 0.0
        %2201 = vadd.xlane.f32.xlu0 %v2200
        %v2202 = vpop.xlane.xlu0 %2201
        %v2203 = vsel %vm1944, %v2118, 0.0
        %2204 = vadd.xlane.f32.xlu0 %v2203
        %v2205 = vpop.xlane.xlu0 %2204
        %v2206 = vsel %vm1944, %v2120, 0.0
        %2207 = vadd.xlane.f32.xlu0 %v2206
        %v2208 = vpop.xlane.xlu0 %2207
        %v2209 = vsel %vm1944, %v2122, 0.0
        %2210 = vadd.xlane.f32.xlu0 %v2209
        %v2211 = vpop.xlane.xlu0 %2210
        %v2212 = vsel %vm1944, %v2124, 0.0
        %2213 = vadd.xlane.f32.xlu0 %v2212
        %v2214 = vpop.xlane.xlu0 %2213
        %v2215 = vsel %vm1944, %v2126, 0.0
        %2216 = vadd.xlane.f32.xlu0 %v2215
        %v2217 = vpop.xlane.xlu0 %2216
        %v2218 = vsel %vm1944, %v2128, 0.0
        %2219 = vadd.xlane.f32.xlu0 %v2218
        %v2220 = vpop.xlane.xlu0 %2219
        %v2221 = vsel %vm1944, %v2130, 0.0
        %2222 = vadd.xlane.f32.xlu0 %v2221
        %v2223 = vpop.xlane.xlu0 %2222
        %v2224 = vsel %vm1944, %v2132, 0.0
        %2225 = vadd.xlane.f32.xlu0 %v2224
        %v2226 = vpop.xlane.xlu0 %2225
        %v2227 = vsel %vm1944, %v2134, 0.0
        %2228 = vadd.xlane.f32.xlu0 %v2227
        %v2229 = vpop.xlane.xlu0 %2228
        %v2230 = vsel %vm1944, %v2136, 0.0
        %2231 = vadd.xlane.f32.xlu0 %v2230
        %v2232 = vpop.xlane.xlu0 %2231
        %v2233 = vrcp.pop %v2139
        %v2234 = vrcp.pop %v2142
        %v2235 = vrcp.pop %v2145
        %v2236 = vrcp.pop %v2148
        %v2237 = vrcp.pop %v2151
        %v2238 = vrcp.pop %v2154
        %v2239 = vrcp.pop %v2157
        %v2240 = vrcp.pop %v2160
        %v2241 = vrcp.pop %v2163
        %v2242 = vrcp.pop %v2166
        %v2243 = vrcp.pop %v2169
        %v2244 = vrcp.pop %v2172
        %v2245 = vrcp.pop %v2175
        %v2246 = vrcp.pop %v2178
        %v2247 = vrcp.pop %v2181
        %v2248 = vrcp.pop %v2184
        %v2249 = vrcp.pop %v2187
        %v2250 = vrcp.pop %v2190
        %v2251 = vrcp.pop %v2193
        %v2252 = vrcp.pop %v2196
        %v2253 = vrcp.pop %v2199
        %v2254 = vrcp.pop %v2202
        %v2255 = vrcp.pop %v2205
        %v2256 = vrcp.pop %v2208
        %v2257 = vrcp.pop %v2211
        %v2258 = vrcp.pop %v2214
        %v2259 = vrcp.pop %v2217
        %v2260 = vrcp.pop %v2220
        %v2261 = vrcp.pop %v2223
        %v2262 = vrcp.pop %v2226
        %v2263 = vrcp.pop %v2229
        %v2264 = vrcp.pop %v2232
        %v2265 = vmul.f32 %v2074, %v2233
        %v2266 = vmul.f32 %v2076, %v2234
        %v2267 = vmul.f32 %v2078, %v2235
        %v2268 = vmul.f32 %v2080, %v2236
        %v2269 = vmul.f32 %v2082, %v2237
        %v2270 = vmul.f32 %v2084, %v2238
        %v2271 = vmul.f32 %v2086, %v2239
        %v2272 = vmul.f32 %v2088, %v2240
        %v2273 = vmul.f32 %v2090, %v2241
        %v2274 = vmul.f32 %v2092, %v2242
        %v2275 = vmul.f32 %v2094, %v2243
        %v2276 = vmul.f32 %v2096, %v2244
        %v2277 = vmul.f32 %v2098, %v2245
        %v2278 = vmul.f32 %v2100, %v2246
        %v2279 = vmul.f32 %v2102, %v2247
        %v2280 = vmul.f32 %v2104, %v2248
        %v2281 = vmul.f32 %v2106, %v2249
        %v2282 = vmul.f32 %v2108, %v2250
        %v2283 = vmul.f32 %v2110, %v2251
        %v2284 = vmul.f32 %v2112, %v2252
        %v2285 = vmul.f32 %v2114, %v2253
        %v2286 = vmul.f32 %v2116, %v2254
        %v2287 = vmul.f32 %v2118, %v2255
        %v2288 = vmul.f32 %v2120, %v2256
        %v2289 = vmul.f32 %v2122, %v2257
        %v2290 = vmul.f32 %v2124, %v2258
        %v2291 = vmul.f32 %v2126, %v2259
        %v2292 = vmul.f32 %v2128, %v2260
        %v2293 = vmul.f32 %v2130, %v2261
        %v2294 = vmul.f32 %v2132, %v2262
        %v2295 = vmul.f32 %v2134, %v2263
        %v2296 = vmul.f32 %v2136, %v2264
        %v2297 = vpack.c.bf16 %v2266, %v2265
        %v2298 = vpack.c.bf16 %v2268, %v2267
        %v2299 = vpack.c.bf16 %v2270, %v2269
        %v2300 = vpack.c.bf16 %v2272, %v2271
        %v2301 = vpack.c.bf16 %v2274, %v2273
        %v2302 = vpack.c.bf16 %v2276, %v2275
        %v2303 = vpack.c.bf16 %v2278, %v2277
        %v2304 = vpack.c.bf16 %v2280, %v2279
        %v2305 = vpack.c.bf16 %v2282, %v2281
        %v2306 = vpack.c.bf16 %v2284, %v2283
        %v2307 = vpack.c.bf16 %v2286, %v2285
        %v2308 = vpack.c.bf16 %v2288, %v2287
        %v2309 = vpack.c.bf16 %v2290, %v2289
        %v2310 = vpack.c.bf16 %v2292, %v2291
        %v2311 = vpack.c.bf16 %v2294, %v2293
        %v2312 = vpack.c.bf16 %v2296, %v2295
        %v2313 = vpack.c.bf16 %v534, %v531
        %v2314 = vpack.c.bf16 %v542, %v539
        %v2315 = vpack.c.bf16 %v550, %v547
        %v2316 = vpack.c.bf16 %v558, %v555
        %v2317 = vpack.c.bf16 %v566, %v563
        %v2318 = vpack.c.bf16 %v574, %v571
        %v2319 = vpack.c.bf16 %v582, %v579
        %v2320 = vpack.c.bf16 %v590, %v587
        %v2321 = vpack.c.bf16 %v598, %v595
        %v2322 = vpack.c.bf16 %v606, %v603
        %v2323 = vpack.c.bf16 %v614, %v611
        %v2324 = vpack.c.bf16 %v622, %v619
        %v2325 = vpack.c.bf16 %v630, %v627
        %v2326 = vpack.c.bf16 %v638, %v635
        %v2327 = vpack.c.bf16 %v646, %v643
        %v2328 = vpack.c.bf16 %v654, %v651
        %2333 = vrot.lane.b32.xlu0 %v2313, 64
        %v2334 = vpop.permute.xlu0 %2333
        %2335 = vrot.lane.b32.xlu0 %v2314, 64
        %v2336 = vpop.permute.xlu0 %2335
        %2337 = vrot.lane.b32.xlu0 %v2315, 64
        %v2338 = vpop.permute.xlu0 %2337
        %2339 = vrot.lane.b32.xlu0 %v2316, 64
        %v2340 = vpop.permute.xlu0 %2339
        %v2346 = vsel %vm1944, %v2297, 0
        %v2349 = vsel %vm1944, %v2298, 0
        %v2352 = vsel %vm1944, %v2299, 0
        %v2355 = vsel %vm1944, %v2300, 0
        %2357 = vmatprep.subr.bf16.mxu0 0
        %2358 = vmatpush1.bf16.msra.mxu0 0
        %2359 = vmatprep.subr.bf16.mxu0 0
        %2360 = vmatpush1.bf16.msra.mxu0 0
        %2361 = vmatprep.subr.bf16.mxu0 0
        %2362 = vmatpush1.bf16.msra.mxu0 0
        %2363 = vmatprep.subr.bf16.mxu0 0
        %2364 = vmatpush1.bf16.msra.mxu0 0
        %2365 = vmatprep.subr.bf16.mxu0 0
        %2366 = vmatpush1.bf16.msra.mxu0 %v2340
        %2367 = vmatprep.subr.bf16.mxu0 0
        %2368 = vmatpush1.bf16.msra.mxu0 %v2338
        %2369 = vmatprep.subr.bf16.mxu0 0
        %2370 = vmatpush1.bf16.msra.mxu0 %v2336
        %2371 = vmatprep.subr.bf16.mxu0 0
        %2372 = vmatpush1.bf16.msra.mxu0 %v2334
        %2373 = vmatprep.subr.bf16.mxu0 0
        %2374 = vmatpush2.bf16.msra.mxu0 0
        %2375 = vmatprep.subr.bf16.mxu0 0
        %2376 = vmatpush2.bf16.msra.mxu0 0
        %2377 = vmatprep.subr.bf16.mxu0 0
        %2378 = vmatpush2.bf16.msra.mxu0 0
        %2379 = vmatprep.subr.bf16.mxu0 0
        %2380 = vmatpush2.bf16.msra.mxu0 0
        %2381 = vmatprep.subr.bf16.mxu0 0
        %2382 = vmatpush2.bf16.msra.mxu0 0
        %2383 = vmatprep.subr.bf16.mxu0 0
        %2384 = vmatpush2.bf16.msra.mxu0 0
        %2385 = vmatprep.subr.bf16.mxu0 0
        %2386 = vmatpush2.bf16.msra.mxu0 0
        %2387 = vmatprep.subr.bf16.mxu0 0
        %2388 = vmatpush2.bf16.msra.mxu0 0
        %2389 = vmatprep.mubr.bf16.mxu0 0
        %2390 = vmatmul.mubr.bf16.gmra.mxu0 %v2346
        %v2391 = vpop.f32.mrf.mxu0
        %v2392 = vadd.f32 0.0, %v2391
        %v2393 = vpop.f32.mrf.mxu0
        %v2394 = vpop.f32.mrf.mxu0
        %v2395 = vadd.f32 0.0, %v2394
        %v2396 = vpop.f32.mrf.mxu0
        %2397 = vmatprep.mubr.bf16.mxu0 0
        %2398 = vmatmul.mubr.bf16.gmra.mxu0 %v2349
        %v2399 = vpop.f32.mrf.mxu0
        %v2400 = vadd.f32 0.0, %v2399
        %v2401 = vpop.f32.mrf.mxu0
        %v2402 = vpop.f32.mrf.mxu0
        %v2403 = vadd.f32 0.0, %v2402
        %v2404 = vpop.f32.mrf.mxu0
        %2405 = vmatprep.mubr.bf16.mxu0 0
        %2406 = vmatmul.mubr.bf16.gmra.mxu0 %v2352
        %v2407 = vpop.f32.mrf.mxu0
        %v2408 = vadd.f32 0.0, %v2407
        %v2409 = vpop.f32.mrf.mxu0
        %v2410 = vpop.f32.mrf.mxu0
        %v2411 = vadd.f32 0.0, %v2410
        %v2412 = vpop.f32.mrf.mxu0
        %2413 = vmatprep.mubr.bf16.mxu0 0
        %2414 = vmatmul.mubr.bf16.gmra.mxu0 %v2355
        %v2415 = vpop.f32.mrf.mxu0
        %v2416 = vadd.f32 0.0, %v2415
        %v2417 = vpop.f32.mrf.mxu0
        %v2418 = vpop.f32.mrf.mxu0
        %v2419 = vadd.f32 0.0, %v2418
        %v2420 = vpop.f32.mrf.mxu0
        %2421 = vdwg.mxu0
        %2426 = vrot.lane.b32.xlu0 %v2317, 64
        %v2427 = vpop.permute.xlu0 %2426
        %2428 = vrot.lane.b32.xlu0 %v2318, 64
        %v2429 = vpop.permute.xlu0 %2428
        %2430 = vrot.lane.b32.xlu0 %v2319, 64
        %v2431 = vpop.permute.xlu0 %2430
        %2432 = vrot.lane.b32.xlu0 %v2320, 64
        %v2433 = vpop.permute.xlu0 %2432
        %v2439 = vsel %vm1944, %v2301, 0
        %v2442 = vsel %vm1944, %v2302, 0
        %v2445 = vsel %vm1944, %v2303, 0
        %v2448 = vsel %vm1944, %v2304, 0
        %2450 = vmatprep.subr.bf16.mxu0 0
        %2451 = vmatpush1.bf16.msra.mxu0 0
        %2452 = vmatprep.subr.bf16.mxu0 0
        %2453 = vmatpush1.bf16.msra.mxu0 0
        %2454 = vmatprep.subr.bf16.mxu0 0
        %2455 = vmatpush1.bf16.msra.mxu0 0
        %2456 = vmatprep.subr.bf16.mxu0 0
        %2457 = vmatpush1.bf16.msra.mxu0 0
        %2458 = vmatprep.subr.bf16.mxu0 0
        %2459 = vmatpush1.bf16.msra.mxu0 %v2433
        %2460 = vmatprep.subr.bf16.mxu0 0
        %2461 = vmatpush1.bf16.msra.mxu0 %v2431
        %2462 = vmatprep.subr.bf16.mxu0 0
        %2463 = vmatpush1.bf16.msra.mxu0 %v2429
        %2464 = vmatprep.subr.bf16.mxu0 0
        %2465 = vmatpush1.bf16.msra.mxu0 %v2427
        %2466 = vmatprep.subr.bf16.mxu0 0
        %2467 = vmatpush2.bf16.msra.mxu0 0
        %2468 = vmatprep.subr.bf16.mxu0 0
        %2469 = vmatpush2.bf16.msra.mxu0 0
        %2470 = vmatprep.subr.bf16.mxu0 0
        %2471 = vmatpush2.bf16.msra.mxu0 0
        %2472 = vmatprep.subr.bf16.mxu0 0
        %2473 = vmatpush2.bf16.msra.mxu0 0
        %2474 = vmatprep.subr.bf16.mxu0 0
        %2475 = vmatpush2.bf16.msra.mxu0 0
        %2476 = vmatprep.subr.bf16.mxu0 0
        %2477 = vmatpush2.bf16.msra.mxu0 0
        %2478 = vmatprep.subr.bf16.mxu0 0
        %2479 = vmatpush2.bf16.msra.mxu0 0
        %2480 = vmatprep.subr.bf16.mxu0 0
        %2481 = vmatpush2.bf16.msra.mxu0 0
        %2482 = vmatprep.mubr.bf16.mxu0 0
        %2483 = vmatmul.mubr.bf16.gmra.mxu0 %v2439
        %v2484 = vpop.f32.mrf.mxu0
        %v2485 = vadd.f32 0.0, %v2484
        %v2486 = vpop.f32.mrf.mxu0
        %v2487 = vpop.f32.mrf.mxu0
        %v2488 = vadd.f32 0.0, %v2487
        %v2489 = vpop.f32.mrf.mxu0
        %2490 = vmatprep.mubr.bf16.mxu0 0
        %2491 = vmatmul.mubr.bf16.gmra.mxu0 %v2442
        %v2492 = vpop.f32.mrf.mxu0
        %v2493 = vadd.f32 0.0, %v2492
        %v2494 = vpop.f32.mrf.mxu0
        %v2495 = vpop.f32.mrf.mxu0
        %v2496 = vadd.f32 0.0, %v2495
        %v2497 = vpop.f32.mrf.mxu0
        %2498 = vmatprep.mubr.bf16.mxu0 0
        %2499 = vmatmul.mubr.bf16.gmra.mxu0 %v2445
        %v2500 = vpop.f32.mrf.mxu0
        %v2501 = vadd.f32 0.0, %v2500
        %v2502 = vpop.f32.mrf.mxu0
        %v2503 = vpop.f32.mrf.mxu0
        %v2504 = vadd.f32 0.0, %v2503
        %v2505 = vpop.f32.mrf.mxu0
        %2506 = vmatprep.mubr.bf16.mxu0 0
        %2507 = vmatmul.mubr.bf16.gmra.mxu0 %v2448
        %v2508 = vpop.f32.mrf.mxu0
        %v2509 = vadd.f32 0.0, %v2508
        %v2510 = vpop.f32.mrf.mxu0
        %v2511 = vpop.f32.mrf.mxu0
        %v2512 = vadd.f32 0.0, %v2511
        %v2513 = vpop.f32.mrf.mxu0
        %2514 = vdwg.mxu0
        %2519 = vrot.lane.b32.xlu0 %v2321, 64
        %v2520 = vpop.permute.xlu0 %2519
        %2521 = vrot.lane.b32.xlu0 %v2322, 64
        %v2522 = vpop.permute.xlu0 %2521
        %2523 = vrot.lane.b32.xlu0 %v2323, 64
        %v2524 = vpop.permute.xlu0 %2523
        %2525 = vrot.lane.b32.xlu0 %v2324, 64
        %v2526 = vpop.permute.xlu0 %2525
        %v2532 = vsel %vm1944, %v2305, 0
        %v2535 = vsel %vm1944, %v2306, 0
        %v2538 = vsel %vm1944, %v2307, 0
        %v2541 = vsel %vm1944, %v2308, 0
        %2543 = vmatprep.subr.bf16.mxu0 0
        %2544 = vmatpush1.bf16.msra.mxu0 0
        %2545 = vmatprep.subr.bf16.mxu0 0
        %2546 = vmatpush1.bf16.msra.mxu0 0
        %2547 = vmatprep.subr.bf16.mxu0 0
        %2548 = vmatpush1.bf16.msra.mxu0 0
        %2549 = vmatprep.subr.bf16.mxu0 0
        %2550 = vmatpush1.bf16.msra.mxu0 0
        %2551 = vmatprep.subr.bf16.mxu0 0
        %2552 = vmatpush1.bf16.msra.mxu0 %v2526
        %2553 = vmatprep.subr.bf16.mxu0 0
        %2554 = vmatpush1.bf16.msra.mxu0 %v2524
        %2555 = vmatprep.subr.bf16.mxu0 0
        %2556 = vmatpush1.bf16.msra.mxu0 %v2522
        %2557 = vmatprep.subr.bf16.mxu0 0
        %2558 = vmatpush1.bf16.msra.mxu0 %v2520
        %2559 = vmatprep.subr.bf16.mxu0 0
        %2560 = vmatpush2.bf16.msra.mxu0 0
        %2561 = vmatprep.subr.bf16.mxu0 0
        %2562 = vmatpush2.bf16.msra.mxu0 0
        %2563 = vmatprep.subr.bf16.mxu0 0
        %2564 = vmatpush2.bf16.msra.mxu0 0
        %2565 = vmatprep.subr.bf16.mxu0 0
        %2566 = vmatpush2.bf16.msra.mxu0 0
        %2567 = vmatprep.subr.bf16.mxu0 0
        %2568 = vmatpush2.bf16.msra.mxu0 0
        %2569 = vmatprep.subr.bf16.mxu0 0
        %2570 = vmatpush2.bf16.msra.mxu0 0
        %2571 = vmatprep.subr.bf16.mxu0 0
        %2572 = vmatpush2.bf16.msra.mxu0 0
        %2573 = vmatprep.subr.bf16.mxu0 0
        %2574 = vmatpush2.bf16.msra.mxu0 0
        %2575 = vmatprep.mubr.bf16.mxu0 0
        %2576 = vmatmul.mubr.bf16.gmra.mxu0 %v2532
        %v2577 = vpop.f32.mrf.mxu0
        %v2578 = vadd.f32 0.0, %v2577
        %v2579 = vpop.f32.mrf.mxu0
        %v2580 = vpop.f32.mrf.mxu0
        %v2581 = vadd.f32 0.0, %v2580
        %v2582 = vpop.f32.mrf.mxu0
        %2583 = vmatprep.mubr.bf16.mxu0 0
        %2584 = vmatmul.mubr.bf16.gmra.mxu0 %v2535
        %v2585 = vpop.f32.mrf.mxu0
        %v2586 = vadd.f32 0.0, %v2585
        %v2587 = vpop.f32.mrf.mxu0
        %v2588 = vpop.f32.mrf.mxu0
        %v2589 = vadd.f32 0.0, %v2588
        %v2590 = vpop.f32.mrf.mxu0
        %2591 = vmatprep.mubr.bf16.mxu0 0
        %2592 = vmatmul.mubr.bf16.gmra.mxu0 %v2538
        %v2593 = vpop.f32.mrf.mxu0
        %v2594 = vadd.f32 0.0, %v2593
        %v2595 = vpop.f32.mrf.mxu0
        %v2596 = vpop.f32.mrf.mxu0
        %v2597 = vadd.f32 0.0, %v2596
        %v2598 = vpop.f32.mrf.mxu0
        %2599 = vmatprep.mubr.bf16.mxu0 0
        %2600 = vmatmul.mubr.bf16.gmra.mxu0 %v2541
        %v2601 = vpop.f32.mrf.mxu0
        %v2602 = vadd.f32 0.0, %v2601
        %v2603 = vpop.f32.mrf.mxu0
        %v2604 = vpop.f32.mrf.mxu0
        %v2605 = vadd.f32 0.0, %v2604
        %v2606 = vpop.f32.mrf.mxu0
        %2607 = vdwg.mxu0
        %2612 = vrot.lane.b32.xlu0 %v2325, 64
        %v2613 = vpop.permute.xlu0 %2612
        %2614 = vrot.lane.b32.xlu0 %v2326, 64
        %v2615 = vpop.permute.xlu0 %2614
        %2616 = vrot.lane.b32.xlu0 %v2327, 64
        %v2617 = vpop.permute.xlu0 %2616
        %2618 = vrot.lane.b32.xlu0 %v2328, 64
        %v2619 = vpop.permute.xlu0 %2618
        %v2625 = vsel %vm1944, %v2309, 0
        %v2628 = vsel %vm1944, %v2310, 0
        %v2631 = vsel %vm1944, %v2311, 0
        %v2634 = vsel %vm1944, %v2312, 0
        %2636 = vmatprep.subr.bf16.mxu0 0
        %2637 = vmatpush1.bf16.msra.mxu0 0
        %2638 = vmatprep.subr.bf16.mxu0 0
        %2639 = vmatpush1.bf16.msra.mxu0 0
        %2640 = vmatprep.subr.bf16.mxu0 0
        %2641 = vmatpush1.bf16.msra.mxu0 0
        %2642 = vmatprep.subr.bf16.mxu0 0
        %2643 = vmatpush1.bf16.msra.mxu0 0
        %2644 = vmatprep.subr.bf16.mxu0 0
        %2645 = vmatpush1.bf16.msra.mxu0 %v2619
        %2646 = vmatprep.subr.bf16.mxu0 0
        %2647 = vmatpush1.bf16.msra.mxu0 %v2617
        %2648 = vmatprep.subr.bf16.mxu0 0
        %2649 = vmatpush1.bf16.msra.mxu0 %v2615
        %2650 = vmatprep.subr.bf16.mxu0 0
        %2651 = vmatpush1.bf16.msra.mxu0 %v2613
        %2652 = vmatprep.subr.bf16.mxu0 0
        %2653 = vmatpush2.bf16.msra.mxu0 0
        %2654 = vmatprep.subr.bf16.mxu0 0
        %2655 = vmatpush2.bf16.msra.mxu0 0
        %2656 = vmatprep.subr.bf16.mxu0 0
        %2657 = vmatpush2.bf16.msra.mxu0 0
        %2658 = vmatprep.subr.bf16.mxu0 0
        %2659 = vmatpush2.bf16.msra.mxu0 0
        %2660 = vmatprep.subr.bf16.mxu0 0
        %2661 = vmatpush2.bf16.msra.mxu0 0
        %2662 = vmatprep.subr.bf16.mxu0 0
        %2663 = vmatpush2.bf16.msra.mxu0 0
        %2664 = vmatprep.subr.bf16.mxu0 0
        %2665 = vmatpush2.bf16.msra.mxu0 0
        %2666 = vmatprep.subr.bf16.mxu0 0
        %2667 = vmatpush2.bf16.msra.mxu0 0
        %2668 = vmatprep.mubr.bf16.mxu0 0
        %2669 = vmatmul.mubr.bf16.gmra.mxu0 %v2625
        %v2670 = vpop.f32.mrf.mxu0
        %v2671 = vadd.f32 0.0, %v2670
        %v2672 = vpop.f32.mrf.mxu0
        %v2673 = vpop.f32.mrf.mxu0
        %v2674 = vadd.f32 0.0, %v2673
        %v2675 = vpop.f32.mrf.mxu0
        %2676 = vmatprep.mubr.bf16.mxu0 0
        %2677 = vmatmul.mubr.bf16.gmra.mxu0 %v2628
        %v2678 = vpop.f32.mrf.mxu0
        %v2679 = vadd.f32 0.0, %v2678
        %v2680 = vpop.f32.mrf.mxu0
        %v2681 = vpop.f32.mrf.mxu0
        %v2682 = vadd.f32 0.0, %v2681
        %v2683 = vpop.f32.mrf.mxu0
        %2684 = vmatprep.mubr.bf16.mxu0 0
        %2685 = vmatmul.mubr.bf16.gmra.mxu0 %v2631
        %v2686 = vpop.f32.mrf.mxu0
        %v2687 = vadd.f32 0.0, %v2686
        %v2688 = vpop.f32.mrf.mxu0
        %v2689 = vpop.f32.mrf.mxu0
        %v2690 = vadd.f32 0.0, %v2689
        %v2691 = vpop.f32.mrf.mxu0
        %2692 = vmatprep.mubr.bf16.mxu0 0
        %2693 = vmatmul.mubr.bf16.gmra.mxu0 %v2634
        %v2694 = vpop.f32.mrf.mxu0
        %v2695 = vadd.f32 0.0, %v2694
        %v2696 = vpop.f32.mrf.mxu0
        %v2697 = vpop.f32.mrf.mxu0
        %v2698 = vadd.f32 0.0, %v2697
        %v2699 = vpop.f32.mrf.mxu0
        %2700 = vdwg.mxu0
        %v2701 = vpack.c.bf16 %v2395, %v2392
        %v2702 = vpack.c.bf16 %v2403, %v2400
        %v2703 = vpack.c.bf16 %v2411, %v2408
        %v2704 = vpack.c.bf16 %v2419, %v2416
        %v2705 = vpack.c.bf16 %v2488, %v2485
        %v2706 = vpack.c.bf16 %v2496, %v2493
        %v2707 = vpack.c.bf16 %v2504, %v2501
        %v2708 = vpack.c.bf16 %v2512, %v2509
        %v2709 = vpack.c.bf16 %v2581, %v2578
        %v2710 = vpack.c.bf16 %v2589, %v2586
        %v2711 = vpack.c.bf16 %v2597, %v2594
        %v2712 = vpack.c.bf16 %v2605, %v2602
        %v2713 = vpack.c.bf16 %v2674, %v2671
        %v2714 = vpack.c.bf16 %v2682, %v2679
        %v2715 = vpack.c.bf16 %v2690, %v2687
        %v2716 = vpack.c.bf16 %v2698, %v2695
        %v2733 = vunpack.c.l.b16 %v2701
        %v2734 = vunpack.c.h.b16 %v2701
        %v2735 = vunpack.c.l.b16 %v2702
        %v2736 = vunpack.c.h.b16 %v2702
        %v2737 = vunpack.c.l.b16 %v2703
        %v2738 = vunpack.c.h.b16 %v2703
        %v2739 = vunpack.c.l.b16 %v2704
        %v2740 = vunpack.c.h.b16 %v2704
        %v2741 = vunpack.c.l.b16 %v2705
        %v2742 = vunpack.c.h.b16 %v2705
        %v2743 = vunpack.c.l.b16 %v2706
        %v2744 = vunpack.c.h.b16 %v2706
        %v2745 = vunpack.c.l.b16 %v2707
        %v2746 = vunpack.c.h.b16 %v2707
        %v2747 = vunpack.c.l.b16 %v2708
        %v2748 = vunpack.c.h.b16 %v2708
        %v2749 = vunpack.c.l.b16 %v2709
        %v2750 = vunpack.c.h.b16 %v2709
        %v2751 = vunpack.c.l.b16 %v2710
        %v2752 = vunpack.c.h.b16 %v2710
        %v2753 = vunpack.c.l.b16 %v2711
        %v2754 = vunpack.c.h.b16 %v2711
        %v2755 = vunpack.c.l.b16 %v2712
        %v2756 = vunpack.c.h.b16 %v2712
        %v2757 = vunpack.c.l.b16 %v2713
        %v2758 = vunpack.c.h.b16 %v2713
        %v2759 = vunpack.c.l.b16 %v2714
        %v2760 = vunpack.c.h.b16 %v2714
        %v2761 = vunpack.c.l.b16 %v2715
        %v2762 = vunpack.c.h.b16 %v2715
        %v2763 = vunpack.c.l.b16 %v2716
        %v2764 = vunpack.c.h.b16 %v2716
        %v2765 = vpack.c.b16 %v2733, %v2733
        %v2766 = vpack.c.b16 %v2734, %v2734
        %v2767 = vpack.c.b16 %v2735, %v2735
        %v2768 = vpack.c.b16 %v2736, %v2736
        %v2769 = vpack.c.b16 %v2737, %v2737
        %v2770 = vpack.c.b16 %v2738, %v2738
        %v2771 = vpack.c.b16 %v2739, %v2739
        %v2772 = vpack.c.b16 %v2740, %v2740
        %v2773 = vpack.c.b16 %v2741, %v2741
        %v2774 = vpack.c.b16 %v2742, %v2742
        %v2775 = vpack.c.b16 %v2743, %v2743
        %v2776 = vpack.c.b16 %v2744, %v2744
        %v2777 = vpack.c.b16 %v2745, %v2745
        %v2778 = vpack.c.b16 %v2746, %v2746
        %v2779 = vpack.c.b16 %v2747, %v2747
        %v2780 = vpack.c.b16 %v2748, %v2748
        %v2781 = vpack.c.b16 %v2749, %v2749
        %v2782 = vpack.c.b16 %v2750, %v2750
        %v2783 = vpack.c.b16 %v2751, %v2751
        %v2784 = vpack.c.b16 %v2752, %v2752
        %v2785 = vpack.c.b16 %v2753, %v2753
        %v2786 = vpack.c.b16 %v2754, %v2754
        %v2787 = vpack.c.b16 %v2755, %v2755
        %v2788 = vpack.c.b16 %v2756, %v2756
        %v2789 = vpack.c.b16 %v2757, %v2757
        %v2790 = vpack.c.b16 %v2758, %v2758
        %v2791 = vpack.c.b16 %v2759, %v2759
        %v2792 = vpack.c.b16 %v2760, %v2760
        %v2793 = vpack.c.b16 %v2761, %v2761
        %v2794 = vpack.c.b16 %v2762, %v2762
        %v2795 = vpack.c.b16 %v2763, %v2763
        %v2796 = vpack.c.b16 %v2764, %v2764
        %vm2829 = vcmask 60416
        %2830 = vst.msk [vmem:[#allocation2] sm:$0xf] %vm2829, %v2765
        %2831 = vst.msk [vmem:[#allocation2 + $0x4] sm:$0xf] %vm2829, %v2766
        %2832 = vst.msk [vmem:[#allocation2 + $0x8] sm:$0xf] %vm2829, %v2767
        %2833 = vst.msk [vmem:[#allocation2 + $0xc] sm:$0xf] %vm2829, %v2768
        %2834 = vst.msk [vmem:[#allocation2 + $0x10] sm:$0xf] %vm2829, %v2769
        %2835 = vst.msk [vmem:[#allocation2 + $0x14] sm:$0xf] %vm2829, %v2770
        %2836 = vst.msk [vmem:[#allocation2 + $0x18] sm:$0xf] %vm2829, %v2771
        %2837 = vst.msk [vmem:[#allocation2 + $0x1c] sm:$0xf] %vm2829, %v2772
        %2838 = vst.msk [vmem:[#allocation2 + $0x20] sm:$0xf] %vm2829, %v2773
        %2839 = vst.msk [vmem:[#allocation2 + $0x24] sm:$0xf] %vm2829, %v2774
        %2840 = vst.msk [vmem:[#allocation2 + $0x28] sm:$0xf] %vm2829, %v2775
        %2841 = vst.msk [vmem:[#allocation2 + $0x2c] sm:$0xf] %vm2829, %v2776
        %2842 = vst.msk [vmem:[#allocation2 + $0x30] sm:$0xf] %vm2829, %v2777
        %2843 = vst.msk [vmem:[#allocation2 + $0x34] sm:$0xf] %vm2829, %v2778
        %2844 = vst.msk [vmem:[#allocation2 + $0x38] sm:$0xf] %vm2829, %v2779
        %2845 = vst.msk [vmem:[#allocation2 + $0x3c] sm:$0xf] %vm2829, %v2780
        %2846 = vst.msk [vmem:[#allocation2 + $0x40] sm:$0xf] %vm2829, %v2781
        %2847 = vst.msk [vmem:[#allocation2 + $0x44] sm:$0xf] %vm2829, %v2782
        %2848 = vst.msk [vmem:[#allocation2 + $0x48] sm:$0xf] %vm2829, %v2783
        %2849 = vst.msk [vmem:[#allocation2 + $0x4c] sm:$0xf] %vm2829, %v2784
        %2850 = vst.msk [vmem:[#allocation2 + $0x50] sm:$0xf] %vm2829, %v2785
        %2851 = vst.msk [vmem:[#allocation2 + $0x54] sm:$0xf] %vm2829, %v2786
        %2852 = vst.msk [vmem:[#allocation2 + $0x58] sm:$0xf] %vm2829, %v2787
        %2853 = vst.msk [vmem:[#allocation2 + $0x5c] sm:$0xf] %vm2829, %v2788
        %2854 = vst.msk [vmem:[#allocation2 + $0x60] sm:$0xf] %vm2829, %v2789
        %2855 = vst.msk [vmem:[#allocation2 + $0x64] sm:$0xf] %vm2829, %v2790
        %2856 = vst.msk [vmem:[#allocation2 + $0x68] sm:$0xf] %vm2829, %v2791
        %2857 = vst.msk [vmem:[#allocation2 + $0x6c] sm:$0xf] %vm2829, %v2792
        %2858 = vst.msk [vmem:[#allocation2 + $0x70] sm:$0xf] %vm2829, %v2793
        %2859 = vst.msk [vmem:[#allocation2 + $0x74] sm:$0xf] %vm2829, %v2794
        %2860 = vst.msk [vmem:[#allocation2 + $0x78] sm:$0xf] %vm2829, %v2795
        %2861 = vst.msk [vmem:[#allocation2 + $0x7c] sm:$0xf] %vm2829, %v2796
        %2862 = vrot.lane.b32.xlu0 %v657, 120
        %v2863 = vpop.permute.xlu0 %2862
        %2864 = vrot.lane.b32.xlu0 %v658, 120
        %v2865 = vpop.permute.xlu0 %2864
        %2866 = vrot.lane.b32.xlu0 %v659, 120
        %v2867 = vpop.permute.xlu0 %2866
        %2868 = vrot.lane.b32.xlu0 %v660, 120
        %v2869 = vpop.permute.xlu0 %2868
        %2870 = vrot.lane.b32.xlu0 %v661, 120
        %v2871 = vpop.permute.xlu0 %2870
        %2872 = vrot.lane.b32.xlu0 %v662, 120
        %v2873 = vpop.permute.xlu0 %2872
        %2874 = vrot.lane.b32.xlu0 %v663, 120
        %v2875 = vpop.permute.xlu0 %2874
        %2876 = vrot.lane.b32.xlu0 %v664, 120
        %v2877 = vpop.permute.xlu0 %2876
        %2878 = vrot.lane.b32.xlu0 %v665, 120
        %v2879 = vpop.permute.xlu0 %2878
        %2880 = vrot.lane.b32.xlu0 %v666, 120
        %v2881 = vpop.permute.xlu0 %2880
        %2882 = vrot.lane.b32.xlu0 %v667, 120
        %v2883 = vpop.permute.xlu0 %2882
        %2884 = vrot.lane.b32.xlu0 %v668, 120
        %v2885 = vpop.permute.xlu0 %2884
        %2886 = vrot.lane.b32.xlu0 %v669, 120
        %v2887 = vpop.permute.xlu0 %2886
        %2888 = vrot.lane.b32.xlu0 %v670, 120
        %v2889 = vpop.permute.xlu0 %2888
        %2890 = vrot.lane.b32.xlu0 %v671, 120
        %v2891 = vpop.permute.xlu0 %2890
        %2892 = vrot.lane.b32.xlu0 %v672, 120
        %v2893 = vpop.permute.xlu0 %2892
        %2894 = vrot.lane.b32.xlu0 %v673, 120
        %v2895 = vpop.permute.xlu0 %2894
        %2896 = vrot.lane.b32.xlu0 %v674, 120
        %v2897 = vpop.permute.xlu0 %2896
        %2898 = vrot.lane.b32.xlu0 %v675, 120
        %v2899 = vpop.permute.xlu0 %2898
        %2900 = vrot.lane.b32.xlu0 %v676, 120
        %v2901 = vpop.permute.xlu0 %2900
        %2902 = vrot.lane.b32.xlu0 %v677, 120
        %v2903 = vpop.permute.xlu0 %2902
        %2904 = vrot.lane.b32.xlu0 %v678, 120
        %v2905 = vpop.permute.xlu0 %2904
        %2906 = vrot.lane.b32.xlu0 %v679, 120
        %v2907 = vpop.permute.xlu0 %2906
        %2908 = vrot.lane.b32.xlu0 %v680, 120
        %v2909 = vpop.permute.xlu0 %2908
        %2910 = vrot.lane.b32.xlu0 %v681, 120
        %v2911 = vpop.permute.xlu0 %2910
        %2912 = vrot.lane.b32.xlu0 %v682, 120
        %v2913 = vpop.permute.xlu0 %2912
        %2914 = vrot.lane.b32.xlu0 %v683, 120
        %v2915 = vpop.permute.xlu0 %2914
        %2916 = vrot.lane.b32.xlu0 %v684, 120
        %v2917 = vpop.permute.xlu0 %2916
        %2918 = vrot.lane.b32.xlu0 %v685, 120
        %v2919 = vpop.permute.xlu0 %2918
        %2920 = vrot.lane.b32.xlu0 %v686, 120
        %v2921 = vpop.permute.xlu0 %2920
        %2922 = vrot.lane.b32.xlu0 %v687, 120
        %v2923 = vpop.permute.xlu0 %2922
        %2924 = vrot.lane.b32.xlu0 %v688, 120
        %v2925 = vpop.permute.xlu0 %2924
        %v2958 = vsel %vm689, %v2863, 0.0
        %2959 = vadd.xlane.f32.xlu0 %v2958
        %v2960 = vpop.xlane.xlu0 %2959
        %v2961 = vsel %vm689, %v2865, 0.0
        %2962 = vadd.xlane.f32.xlu0 %v2961
        %v2963 = vpop.xlane.xlu0 %2962
        %v2964 = vsel %vm689, %v2867, 0.0
        %2965 = vadd.xlane.f32.xlu0 %v2964
        %v2966 = vpop.xlane.xlu0 %2965
        %v2967 = vsel %vm689, %v2869, 0.0
        %2968 = vadd.xlane.f32.xlu0 %v2967
        %v2969 = vpop.xlane.xlu0 %2968
        %v2970 = vsel %vm689, %v2871, 0.0
        %2971 = vadd.xlane.f32.xlu0 %v2970
        %v2972 = vpop.xlane.xlu0 %2971
        %v2973 = vsel %vm689, %v2873, 0.0
        %2974 = vadd.xlane.f32.xlu0 %v2973
        %v2975 = vpop.xlane.xlu0 %2974
        %v2976 = vsel %vm689, %v2875, 0.0
        %2977 = vadd.xlane.f32.xlu0 %v2976
        %v2978 = vpop.xlane.xlu0 %2977
        %v2979 = vsel %vm689, %v2877, 0.0
        %2980 = vadd.xlane.f32.xlu0 %v2979
        %v2981 = vpop.xlane.xlu0 %2980
        %v2982 = vsel %vm689, %v2879, 0.0
        %2983 = vadd.xlane.f32.xlu0 %v2982
        %v2984 = vpop.xlane.xlu0 %2983
        %v2985 = vsel %vm689, %v2881, 0.0
        %2986 = vadd.xlane.f32.xlu0 %v2985
        %v2987 = vpop.xlane.xlu0 %2986
        %v2988 = vsel %vm689, %v2883, 0.0
        %2989 = vadd.xlane.f32.xlu0 %v2988
        %v2990 = vpop.xlane.xlu0 %2989
        %v2991 = vsel %vm689, %v2885, 0.0
        %2992 = vadd.xlane.f32.xlu0 %v2991
        %v2993 = vpop.xlane.xlu0 %2992
        %v2994 = vsel %vm689, %v2887, 0.0
        %2995 = vadd.xlane.f32.xlu0 %v2994
        %v2996 = vpop.xlane.xlu0 %2995
        %v2997 = vsel %vm689, %v2889, 0.0
        %2998 = vadd.xlane.f32.xlu0 %v2997
        %v2999 = vpop.xlane.xlu0 %2998
        %v3000 = vsel %vm689, %v2891, 0.0
        %3001 = vadd.xlane.f32.xlu0 %v3000
        %v3002 = vpop.xlane.xlu0 %3001
        %v3003 = vsel %vm689, %v2893, 0.0
        %3004 = vadd.xlane.f32.xlu0 %v3003
        %v3005 = vpop.xlane.xlu0 %3004
        %v3006 = vsel %vm689, %v2895, 0.0
        %3007 = vadd.xlane.f32.xlu0 %v3006
        %v3008 = vpop.xlane.xlu0 %3007
        %v3009 = vsel %vm689, %v2897, 0.0
        %3010 = vadd.xlane.f32.xlu0 %v3009
        %v3011 = vpop.xlane.xlu0 %3010
        %v3012 = vsel %vm689, %v2899, 0.0
        %3013 = vadd.xlane.f32.xlu0 %v3012
        %v3014 = vpop.xlane.xlu0 %3013
        %v3015 = vsel %vm689, %v2901, 0.0
        %3016 = vadd.xlane.f32.xlu0 %v3015
        %v3017 = vpop.xlane.xlu0 %3016
        %v3018 = vsel %vm689, %v2903, 0.0
        %3019 = vadd.xlane.f32.xlu0 %v3018
        %v3020 = vpop.xlane.xlu0 %3019
        %v3021 = vsel %vm689, %v2905, 0.0
        %3022 = vadd.xlane.f32.xlu0 %v3021
        %v3023 = vpop.xlane.xlu0 %3022
        %v3024 = vsel %vm689, %v2907, 0.0
        %3025 = vadd.xlane.f32.xlu0 %v3024
        %v3026 = vpop.xlane.xlu0 %3025
        %v3027 = vsel %vm689, %v2909, 0.0
        %3028 = vadd.xlane.f32.xlu0 %v3027
        %v3029 = vpop.xlane.xlu0 %3028
        %v3030 = vsel %vm689, %v2911, 0.0
        %3031 = vadd.xlane.f32.xlu0 %v3030
        %v3032 = vpop.xlane.xlu0 %3031
        %v3033 = vsel %vm689, %v2913, 0.0
        %3034 = vadd.xlane.f32.xlu0 %v3033
        %v3035 = vpop.xlane.xlu0 %3034
        %v3036 = vsel %vm689, %v2915, 0.0
        %3037 = vadd.xlane.f32.xlu0 %v3036
        %v3038 = vpop.xlane.xlu0 %3037
        %v3039 = vsel %vm689, %v2917, 0.0
        %3040 = vadd.xlane.f32.xlu0 %v3039
        %v3041 = vpop.xlane.xlu0 %3040
        %v3042 = vsel %vm689, %v2919, 0.0
        %3043 = vadd.xlane.f32.xlu0 %v3042
        %v3044 = vpop.xlane.xlu0 %3043
        %v3045 = vsel %vm689, %v2921, 0.0
        %3046 = vadd.xlane.f32.xlu0 %v3045
        %v3047 = vpop.xlane.xlu0 %3046
        %v3048 = vsel %vm689, %v2923, 0.0
        %3049 = vadd.xlane.f32.xlu0 %v3048
        %v3050 = vpop.xlane.xlu0 %3049
        %v3051 = vsel %vm689, %v2925, 0.0
        %3052 = vadd.xlane.f32.xlu0 %v3051
        %v3053 = vpop.xlane.xlu0 %3052
        %v3054 = vmax.f32 %v2960, 1e-24
        %v3055 = vmax.f32 %v2963, 1e-24
        %v3056 = vmax.f32 %v2966, 1e-24
        %v3057 = vmax.f32 %v2969, 1e-24
        %v3058 = vmax.f32 %v2972, 1e-24
        %v3059 = vmax.f32 %v2975, 1e-24
        %v3060 = vmax.f32 %v2978, 1e-24
        %v3061 = vmax.f32 %v2981, 1e-24
        %v3062 = vmax.f32 %v2984, 1e-24
        %v3063 = vmax.f32 %v2987, 1e-24
        %v3064 = vmax.f32 %v2990, 1e-24
        %v3065 = vmax.f32 %v2993, 1e-24
        %v3066 = vmax.f32 %v2996, 1e-24
        %v3067 = vmax.f32 %v2999, 1e-24
        %v3068 = vmax.f32 %v3002, 1e-24
        %v3069 = vmax.f32 %v3005, 1e-24
        %v3070 = vmax.f32 %v3008, 1e-24
        %v3071 = vmax.f32 %v3011, 1e-24
        %v3072 = vmax.f32 %v3014, 1e-24
        %v3073 = vmax.f32 %v3017, 1e-24
        %v3074 = vmax.f32 %v3020, 1e-24
        %v3075 = vmax.f32 %v3023, 1e-24
        %v3076 = vmax.f32 %v3026, 1e-24
        %v3077 = vmax.f32 %v3029, 1e-24
        %v3078 = vmax.f32 %v3032, 1e-24
        %v3079 = vmax.f32 %v3035, 1e-24
        %v3080 = vmax.f32 %v3038, 1e-24
        %v3081 = vmax.f32 %v3041, 1e-24
        %v3082 = vmax.f32 %v3044, 1e-24
        %v3083 = vmax.f32 %v3047, 1e-24
        %v3084 = vmax.f32 %v3050, 1e-24
        %v3085 = vmax.f32 %v3053, 1e-24
        %v3086 = vrsqrt.pop %v3054
        %v3087 = vrsqrt.pop %v3055
        %v3088 = vrsqrt.pop %v3056
        %v3089 = vrsqrt.pop %v3057
        %v3090 = vrsqrt.pop %v3058
        %v3091 = vrsqrt.pop %v3059
        %v3092 = vrsqrt.pop %v3060
        %v3093 = vrsqrt.pop %v3061
        %v3094 = vrsqrt.pop %v3062
        %v3095 = vrsqrt.pop %v3063
        %v3096 = vrsqrt.pop %v3064
        %v3097 = vrsqrt.pop %v3065
        %v3098 = vrsqrt.pop %v3066
        %v3099 = vrsqrt.pop %v3067
        %v3100 = vrsqrt.pop %v3068
        %v3101 = vrsqrt.pop %v3069
        %v3102 = vrsqrt.pop %v3070
        %v3103 = vrsqrt.pop %v3071
        %v3104 = vrsqrt.pop %v3072
        %v3105 = vrsqrt.pop %v3073
        %v3106 = vrsqrt.pop %v3074
        %v3107 = vrsqrt.pop %v3075
        %v3108 = vrsqrt.pop %v3076
        %v3109 = vrsqrt.pop %v3077
        %v3110 = vrsqrt.pop %v3078
        %v3111 = vrsqrt.pop %v3079
        %v3112 = vrsqrt.pop %v3080
        %v3113 = vrsqrt.pop %v3081
        %v3114 = vrsqrt.pop %v3082
        %v3115 = vrsqrt.pop %v3083
        %v3116 = vrsqrt.pop %v3084
        %v3117 = vrsqrt.pop %v3085
        %3118 = vrot.lane.b32.xlu0 %v657, 88
        %v3119 = vpop.permute.xlu0 %3118
        %3120 = vrot.lane.b32.xlu0 %v658, 88
        %v3121 = vpop.permute.xlu0 %3120
        %3122 = vrot.lane.b32.xlu0 %v659, 88
        %v3123 = vpop.permute.xlu0 %3122
        %3124 = vrot.lane.b32.xlu0 %v660, 88
        %v3125 = vpop.permute.xlu0 %3124
        %3126 = vrot.lane.b32.xlu0 %v661, 88
        %v3127 = vpop.permute.xlu0 %3126
        %3128 = vrot.lane.b32.xlu0 %v662, 88
        %v3129 = vpop.permute.xlu0 %3128
        %3130 = vrot.lane.b32.xlu0 %v663, 88
        %v3131 = vpop.permute.xlu0 %3130
        %3132 = vrot.lane.b32.xlu0 %v664, 88
        %v3133 = vpop.permute.xlu0 %3132
        %3134 = vrot.lane.b32.xlu0 %v665, 88
        %v3135 = vpop.permute.xlu0 %3134
        %3136 = vrot.lane.b32.xlu0 %v666, 88
        %v3137 = vpop.permute.xlu0 %3136
        %3138 = vrot.lane.b32.xlu0 %v667, 88
        %v3139 = vpop.permute.xlu0 %3138
        %3140 = vrot.lane.b32.xlu0 %v668, 88
        %v3141 = vpop.permute.xlu0 %3140
        %3142 = vrot.lane.b32.xlu0 %v669, 88
        %v3143 = vpop.permute.xlu0 %3142
        %3144 = vrot.lane.b32.xlu0 %v670, 88
        %v3145 = vpop.permute.xlu0 %3144
        %3146 = vrot.lane.b32.xlu0 %v671, 88
        %v3147 = vpop.permute.xlu0 %3146
        %3148 = vrot.lane.b32.xlu0 %v672, 88
        %v3149 = vpop.permute.xlu0 %3148
        %3150 = vrot.lane.b32.xlu0 %v673, 88
        %v3151 = vpop.permute.xlu0 %3150
        %3152 = vrot.lane.b32.xlu0 %v674, 88
        %v3153 = vpop.permute.xlu0 %3152
        %3154 = vrot.lane.b32.xlu0 %v675, 88
        %v3155 = vpop.permute.xlu0 %3154
        %3156 = vrot.lane.b32.xlu0 %v676, 88
        %v3157 = vpop.permute.xlu0 %3156
        %3158 = vrot.lane.b32.xlu0 %v677, 88
        %v3159 = vpop.permute.xlu0 %3158
        %3160 = vrot.lane.b32.xlu0 %v678, 88
        %v3161 = vpop.permute.xlu0 %3160
        %3162 = vrot.lane.b32.xlu0 %v679, 88
        %v3163 = vpop.permute.xlu0 %3162
        %3164 = vrot.lane.b32.xlu0 %v680, 88
        %v3165 = vpop.permute.xlu0 %3164
        %3166 = vrot.lane.b32.xlu0 %v681, 88
        %v3167 = vpop.permute.xlu0 %3166
        %3168 = vrot.lane.b32.xlu0 %v682, 88
        %v3169 = vpop.permute.xlu0 %3168
        %3170 = vrot.lane.b32.xlu0 %v683, 88
        %v3171 = vpop.permute.xlu0 %3170
        %3172 = vrot.lane.b32.xlu0 %v684, 88
        %v3173 = vpop.permute.xlu0 %3172
        %3174 = vrot.lane.b32.xlu0 %v685, 88
        %v3175 = vpop.permute.xlu0 %3174
        %3176 = vrot.lane.b32.xlu0 %v686, 88
        %v3177 = vpop.permute.xlu0 %3176
        %3178 = vrot.lane.b32.xlu0 %v687, 88
        %v3179 = vpop.permute.xlu0 %3178
        %3180 = vrot.lane.b32.xlu0 %v688, 88
        %v3181 = vpop.permute.xlu0 %3180
        %v3214 = vsel %vm689, %v3119, 0.0
        %3215 = vadd.xlane.f32.xlu0 %v3214
        %v3216 = vpop.xlane.xlu0 %3215
        %v3217 = vsel %vm689, %v3121, 0.0
        %3218 = vadd.xlane.f32.xlu0 %v3217
        %v3219 = vpop.xlane.xlu0 %3218
        %v3220 = vsel %vm689, %v3123, 0.0
        %3221 = vadd.xlane.f32.xlu0 %v3220
        %v3222 = vpop.xlane.xlu0 %3221
        %v3223 = vsel %vm689, %v3125, 0.0
        %3224 = vadd.xlane.f32.xlu0 %v3223
        %v3225 = vpop.xlane.xlu0 %3224
        %v3226 = vsel %vm689, %v3127, 0.0
        %3227 = vadd.xlane.f32.xlu0 %v3226
        %v3228 = vpop.xlane.xlu0 %3227
        %v3229 = vsel %vm689, %v3129, 0.0
        %3230 = vadd.xlane.f32.xlu0 %v3229
        %v3231 = vpop.xlane.xlu0 %3230
        %v3232 = vsel %vm689, %v3131, 0.0
        %3233 = vadd.xlane.f32.xlu0 %v3232
        %v3234 = vpop.xlane.xlu0 %3233
        %v3235 = vsel %vm689, %v3133, 0.0
        %3236 = vadd.xlane.f32.xlu0 %v3235
        %v3237 = vpop.xlane.xlu0 %3236
        %v3238 = vsel %vm689, %v3135, 0.0
        %3239 = vadd.xlane.f32.xlu0 %v3238
        %v3240 = vpop.xlane.xlu0 %3239
        %v3241 = vsel %vm689, %v3137, 0.0
        %3242 = vadd.xlane.f32.xlu0 %v3241
        %v3243 = vpop.xlane.xlu0 %3242
        %v3244 = vsel %vm689, %v3139, 0.0
        %3245 = vadd.xlane.f32.xlu0 %v3244
        %v3246 = vpop.xlane.xlu0 %3245
        %v3247 = vsel %vm689, %v3141, 0.0
        %3248 = vadd.xlane.f32.xlu0 %v3247
        %v3249 = vpop.xlane.xlu0 %3248
        %v3250 = vsel %vm689, %v3143, 0.0
        %3251 = vadd.xlane.f32.xlu0 %v3250
        %v3252 = vpop.xlane.xlu0 %3251
        %v3253 = vsel %vm689, %v3145, 0.0
        %3254 = vadd.xlane.f32.xlu0 %v3253
        %v3255 = vpop.xlane.xlu0 %3254
        %v3256 = vsel %vm689, %v3147, 0.0
        %3257 = vadd.xlane.f32.xlu0 %v3256
        %v3258 = vpop.xlane.xlu0 %3257
        %v3259 = vsel %vm689, %v3149, 0.0
        %3260 = vadd.xlane.f32.xlu0 %v3259
        %v3261 = vpop.xlane.xlu0 %3260
        %v3262 = vsel %vm689, %v3151, 0.0
        %3263 = vadd.xlane.f32.xlu0 %v3262
        %v3264 = vpop.xlane.xlu0 %3263
        %v3265 = vsel %vm689, %v3153, 0.0
        %3266 = vadd.xlane.f32.xlu0 %v3265
        %v3267 = vpop.xlane.xlu0 %3266
        %v3268 = vsel %vm689, %v3155, 0.0
        %3269 = vadd.xlane.f32.xlu0 %v3268
        %v3270 = vpop.xlane.xlu0 %3269
        %v3271 = vsel %vm689, %v3157, 0.0
        %3272 = vadd.xlane.f32.xlu0 %v3271
        %v3273 = vpop.xlane.xlu0 %3272
        %v3274 = vsel %vm689, %v3159, 0.0
        %3275 = vadd.xlane.f32.xlu0 %v3274
        %v3276 = vpop.xlane.xlu0 %3275
        %v3277 = vsel %vm689, %v3161, 0.0
        %3278 = vadd.xlane.f32.xlu0 %v3277
        %v3279 = vpop.xlane.xlu0 %3278
        %v3280 = vsel %vm689, %v3163, 0.0
        %3281 = vadd.xlane.f32.xlu0 %v3280
        %v3282 = vpop.xlane.xlu0 %3281
        %v3283 = vsel %vm689, %v3165, 0.0
        %3284 = vadd.xlane.f32.xlu0 %v3283
        %v3285 = vpop.xlane.xlu0 %3284
        %v3286 = vsel %vm689, %v3167, 0.0
        %3287 = vadd.xlane.f32.xlu0 %v3286
        %v3288 = vpop.xlane.xlu0 %3287
        %v3289 = vsel %vm689, %v3169, 0.0
        %3290 = vadd.xlane.f32.xlu0 %v3289
        %v3291 = vpop.xlane.xlu0 %3290
        %v3292 = vsel %vm689, %v3171, 0.0
        %3293 = vadd.xlane.f32.xlu0 %v3292
        %v3294 = vpop.xlane.xlu0 %3293
        %v3295 = vsel %vm689, %v3173, 0.0
        %3296 = vadd.xlane.f32.xlu0 %v3295
        %v3297 = vpop.xlane.xlu0 %3296
        %v3298 = vsel %vm689, %v3175, 0.0
        %3299 = vadd.xlane.f32.xlu0 %v3298
        %v3300 = vpop.xlane.xlu0 %3299
        %v3301 = vsel %vm689, %v3177, 0.0
        %3302 = vadd.xlane.f32.xlu0 %v3301
        %v3303 = vpop.xlane.xlu0 %3302
        %v3304 = vsel %vm689, %v3179, 0.0
        %3305 = vadd.xlane.f32.xlu0 %v3304
        %v3306 = vpop.xlane.xlu0 %3305
        %v3307 = vsel %vm689, %v3181, 0.0
        %3308 = vadd.xlane.f32.xlu0 %v3307
        %v3309 = vpop.xlane.xlu0 %3308
        %v3310 = vmax.f32 %v3216, 1e-24
        %v3311 = vmax.f32 %v3219, 1e-24
        %v3312 = vmax.f32 %v3222, 1e-24
        %v3313 = vmax.f32 %v3225, 1e-24
        %v3314 = vmax.f32 %v3228, 1e-24
        %v3315 = vmax.f32 %v3231, 1e-24
        %v3316 = vmax.f32 %v3234, 1e-24
        %v3317 = vmax.f32 %v3237, 1e-24
        %v3318 = vmax.f32 %v3240, 1e-24
        %v3319 = vmax.f32 %v3243, 1e-24
        %v3320 = vmax.f32 %v3246, 1e-24
        %v3321 = vmax.f32 %v3249, 1e-24
        %v3322 = vmax.f32 %v3252, 1e-24
        %v3323 = vmax.f32 %v3255, 1e-24
        %v3324 = vmax.f32 %v3258, 1e-24
        %v3325 = vmax.f32 %v3261, 1e-24
        %v3326 = vmax.f32 %v3264, 1e-24
        %v3327 = vmax.f32 %v3267, 1e-24
        %v3328 = vmax.f32 %v3270, 1e-24
        %v3329 = vmax.f32 %v3273, 1e-24
        %v3330 = vmax.f32 %v3276, 1e-24
        %v3331 = vmax.f32 %v3279, 1e-24
        %v3332 = vmax.f32 %v3282, 1e-24
        %v3333 = vmax.f32 %v3285, 1e-24
        %v3334 = vmax.f32 %v3288, 1e-24
        %v3335 = vmax.f32 %v3291, 1e-24
        %v3336 = vmax.f32 %v3294, 1e-24
        %v3337 = vmax.f32 %v3297, 1e-24
        %v3338 = vmax.f32 %v3300, 1e-24
        %v3339 = vmax.f32 %v3303, 1e-24
        %v3340 = vmax.f32 %v3306, 1e-24
        %v3341 = vmax.f32 %v3309, 1e-24
        %v3342 = vrsqrt.pop %v3310
        %v3343 = vrsqrt.pop %v3311
        %v3344 = vrsqrt.pop %v3312
        %v3345 = vrsqrt.pop %v3313
        %v3346 = vrsqrt.pop %v3314
        %v3347 = vrsqrt.pop %v3315
        %v3348 = vrsqrt.pop %v3316
        %v3349 = vrsqrt.pop %v3317
        %v3350 = vrsqrt.pop %v3318
        %v3351 = vrsqrt.pop %v3319
        %v3352 = vrsqrt.pop %v3320
        %v3353 = vrsqrt.pop %v3321
        %v3354 = vrsqrt.pop %v3322
        %v3355 = vrsqrt.pop %v3323
        %v3356 = vrsqrt.pop %v3324
        %v3357 = vrsqrt.pop %v3325
        %v3358 = vrsqrt.pop %v3326
        %v3359 = vrsqrt.pop %v3327
        %v3360 = vrsqrt.pop %v3328
        %v3361 = vrsqrt.pop %v3329
        %v3362 = vrsqrt.pop %v3330
        %v3363 = vrsqrt.pop %v3331
        %v3364 = vrsqrt.pop %v3332
        %v3365 = vrsqrt.pop %v3333
        %v3366 = vrsqrt.pop %v3334
        %v3367 = vrsqrt.pop %v3335
        %v3368 = vrsqrt.pop %v3336
        %v3369 = vrsqrt.pop %v3337
        %v3370 = vrsqrt.pop %v3338
        %v3371 = vrsqrt.pop %v3339
        %v3372 = vrsqrt.pop %v3340
        %v3373 = vrsqrt.pop %v3341
        %s3374 = sld [smem:[#allocation6 + $0x1]]
        %v3375 = vstv %s3374
        %v3376 = vmul.f32 %v3086, %v3375
        %v3377 = vmul.f32 %v3087, %v3375
        %v3378 = vmul.f32 %v3088, %v3375
        %v3379 = vmul.f32 %v3089, %v3375
        %v3380 = vmul.f32 %v3090, %v3375
        %v3381 = vmul.f32 %v3091, %v3375
        %v3382 = vmul.f32 %v3092, %v3375
        %v3383 = vmul.f32 %v3093, %v3375
        %v3384 = vmul.f32 %v3094, %v3375
        %v3385 = vmul.f32 %v3095, %v3375
        %v3386 = vmul.f32 %v3096, %v3375
        %v3387 = vmul.f32 %v3097, %v3375
        %v3388 = vmul.f32 %v3098, %v3375
        %v3389 = vmul.f32 %v3099, %v3375
        %v3390 = vmul.f32 %v3100, %v3375
        %v3391 = vmul.f32 %v3101, %v3375
        %v3392 = vmul.f32 %v3102, %v3375
        %v3393 = vmul.f32 %v3103, %v3375
        %v3394 = vmul.f32 %v3104, %v3375
        %v3395 = vmul.f32 %v3105, %v3375
        %v3396 = vmul.f32 %v3106, %v3375
        %v3397 = vmul.f32 %v3107, %v3375
        %v3398 = vmul.f32 %v3108, %v3375
        %v3399 = vmul.f32 %v3109, %v3375
        %v3400 = vmul.f32 %v3110, %v3375
        %v3401 = vmul.f32 %v3111, %v3375
        %v3402 = vmul.f32 %v3112, %v3375
        %v3403 = vmul.f32 %v3113, %v3375
        %v3404 = vmul.f32 %v3114, %v3375
        %v3405 = vmul.f32 %v3115, %v3375
        %v3406 = vmul.f32 %v3116, %v3375
        %v3407 = vmul.f32 %v3117, %v3375
        %v3408 = vmul.f32 %v531, %v3376
        %v3409 = vmul.f32 %v534, %v3377
        %v3410 = vmul.f32 %v539, %v3378
        %v3411 = vmul.f32 %v542, %v3379
        %v3412 = vmul.f32 %v547, %v3380
        %v3413 = vmul.f32 %v550, %v3381
        %v3414 = vmul.f32 %v555, %v3382
        %v3415 = vmul.f32 %v558, %v3383
        %v3416 = vmul.f32 %v563, %v3384
        %v3417 = vmul.f32 %v566, %v3385
        %v3418 = vmul.f32 %v571, %v3386
        %v3419 = vmul.f32 %v574, %v3387
        %v3420 = vmul.f32 %v579, %v3388
        %v3421 = vmul.f32 %v582, %v3389
        %v3422 = vmul.f32 %v587, %v3390
        %v3423 = vmul.f32 %v590, %v3391
        %v3424 = vmul.f32 %v595, %v3392
        %v3425 = vmul.f32 %v598, %v3393
        %v3426 = vmul.f32 %v603, %v3394
        %v3427 = vmul.f32 %v606, %v3395
        %v3428 = vmul.f32 %v611, %v3396
        %v3429 = vmul.f32 %v614, %v3397
        %v3430 = vmul.f32 %v619, %v3398
        %v3431 = vmul.f32 %v622, %v3399
        %v3432 = vmul.f32 %v627, %v3400
        %v3433 = vmul.f32 %v630, %v3401
        %v3434 = vmul.f32 %v635, %v3402
        %v3435 = vmul.f32 %v638, %v3403
        %v3436 = vmul.f32 %v643, %v3404
        %v3437 = vmul.f32 %v646, %v3405
        %v3438 = vmul.f32 %v651, %v3406
        %v3439 = vmul.f32 %v654, %v3407
        %v3440 = vmul.f32 %v531, %v3342
        %v3441 = vmul.f32 %v534, %v3343
        %v3442 = vmul.f32 %v539, %v3344
        %v3443 = vmul.f32 %v542, %v3345
        %v3444 = vmul.f32 %v547, %v3346
        %v3445 = vmul.f32 %v550, %v3347
        %v3446 = vmul.f32 %v555, %v3348
        %v3447 = vmul.f32 %v558, %v3349
        %v3448 = vmul.f32 %v563, %v3350
        %v3449 = vmul.f32 %v566, %v3351
        %v3450 = vmul.f32 %v571, %v3352
        %v3451 = vmul.f32 %v574, %v3353
        %v3452 = vmul.f32 %v579, %v3354
        %v3453 = vmul.f32 %v582, %v3355
        %v3454 = vmul.f32 %v587, %v3356
        %v3455 = vmul.f32 %v590, %v3357
        %v3456 = vmul.f32 %v595, %v3358
        %v3457 = vmul.f32 %v598, %v3359
        %v3458 = vmul.f32 %v603, %v3360
        %v3459 = vmul.f32 %v606, %v3361
        %v3460 = vmul.f32 %v611, %v3362
        %v3461 = vmul.f32 %v614, %v3363
        %v3462 = vmul.f32 %v619, %v3364
        %v3463 = vmul.f32 %v622, %v3365
        %v3464 = vmul.f32 %v627, %v3366
        %v3465 = vmul.f32 %v630, %v3367
        %v3466 = vmul.f32 %v635, %v3368
        %v3467 = vmul.f32 %v638, %v3369
        %v3468 = vmul.f32 %v643, %v3370
        %v3469 = vmul.f32 %v646, %v3371
        %v3470 = vmul.f32 %v651, %v3372
        %v3471 = vmul.f32 %v654, %v3373
        %s3472 = scalar_lea.vmem [#allocation3], 256
        %v3473 = vld [vmem:[%s3472] sm:$0xff]
        %v3474 = vld [vmem:[%s3472 + $0x8] sm:$0xff]
        %v3475 = vld [vmem:[%s3472 + $0x10] sm:$0xff]
        %v3476 = vld [vmem:[%s3472 + $0x18] sm:$0xff]
        %v3477 = vld [vmem:[%s3472 + $0x20] sm:$0xff]
        %v3478 = vld [vmem:[%s3472 + $0x28] sm:$0xff]
        %v3479 = vld [vmem:[%s3472 + $0x30] sm:$0xff]
        %v3480 = vld [vmem:[%s3472 + $0x38] sm:$0xff]
        %v3481 = vld [vmem:[%s3472 + $0x40] sm:$0xff]
        %v3482 = vld [vmem:[%s3472 + $0x48] sm:$0xff]
        %v3483 = vld [vmem:[%s3472 + $0x50] sm:$0xff]
        %v3484 = vld [vmem:[%s3472 + $0x58] sm:$0xff]
        %v3485 = vld [vmem:[%s3472 + $0x60] sm:$0xff]
        %v3486 = vld [vmem:[%s3472 + $0x68] sm:$0xff]
        %v3487 = vld [vmem:[%s3472 + $0x70] sm:$0xff]
        %v3488 = vld [vmem:[%s3472 + $0x78] sm:$0xff]
        %v3489 = vld [vmem:[%s3472 + $0x80] sm:$0xff]
        %v3490 = vld [vmem:[%s3472 + $0x88] sm:$0xff]
        %v3491 = vld [vmem:[%s3472 + $0x90] sm:$0xff]
        %v3492 = vld [vmem:[%s3472 + $0x98] sm:$0xff]
        %v3493 = vld [vmem:[%s3472 + $0xa0] sm:$0xff]
        %v3494 = vld [vmem:[%s3472 + $0xa8] sm:$0xff]
        %v3495 = vld [vmem:[%s3472 + $0xb0] sm:$0xff]
        %v3496 = vld [vmem:[%s3472 + $0xb8] sm:$0xff]
        %v3497 = vld [vmem:[%s3472 + $0xc0] sm:$0xff]
        %v3498 = vld [vmem:[%s3472 + $0xc8] sm:$0xff]
        %v3499 = vld [vmem:[%s3472 + $0xd0] sm:$0xff]
        %v3500 = vld [vmem:[%s3472 + $0xd8] sm:$0xff]
        %v3501 = vld [vmem:[%s3472 + $0xe0] sm:$0xff]
        %v3502 = vld [vmem:[%s3472 + $0xe8] sm:$0xff]
        %v3503 = vld [vmem:[%s3472 + $0xf0] sm:$0xff]
        %v3504 = vld [vmem:[%s3472 + $0xf8] sm:$0xff]
        %3513 = vrot.lane.b32.xlu0 %v3408, 120
        %v3514 = vpop.permute.xlu0 %3513
        %3515 = vrot.lane.b32.xlu0 %v3409, 120
        %v3516 = vpop.permute.xlu0 %3515
        %3517 = vrot.lane.b32.xlu0 %v3410, 120
        %v3518 = vpop.permute.xlu0 %3517
        %3519 = vrot.lane.b32.xlu0 %v3411, 120
        %v3520 = vpop.permute.xlu0 %3519
        %3521 = vrot.lane.b32.xlu0 %v3412, 120
        %v3522 = vpop.permute.xlu0 %3521
        %3523 = vrot.lane.b32.xlu0 %v3413, 120
        %v3524 = vpop.permute.xlu0 %3523
        %3525 = vrot.lane.b32.xlu0 %v3414, 120
        %v3526 = vpop.permute.xlu0 %3525
        %3527 = vrot.lane.b32.xlu0 %v3415, 120
        %v3528 = vpop.permute.xlu0 %3527
        %3537 = vrot.lane.b32.xlu0 %v3440, 88
        %v3538 = vpop.permute.xlu0 %3537
        %3539 = vrot.lane.b32.xlu0 %v3441, 88
        %v3540 = vpop.permute.xlu0 %3539
        %3541 = vrot.lane.b32.xlu0 %v3442, 88
        %v3542 = vpop.permute.xlu0 %3541
        %3543 = vrot.lane.b32.xlu0 %v3443, 88
        %v3544 = vpop.permute.xlu0 %3543
        %3545 = vrot.lane.b32.xlu0 %v3444, 88
        %v3546 = vpop.permute.xlu0 %3545
        %3547 = vrot.lane.b32.xlu0 %v3445, 88
        %v3548 = vpop.permute.xlu0 %3547
        %3549 = vrot.lane.b32.xlu0 %v3446, 88
        %v3550 = vpop.permute.xlu0 %3549
        %3551 = vrot.lane.b32.xlu0 %v3447, 88
        %v3552 = vpop.permute.xlu0 %3551
        %v3553 = vsel %vm689, %v3514, 0
        %v3555 = vsel %vm689, %v3516, 0
        %v3557 = vsel %vm689, %v3518, 0
        %v3559 = vsel %vm689, %v3520, 0
        %v3561 = vsel %vm689, %v3522, 0
        %v3563 = vsel %vm689, %v3524, 0
        %v3565 = vsel %vm689, %v3526, 0
        %v3567 = vsel %vm689, %v3528, 0
        %v3569 = vsel %vm689, %v3538, 0
        %v3571 = vsel %vm689, %v3540, 0
        %v3573 = vsel %vm689, %v3542, 0
        %v3575 = vsel %vm689, %v3544, 0
        %v3577 = vsel %vm689, %v3546, 0
        %v3579 = vsel %vm689, %v3548, 0
        %v3581 = vsel %vm689, %v3550, 0
        %v3583 = vsel %vm689, %v3552, 0
        %3585 = vmatprep.subr.mxu0 0.0
        %3586 = vmatpush1.xpose.msra.mxu0 0.0
        %3587 = vmatprep.subr.mxu0 0.0
        %3588 = vmatpush1.xpose.msra.mxu0 0.0
        %3589 = vmatprep.subr.mxu0 0.0
        %3590 = vmatpush1.xpose.msra.mxu0 0.0
        %3591 = vmatprep.subr.mxu0 0.0
        %3592 = vmatpush1.xpose.msra.mxu0 0.0
        %3593 = vmatprep.subr.mxu0 0.0
        %3594 = vmatpush1.xpose.msra.mxu0 0.0
        %3595 = vmatprep.subr.mxu0 0.0
        %3596 = vmatpush1.xpose.msra.mxu0 0.0
        %3597 = vmatprep.subr.mxu0 0.0
        %3598 = vmatpush1.xpose.msra.mxu0 0.0
        %3599 = vmatprep.subr.mxu0 0.0
        %3600 = vmatpush1.xpose.msra.mxu0 0.0
        %3601 = vmatprep.subr.mxu0 0.0
        %3602 = vmatpush1.xpose.msra.mxu0 %v3583
        %3603 = vmatprep.subr.mxu0 0.0
        %3604 = vmatpush1.xpose.msra.mxu0 %v3581
        %3605 = vmatprep.subr.mxu0 0.0
        %3606 = vmatpush1.xpose.msra.mxu0 %v3579
        %3607 = vmatprep.subr.mxu0 0.0
        %3608 = vmatpush1.xpose.msra.mxu0 %v3577
        %3609 = vmatprep.subr.mxu0 0.0
        %3610 = vmatpush1.xpose.msra.mxu0 %v3575
        %3611 = vmatprep.subr.mxu0 0.0
        %3612 = vmatpush1.xpose.msra.mxu0 %v3573
        %3613 = vmatprep.subr.mxu0 0.0
        %3614 = vmatpush1.xpose.msra.mxu0 %v3571
        %3615 = vmatprep.subr.mxu0 0.0
        %3616 = vmatpush1.xpose.msra.mxu0 %v3569
        %3617 = vmatprep.subr.mxu0 0.0
        %3618 = vmatpush2.xpose.msra.mxu0 0.0
        %3619 = vmatprep.subr.mxu0 0.0
        %3620 = vmatpush2.xpose.msra.mxu0 0.0
        %3621 = vmatprep.subr.mxu0 0.0
        %3622 = vmatpush2.xpose.msra.mxu0 0.0
        %3623 = vmatprep.subr.mxu0 0.0
        %3624 = vmatpush2.xpose.msra.mxu0 0.0
        %3625 = vmatprep.subr.mxu0 0.0
        %3626 = vmatpush2.xpose.msra.mxu0 0.0
        %3627 = vmatprep.subr.mxu0 0.0
        %3628 = vmatpush2.xpose.msra.mxu0 0.0
        %3629 = vmatprep.subr.mxu0 0.0
        %3630 = vmatpush2.xpose.msra.mxu0 0.0
        %3631 = vmatprep.subr.mxu0 0.0
        %3632 = vmatpush2.xpose.msra.mxu0 0.0
        %3633 = vmatprep.subr.mxu0 0.0
        %3634 = vmatpush2.xpose.msra.mxu0 0.0
        %3635 = vmatprep.subr.mxu0 0.0
        %3636 = vmatpush2.xpose.msra.mxu0 0.0
        %3637 = vmatprep.subr.mxu0 0.0
        %3638 = vmatpush2.xpose.msra.mxu0 0.0
        %3639 = vmatprep.subr.mxu0 0.0
        %3640 = vmatpush2.xpose.msra.mxu0 0.0
        %3641 = vmatprep.subr.mxu0 0.0
        %3642 = vmatpush2.xpose.msra.mxu0 0.0
        %3643 = vmatprep.subr.mxu0 0.0
        %3644 = vmatpush2.xpose.msra.mxu0 0.0
        %3645 = vmatprep.subr.mxu0 0.0
        %3646 = vmatpush2.xpose.msra.mxu0 0.0
        %3647 = vmatprep.subr.mxu0 0.0
        %3648 = vmatpush2.xpose.msra.mxu0 0.0
        %3649 = vmatprep.mubr.f32.mxu0 0.0
        %3650 = vmatmul.mubr.f32.gmra.mxu0 %v3553
        %v3651 = vpop.f32.mrf.mxu0
        %v3652 = vadd.f32 %v3473, %v3651
        %v3653 = vpop.f32.mrf.mxu0
        %3654 = vmatprep.mubr.f32.mxu0 0.0
        %3655 = vmatmul.mubr.f32.gmra.mxu0 %v3555
        %v3656 = vpop.f32.mrf.mxu0
        %v3657 = vadd.f32 %v3474, %v3656
        %v3658 = vpop.f32.mrf.mxu0
        %3659 = vmatprep.mubr.f32.mxu0 0.0
        %3660 = vmatmul.mubr.f32.gmra.mxu0 %v3557
        %v3661 = vpop.f32.mrf.mxu0
        %v3662 = vadd.f32 %v3475, %v3661
        %v3663 = vpop.f32.mrf.mxu0
        %3664 = vmatprep.mubr.f32.mxu0 0.0
        %3665 = vmatmul.mubr.f32.gmra.mxu0 %v3559
        %v3666 = vpop.f32.mrf.mxu0
        %v3667 = vadd.f32 %v3476, %v3666
        %v3668 = vpop.f32.mrf.mxu0
        %3669 = vmatprep.mubr.f32.mxu0 0.0
        %3670 = vmatmul.mubr.f32.gmra.mxu0 %v3561
        %v3671 = vpop.f32.mrf.mxu0
        %v3672 = vadd.f32 %v3477, %v3671
        %v3673 = vpop.f32.mrf.mxu0
        %3674 = vmatprep.mubr.f32.mxu0 0.0
        %3675 = vmatmul.mubr.f32.gmra.mxu0 %v3563
        %v3676 = vpop.f32.mrf.mxu0
        %v3677 = vadd.f32 %v3478, %v3676
        %v3678 = vpop.f32.mrf.mxu0
        %3679 = vmatprep.mubr.f32.mxu0 0.0
        %3680 = vmatmul.mubr.f32.gmra.mxu0 %v3565
        %v3681 = vpop.f32.mrf.mxu0
        %v3682 = vadd.f32 %v3479, %v3681
        %v3683 = vpop.f32.mrf.mxu0
        %3684 = vmatprep.mubr.f32.mxu0 0.0
        %3685 = vmatmul.mubr.f32.gmra.mxu0 %v3567
        %v3686 = vpop.f32.mrf.mxu0
        %v3687 = vadd.f32 %v3480, %v3686
        %v3688 = vpop.f32.mrf.mxu0
        %3689 = vdwg.mxu0
        %3698 = vrot.lane.b32.xlu0 %v3416, 120
        %v3699 = vpop.permute.xlu0 %3698
        %3700 = vrot.lane.b32.xlu0 %v3417, 120
        %v3701 = vpop.permute.xlu0 %3700
        %3702 = vrot.lane.b32.xlu0 %v3418, 120
        %v3703 = vpop.permute.xlu0 %3702
        %3704 = vrot.lane.b32.xlu0 %v3419, 120
        %v3705 = vpop.permute.xlu0 %3704
        %3706 = vrot.lane.b32.xlu0 %v3420, 120
        %v3707 = vpop.permute.xlu0 %3706
        %3708 = vrot.lane.b32.xlu0 %v3421, 120
        %v3709 = vpop.permute.xlu0 %3708
        %3710 = vrot.lane.b32.xlu0 %v3422, 120
        %v3711 = vpop.permute.xlu0 %3710
        %3712 = vrot.lane.b32.xlu0 %v3423, 120
        %v3713 = vpop.permute.xlu0 %3712
        %3722 = vrot.lane.b32.xlu0 %v3448, 88
        %v3723 = vpop.permute.xlu0 %3722
        %3724 = vrot.lane.b32.xlu0 %v3449, 88
        %v3725 = vpop.permute.xlu0 %3724
        %3726 = vrot.lane.b32.xlu0 %v3450, 88
        %v3727 = vpop.permute.xlu0 %3726
        %3728 = vrot.lane.b32.xlu0 %v3451, 88
        %v3729 = vpop.permute.xlu0 %3728
        %3730 = vrot.lane.b32.xlu0 %v3452, 88
        %v3731 = vpop.permute.xlu0 %3730
        %3732 = vrot.lane.b32.xlu0 %v3453, 88
        %v3733 = vpop.permute.xlu0 %3732
        %3734 = vrot.lane.b32.xlu0 %v3454, 88
        %v3735 = vpop.permute.xlu0 %3734
        %3736 = vrot.lane.b32.xlu0 %v3455, 88
        %v3737 = vpop.permute.xlu0 %3736
        %v3738 = vsel %vm689, %v3699, 0
        %v3740 = vsel %vm689, %v3701, 0
        %v3742 = vsel %vm689, %v3703, 0
        %v3744 = vsel %vm689, %v3705, 0
        %v3746 = vsel %vm689, %v3707, 0
        %v3748 = vsel %vm689, %v3709, 0
        %v3750 = vsel %vm689, %v3711, 0
        %v3752 = vsel %vm689, %v3713, 0
        %v3754 = vsel %vm689, %v3723, 0
        %v3756 = vsel %vm689, %v3725, 0
        %v3758 = vsel %vm689, %v3727, 0
        %v3760 = vsel %vm689, %v3729, 0
        %v3762 = vsel %vm689, %v3731, 0
        %v3764 = vsel %vm689, %v3733, 0
        %v3766 = vsel %vm689, %v3735, 0
        %v3768 = vsel %vm689, %v3737, 0
        %3770 = vmatprep.subr.mxu0 0.0
        %3771 = vmatpush1.xpose.msra.mxu0 0.0
        %3772 = vmatprep.subr.mxu0 0.0
        %3773 = vmatpush1.xpose.msra.mxu0 0.0
        %3774 = vmatprep.subr.mxu0 0.0
        %3775 = vmatpush1.xpose.msra.mxu0 0.0
        %3776 = vmatprep.subr.mxu0 0.0
        %3777 = vmatpush1.xpose.msra.mxu0 0.0
        %3778 = vmatprep.subr.mxu0 0.0
        %3779 = vmatpush1.xpose.msra.mxu0 0.0
        %3780 = vmatprep.subr.mxu0 0.0
        %3781 = vmatpush1.xpose.msra.mxu0 0.0
        %3782 = vmatprep.subr.mxu0 0.0
        %3783 = vmatpush1.xpose.msra.mxu0 0.0
        %3784 = vmatprep.subr.mxu0 0.0
        %3785 = vmatpush1.xpose.msra.mxu0 0.0
        %3786 = vmatprep.subr.mxu0 0.0
        %3787 = vmatpush1.xpose.msra.mxu0 %v3768
        %3788 = vmatprep.subr.mxu0 0.0
        %3789 = vmatpush1.xpose.msra.mxu0 %v3766
        %3790 = vmatprep.subr.mxu0 0.0
        %3791 = vmatpush1.xpose.msra.mxu0 %v3764
        %3792 = vmatprep.subr.mxu0 0.0
        %3793 = vmatpush1.xpose.msra.mxu0 %v3762
        %3794 = vmatprep.subr.mxu0 0.0
        %3795 = vmatpush1.xpose.msra.mxu0 %v3760
        %3796 = vmatprep.subr.mxu0 0.0
        %3797 = vmatpush1.xpose.msra.mxu0 %v3758
        %3798 = vmatprep.subr.mxu0 0.0
        %3799 = vmatpush1.xpose.msra.mxu0 %v3756
        %3800 = vmatprep.subr.mxu0 0.0
        %3801 = vmatpush1.xpose.msra.mxu0 %v3754
        %3802 = vmatprep.subr.mxu0 0.0
        %3803 = vmatpush2.xpose.msra.mxu0 0.0
        %3804 = vmatprep.subr.mxu0 0.0
        %3805 = vmatpush2.xpose.msra.mxu0 0.0
        %3806 = vmatprep.subr.mxu0 0.0
        %3807 = vmatpush2.xpose.msra.mxu0 0.0
        %3808 = vmatprep.subr.mxu0 0.0
        %3809 = vmatpush2.xpose.msra.mxu0 0.0
        %3810 = vmatprep.subr.mxu0 0.0
        %3811 = vmatpush2.xpose.msra.mxu0 0.0
        %3812 = vmatprep.subr.mxu0 0.0
        %3813 = vmatpush2.xpose.msra.mxu0 0.0
        %3814 = vmatprep.subr.mxu0 0.0
        %3815 = vmatpush2.xpose.msra.mxu0 0.0
        %3816 = vmatprep.subr.mxu0 0.0
        %3817 = vmatpush2.xpose.msra.mxu0 0.0
        %3818 = vmatprep.subr.mxu0 0.0
        %3819 = vmatpush2.xpose.msra.mxu0 0.0
        %3820 = vmatprep.subr.mxu0 0.0
        %3821 = vmatpush2.xpose.msra.mxu0 0.0
        %3822 = vmatprep.subr.mxu0 0.0
        %3823 = vmatpush2.xpose.msra.mxu0 0.0
        %3824 = vmatprep.subr.mxu0 0.0
        %3825 = vmatpush2.xpose.msra.mxu0 0.0
        %3826 = vmatprep.subr.mxu0 0.0
        %3827 = vmatpush2.xpose.msra.mxu0 0.0
        %3828 = vmatprep.subr.mxu0 0.0
        %3829 = vmatpush2.xpose.msra.mxu0 0.0
        %3830 = vmatprep.subr.mxu0 0.0
        %3831 = vmatpush2.xpose.msra.mxu0 0.0
        %3832 = vmatprep.subr.mxu0 0.0
        %3833 = vmatpush2.xpose.msra.mxu0 0.0
        %3834 = vmatprep.mubr.f32.mxu0 0.0
        %3835 = vmatmul.mubr.f32.gmra.mxu0 %v3738
        %v3836 = vpop.f32.mrf.mxu0
        %v3837 = vadd.f32 %v3481, %v3836
        %v3838 = vpop.f32.mrf.mxu0
        %3839 = vmatprep.mubr.f32.mxu0 0.0
        %3840 = vmatmul.mubr.f32.gmra.mxu0 %v3740
        %v3841 = vpop.f32.mrf.mxu0
        %v3842 = vadd.f32 %v3482, %v3841
        %v3843 = vpop.f32.mrf.mxu0
        %3844 = vmatprep.mubr.f32.mxu0 0.0
        %3845 = vmatmul.mubr.f32.gmra.mxu0 %v3742
        %v3846 = vpop.f32.mrf.mxu0
        %v3847 = vadd.f32 %v3483, %v3846
        %v3848 = vpop.f32.mrf.mxu0
        %3849 = vmatprep.mubr.f32.mxu0 0.0
        %3850 = vmatmul.mubr.f32.gmra.mxu0 %v3744
        %v3851 = vpop.f32.mrf.mxu0
        %v3852 = vadd.f32 %v3484, %v3851
        %v3853 = vpop.f32.mrf.mxu0
        %3854 = vmatprep.mubr.f32.mxu0 0.0
        %3855 = vmatmul.mubr.f32.gmra.mxu0 %v3746
        %v3856 = vpop.f32.mrf.mxu0
        %v3857 = vadd.f32 %v3485, %v3856
        %v3858 = vpop.f32.mrf.mxu0
        %3859 = vmatprep.mubr.f32.mxu0 0.0
        %3860 = vmatmul.mubr.f32.gmra.mxu0 %v3748
        %v3861 = vpop.f32.mrf.mxu0
        %v3862 = vadd.f32 %v3486, %v3861
        %v3863 = vpop.f32.mrf.mxu0
        %3864 = vmatprep.mubr.f32.mxu0 0.0
        %3865 = vmatmul.mubr.f32.gmra.mxu0 %v3750
        %v3866 = vpop.f32.mrf.mxu0
        %v3867 = vadd.f32 %v3487, %v3866
        %v3868 = vpop.f32.mrf.mxu0
        %3869 = vmatprep.mubr.f32.mxu0 0.0
        %3870 = vmatmul.mubr.f32.gmra.mxu0 %v3752
        %v3871 = vpop.f32.mrf.mxu0
        %v3872 = vadd.f32 %v3488, %v3871
        %v3873 = vpop.f32.mrf.mxu0
        %3874 = vdwg.mxu0
        %3883 = vrot.lane.b32.xlu0 %v3424, 120
        %v3884 = vpop.permute.xlu0 %3883
        %3885 = vrot.lane.b32.xlu0 %v3425, 120
        %v3886 = vpop.permute.xlu0 %3885
        %3887 = vrot.lane.b32.xlu0 %v3426, 120
        %v3888 = vpop.permute.xlu0 %3887
        %3889 = vrot.lane.b32.xlu0 %v3427, 120
        %v3890 = vpop.permute.xlu0 %3889
        %3891 = vrot.lane.b32.xlu0 %v3428, 120
        %v3892 = vpop.permute.xlu0 %3891
        %3893 = vrot.lane.b32.xlu0 %v3429, 120
        %v3894 = vpop.permute.xlu0 %3893
        %3895 = vrot.lane.b32.xlu0 %v3430, 120
        %v3896 = vpop.permute.xlu0 %3895
        %3897 = vrot.lane.b32.xlu0 %v3431, 120
        %v3898 = vpop.permute.xlu0 %3897
        %3907 = vrot.lane.b32.xlu0 %v3456, 88
        %v3908 = vpop.permute.xlu0 %3907
        %3909 = vrot.lane.b32.xlu0 %v3457, 88
        %v3910 = vpop.permute.xlu0 %3909
        %3911 = vrot.lane.b32.xlu0 %v3458, 88
        %v3912 = vpop.permute.xlu0 %3911
        %3913 = vrot.lane.b32.xlu0 %v3459, 88
        %v3914 = vpop.permute.xlu0 %3913
        %3915 = vrot.lane.b32.xlu0 %v3460, 88
        %v3916 = vpop.permute.xlu0 %3915
        %3917 = vrot.lane.b32.xlu0 %v3461, 88
        %v3918 = vpop.permute.xlu0 %3917
        %3919 = vrot.lane.b32.xlu0 %v3462, 88
        %v3920 = vpop.permute.xlu0 %3919
        %3921 = vrot.lane.b32.xlu0 %v3463, 88
        %v3922 = vpop.permute.xlu0 %3921
        %v3923 = vsel %vm689, %v3884, 0
        %v3925 = vsel %vm689, %v3886, 0
        %v3927 = vsel %vm689, %v3888, 0
        %v3929 = vsel %vm689, %v3890, 0
        %v3931 = vsel %vm689, %v3892, 0
        %v3933 = vsel %vm689, %v3894, 0
        %v3935 = vsel %vm689, %v3896, 0
        %v3937 = vsel %vm689, %v3898, 0
        %v3939 = vsel %vm689, %v3908, 0
        %v3941 = vsel %vm689, %v3910, 0
        %v3943 = vsel %vm689, %v3912, 0
        %v3945 = vsel %vm689, %v3914, 0
        %v3947 = vsel %vm689, %v3916, 0
        %v3949 = vsel %vm689, %v3918, 0
        %v3951 = vsel %vm689, %v3920, 0
        %v3953 = vsel %vm689, %v3922, 0
        %3955 = vmatprep.subr.mxu0 0.0
        %3956 = vmatpush1.xpose.msra.mxu0 0.0
        %3957 = vmatprep.subr.mxu0 0.0
        %3958 = vmatpush1.xpose.msra.mxu0 0.0
        %3959 = vmatprep.subr.mxu0 0.0
        %3960 = vmatpush1.xpose.msra.mxu0 0.0
        %3961 = vmatprep.subr.mxu0 0.0
        %3962 = vmatpush1.xpose.msra.mxu0 0.0
        %3963 = vmatprep.subr.mxu0 0.0
        %3964 = vmatpush1.xpose.msra.mxu0 0.0
        %3965 = vmatprep.subr.mxu0 0.0
        %3966 = vmatpush1.xpose.msra.mxu0 0.0
        %3967 = vmatprep.subr.mxu0 0.0
        %3968 = vmatpush1.xpose.msra.mxu0 0.0
        %3969 = vmatprep.subr.mxu0 0.0
        %3970 = vmatpush1.xpose.msra.mxu0 0.0
        %3971 = vmatprep.subr.mxu0 0.0
        %3972 = vmatpush1.xpose.msra.mxu0 %v3953
        %3973 = vmatprep.subr.mxu0 0.0
        %3974 = vmatpush1.xpose.msra.mxu0 %v3951
        %3975 = vmatprep.subr.mxu0 0.0
        %3976 = vmatpush1.xpose.msra.mxu0 %v3949
        %3977 = vmatprep.subr.mxu0 0.0
        %3978 = vmatpush1.xpose.msra.mxu0 %v3947
        %3979 = vmatprep.subr.mxu0 0.0
        %3980 = vmatpush1.xpose.msra.mxu0 %v3945
        %3981 = vmatprep.subr.mxu0 0.0
        %3982 = vmatpush1.xpose.msra.mxu0 %v3943
        %3983 = vmatprep.subr.mxu0 0.0
        %3984 = vmatpush1.xpose.msra.mxu0 %v3941
        %3985 = vmatprep.subr.mxu0 0.0
        %3986 = vmatpush1.xpose.msra.mxu0 %v3939
        %3987 = vmatprep.subr.mxu0 0.0
        %3988 = vmatpush2.xpose.msra.mxu0 0.0
        %3989 = vmatprep.subr.mxu0 0.0
        %3990 = vmatpush2.xpose.msra.mxu0 0.0
        %3991 = vmatprep.subr.mxu0 0.0
        %3992 = vmatpush2.xpose.msra.mxu0 0.0
        %3993 = vmatprep.subr.mxu0 0.0
        %3994 = vmatpush2.xpose.msra.mxu0 0.0
        %3995 = vmatprep.subr.mxu0 0.0
        %3996 = vmatpush2.xpose.msra.mxu0 0.0
        %3997 = vmatprep.subr.mxu0 0.0
        %3998 = vmatpush2.xpose.msra.mxu0 0.0
        %3999 = vmatprep.subr.mxu0 0.0
        %4000 = vmatpush2.xpose.msra.mxu0 0.0
        %4001 = vmatprep.subr.mxu0 0.0
        %4002 = vmatpush2.xpose.msra.mxu0 0.0
        %4003 = vmatprep.subr.mxu0 0.0
        %4004 = vmatpush2.xpose.msra.mxu0 0.0
        %4005 = vmatprep.subr.mxu0 0.0
        %4006 = vmatpush2.xpose.msra.mxu0 0.0
        %4007 = vmatprep.subr.mxu0 0.0
        %4008 = vmatpush2.xpose.msra.mxu0 0.0
        %4009 = vmatprep.subr.mxu0 0.0
        %4010 = vmatpush2.xpose.msra.mxu0 0.0
        %4011 = vmatprep.subr.mxu0 0.0
        %4012 = vmatpush2.xpose.msra.mxu0 0.0
        %4013 = vmatprep.subr.mxu0 0.0
        %4014 = vmatpush2.xpose.msra.mxu0 0.0
        %4015 = vmatprep.subr.mxu0 0.0
        %4016 = vmatpush2.xpose.msra.mxu0 0.0
        %4017 = vmatprep.subr.mxu0 0.0
        %4018 = vmatpush2.xpose.msra.mxu0 0.0
        %4019 = vmatprep.mubr.f32.mxu0 0.0
        %4020 = vmatmul.mubr.f32.gmra.mxu0 %v3923
        %v4021 = vpop.f32.mrf.mxu0
        %v4022 = vadd.f32 %v3489, %v4021
        %v4023 = vpop.f32.mrf.mxu0
        %4024 = vmatprep.mubr.f32.mxu0 0.0
        %4025 = vmatmul.mubr.f32.gmra.mxu0 %v3925
        %v4026 = vpop.f32.mrf.mxu0
        %v4027 = vadd.f32 %v3490, %v4026
        %v4028 = vpop.f32.mrf.mxu0
        %4029 = vmatprep.mubr.f32.mxu0 0.0
        %4030 = vmatmul.mubr.f32.gmra.mxu0 %v3927
        %v4031 = vpop.f32.mrf.mxu0
        %v4032 = vadd.f32 %v3491, %v4031
        %v4033 = vpop.f32.mrf.mxu0
        %4034 = vmatprep.mubr.f32.mxu0 0.0
        %4035 = vmatmul.mubr.f32.gmra.mxu0 %v3929
        %v4036 = vpop.f32.mrf.mxu0
        %v4037 = vadd.f32 %v3492, %v4036
        %v4038 = vpop.f32.mrf.mxu0
        %4039 = vmatprep.mubr.f32.mxu0 0.0
        %4040 = vmatmul.mubr.f32.gmra.mxu0 %v3931
        %v4041 = vpop.f32.mrf.mxu0
        %v4042 = vadd.f32 %v3493, %v4041
        %v4043 = vpop.f32.mrf.mxu0
        %4044 = vmatprep.mubr.f32.mxu0 0.0
        %4045 = vmatmul.mubr.f32.gmra.mxu0 %v3933
        %v4046 = vpop.f32.mrf.mxu0
        %v4047 = vadd.f32 %v3494, %v4046
        %v4048 = vpop.f32.mrf.mxu0
        %4049 = vmatprep.mubr.f32.mxu0 0.0
        %4050 = vmatmul.mubr.f32.gmra.mxu0 %v3935
        %v4051 = vpop.f32.mrf.mxu0
        %v4052 = vadd.f32 %v3495, %v4051
        %v4053 = vpop.f32.mrf.mxu0
        %4054 = vmatprep.mubr.f32.mxu0 0.0
        %4055 = vmatmul.mubr.f32.gmra.mxu0 %v3937
        %v4056 = vpop.f32.mrf.mxu0
        %v4057 = vadd.f32 %v3496, %v4056
        %v4058 = vpop.f32.mrf.mxu0
        %4059 = vdwg.mxu0
        %4068 = vrot.lane.b32.xlu0 %v3432, 120
        %v4069 = vpop.permute.xlu0 %4068
        %4070 = vrot.lane.b32.xlu0 %v3433, 120
        %v4071 = vpop.permute.xlu0 %4070
        %4072 = vrot.lane.b32.xlu0 %v3434, 120
        %v4073 = vpop.permute.xlu0 %4072
        %4074 = vrot.lane.b32.xlu0 %v3435, 120
        %v4075 = vpop.permute.xlu0 %4074
        %4076 = vrot.lane.b32.xlu0 %v3436, 120
        %v4077 = vpop.permute.xlu0 %4076
        %4078 = vrot.lane.b32.xlu0 %v3437, 120
        %v4079 = vpop.permute.xlu0 %4078
        %4080 = vrot.lane.b32.xlu0 %v3438, 120
        %v4081 = vpop.permute.xlu0 %4080
        %4082 = vrot.lane.b32.xlu0 %v3439, 120
        %v4083 = vpop.permute.xlu0 %4082
        %4092 = vrot.lane.b32.xlu0 %v3464, 88
        %v4093 = vpop.permute.xlu0 %4092
        %4094 = vrot.lane.b32.xlu0 %v3465, 88
        %v4095 = vpop.permute.xlu0 %4094
        %4096 = vrot.lane.b32.xlu0 %v3466, 88
        %v4097 = vpop.permute.xlu0 %4096
        %4098 = vrot.lane.b32.xlu0 %v3467, 88
        %v4099 = vpop.permute.xlu0 %4098
        %4100 = vrot.lane.b32.xlu0 %v3468, 88
        %v4101 = vpop.permute.xlu0 %4100
        %4102 = vrot.lane.b32.xlu0 %v3469, 88
        %v4103 = vpop.permute.xlu0 %4102
        %4104 = vrot.lane.b32.xlu0 %v3470, 88
        %v4105 = vpop.permute.xlu0 %4104
        %4106 = vrot.lane.b32.xlu0 %v3471, 88
        %v4107 = vpop.permute.xlu0 %4106
        %v4108 = vsel %vm689, %v4069, 0
        %v4110 = vsel %vm689, %v4071, 0
        %v4112 = vsel %vm689, %v4073, 0
        %v4114 = vsel %vm689, %v4075, 0
        %v4116 = vsel %vm689, %v4077, 0
        %v4118 = vsel %vm689, %v4079, 0
        %v4120 = vsel %vm689, %v4081, 0
        %v4122 = vsel %vm689, %v4083, 0
        %v4124 = vsel %vm689, %v4093, 0
        %v4126 = vsel %vm689, %v4095, 0
        %v4128 = vsel %vm689, %v4097, 0
        %v4130 = vsel %vm689, %v4099, 0
        %v4132 = vsel %vm689, %v4101, 0
        %v4134 = vsel %vm689, %v4103, 0
        %v4136 = vsel %vm689, %v4105, 0
        %v4138 = vsel %vm689, %v4107, 0
        %4140 = vmatprep.subr.mxu0 0.0
        %4141 = vmatpush1.xpose.msra.mxu0 0.0
        %4142 = vmatprep.subr.mxu0 0.0
        %4143 = vmatpush1.xpose.msra.mxu0 0.0
        %4144 = vmatprep.subr.mxu0 0.0
        %4145 = vmatpush1.xpose.msra.mxu0 0.0
        %4146 = vmatprep.subr.mxu0 0.0
        %4147 = vmatpush1.xpose.msra.mxu0 0.0
        %4148 = vmatprep.subr.mxu0 0.0
        %4149 = vmatpush1.xpose.msra.mxu0 0.0
        %4150 = vmatprep.subr.mxu0 0.0
        %4151 = vmatpush1.xpose.msra.mxu0 0.0
        %4152 = vmatprep.subr.mxu0 0.0
        %4153 = vmatpush1.xpose.msra.mxu0 0.0
        %4154 = vmatprep.subr.mxu0 0.0
        %4155 = vmatpush1.xpose.msra.mxu0 0.0
        %4156 = vmatprep.subr.mxu0 0.0
        %4157 = vmatpush1.xpose.msra.mxu0 %v4138
        %4158 = vmatprep.subr.mxu0 0.0
        %4159 = vmatpush1.xpose.msra.mxu0 %v4136
        %4160 = vmatprep.subr.mxu0 0.0
        %4161 = vmatpush1.xpose.msra.mxu0 %v4134
        %4162 = vmatprep.subr.mxu0 0.0
        %4163 = vmatpush1.xpose.msra.mxu0 %v4132
        %4164 = vmatprep.subr.mxu0 0.0
        %4165 = vmatpush1.xpose.msra.mxu0 %v4130
        %4166 = vmatprep.subr.mxu0 0.0
        %4167 = vmatpush1.xpose.msra.mxu0 %v4128
        %4168 = vmatprep.subr.mxu0 0.0
        %4169 = vmatpush1.xpose.msra.mxu0 %v4126
        %4170 = vmatprep.subr.mxu0 0.0
        %4171 = vmatpush1.xpose.msra.mxu0 %v4124
        %4172 = vmatprep.subr.mxu0 0.0
        %4173 = vmatpush2.xpose.msra.mxu0 0.0
        %4174 = vmatprep.subr.mxu0 0.0
        %4175 = vmatpush2.xpose.msra.mxu0 0.0
        %4176 = vmatprep.subr.mxu0 0.0
        %4177 = vmatpush2.xpose.msra.mxu0 0.0
        %4178 = vmatprep.subr.mxu0 0.0
        %4179 = vmatpush2.xpose.msra.mxu0 0.0
        %4180 = vmatprep.subr.mxu0 0.0
        %4181 = vmatpush2.xpose.msra.mxu0 0.0
        %4182 = vmatprep.subr.mxu0 0.0
        %4183 = vmatpush2.xpose.msra.mxu0 0.0
        %4184 = vmatprep.subr.mxu0 0.0
        %4185 = vmatpush2.xpose.msra.mxu0 0.0
        %4186 = vmatprep.subr.mxu0 0.0
        %4187 = vmatpush2.xpose.msra.mxu0 0.0
        %4188 = vmatprep.subr.mxu0 0.0
        %4189 = vmatpush2.xpose.msra.mxu0 0.0
        %4190 = vmatprep.subr.mxu0 0.0
        %4191 = vmatpush2.xpose.msra.mxu0 0.0
        %4192 = vmatprep.subr.mxu0 0.0
        %4193 = vmatpush2.xpose.msra.mxu0 0.0
        %4194 = vmatprep.subr.mxu0 0.0
        %4195 = vmatpush2.xpose.msra.mxu0 0.0
        %4196 = vmatprep.subr.mxu0 0.0
        %4197 = vmatpush2.xpose.msra.mxu0 0.0
        %4198 = vmatprep.subr.mxu0 0.0
        %4199 = vmatpush2.xpose.msra.mxu0 0.0
        %4200 = vmatprep.subr.mxu0 0.0
        %4201 = vmatpush2.xpose.msra.mxu0 0.0
        %4202 = vmatprep.subr.mxu0 0.0
        %4203 = vmatpush2.xpose.msra.mxu0 0.0
        %4204 = vmatprep.mubr.f32.mxu0 0.0
        %4205 = vmatmul.mubr.f32.gmra.mxu0 %v4108
        %v4206 = vpop.f32.mrf.mxu0
        %v4207 = vadd.f32 %v3497, %v4206
        %v4208 = vpop.f32.mrf.mxu0
        %4209 = vmatprep.mubr.f32.mxu0 0.0
        %4210 = vmatmul.mubr.f32.gmra.mxu0 %v4110
        %v4211 = vpop.f32.mrf.mxu0
        %v4212 = vadd.f32 %v3498, %v4211
        %v4213 = vpop.f32.mrf.mxu0
        %4214 = vmatprep.mubr.f32.mxu0 0.0
        %4215 = vmatmul.mubr.f32.gmra.mxu0 %v4112
        %v4216 = vpop.f32.mrf.mxu0
        %v4217 = vadd.f32 %v3499, %v4216
        %v4218 = vpop.f32.mrf.mxu0
        %4219 = vmatprep.mubr.f32.mxu0 0.0
        %4220 = vmatmul.mubr.f32.gmra.mxu0 %v4114
        %v4221 = vpop.f32.mrf.mxu0
        %v4222 = vadd.f32 %v3500, %v4221
        %v4223 = vpop.f32.mrf.mxu0
        %4224 = vmatprep.mubr.f32.mxu0 0.0
        %4225 = vmatmul.mubr.f32.gmra.mxu0 %v4116
        %v4226 = vpop.f32.mrf.mxu0
        %v4227 = vadd.f32 %v3501, %v4226
        %v4228 = vpop.f32.mrf.mxu0
        %4229 = vmatprep.mubr.f32.mxu0 0.0
        %4230 = vmatmul.mubr.f32.gmra.mxu0 %v4118
        %v4231 = vpop.f32.mrf.mxu0
        %v4232 = vadd.f32 %v3502, %v4231
        %v4233 = vpop.f32.mrf.mxu0
        %4234 = vmatprep.mubr.f32.mxu0 0.0
        %4235 = vmatmul.mubr.f32.gmra.mxu0 %v4120
        %v4236 = vpop.f32.mrf.mxu0
        %v4237 = vadd.f32 %v3503, %v4236
        %v4238 = vpop.f32.mrf.mxu0
        %4239 = vmatprep.mubr.f32.mxu0 0.0
        %4240 = vmatmul.mubr.f32.gmra.mxu0 %v4122
        %v4241 = vpop.f32.mrf.mxu0
        %v4242 = vadd.f32 %v3504, %v4241
        %v4243 = vpop.f32.mrf.mxu0
        %4244 = vdwg.mxu0
        %v4245 = vsel %vm1944, %v3652, -inf
        %4246 = vmax.xlane.f32.xlu0 %v4245
        %v4247 = vpop.xlane.xlu0 %4246
        %v4248 = vsel %vm1944, %v3657, -inf
        %4249 = vmax.xlane.f32.xlu0 %v4248
        %v4250 = vpop.xlane.xlu0 %4249
        %v4251 = vsel %vm1944, %v3662, -inf
        %4252 = vmax.xlane.f32.xlu0 %v4251
        %v4253 = vpop.xlane.xlu0 %4252
        %v4254 = vsel %vm1944, %v3667, -inf
        %4255 = vmax.xlane.f32.xlu0 %v4254
        %v4256 = vpop.xlane.xlu0 %4255
        %v4257 = vsel %vm1944, %v3672, -inf
        %4258 = vmax.xlane.f32.xlu0 %v4257
        %v4259 = vpop.xlane.xlu0 %4258
        %v4260 = vsel %vm1944, %v3677, -inf
        %4261 = vmax.xlane.f32.xlu0 %v4260
        %v4262 = vpop.xlane.xlu0 %4261
        %v4263 = vsel %vm1944, %v3682, -inf
        %4264 = vmax.xlane.f32.xlu0 %v4263
        %v4265 = vpop.xlane.xlu0 %4264
        %v4266 = vsel %vm1944, %v3687, -inf
        %4267 = vmax.xlane.f32.xlu0 %v4266
        %v4268 = vpop.xlane.xlu0 %4267
        %v4269 = vsel %vm1944, %v3837, -inf
        %4270 = vmax.xlane.f32.xlu0 %v4269
        %v4271 = vpop.xlane.xlu0 %4270
        %v4272 = vsel %vm1944, %v3842, -inf
        %4273 = vmax.xlane.f32.xlu0 %v4272
        %v4274 = vpop.xlane.xlu0 %4273
        %v4275 = vsel %vm1944, %v3847, -inf
        %4276 = vmax.xlane.f32.xlu0 %v4275
        %v4277 = vpop.xlane.xlu0 %4276
        %v4278 = vsel %vm1944, %v3852, -inf
        %4279 = vmax.xlane.f32.xlu0 %v4278
        %v4280 = vpop.xlane.xlu0 %4279
        %v4281 = vsel %vm1944, %v3857, -inf
        %4282 = vmax.xlane.f32.xlu0 %v4281
        %v4283 = vpop.xlane.xlu0 %4282
        %v4284 = vsel %vm1944, %v3862, -inf
        %4285 = vmax.xlane.f32.xlu0 %v4284
        %v4286 = vpop.xlane.xlu0 %4285
        %v4287 = vsel %vm1944, %v3867, -inf
        %4288 = vmax.xlane.f32.xlu0 %v4287
        %v4289 = vpop.xlane.xlu0 %4288
        %v4290 = vsel %vm1944, %v3872, -inf
        %4291 = vmax.xlane.f32.xlu0 %v4290
        %v4292 = vpop.xlane.xlu0 %4291
        %v4293 = vsel %vm1944, %v4022, -inf
        %4294 = vmax.xlane.f32.xlu0 %v4293
        %v4295 = vpop.xlane.xlu0 %4294
        %v4296 = vsel %vm1944, %v4027, -inf
        %4297 = vmax.xlane.f32.xlu0 %v4296
        %v4298 = vpop.xlane.xlu0 %4297
        %v4299 = vsel %vm1944, %v4032, -inf
        %4300 = vmax.xlane.f32.xlu0 %v4299
        %v4301 = vpop.xlane.xlu0 %4300
        %v4302 = vsel %vm1944, %v4037, -inf
        %4303 = vmax.xlane.f32.xlu0 %v4302
        %v4304 = vpop.xlane.xlu0 %4303
        %v4305 = vsel %vm1944, %v4042, -inf
        %4306 = vmax.xlane.f32.xlu0 %v4305
        %v4307 = vpop.xlane.xlu0 %4306
        %v4308 = vsel %vm1944, %v4047, -inf
        %4309 = vmax.xlane.f32.xlu0 %v4308
        %v4310 = vpop.xlane.xlu0 %4309
        %v4311 = vsel %vm1944, %v4052, -inf
        %4312 = vmax.xlane.f32.xlu0 %v4311
        %v4313 = vpop.xlane.xlu0 %4312
        %v4314 = vsel %vm1944, %v4057, -inf
        %4315 = vmax.xlane.f32.xlu0 %v4314
        %v4316 = vpop.xlane.xlu0 %4315
        %v4317 = vsel %vm1944, %v4207, -inf
        %4318 = vmax.xlane.f32.xlu0 %v4317
        %v4319 = vpop.xlane.xlu0 %4318
        %v4320 = vsel %vm1944, %v4212, -inf
        %4321 = vmax.xlane.f32.xlu0 %v4320
        %v4322 = vpop.xlane.xlu0 %4321
        %v4323 = vsel %vm1944, %v4217, -inf
        %4324 = vmax.xlane.f32.xlu0 %v4323
        %v4325 = vpop.xlane.xlu0 %4324
        %v4326 = vsel %vm1944, %v4222, -inf
        %4327 = vmax.xlane.f32.xlu0 %v4326
        %v4328 = vpop.xlane.xlu0 %4327
        %v4329 = vsel %vm1944, %v4227, -inf
        %4330 = vmax.xlane.f32.xlu0 %v4329
        %v4331 = vpop.xlane.xlu0 %4330
        %v4332 = vsel %vm1944, %v4232, -inf
        %4333 = vmax.xlane.f32.xlu0 %v4332
        %v4334 = vpop.xlane.xlu0 %4333
        %v4335 = vsel %vm1944, %v4237, -inf
        %4336 = vmax.xlane.f32.xlu0 %v4335
        %v4337 = vpop.xlane.xlu0 %4336
        %v4338 = vsel %vm1944, %v4242, -inf
        %4339 = vmax.xlane.f32.xlu0 %v4338
        %v4340 = vpop.xlane.xlu0 %4339
        %v4341 = vsub.f32 %v3652, %v4247
        %v4342 = vsub.f32 %v3657, %v4250
        %v4343 = vsub.f32 %v3662, %v4253
        %v4344 = vsub.f32 %v3667, %v4256
        %v4345 = vsub.f32 %v3672, %v4259
        %v4346 = vsub.f32 %v3677, %v4262
        %v4347 = vsub.f32 %v3682, %v4265
        %v4348 = vsub.f32 %v3687, %v4268
        %v4349 = vsub.f32 %v3837, %v4271
        %v4350 = vsub.f32 %v3842, %v4274
        %v4351 = vsub.f32 %v3847, %v4277
        %v4352 = vsub.f32 %v3852, %v4280
        %v4353 = vsub.f32 %v3857, %v4283
        %v4354 = vsub.f32 %v3862, %v4286
        %v4355 = vsub.f32 %v3867, %v4289
        %v4356 = vsub.f32 %v3872, %v4292
        %v4357 = vsub.f32 %v4022, %v4295
        %v4358 = vsub.f32 %v4027, %v4298
        %v4359 = vsub.f32 %v4032, %v4301
        %v4360 = vsub.f32 %v4037, %v4304
        %v4361 = vsub.f32 %v4042, %v4307
        %v4362 = vsub.f32 %v4047, %v4310
        %v4363 = vsub.f32 %v4052, %v4313
        %v4364 = vsub.f32 %v4057, %v4316
        %v4365 = vsub.f32 %v4207, %v4319
        %v4366 = vsub.f32 %v4212, %v4322
        %v4367 = vsub.f32 %v4217, %v4325
        %v4368 = vsub.f32 %v4222, %v4328
        %v4369 = vsub.f32 %v4227, %v4331
        %v4370 = vsub.f32 %v4232, %v4334
        %v4371 = vsub.f32 %v4237, %v4337
        %v4372 = vsub.f32 %v4242, %v4340
        %v4373 = vmul.f32 %v4341, 1.442695
        %v4374 = vpow.pop %v4373
        %v4375 = vmul.f32 %v4342, 1.442695
        %v4376 = vpow.pop %v4375
        %v4377 = vmul.f32 %v4343, 1.442695
        %v4378 = vpow.pop %v4377
        %v4379 = vmul.f32 %v4344, 1.442695
        %v4380 = vpow.pop %v4379
        %v4381 = vmul.f32 %v4345, 1.442695
        %v4382 = vpow.pop %v4381
        %v4383 = vmul.f32 %v4346, 1.442695
        %v4384 = vpow.pop %v4383
        %v4385 = vmul.f32 %v4347, 1.442695
        %v4386 = vpow.pop %v4385
        %v4387 = vmul.f32 %v4348, 1.442695
        %v4388 = vpow.pop %v4387
        %v4389 = vmul.f32 %v4349, 1.442695
        %v4390 = vpow.pop %v4389
        %v4391 = vmul.f32 %v4350, 1.442695
        %v4392 = vpow.pop %v4391
        %v4393 = vmul.f32 %v4351, 1.442695
        %v4394 = vpow.pop %v4393
        %v4395 = vmul.f32 %v4352, 1.442695
        %v4396 = vpow.pop %v4395
        %v4397 = vmul.f32 %v4353, 1.442695
        %v4398 = vpow.pop %v4397
        %v4399 = vmul.f32 %v4354, 1.442695
        %v4400 = vpow.pop %v4399
        %v4401 = vmul.f32 %v4355, 1.442695
        %v4402 = vpow.pop %v4401
        %v4403 = vmul.f32 %v4356, 1.442695
        %v4404 = vpow.pop %v4403
        %v4405 = vmul.f32 %v4357, 1.442695
        %v4406 = vpow.pop %v4405
        %v4407 = vmul.f32 %v4358, 1.442695
        %v4408 = vpow.pop %v4407
        %v4409 = vmul.f32 %v4359, 1.442695
        %v4410 = vpow.pop %v4409
        %v4411 = vmul.f32 %v4360, 1.442695
        %v4412 = vpow.pop %v4411
        %v4413 = vmul.f32 %v4361, 1.442695
        %v4414 = vpow.pop %v4413
        %v4415 = vmul.f32 %v4362, 1.442695
        %v4416 = vpow.pop %v4415
        %v4417 = vmul.f32 %v4363, 1.442695
        %v4418 = vpow.pop %v4417
        %v4419 = vmul.f32 %v4364, 1.442695
        %v4420 = vpow.pop %v4419
        %v4421 = vmul.f32 %v4365, 1.442695
        %v4422 = vpow.pop %v4421
        %v4423 = vmul.f32 %v4366, 1.442695
        %v4424 = vpow.pop %v4423
        %v4425 = vmul.f32 %v4367, 1.442695
        %v4426 = vpow.pop %v4425
        %v4427 = vmul.f32 %v4368, 1.442695
        %v4428 = vpow.pop %v4427
        %v4429 = vmul.f32 %v4369, 1.442695
        %v4430 = vpow.pop %v4429
        %v4431 = vmul.f32 %v4370, 1.442695
        %v4432 = vpow.pop %v4431
        %v4433 = vmul.f32 %v4371, 1.442695
        %v4434 = vpow.pop %v4433
        %v4435 = vmul.f32 %v4372, 1.442695
        %v4436 = vpow.pop %v4435
        %v4437 = vsel %vm1944, %v4374, 0.0
        %4438 = vadd.xlane.f32.xlu0 %v4437
        %v4439 = vpop.xlane.xlu0 %4438
        %v4440 = vsel %vm1944, %v4376, 0.0
        %4441 = vadd.xlane.f32.xlu0 %v4440
        %v4442 = vpop.xlane.xlu0 %4441
        %v4443 = vsel %vm1944, %v4378, 0.0
        %4444 = vadd.xlane.f32.xlu0 %v4443
        %v4445 = vpop.xlane.xlu0 %4444
        %v4446 = vsel %vm1944, %v4380, 0.0
        %4447 = vadd.xlane.f32.xlu0 %v4446
        %v4448 = vpop.xlane.xlu0 %4447
        %v4449 = vsel %vm1944, %v4382, 0.0
        %4450 = vadd.xlane.f32.xlu0 %v4449
        %v4451 = vpop.xlane.xlu0 %4450
        %v4452 = vsel %vm1944, %v4384, 0.0
        %4453 = vadd.xlane.f32.xlu0 %v4452
        %v4454 = vpop.xlane.xlu0 %4453
        %v4455 = vsel %vm1944, %v4386, 0.0
        %4456 = vadd.xlane.f32.xlu0 %v4455
        %v4457 = vpop.xlane.xlu0 %4456
        %v4458 = vsel %vm1944, %v4388, 0.0
        %4459 = vadd.xlane.f32.xlu0 %v4458
        %v4460 = vpop.xlane.xlu0 %4459
        %v4461 = vsel %vm1944, %v4390, 0.0
        %4462 = vadd.xlane.f32.xlu0 %v4461
        %v4463 = vpop.xlane.xlu0 %4462
        %v4464 = vsel %vm1944, %v4392, 0.0
        %4465 = vadd.xlane.f32.xlu0 %v4464
        %v4466 = vpop.xlane.xlu0 %4465
        %v4467 = vsel %vm1944, %v4394, 0.0
        %4468 = vadd.xlane.f32.xlu0 %v4467
        %v4469 = vpop.xlane.xlu0 %4468
        %v4470 = vsel %vm1944, %v4396, 0.0
        %4471 = vadd.xlane.f32.xlu0 %v4470
        %v4472 = vpop.xlane.xlu0 %4471
        %v4473 = vsel %vm1944, %v4398, 0.0
        %4474 = vadd.xlane.f32.xlu0 %v4473
        %v4475 = vpop.xlane.xlu0 %4474
        %v4476 = vsel %vm1944, %v4400, 0.0
        %4477 = vadd.xlane.f32.xlu0 %v4476
        %v4478 = vpop.xlane.xlu0 %4477
        %v4479 = vsel %vm1944, %v4402, 0.0
        %4480 = vadd.xlane.f32.xlu0 %v4479
        %v4481 = vpop.xlane.xlu0 %4480
        %v4482 = vsel %vm1944, %v4404, 0.0
        %4483 = vadd.xlane.f32.xlu0 %v4482
        %v4484 = vpop.xlane.xlu0 %4483
        %v4485 = vsel %vm1944, %v4406, 0.0
        %4486 = vadd.xlane.f32.xlu0 %v4485
        %v4487 = vpop.xlane.xlu0 %4486
        %v4488 = vsel %vm1944, %v4408, 0.0
        %4489 = vadd.xlane.f32.xlu0 %v4488
        %v4490 = vpop.xlane.xlu0 %4489
        %v4491 = vsel %vm1944, %v4410, 0.0
        %4492 = vadd.xlane.f32.xlu0 %v4491
        %v4493 = vpop.xlane.xlu0 %4492
        %v4494 = vsel %vm1944, %v4412, 0.0
        %4495 = vadd.xlane.f32.xlu0 %v4494
        %v4496 = vpop.xlane.xlu0 %4495
        %v4497 = vsel %vm1944, %v4414, 0.0
        %4498 = vadd.xlane.f32.xlu0 %v4497
        %v4499 = vpop.xlane.xlu0 %4498
        %v4500 = vsel %vm1944, %v4416, 0.0
        %4501 = vadd.xlane.f32.xlu0 %v4500
        %v4502 = vpop.xlane.xlu0 %4501
        %v4503 = vsel %vm1944, %v4418, 0.0
        %4504 = vadd.xlane.f32.xlu0 %v4503
        %v4505 = vpop.xlane.xlu0 %4504
        %v4506 = vsel %vm1944, %v4420, 0.0
        %4507 = vadd.xlane.f32.xlu0 %v4506
        %v4508 = vpop.xlane.xlu0 %4507
        %v4509 = vsel %vm1944, %v4422, 0.0
        %4510 = vadd.xlane.f32.xlu0 %v4509
        %v4511 = vpop.xlane.xlu0 %4510
        %v4512 = vsel %vm1944, %v4424, 0.0
        %4513 = vadd.xlane.f32.xlu0 %v4512
        %v4514 = vpop.xlane.xlu0 %4513
        %v4515 = vsel %vm1944, %v4426, 0.0
        %4516 = vadd.xlane.f32.xlu0 %v4515
        %v4517 = vpop.xlane.xlu0 %4516
        %v4518 = vsel %vm1944, %v4428, 0.0
        %4519 = vadd.xlane.f32.xlu0 %v4518
        %v4520 = vpop.xlane.xlu0 %4519
        %v4521 = vsel %vm1944, %v4430, 0.0
        %4522 = vadd.xlane.f32.xlu0 %v4521
        %v4523 = vpop.xlane.xlu0 %4522
        %v4524 = vsel %vm1944, %v4432, 0.0
        %4525 = vadd.xlane.f32.xlu0 %v4524
        %v4526 = vpop.xlane.xlu0 %4525
        %v4527 = vsel %vm1944, %v4434, 0.0
        %4528 = vadd.xlane.f32.xlu0 %v4527
        %v4529 = vpop.xlane.xlu0 %4528
        %v4530 = vsel %vm1944, %v4436, 0.0
        %4531 = vadd.xlane.f32.xlu0 %v4530
        %v4532 = vpop.xlane.xlu0 %4531
        %v4533 = vrcp.pop %v4439
        %v4534 = vrcp.pop %v4442
        %v4535 = vrcp.pop %v4445
        %v4536 = vrcp.pop %v4448
        %v4537 = vrcp.pop %v4451
        %v4538 = vrcp.pop %v4454
        %v4539 = vrcp.pop %v4457
        %v4540 = vrcp.pop %v4460
        %v4541 = vrcp.pop %v4463
        %v4542 = vrcp.pop %v4466
        %v4543 = vrcp.pop %v4469
        %v4544 = vrcp.pop %v4472
        %v4545 = vrcp.pop %v4475
        %v4546 = vrcp.pop %v4478
        %v4547 = vrcp.pop %v4481
        %v4548 = vrcp.pop %v4484
        %v4549 = vrcp.pop %v4487
        %v4550 = vrcp.pop %v4490
        %v4551 = vrcp.pop %v4493
        %v4552 = vrcp.pop %v4496
        %v4553 = vrcp.pop %v4499
        %v4554 = vrcp.pop %v4502
        %v4555 = vrcp.pop %v4505
        %v4556 = vrcp.pop %v4508
        %v4557 = vrcp.pop %v4511
        %v4558 = vrcp.pop %v4514
        %v4559 = vrcp.pop %v4517
        %v4560 = vrcp.pop %v4520
        %v4561 = vrcp.pop %v4523
        %v4562 = vrcp.pop %v4526
        %v4563 = vrcp.pop %v4529
        %v4564 = vrcp.pop %v4532
        %v4565 = vmul.f32 %v4374, %v4533
        %v4566 = vmul.f32 %v4376, %v4534
        %v4567 = vmul.f32 %v4378, %v4535
        %v4568 = vmul.f32 %v4380, %v4536
        %v4569 = vmul.f32 %v4382, %v4537
        %v4570 = vmul.f32 %v4384, %v4538
        %v4571 = vmul.f32 %v4386, %v4539
        %v4572 = vmul.f32 %v4388, %v4540
        %v4573 = vmul.f32 %v4390, %v4541
        %v4574 = vmul.f32 %v4392, %v4542
        %v4575 = vmul.f32 %v4394, %v4543
        %v4576 = vmul.f32 %v4396, %v4544
        %v4577 = vmul.f32 %v4398, %v4545
        %v4578 = vmul.f32 %v4400, %v4546
        %v4579 = vmul.f32 %v4402, %v4547
        %v4580 = vmul.f32 %v4404, %v4548
        %v4581 = vmul.f32 %v4406, %v4549
        %v4582 = vmul.f32 %v4408, %v4550
        %v4583 = vmul.f32 %v4410, %v4551
        %v4584 = vmul.f32 %v4412, %v4552
        %v4585 = vmul.f32 %v4414, %v4553
        %v4586 = vmul.f32 %v4416, %v4554
        %v4587 = vmul.f32 %v4418, %v4555
        %v4588 = vmul.f32 %v4420, %v4556
        %v4589 = vmul.f32 %v4422, %v4557
        %v4590 = vmul.f32 %v4424, %v4558
        %v4591 = vmul.f32 %v4426, %v4559
        %v4592 = vmul.f32 %v4428, %v4560
        %v4593 = vmul.f32 %v4430, %v4561
        %v4594 = vmul.f32 %v4432, %v4562
        %v4595 = vmul.f32 %v4434, %v4563
        %v4596 = vmul.f32 %v4436, %v4564
        %v4597 = vpack.c.bf16 %v4566, %v4565
        %v4598 = vpack.c.bf16 %v4568, %v4567
        %v4599 = vpack.c.bf16 %v4570, %v4569
        %v4600 = vpack.c.bf16 %v4572, %v4571
        %v4601 = vpack.c.bf16 %v4574, %v4573
        %v4602 = vpack.c.bf16 %v4576, %v4575
        %v4603 = vpack.c.bf16 %v4578, %v4577
        %v4604 = vpack.c.bf16 %v4580, %v4579
        %v4605 = vpack.c.bf16 %v4582, %v4581
        %v4606 = vpack.c.bf16 %v4584, %v4583
        %v4607 = vpack.c.bf16 %v4586, %v4585
        %v4608 = vpack.c.bf16 %v4588, %v4587
        %v4609 = vpack.c.bf16 %v4590, %v4589
        %v4610 = vpack.c.bf16 %v4592, %v4591
        %v4611 = vpack.c.bf16 %v4594, %v4593
        %v4612 = vpack.c.bf16 %v4596, %v4595
        %4613 = vrot.lane.b32.xlu0 %v2313, 56
        %v4614 = vpop.permute.xlu0 %4613
        %4615 = vrot.lane.b32.xlu0 %v2314, 56
        %v4616 = vpop.permute.xlu0 %4615
        %4617 = vrot.lane.b32.xlu0 %v2315, 56
        %v4618 = vpop.permute.xlu0 %4617
        %4619 = vrot.lane.b32.xlu0 %v2316, 56
        %v4620 = vpop.permute.xlu0 %4619
        %v4626 = vsel %vm1944, %v4597, 0
        %v4629 = vsel %vm1944, %v4598, 0
        %v4632 = vsel %vm1944, %v4599, 0
        %v4635 = vsel %vm1944, %v4600, 0
        %4637 = vmatprep.subr.bf16.mxu0 0
        %4638 = vmatpush1.bf16.msra.mxu0 0
        %4639 = vmatprep.subr.bf16.mxu0 0
        %4640 = vmatpush1.bf16.msra.mxu0 0
        %4641 = vmatprep.subr.bf16.mxu0 0
        %4642 = vmatpush1.bf16.msra.mxu0 0
        %4643 = vmatprep.subr.bf16.mxu0 0
        %4644 = vmatpush1.bf16.msra.mxu0 0
        %4645 = vmatprep.subr.bf16.mxu0 0
        %4646 = vmatpush1.bf16.msra.mxu0 %v4620
        %4647 = vmatprep.subr.bf16.mxu0 0
        %4648 = vmatpush1.bf16.msra.mxu0 %v4618
        %4649 = vmatprep.subr.bf16.mxu0 0
        %4650 = vmatpush1.bf16.msra.mxu0 %v4616
        %4651 = vmatprep.subr.bf16.mxu0 0
        %4652 = vmatpush1.bf16.msra.mxu0 %v4614
        %4653 = vmatprep.subr.bf16.mxu0 0
        %4654 = vmatpush2.bf16.msra.mxu0 0
        %4655 = vmatprep.subr.bf16.mxu0 0
        %4656 = vmatpush2.bf16.msra.mxu0 0
        %4657 = vmatprep.subr.bf16.mxu0 0
        %4658 = vmatpush2.bf16.msra.mxu0 0
        %4659 = vmatprep.subr.bf16.mxu0 0
        %4660 = vmatpush2.bf16.msra.mxu0 0
        %4661 = vmatprep.subr.bf16.mxu0 0
        %4662 = vmatpush2.bf16.msra.mxu0 0
        %4663 = vmatprep.subr.bf16.mxu0 0
        %4664 = vmatpush2.bf16.msra.mxu0 0
        %4665 = vmatprep.subr.bf16.mxu0 0
        %4666 = vmatpush2.bf16.msra.mxu0 0
        %4667 = vmatprep.subr.bf16.mxu0 0
        %4668 = vmatpush2.bf16.msra.mxu0 0
        %4669 = vmatprep.mubr.bf16.mxu0 0
        %4670 = vmatmul.mubr.bf16.gmra.mxu0 %v4626
        %v4671 = vpop.f32.mrf.mxu0
        %v4672 = vadd.f32 0.0, %v4671
        %v4673 = vpop.f32.mrf.mxu0
        %v4674 = vpop.f32.mrf.mxu0
        %v4675 = vadd.f32 0.0, %v4674
        %v4676 = vpop.f32.mrf.mxu0
        %4677 = vmatprep.mubr.bf16.mxu0 0
        %4678 = vmatmul.mubr.bf16.gmra.mxu0 %v4629
        %v4679 = vpop.f32.mrf.mxu0
        %v4680 = vadd.f32 0.0, %v4679
        %v4681 = vpop.f32.mrf.mxu0
        %v4682 = vpop.f32.mrf.mxu0
        %v4683 = vadd.f32 0.0, %v4682
        %v4684 = vpop.f32.mrf.mxu0
        %4685 = vmatprep.mubr.bf16.mxu0 0
        %4686 = vmatmul.mubr.bf16.gmra.mxu0 %v4632
        %v4687 = vpop.f32.mrf.mxu0
        %v4688 = vadd.f32 0.0, %v4687
        %v4689 = vpop.f32.mrf.mxu0
        %v4690 = vpop.f32.mrf.mxu0
        %v4691 = vadd.f32 0.0, %v4690
        %v4692 = vpop.f32.mrf.mxu0
        %4693 = vmatprep.mubr.bf16.mxu0 0
        %4694 = vmatmul.mubr.bf16.gmra.mxu0 %v4635
        %v4695 = vpop.f32.mrf.mxu0
        %v4696 = vadd.f32 0.0, %v4695
        %v4697 = vpop.f32.mrf.mxu0
        %v4698 = vpop.f32.mrf.mxu0
        %v4699 = vadd.f32 0.0, %v4698
        %v4700 = vpop.f32.mrf.mxu0
        %4701 = vdwg.mxu0
        %4702 = vrot.lane.b32.xlu0 %v2317, 56
        %v4703 = vpop.permute.xlu0 %4702
        %4704 = vrot.lane.b32.xlu0 %v2318, 56
        %v4705 = vpop.permute.xlu0 %4704
        %4706 = vrot.lane.b32.xlu0 %v2319, 56
        %v4707 = vpop.permute.xlu0 %4706
        %4708 = vrot.lane.b32.xlu0 %v2320, 56
        %v4709 = vpop.permute.xlu0 %4708
        %v4715 = vsel %vm1944, %v4601, 0
        %v4718 = vsel %vm1944, %v4602, 0
        %v4721 = vsel %vm1944, %v4603, 0
        %v4724 = vsel %vm1944, %v4604, 0
        %4726 = vmatprep.subr.bf16.mxu0 0
        %4727 = vmatpush1.bf16.msra.mxu0 0
        %4728 = vmatprep.subr.bf16.mxu0 0
        %4729 = vmatpush1.bf16.msra.mxu0 0
        %4730 = vmatprep.subr.bf16.mxu0 0
        %4731 = vmatpush1.bf16.msra.mxu0 0
        %4732 = vmatprep.subr.bf16.mxu0 0
        %4733 = vmatpush1.bf16.msra.mxu0 0
        %4734 = vmatprep.subr.bf16.mxu0 0
        %4735 = vmatpush1.bf16.msra.mxu0 %v4709
        %4736 = vmatprep.subr.bf16.mxu0 0
        %4737 = vmatpush1.bf16.msra.mxu0 %v4707
        %4738 = vmatprep.subr.bf16.mxu0 0
        %4739 = vmatpush1.bf16.msra.mxu0 %v4705
        %4740 = vmatprep.subr.bf16.mxu0 0
        %4741 = vmatpush1.bf16.msra.mxu0 %v4703
        %4742 = vmatprep.subr.bf16.mxu0 0
        %4743 = vmatpush2.bf16.msra.mxu0 0
        %4744 = vmatprep.subr.bf16.mxu0 0
        %4745 = vmatpush2.bf16.msra.mxu0 0
        %4746 = vmatprep.subr.bf16.mxu0 0
        %4747 = vmatpush2.bf16.msra.mxu0 0
        %4748 = vmatprep.subr.bf16.mxu0 0
        %4749 = vmatpush2.bf16.msra.mxu0 0
        %4750 = vmatprep.subr.bf16.mxu0 0
        %4751 = vmatpush2.bf16.msra.mxu0 0
        %4752 = vmatprep.subr.bf16.mxu0 0
        %4753 = vmatpush2.bf16.msra.mxu0 0
        %4754 = vmatprep.subr.bf16.mxu0 0
        %4755 = vmatpush2.bf16.msra.mxu0 0
        %4756 = vmatprep.subr.bf16.mxu0 0
        %4757 = vmatpush2.bf16.msra.mxu0 0
        %4758 = vmatprep.mubr.bf16.mxu0 0
        %4759 = vmatmul.mubr.bf16.gmra.mxu0 %v4715
        %v4760 = vpop.f32.mrf.mxu0
        %v4761 = vadd.f32 0.0, %v4760
        %v4762 = vpop.f32.mrf.mxu0
        %v4763 = vpop.f32.mrf.mxu0
        %v4764 = vadd.f32 0.0, %v4763
        %v4765 = vpop.f32.mrf.mxu0
        %4766 = vmatprep.mubr.bf16.mxu0 0
        %4767 = vmatmul.mubr.bf16.gmra.mxu0 %v4718
        %v4768 = vpop.f32.mrf.mxu0
        %v4769 = vadd.f32 0.0, %v4768
        %v4770 = vpop.f32.mrf.mxu0
        %v4771 = vpop.f32.mrf.mxu0
        %v4772 = vadd.f32 0.0, %v4771
        %v4773 = vpop.f32.mrf.mxu0
        %4774 = vmatprep.mubr.bf16.mxu0 0
        %4775 = vmatmul.mubr.bf16.gmra.mxu0 %v4721
        %v4776 = vpop.f32.mrf.mxu0
        %v4777 = vadd.f32 0.0, %v4776
        %v4778 = vpop.f32.mrf.mxu0
        %v4779 = vpop.f32.mrf.mxu0
        %v4780 = vadd.f32 0.0, %v4779
        %v4781 = vpop.f32.mrf.mxu0
        %4782 = vmatprep.mubr.bf16.mxu0 0
        %4783 = vmatmul.mubr.bf16.gmra.mxu0 %v4724
        %v4784 = vpop.f32.mrf.mxu0
        %v4785 = vadd.f32 0.0, %v4784
        %v4786 = vpop.f32.mrf.mxu0
        %v4787 = vpop.f32.mrf.mxu0
        %v4788 = vadd.f32 0.0, %v4787
        %v4789 = vpop.f32.mrf.mxu0
        %4790 = vdwg.mxu0
        %4791 = vrot.lane.b32.xlu0 %v2321, 56
        %v4792 = vpop.permute.xlu0 %4791
        %4793 = vrot.lane.b32.xlu0 %v2322, 56
        %v4794 = vpop.permute.xlu0 %4793
        %4795 = vrot.lane.b32.xlu0 %v2323, 56
        %v4796 = vpop.permute.xlu0 %4795
        %4797 = vrot.lane.b32.xlu0 %v2324, 56
        %v4798 = vpop.permute.xlu0 %4797
        %v4804 = vsel %vm1944, %v4605, 0
        %v4807 = vsel %vm1944, %v4606, 0
        %v4810 = vsel %vm1944, %v4607, 0
        %v4813 = vsel %vm1944, %v4608, 0
        %4815 = vmatprep.subr.bf16.mxu0 0
        %4816 = vmatpush1.bf16.msra.mxu0 0
        %4817 = vmatprep.subr.bf16.mxu0 0
        %4818 = vmatpush1.bf16.msra.mxu0 0
        %4819 = vmatprep.subr.bf16.mxu0 0
        %4820 = vmatpush1.bf16.msra.mxu0 0
        %4821 = vmatprep.subr.bf16.mxu0 0
        %4822 = vmatpush1.bf16.msra.mxu0 0
        %4823 = vmatprep.subr.bf16.mxu0 0
        %4824 = vmatpush1.bf16.msra.mxu0 %v4798
        %4825 = vmatprep.subr.bf16.mxu0 0
        %4826 = vmatpush1.bf16.msra.mxu0 %v4796
        %4827 = vmatprep.subr.bf16.mxu0 0
        %4828 = vmatpush1.bf16.msra.mxu0 %v4794
        %4829 = vmatprep.subr.bf16.mxu0 0
        %4830 = vmatpush1.bf16.msra.mxu0 %v4792
        %4831 = vmatprep.subr.bf16.mxu0 0
        %4832 = vmatpush2.bf16.msra.mxu0 0
        %4833 = vmatprep.subr.bf16.mxu0 0
        %4834 = vmatpush2.bf16.msra.mxu0 0
        %4835 = vmatprep.subr.bf16.mxu0 0
        %4836 = vmatpush2.bf16.msra.mxu0 0
        %4837 = vmatprep.subr.bf16.mxu0 0
        %4838 = vmatpush2.bf16.msra.mxu0 0
        %4839 = vmatprep.subr.bf16.mxu0 0
        %4840 = vmatpush2.bf16.msra.mxu0 0
        %4841 = vmatprep.subr.bf16.mxu0 0
        %4842 = vmatpush2.bf16.msra.mxu0 0
        %4843 = vmatprep.subr.bf16.mxu0 0
        %4844 = vmatpush2.bf16.msra.mxu0 0
        %4845 = vmatprep.subr.bf16.mxu0 0
        %4846 = vmatpush2.bf16.msra.mxu0 0
        %4847 = vmatprep.mubr.bf16.mxu0 0
        %4848 = vmatmul.mubr.bf16.gmra.mxu0 %v4804
        %v4849 = vpop.f32.mrf.mxu0
        %v4850 = vadd.f32 0.0, %v4849
        %v4851 = vpop.f32.mrf.mxu0
        %v4852 = vpop.f32.mrf.mxu0
        %v4853 = vadd.f32 0.0, %v4852
        %v4854 = vpop.f32.mrf.mxu0
        %4855 = vmatprep.mubr.bf16.mxu0 0
        %4856 = vmatmul.mubr.bf16.gmra.mxu0 %v4807
        %v4857 = vpop.f32.mrf.mxu0
        %v4858 = vadd.f32 0.0, %v4857
        %v4859 = vpop.f32.mrf.mxu0
        %v4860 = vpop.f32.mrf.mxu0
        %v4861 = vadd.f32 0.0, %v4860
        %v4862 = vpop.f32.mrf.mxu0
        %4863 = vmatprep.mubr.bf16.mxu0 0
        %4864 = vmatmul.mubr.bf16.gmra.mxu0 %v4810
        %v4865 = vpop.f32.mrf.mxu0
        %v4866 = vadd.f32 0.0, %v4865
        %v4867 = vpop.f32.mrf.mxu0
        %v4868 = vpop.f32.mrf.mxu0
        %v4869 = vadd.f32 0.0, %v4868
        %v4870 = vpop.f32.mrf.mxu0
        %4871 = vmatprep.mubr.bf16.mxu0 0
        %4872 = vmatmul.mubr.bf16.gmra.mxu0 %v4813
        %v4873 = vpop.f32.mrf.mxu0
        %v4874 = vadd.f32 0.0, %v4873
        %v4875 = vpop.f32.mrf.mxu0
        %v4876 = vpop.f32.mrf.mxu0
        %v4877 = vadd.f32 0.0, %v4876
        %v4878 = vpop.f32.mrf.mxu0
        %4879 = vdwg.mxu0
        %4880 = vrot.lane.b32.xlu0 %v2325, 56
        %v4881 = vpop.permute.xlu0 %4880
        %4882 = vrot.lane.b32.xlu0 %v2326, 56
        %v4883 = vpop.permute.xlu0 %4882
        %4884 = vrot.lane.b32.xlu0 %v2327, 56
        %v4885 = vpop.permute.xlu0 %4884
        %4886 = vrot.lane.b32.xlu0 %v2328, 56
        %v4887 = vpop.permute.xlu0 %4886
        %v4893 = vsel %vm1944, %v4609, 0
        %v4896 = vsel %vm1944, %v4610, 0
        %v4899 = vsel %vm1944, %v4611, 0
        %v4902 = vsel %vm1944, %v4612, 0
        %4904 = vmatprep.subr.bf16.mxu0 0
        %4905 = vmatpush1.bf16.msra.mxu0 0
        %4906 = vmatprep.subr.bf16.mxu0 0
        %4907 = vmatpush1.bf16.msra.mxu0 0
        %4908 = vmatprep.subr.bf16.mxu0 0
        %4909 = vmatpush1.bf16.msra.mxu0 0
        %4910 = vmatprep.subr.bf16.mxu0 0
        %4911 = vmatpush1.bf16.msra.mxu0 0
        %4912 = vmatprep.subr.bf16.mxu0 0
        %4913 = vmatpush1.bf16.msra.mxu0 %v4887
        %4914 = vmatprep.subr.bf16.mxu0 0
        %4915 = vmatpush1.bf16.msra.mxu0 %v4885
        %4916 = vmatprep.subr.bf16.mxu0 0
        %4917 = vmatpush1.bf16.msra.mxu0 %v4883
        %4918 = vmatprep.subr.bf16.mxu0 0
        %4919 = vmatpush1.bf16.msra.mxu0 %v4881
        %4920 = vmatprep.subr.bf16.mxu0 0
        %4921 = vmatpush2.bf16.msra.mxu0 0
        %4922 = vmatprep.subr.bf16.mxu0 0
        %4923 = vmatpush2.bf16.msra.mxu0 0
        %4924 = vmatprep.subr.bf16.mxu0 0
        %4925 = vmatpush2.bf16.msra.mxu0 0
        %4926 = vmatprep.subr.bf16.mxu0 0
        %4927 = vmatpush2.bf16.msra.mxu0 0
        %4928 = vmatprep.subr.bf16.mxu0 0
        %4929 = vmatpush2.bf16.msra.mxu0 0
        %4930 = vmatprep.subr.bf16.mxu0 0
        %4931 = vmatpush2.bf16.msra.mxu0 0
        %4932 = vmatprep.subr.bf16.mxu0 0
        %4933 = vmatpush2.bf16.msra.mxu0 0
        %4934 = vmatprep.subr.bf16.mxu0 0
        %4935 = vmatpush2.bf16.msra.mxu0 0
        %4936 = vmatprep.mubr.bf16.mxu0 0
        %4937 = vmatmul.mubr.bf16.gmra.mxu0 %v4893
        %v4938 = vpop.f32.mrf.mxu0
        %v4939 = vadd.f32 0.0, %v4938
        %v4940 = vpop.f32.mrf.mxu0
        %v4941 = vpop.f32.mrf.mxu0
        %v4942 = vadd.f32 0.0, %v4941
        %v4943 = vpop.f32.mrf.mxu0
        %4944 = vmatprep.mubr.bf16.mxu0 0
        %4945 = vmatmul.mubr.bf16.gmra.mxu0 %v4896
        %v4946 = vpop.f32.mrf.mxu0
        %v4947 = vadd.f32 0.0, %v4946
        %v4948 = vpop.f32.mrf.mxu0
        %v4949 = vpop.f32.mrf.mxu0
        %v4950 = vadd.f32 0.0, %v4949
        %v4951 = vpop.f32.mrf.mxu0
        %4952 = vmatprep.mubr.bf16.mxu0 0
        %4953 = vmatmul.mubr.bf16.gmra.mxu0 %v4899
        %v4954 = vpop.f32.mrf.mxu0
        %v4955 = vadd.f32 0.0, %v4954
        %v4956 = vpop.f32.mrf.mxu0
        %v4957 = vpop.f32.mrf.mxu0
        %v4958 = vadd.f32 0.0, %v4957
        %v4959 = vpop.f32.mrf.mxu0
        %4960 = vmatprep.mubr.bf16.mxu0 0
        %4961 = vmatmul.mubr.bf16.gmra.mxu0 %v4902
        %v4962 = vpop.f32.mrf.mxu0
        %v4963 = vadd.f32 0.0, %v4962
        %v4964 = vpop.f32.mrf.mxu0
        %v4965 = vpop.f32.mrf.mxu0
        %v4966 = vadd.f32 0.0, %v4965
        %v4967 = vpop.f32.mrf.mxu0
        %4968 = vdwg.mxu0
        %v4969 = vpack.c.bf16 %v4675, %v4672
        %v4970 = vpack.c.bf16 %v4683, %v4680
        %v4971 = vpack.c.bf16 %v4691, %v4688
        %v4972 = vpack.c.bf16 %v4699, %v4696
        %v4973 = vpack.c.bf16 %v4764, %v4761
        %v4974 = vpack.c.bf16 %v4772, %v4769
        %v4975 = vpack.c.bf16 %v4780, %v4777
        %v4976 = vpack.c.bf16 %v4788, %v4785
        %v4977 = vpack.c.bf16 %v4853, %v4850
        %v4978 = vpack.c.bf16 %v4861, %v4858
        %v4979 = vpack.c.bf16 %v4869, %v4866
        %v4980 = vpack.c.bf16 %v4877, %v4874
        %v4981 = vpack.c.bf16 %v4942, %v4939
        %v4982 = vpack.c.bf16 %v4950, %v4947
        %v4983 = vpack.c.bf16 %v4958, %v4955
        %v4984 = vpack.c.bf16 %v4966, %v4963
        %v5001 = vunpack.c.l.b16 %v4969
        %v5002 = vunpack.c.h.b16 %v4969
        %v5003 = vunpack.c.l.b16 %v4970
        %v5004 = vunpack.c.h.b16 %v4970
        %v5005 = vunpack.c.l.b16 %v4971
        %v5006 = vunpack.c.h.b16 %v4971
        %v5007 = vunpack.c.l.b16 %v4972
        %v5008 = vunpack.c.h.b16 %v4972
        %v5009 = vunpack.c.l.b16 %v4973
        %v5010 = vunpack.c.h.b16 %v4973
        %v5011 = vunpack.c.l.b16 %v4974
        %v5012 = vunpack.c.h.b16 %v4974
        %v5013 = vunpack.c.l.b16 %v4975
        %v5014 = vunpack.c.h.b16 %v4975
        %v5015 = vunpack.c.l.b16 %v4976
        %v5016 = vunpack.c.h.b16 %v4976
        %v5017 = vunpack.c.l.b16 %v4977
        %v5018 = vunpack.c.h.b16 %v4977
        %v5019 = vunpack.c.l.b16 %v4978
        %v5020 = vunpack.c.h.b16 %v4978
        %v5021 = vunpack.c.l.b16 %v4979
        %v5022 = vunpack.c.h.b16 %v4979
        %v5023 = vunpack.c.l.b16 %v4980
        %v5024 = vunpack.c.h.b16 %v4980
        %v5025 = vunpack.c.l.b16 %v4981
        %v5026 = vunpack.c.h.b16 %v4981
        %v5027 = vunpack.c.l.b16 %v4982
        %v5028 = vunpack.c.h.b16 %v4982
        %v5029 = vunpack.c.l.b16 %v4983
        %v5030 = vunpack.c.h.b16 %v4983
        %v5031 = vunpack.c.l.b16 %v4984
        %v5032 = vunpack.c.h.b16 %v4984
        %v5033 = vpack.c.b16 %v5001, %v5001
        %v5034 = vpack.c.b16 %v5002, %v5002
        %v5035 = vpack.c.b16 %v5003, %v5003
        %v5036 = vpack.c.b16 %v5004, %v5004
        %v5037 = vpack.c.b16 %v5005, %v5005
        %v5038 = vpack.c.b16 %v5006, %v5006
        %v5039 = vpack.c.b16 %v5007, %v5007
        %v5040 = vpack.c.b16 %v5008, %v5008
        %v5041 = vpack.c.b16 %v5009, %v5009
        %v5042 = vpack.c.b16 %v5010, %v5010
        %v5043 = vpack.c.b16 %v5011, %v5011
        %v5044 = vpack.c.b16 %v5012, %v5012
        %v5045 = vpack.c.b16 %v5013, %v5013
        %v5046 = vpack.c.b16 %v5014, %v5014
        %v5047 = vpack.c.b16 %v5015, %v5015
        %v5048 = vpack.c.b16 %v5016, %v5016
        %v5049 = vpack.c.b16 %v5017, %v5017
        %v5050 = vpack.c.b16 %v5018, %v5018
        %v5051 = vpack.c.b16 %v5019, %v5019
        %v5052 = vpack.c.b16 %v5020, %v5020
        %v5053 = vpack.c.b16 %v5021, %v5021
        %v5054 = vpack.c.b16 %v5022, %v5022
        %v5055 = vpack.c.b16 %v5023, %v5023
        %v5056 = vpack.c.b16 %v5024, %v5024
        %v5057 = vpack.c.b16 %v5025, %v5025
        %v5058 = vpack.c.b16 %v5026, %v5026
        %v5059 = vpack.c.b16 %v5027, %v5027
        %v5060 = vpack.c.b16 %v5028, %v5028
        %v5061 = vpack.c.b16 %v5029, %v5029
        %v5062 = vpack.c.b16 %v5030, %v5030
        %v5063 = vpack.c.b16 %v5031, %v5031
        %v5064 = vpack.c.b16 %v5032, %v5032
        %5065 = vrot.lane.b32.xlu0 %v5033, 8
        %v5066 = vpop.permute.xlu0 %5065
        %5067 = vrot.lane.b32.xlu0 %v5034, 8
        %v5068 = vpop.permute.xlu0 %5067
        %5069 = vrot.lane.b32.xlu0 %v5035, 8
        %v5070 = vpop.permute.xlu0 %5069
        %5071 = vrot.lane.b32.xlu0 %v5036, 8
        %v5072 = vpop.permute.xlu0 %5071
        %5073 = vrot.lane.b32.xlu0 %v5037, 8
        %v5074 = vpop.permute.xlu0 %5073
        %5075 = vrot.lane.b32.xlu0 %v5038, 8
        %v5076 = vpop.permute.xlu0 %5075
        %5077 = vrot.lane.b32.xlu0 %v5039, 8
        %v5078 = vpop.permute.xlu0 %5077
        %5079 = vrot.lane.b32.xlu0 %v5040, 8
        %v5080 = vpop.permute.xlu0 %5079
        %5081 = vrot.lane.b32.xlu0 %v5041, 8
        %v5082 = vpop.permute.xlu0 %5081
        %5083 = vrot.lane.b32.xlu0 %v5042, 8
        %v5084 = vpop.permute.xlu0 %5083
        %5085 = vrot.lane.b32.xlu0 %v5043, 8
        %v5086 = vpop.permute.xlu0 %5085
        %5087 = vrot.lane.b32.xlu0 %v5044, 8
        %v5088 = vpop.permute.xlu0 %5087
        %5089 = vrot.lane.b32.xlu0 %v5045, 8
        %v5090 = vpop.permute.xlu0 %5089
        %5091 = vrot.lane.b32.xlu0 %v5046, 8
        %v5092 = vpop.permute.xlu0 %5091
        %5093 = vrot.lane.b32.xlu0 %v5047, 8
        %v5094 = vpop.permute.xlu0 %5093
        %5095 = vrot.lane.b32.xlu0 %v5048, 8
        %v5096 = vpop.permute.xlu0 %5095
        %5097 = vrot.lane.b32.xlu0 %v5049, 8
        %v5098 = vpop.permute.xlu0 %5097
        %5099 = vrot.lane.b32.xlu0 %v5050, 8
        %v5100 = vpop.permute.xlu0 %5099
        %5101 = vrot.lane.b32.xlu0 %v5051, 8
        %v5102 = vpop.permute.xlu0 %5101
        %5103 = vrot.lane.b32.xlu0 %v5052, 8
        %v5104 = vpop.permute.xlu0 %5103
        %5105 = vrot.lane.b32.xlu0 %v5053, 8
        %v5106 = vpop.permute.xlu0 %5105
        %5107 = vrot.lane.b32.xlu0 %v5054, 8
        %v5108 = vpop.permute.xlu0 %5107
        %5109 = vrot.lane.b32.xlu0 %v5055, 8
        %v5110 = vpop.permute.xlu0 %5109
        %5111 = vrot.lane.b32.xlu0 %v5056, 8
        %v5112 = vpop.permute.xlu0 %5111
        %5113 = vrot.lane.b32.xlu0 %v5057, 8
        %v5114 = vpop.permute.xlu0 %5113
        %5115 = vrot.lane.b32.xlu0 %v5058, 8
        %v5116 = vpop.permute.xlu0 %5115
        %5117 = vrot.lane.b32.xlu0 %v5059, 8
        %v5118 = vpop.permute.xlu0 %5117
        %5119 = vrot.lane.b32.xlu0 %v5060, 8
        %v5120 = vpop.permute.xlu0 %5119
        %5121 = vrot.lane.b32.xlu0 %v5061, 8
        %v5122 = vpop.permute.xlu0 %5121
        %5123 = vrot.lane.b32.xlu0 %v5062, 8
        %v5124 = vpop.permute.xlu0 %5123
        %5125 = vrot.lane.b32.xlu0 %v5063, 8
        %v5126 = vpop.permute.xlu0 %5125
        %5127 = vrot.lane.b32.xlu0 %v5064, 8
        %v5128 = vpop.permute.xlu0 %5127
        %vm5161 = vcmask 126016
        %5162 = vst.msk [vmem:[#allocation2] sm:$0xf] %vm5161, %v5066
        %5163 = vst.msk [vmem:[#allocation2 + $0x4] sm:$0xf] %vm5161, %v5068
        %5164 = vst.msk [vmem:[#allocation2 + $0x8] sm:$0xf] %vm5161, %v5070
        %5165 = vst.msk [vmem:[#allocation2 + $0xc] sm:$0xf] %vm5161, %v5072
        %5166 = vst.msk [vmem:[#allocation2 + $0x10] sm:$0xf] %vm5161, %v5074
        %5167 = vst.msk [vmem:[#allocation2 + $0x14] sm:$0xf] %vm5161, %v5076
        %5168 = vst.msk [vmem:[#allocation2 + $0x18] sm:$0xf] %vm5161, %v5078
        %5169 = vst.msk [vmem:[#allocation2 + $0x1c] sm:$0xf] %vm5161, %v5080
        %5170 = vst.msk [vmem:[#allocation2 + $0x20] sm:$0xf] %vm5161, %v5082
        %5171 = vst.msk [vmem:[#allocation2 + $0x24] sm:$0xf] %vm5161, %v5084
        %5172 = vst.msk [vmem:[#allocation2 + $0x28] sm:$0xf] %vm5161, %v5086
        %5173 = vst.msk [vmem:[#allocation2 + $0x2c] sm:$0xf] %vm5161, %v5088
        %5174 = vst.msk [vmem:[#allocation2 + $0x30] sm:$0xf] %vm5161, %v5090
        %5175 = vst.msk [vmem:[#allocation2 + $0x34] sm:$0xf] %vm5161, %v5092
        %5176 = vst.msk [vmem:[#allocation2 + $0x38] sm:$0xf] %vm5161, %v5094
        %5177 = vst.msk [vmem:[#allocation2 + $0x3c] sm:$0xf] %vm5161, %v5096
        %5178 = vst.msk [vmem:[#allocation2 + $0x40] sm:$0xf] %vm5161, %v5098
        %5179 = vst.msk [vmem:[#allocation2 + $0x44] sm:$0xf] %vm5161, %v5100
        %5180 = vst.msk [vmem:[#allocation2 + $0x48] sm:$0xf] %vm5161, %v5102
        %5181 = vst.msk [vmem:[#allocation2 + $0x4c] sm:$0xf] %vm5161, %v5104
        %5182 = vst.msk [vmem:[#allocation2 + $0x50] sm:$0xf] %vm5161, %v5106
        %5183 = vst.msk [vmem:[#allocation2 + $0x54] sm:$0xf] %vm5161, %v5108
        %5184 = vst.msk [vmem:[#allocation2 + $0x58] sm:$0xf] %vm5161, %v5110
        %5185 = vst.msk [vmem:[#allocation2 + $0x5c] sm:$0xf] %vm5161, %v5112
        %5186 = vst.msk [vmem:[#allocation2 + $0x60] sm:$0xf] %vm5161, %v5114
        %5187 = vst.msk [vmem:[#allocation2 + $0x64] sm:$0xf] %vm5161, %v5116
        %5188 = vst.msk [vmem:[#allocation2 + $0x68] sm:$0xf] %vm5161, %v5118
        %5189 = vst.msk [vmem:[#allocation2 + $0x6c] sm:$0xf] %vm5161, %v5120
        %5190 = vst.msk [vmem:[#allocation2 + $0x70] sm:$0xf] %vm5161, %v5122
        %5191 = vst.msk [vmem:[#allocation2 + $0x74] sm:$0xf] %vm5161, %v5124
        %5192 = vst.msk [vmem:[#allocation2 + $0x78] sm:$0xf] %vm5161, %v5126
        %5193 = vst.msk [vmem:[#allocation2 + $0x7c] sm:$0xf] %vm5161, %v5128
        %5194 = vrot.lane.b32.xlu0 %v657, 112
        %v5195 = vpop.permute.xlu0 %5194
        %5196 = vrot.lane.b32.xlu0 %v658, 112
        %v5197 = vpop.permute.xlu0 %5196
        %5198 = vrot.lane.b32.xlu0 %v659, 112
        %v5199 = vpop.permute.xlu0 %5198
        %5200 = vrot.lane.b32.xlu0 %v660, 112
        %v5201 = vpop.permute.xlu0 %5200
        %5202 = vrot.lane.b32.xlu0 %v661, 112
        %v5203 = vpop.permute.xlu0 %5202
        %5204 = vrot.lane.b32.xlu0 %v662, 112
        %v5205 = vpop.permute.xlu0 %5204
        %5206 = vrot.lane.b32.xlu0 %v663, 112
        %v5207 = vpop.permute.xlu0 %5206
        %5208 = vrot.lane.b32.xlu0 %v664, 112
        %v5209 = vpop.permute.xlu0 %5208
        %5210 = vrot.lane.b32.xlu0 %v665, 112
        %v5211 = vpop.permute.xlu0 %5210
        %5212 = vrot.lane.b32.xlu0 %v666, 112
        %v5213 = vpop.permute.xlu0 %5212
        %5214 = vrot.lane.b32.xlu0 %v667, 112
        %v5215 = vpop.permute.xlu0 %5214
        %5216 = vrot.lane.b32.xlu0 %v668, 112
        %v5217 = vpop.permute.xlu0 %5216
        %5218 = vrot.lane.b32.xlu0 %v669, 112
        %v5219 = vpop.permute.xlu0 %5218
        %5220 = vrot.lane.b32.xlu0 %v670, 112
        %v5221 = vpop.permute.xlu0 %5220
        %5222 = vrot.lane.b32.xlu0 %v671, 112
        %v5223 = vpop.permute.xlu0 %5222
        %5224 = vrot.lane.b32.xlu0 %v672, 112
        %v5225 = vpop.permute.xlu0 %5224
        %5226 = vrot.lane.b32.xlu0 %v673, 112
        %v5227 = vpop.permute.xlu0 %5226
        %5228 = vrot.lane.b32.xlu0 %v674, 112
        %v5229 = vpop.permute.xlu0 %5228
        %5230 = vrot.lane.b32.xlu0 %v675, 112
        %v5231 = vpop.permute.xlu0 %5230
        %5232 = vrot.lane.b32.xlu0 %v676, 112
        %v5233 = vpop.permute.xlu0 %5232
        %5234 = vrot.lane.b32.xlu0 %v677, 112
        %v5235 = vpop.permute.xlu0 %5234
        %5236 = vrot.lane.b32.xlu0 %v678, 112
        %v5237 = vpop.permute.xlu0 %5236
        %5238 = vrot.lane.b32.xlu0 %v679, 112
        %v5239 = vpop.permute.xlu0 %5238
        %5240 = vrot.lane.b32.xlu0 %v680, 112
        %v5241 = vpop.permute.xlu0 %5240
        %5242 = vrot.lane.b32.xlu0 %v681, 112
        %v5243 = vpop.permute.xlu0 %5242
        %5244 = vrot.lane.b32.xlu0 %v682, 112
        %v5245 = vpop.permute.xlu0 %5244
        %5246 = vrot.lane.b32.xlu0 %v683, 112
        %v5247 = vpop.permute.xlu0 %5246
        %5248 = vrot.lane.b32.xlu0 %v684, 112
        %v5249 = vpop.permute.xlu0 %5248
        %5250 = vrot.lane.b32.xlu0 %v685, 112
        %v5251 = vpop.permute.xlu0 %5250
        %5252 = vrot.lane.b32.xlu0 %v686, 112
        %v5253 = vpop.permute.xlu0 %5252
        %5254 = vrot.lane.b32.xlu0 %v687, 112
        %v5255 = vpop.permute.xlu0 %5254
        %5256 = vrot.lane.b32.xlu0 %v688, 112
        %v5257 = vpop.permute.xlu0 %5256
        %v5290 = vsel %vm689, %v5195, 0.0
        %5291 = vadd.xlane.f32.xlu0 %v5290
        %v5292 = vpop.xlane.xlu0 %5291
        %v5293 = vsel %vm689, %v5197, 0.0
        %5294 = vadd.xlane.f32.xlu0 %v5293
        %v5295 = vpop.xlane.xlu0 %5294
        %v5296 = vsel %vm689, %v5199, 0.0
        %5297 = vadd.xlane.f32.xlu0 %v5296
        %v5298 = vpop.xlane.xlu0 %5297
        %v5299 = vsel %vm689, %v5201, 0.0
        %5300 = vadd.xlane.f32.xlu0 %v5299
        %v5301 = vpop.xlane.xlu0 %5300
        %v5302 = vsel %vm689, %v5203, 0.0
        %5303 = vadd.xlane.f32.xlu0 %v5302
        %v5304 = vpop.xlane.xlu0 %5303
        %v5305 = vsel %vm689, %v5205, 0.0
        %5306 = vadd.xlane.f32.xlu0 %v5305
        %v5307 = vpop.xlane.xlu0 %5306
        %v5308 = vsel %vm689, %v5207, 0.0
        %5309 = vadd.xlane.f32.xlu0 %v5308
        %v5310 = vpop.xlane.xlu0 %5309
        %v5311 = vsel %vm689, %v5209, 0.0
        %5312 = vadd.xlane.f32.xlu0 %v5311
        %v5313 = vpop.xlane.xlu0 %5312
        %v5314 = vsel %vm689, %v5211, 0.0
        %5315 = vadd.xlane.f32.xlu0 %v5314
        %v5316 = vpop.xlane.xlu0 %5315
        %v5317 = vsel %vm689, %v5213, 0.0
        %5318 = vadd.xlane.f32.xlu0 %v5317
        %v5319 = vpop.xlane.xlu0 %5318
        %v5320 = vsel %vm689, %v5215, 0.0
        %5321 = vadd.xlane.f32.xlu0 %v5320
        %v5322 = vpop.xlane.xlu0 %5321
        %v5323 = vsel %vm689, %v5217, 0.0
        %5324 = vadd.xlane.f32.xlu0 %v5323
        %v5325 = vpop.xlane.xlu0 %5324
        %v5326 = vsel %vm689, %v5219, 0.0
        %5327 = vadd.xlane.f32.xlu0 %v5326
        %v5328 = vpop.xlane.xlu0 %5327
        %v5329 = vsel %vm689, %v5221, 0.0
        %5330 = vadd.xlane.f32.xlu0 %v5329
        %v5331 = vpop.xlane.xlu0 %5330
        %v5332 = vsel %vm689, %v5223, 0.0
        %5333 = vadd.xlane.f32.xlu0 %v5332
        %v5334 = vpop.xlane.xlu0 %5333
        %v5335 = vsel %vm689, %v5225, 0.0
        %5336 = vadd.xlane.f32.xlu0 %v5335
        %v5337 = vpop.xlane.xlu0 %5336
        %v5338 = vsel %vm689, %v5227, 0.0
        %5339 = vadd.xlane.f32.xlu0 %v5338
        %v5340 = vpop.xlane.xlu0 %5339
        %v5341 = vsel %vm689, %v5229, 0.0
        %5342 = vadd.xlane.f32.xlu0 %v5341
        %v5343 = vpop.xlane.xlu0 %5342
        %v5344 = vsel %vm689, %v5231, 0.0
        %5345 = vadd.xlane.f32.xlu0 %v5344
        %v5346 = vpop.xlane.xlu0 %5345
        %v5347 = vsel %vm689, %v5233, 0.0
        %5348 = vadd.xlane.f32.xlu0 %v5347
        %v5349 = vpop.xlane.xlu0 %5348
        %v5350 = vsel %vm689, %v5235, 0.0
        %5351 = vadd.xlane.f32.xlu0 %v5350
        %v5352 = vpop.xlane.xlu0 %5351
        %v5353 = vsel %vm689, %v5237, 0.0
        %5354 = vadd.xlane.f32.xlu0 %v5353
        %v5355 = vpop.xlane.xlu0 %5354
        %v5356 = vsel %vm689, %v5239, 0.0
        %5357 = vadd.xlane.f32.xlu0 %v5356
        %v5358 = vpop.xlane.xlu0 %5357
        %v5359 = vsel %vm689, %v5241, 0.0
        %5360 = vadd.xlane.f32.xlu0 %v5359
        %v5361 = vpop.xlane.xlu0 %5360
        %v5362 = vsel %vm689, %v5243, 0.0
        %5363 = vadd.xlane.f32.xlu0 %v5362
        %v5364 = vpop.xlane.xlu0 %5363
        %v5365 = vsel %vm689, %v5245, 0.0
        %5366 = vadd.xlane.f32.xlu0 %v5365
        %v5367 = vpop.xlane.xlu0 %5366
        %v5368 = vsel %vm689, %v5247, 0.0
        %5369 = vadd.xlane.f32.xlu0 %v5368
        %v5370 = vpop.xlane.xlu0 %5369
        %v5371 = vsel %vm689, %v5249, 0.0
        %5372 = vadd.xlane.f32.xlu0 %v5371
        %v5373 = vpop.xlane.xlu0 %5372
        %v5374 = vsel %vm689, %v5251, 0.0
        %5375 = vadd.xlane.f32.xlu0 %v5374
        %v5376 = vpop.xlane.xlu0 %5375
        %v5377 = vsel %vm689, %v5253, 0.0
        %5378 = vadd.xlane.f32.xlu0 %v5377
        %v5379 = vpop.xlane.xlu0 %5378
        %v5380 = vsel %vm689, %v5255, 0.0
        %5381 = vadd.xlane.f32.xlu0 %v5380
        %v5382 = vpop.xlane.xlu0 %5381
        %v5383 = vsel %vm689, %v5257, 0.0
        %5384 = vadd.xlane.f32.xlu0 %v5383
        %v5385 = vpop.xlane.xlu0 %5384
        %v5386 = vmax.f32 %v5292, 1e-24
        %v5387 = vmax.f32 %v5295, 1e-24
        %v5388 = vmax.f32 %v5298, 1e-24
        %v5389 = vmax.f32 %v5301, 1e-24
        %v5390 = vmax.f32 %v5304, 1e-24
        %v5391 = vmax.f32 %v5307, 1e-24
        %v5392 = vmax.f32 %v5310, 1e-24
        %v5393 = vmax.f32 %v5313, 1e-24
        %v5394 = vmax.f32 %v5316, 1e-24
        %v5395 = vmax.f32 %v5319, 1e-24
        %v5396 = vmax.f32 %v5322, 1e-24
        %v5397 = vmax.f32 %v5325, 1e-24
        %v5398 = vmax.f32 %v5328, 1e-24
        %v5399 = vmax.f32 %v5331, 1e-24
        %v5400 = vmax.f32 %v5334, 1e-24
        %v5401 = vmax.f32 %v5337, 1e-24
        %v5402 = vmax.f32 %v5340, 1e-24
        %v5403 = vmax.f32 %v5343, 1e-24
        %v5404 = vmax.f32 %v5346, 1e-24
        %v5405 = vmax.f32 %v5349, 1e-24
        %v5406 = vmax.f32 %v5352, 1e-24
        %v5407 = vmax.f32 %v5355, 1e-24
        %v5408 = vmax.f32 %v5358, 1e-24
        %v5409 = vmax.f32 %v5361, 1e-24
        %v5410 = vmax.f32 %v5364, 1e-24
        %v5411 = vmax.f32 %v5367, 1e-24
        %v5412 = vmax.f32 %v5370, 1e-24
        %v5413 = vmax.f32 %v5373, 1e-24
        %v5414 = vmax.f32 %v5376, 1e-24
        %v5415 = vmax.f32 %v5379, 1e-24
        %v5416 = vmax.f32 %v5382, 1e-24
        %v5417 = vmax.f32 %v5385, 1e-24
        %v5418 = vrsqrt.pop %v5386
        %v5419 = vrsqrt.pop %v5387
        %v5420 = vrsqrt.pop %v5388
        %v5421 = vrsqrt.pop %v5389
        %v5422 = vrsqrt.pop %v5390
        %v5423 = vrsqrt.pop %v5391
        %v5424 = vrsqrt.pop %v5392
        %v5425 = vrsqrt.pop %v5393
        %v5426 = vrsqrt.pop %v5394
        %v5427 = vrsqrt.pop %v5395
        %v5428 = vrsqrt.pop %v5396
        %v5429 = vrsqrt.pop %v5397
        %v5430 = vrsqrt.pop %v5398
        %v5431 = vrsqrt.pop %v5399
        %v5432 = vrsqrt.pop %v5400
        %v5433 = vrsqrt.pop %v5401
        %v5434 = vrsqrt.pop %v5402
        %v5435 = vrsqrt.pop %v5403
        %v5436 = vrsqrt.pop %v5404
        %v5437 = vrsqrt.pop %v5405
        %v5438 = vrsqrt.pop %v5406
        %v5439 = vrsqrt.pop %v5407
        %v5440 = vrsqrt.pop %v5408
        %v5441 = vrsqrt.pop %v5409
        %v5442 = vrsqrt.pop %v5410
        %v5443 = vrsqrt.pop %v5411
        %v5444 = vrsqrt.pop %v5412
        %v5445 = vrsqrt.pop %v5413
        %v5446 = vrsqrt.pop %v5414
        %v5447 = vrsqrt.pop %v5415
        %v5448 = vrsqrt.pop %v5416
        %v5449 = vrsqrt.pop %v5417
        %5450 = vrot.lane.b32.xlu0 %v657, 80
        %v5451 = vpop.permute.xlu0 %5450
        %5452 = vrot.lane.b32.xlu0 %v658, 80
        %v5453 = vpop.permute.xlu0 %5452
        %5454 = vrot.lane.b32.xlu0 %v659, 80
        %v5455 = vpop.permute.xlu0 %5454
        %5456 = vrot.lane.b32.xlu0 %v660, 80
        %v5457 = vpop.permute.xlu0 %5456
        %5458 = vrot.lane.b32.xlu0 %v661, 80
        %v5459 = vpop.permute.xlu0 %5458
        %5460 = vrot.lane.b32.xlu0 %v662, 80
        %v5461 = vpop.permute.xlu0 %5460
        %5462 = vrot.lane.b32.xlu0 %v663, 80
        %v5463 = vpop.permute.xlu0 %5462
        %5464 = vrot.lane.b32.xlu0 %v664, 80
        %v5465 = vpop.permute.xlu0 %5464
        %5466 = vrot.lane.b32.xlu0 %v665, 80
        %v5467 = vpop.permute.xlu0 %5466
        %5468 = vrot.lane.b32.xlu0 %v666, 80
        %v5469 = vpop.permute.xlu0 %5468
        %5470 = vrot.lane.b32.xlu0 %v667, 80
        %v5471 = vpop.permute.xlu0 %5470
        %5472 = vrot.lane.b32.xlu0 %v668, 80
        %v5473 = vpop.permute.xlu0 %5472
        %5474 = vrot.lane.b32.xlu0 %v669, 80
        %v5475 = vpop.permute.xlu0 %5474
        %5476 = vrot.lane.b32.xlu0 %v670, 80
        %v5477 = vpop.permute.xlu0 %5476
        %5478 = vrot.lane.b32.xlu0 %v671, 80
        %v5479 = vpop.permute.xlu0 %5478
        %5480 = vrot.lane.b32.xlu0 %v672, 80
        %v5481 = vpop.permute.xlu0 %5480
        %5482 = vrot.lane.b32.xlu0 %v673, 80
        %v5483 = vpop.permute.xlu0 %5482
        %5484 = vrot.lane.b32.xlu0 %v674, 80
        %v5485 = vpop.permute.xlu0 %5484
        %5486 = vrot.lane.b32.xlu0 %v675, 80
        %v5487 = vpop.permute.xlu0 %5486
        %5488 = vrot.lane.b32.xlu0 %v676, 80
        %v5489 = vpop.permute.xlu0 %5488
        %5490 = vrot.lane.b32.xlu0 %v677, 80
        %v5491 = vpop.permute.xlu0 %5490
        %5492 = vrot.lane.b32.xlu0 %v678, 80
        %v5493 = vpop.permute.xlu0 %5492
        %5494 = vrot.lane.b32.xlu0 %v679, 80
        %v5495 = vpop.permute.xlu0 %5494
        %5496 = vrot.lane.b32.xlu0 %v680, 80
        %v5497 = vpop.permute.xlu0 %5496
        %5498 = vrot.lane.b32.xlu0 %v681, 80
        %v5499 = vpop.permute.xlu0 %5498
        %5500 = vrot.lane.b32.xlu0 %v682, 80
        %v5501 = vpop.permute.xlu0 %5500
        %5502 = vrot.lane.b32.xlu0 %v683, 80
        %v5503 = vpop.permute.xlu0 %5502
        %5504 = vrot.lane.b32.xlu0 %v684, 80
        %v5505 = vpop.permute.xlu0 %5504
        %5506 = vrot.lane.b32.xlu0 %v685, 80
        %v5507 = vpop.permute.xlu0 %5506
        %5508 = vrot.lane.b32.xlu0 %v686, 80
        %v5509 = vpop.permute.xlu0 %5508
        %5510 = vrot.lane.b32.xlu0 %v687, 80
        %v5511 = vpop.permute.xlu0 %5510
        %5512 = vrot.lane.b32.xlu0 %v688, 80
        %v5513 = vpop.permute.xlu0 %5512
        %v5546 = vsel %vm689, %v5451, 0.0
        %5547 = vadd.xlane.f32.xlu0 %v5546
        %v5548 = vpop.xlane.xlu0 %5547
        %v5549 = vsel %vm689, %v5453, 0.0
        %5550 = vadd.xlane.f32.xlu0 %v5549
        %v5551 = vpop.xlane.xlu0 %5550
        %v5552 = vsel %vm689, %v5455, 0.0
        %5553 = vadd.xlane.f32.xlu0 %v5552
        %v5554 = vpop.xlane.xlu0 %5553
        %v5555 = vsel %vm689, %v5457, 0.0
        %5556 = vadd.xlane.f32.xlu0 %v5555
        %v5557 = vpop.xlane.xlu0 %5556
        %v5558 = vsel %vm689, %v5459, 0.0
        %5559 = vadd.xlane.f32.xlu0 %v5558
        %v5560 = vpop.xlane.xlu0 %5559
        %v5561 = vsel %vm689, %v5461, 0.0
        %5562 = vadd.xlane.f32.xlu0 %v5561
        %v5563 = vpop.xlane.xlu0 %5562
        %v5564 = vsel %vm689, %v5463, 0.0
        %5565 = vadd.xlane.f32.xlu0 %v5564
        %v5566 = vpop.xlane.xlu0 %5565
        %v5567 = vsel %vm689, %v5465, 0.0
        %5568 = vadd.xlane.f32.xlu0 %v5567
        %v5569 = vpop.xlane.xlu0 %5568
        %v5570 = vsel %vm689, %v5467, 0.0
        %5571 = vadd.xlane.f32.xlu0 %v5570
        %v5572 = vpop.xlane.xlu0 %5571
        %v5573 = vsel %vm689, %v5469, 0.0
        %5574 = vadd.xlane.f32.xlu0 %v5573
        %v5575 = vpop.xlane.xlu0 %5574
        %v5576 = vsel %vm689, %v5471, 0.0
        %5577 = vadd.xlane.f32.xlu0 %v5576
        %v5578 = vpop.xlane.xlu0 %5577
        %v5579 = vsel %vm689, %v5473, 0.0
        %5580 = vadd.xlane.f32.xlu0 %v5579
        %v5581 = vpop.xlane.xlu0 %5580
        %v5582 = vsel %vm689, %v5475, 0.0
        %5583 = vadd.xlane.f32.xlu0 %v5582
        %v5584 = vpop.xlane.xlu0 %5583
        %v5585 = vsel %vm689, %v5477, 0.0
        %5586 = vadd.xlane.f32.xlu0 %v5585
        %v5587 = vpop.xlane.xlu0 %5586
        %v5588 = vsel %vm689, %v5479, 0.0
        %5589 = vadd.xlane.f32.xlu0 %v5588
        %v5590 = vpop.xlane.xlu0 %5589
        %v5591 = vsel %vm689, %v5481, 0.0
        %5592 = vadd.xlane.f32.xlu0 %v5591
        %v5593 = vpop.xlane.xlu0 %5592
        %v5594 = vsel %vm689, %v5483, 0.0
        %5595 = vadd.xlane.f32.xlu0 %v5594
        %v5596 = vpop.xlane.xlu0 %5595
        %v5597 = vsel %vm689, %v5485, 0.0
        %5598 = vadd.xlane.f32.xlu0 %v5597
        %v5599 = vpop.xlane.xlu0 %5598
        %v5600 = vsel %vm689, %v5487, 0.0
        %5601 = vadd.xlane.f32.xlu0 %v5600
        %v5602 = vpop.xlane.xlu0 %5601
        %v5603 = vsel %vm689, %v5489, 0.0
        %5604 = vadd.xlane.f32.xlu0 %v5603
        %v5605 = vpop.xlane.xlu0 %5604
        %v5606 = vsel %vm689, %v5491, 0.0
        %5607 = vadd.xlane.f32.xlu0 %v5606
        %v5608 = vpop.xlane.xlu0 %5607
        %v5609 = vsel %vm689, %v5493, 0.0
        %5610 = vadd.xlane.f32.xlu0 %v5609
        %v5611 = vpop.xlane.xlu0 %5610
        %v5612 = vsel %vm689, %v5495, 0.0
        %5613 = vadd.xlane.f32.xlu0 %v5612
        %v5614 = vpop.xlane.xlu0 %5613
        %v5615 = vsel %vm689, %v5497, 0.0
        %5616 = vadd.xlane.f32.xlu0 %v5615
        %v5617 = vpop.xlane.xlu0 %5616
        %v5618 = vsel %vm689, %v5499, 0.0
        %5619 = vadd.xlane.f32.xlu0 %v5618
        %v5620 = vpop.xlane.xlu0 %5619
        %v5621 = vsel %vm689, %v5501, 0.0
        %5622 = vadd.xlane.f32.xlu0 %v5621
        %v5623 = vpop.xlane.xlu0 %5622
        %v5624 = vsel %vm689, %v5503, 0.0
        %5625 = vadd.xlane.f32.xlu0 %v5624
        %v5626 = vpop.xlane.xlu0 %5625
        %v5627 = vsel %vm689, %v5505, 0.0
        %5628 = vadd.xlane.f32.xlu0 %v5627
        %v5629 = vpop.xlane.xlu0 %5628
        %v5630 = vsel %vm689, %v5507, 0.0
        %5631 = vadd.xlane.f32.xlu0 %v5630
        %v5632 = vpop.xlane.xlu0 %5631
        %v5633 = vsel %vm689, %v5509, 0.0
        %5634 = vadd.xlane.f32.xlu0 %v5633
        %v5635 = vpop.xlane.xlu0 %5634
        %v5636 = vsel %vm689, %v5511, 0.0
        %5637 = vadd.xlane.f32.xlu0 %v5636
        %v5638 = vpop.xlane.xlu0 %5637
        %v5639 = vsel %vm689, %v5513, 0.0
        %5640 = vadd.xlane.f32.xlu0 %v5639
        %v5641 = vpop.xlane.xlu0 %5640
        %v5642 = vmax.f32 %v5548, 1e-24
        %v5643 = vmax.f32 %v5551, 1e-24
        %v5644 = vmax.f32 %v5554, 1e-24
        %v5645 = vmax.f32 %v5557, 1e-24
        %v5646 = vmax.f32 %v5560, 1e-24
        %v5647 = vmax.f32 %v5563, 1e-24
        %v5648 = vmax.f32 %v5566, 1e-24
        %v5649 = vmax.f32 %v5569, 1e-24
        %v5650 = vmax.f32 %v5572, 1e-24
        %v5651 = vmax.f32 %v5575, 1e-24
        %v5652 = vmax.f32 %v5578, 1e-24
        %v5653 = vmax.f32 %v5581, 1e-24
        %v5654 = vmax.f32 %v5584, 1e-24
        %v5655 = vmax.f32 %v5587, 1e-24
        %v5656 = vmax.f32 %v5590, 1e-24
        %v5657 = vmax.f32 %v5593, 1e-24
        %v5658 = vmax.f32 %v5596, 1e-24
        %v5659 = vmax.f32 %v5599, 1e-24
        %v5660 = vmax.f32 %v5602, 1e-24
        %v5661 = vmax.f32 %v5605, 1e-24
        %v5662 = vmax.f32 %v5608, 1e-24
        %v5663 = vmax.f32 %v5611, 1e-24
        %v5664 = vmax.f32 %v5614, 1e-24
        %v5665 = vmax.f32 %v5617, 1e-24
        %v5666 = vmax.f32 %v5620, 1e-24
        %v5667 = vmax.f32 %v5623, 1e-24
        %v5668 = vmax.f32 %v5626, 1e-24
        %v5669 = vmax.f32 %v5629, 1e-24
        %v5670 = vmax.f32 %v5632, 1e-24
        %v5671 = vmax.f32 %v5635, 1e-24
        %v5672 = vmax.f32 %v5638, 1e-24
        %v5673 = vmax.f32 %v5641, 1e-24
        %v5674 = vrsqrt.pop %v5642
        %v5675 = vrsqrt.pop %v5643
        %v5676 = vrsqrt.pop %v5644
        %v5677 = vrsqrt.pop %v5645
        %v5678 = vrsqrt.pop %v5646
        %v5679 = vrsqrt.pop %v5647
        %v5680 = vrsqrt.pop %v5648
        %v5681 = vrsqrt.pop %v5649
        %v5682 = vrsqrt.pop %v5650
        %v5683 = vrsqrt.pop %v5651
        %v5684 = vrsqrt.pop %v5652
        %v5685 = vrsqrt.pop %v5653
        %v5686 = vrsqrt.pop %v5654
        %v5687 = vrsqrt.pop %v5655
        %v5688 = vrsqrt.pop %v5656
        %v5689 = vrsqrt.pop %v5657
        %v5690 = vrsqrt.pop %v5658
        %v5691 = vrsqrt.pop %v5659
        %v5692 = vrsqrt.pop %v5660
        %v5693 = vrsqrt.pop %v5661
        %v5694 = vrsqrt.pop %v5662
        %v5695 = vrsqrt.pop %v5663
        %v5696 = vrsqrt.pop %v5664
        %v5697 = vrsqrt.pop %v5665
        %v5698 = vrsqrt.pop %v5666
        %v5699 = vrsqrt.pop %v5667
        %v5700 = vrsqrt.pop %v5668
        %v5701 = vrsqrt.pop %v5669
        %v5702 = vrsqrt.pop %v5670
        %v5703 = vrsqrt.pop %v5671
        %v5704 = vrsqrt.pop %v5672
        %v5705 = vrsqrt.pop %v5673
        %s5706 = sld [smem:[#allocation6 + $0x2]]
        %v5707 = vstv %s5706
        %v5708 = vmul.f32 %v5418, %v5707
        %v5709 = vmul.f32 %v5419, %v5707
        %v5710 = vmul.f32 %v5420, %v5707
        %v5711 = vmul.f32 %v5421, %v5707
        %v5712 = vmul.f32 %v5422, %v5707
        %v5713 = vmul.f32 %v5423, %v5707
        %v5714 = vmul.f32 %v5424, %v5707
        %v5715 = vmul.f32 %v5425, %v5707
        %v5716 = vmul.f32 %v5426, %v5707
        %v5717 = vmul.f32 %v5427, %v5707
        %v5718 = vmul.f32 %v5428, %v5707
        %v5719 = vmul.f32 %v5429, %v5707
        %v5720 = vmul.f32 %v5430, %v5707
        %v5721 = vmul.f32 %v5431, %v5707
        %v5722 = vmul.f32 %v5432, %v5707
        %v5723 = vmul.f32 %v5433, %v5707
        %v5724 = vmul.f32 %v5434, %v5707
        %v5725 = vmul.f32 %v5435, %v5707
        %v5726 = vmul.f32 %v5436, %v5707
        %v5727 = vmul.f32 %v5437, %v5707
        %v5728 = vmul.f32 %v5438, %v5707
        %v5729 = vmul.f32 %v5439, %v5707
        %v5730 = vmul.f32 %v5440, %v5707
        %v5731 = vmul.f32 %v5441, %v5707
        %v5732 = vmul.f32 %v5442, %v5707
        %v5733 = vmul.f32 %v5443, %v5707
        %v5734 = vmul.f32 %v5444, %v5707
        %v5735 = vmul.f32 %v5445, %v5707
        %v5736 = vmul.f32 %v5446, %v5707
        %v5737 = vmul.f32 %v5447, %v5707
        %v5738 = vmul.f32 %v5448, %v5707
        %v5739 = vmul.f32 %v5449, %v5707
        %v5740 = vmul.f32 %v531, %v5708
        %v5741 = vmul.f32 %v534, %v5709
        %v5742 = vmul.f32 %v539, %v5710
        %v5743 = vmul.f32 %v542, %v5711
        %v5744 = vmul.f32 %v547, %v5712
        %v5745 = vmul.f32 %v550, %v5713
        %v5746 = vmul.f32 %v555, %v5714
        %v5747 = vmul.f32 %v558, %v5715
        %v5748 = vmul.f32 %v563, %v5716
        %v5749 = vmul.f32 %v566, %v5717
        %v5750 = vmul.f32 %v571, %v5718
        %v5751 = vmul.f32 %v574, %v5719
        %v5752 = vmul.f32 %v579, %v5720
        %v5753 = vmul.f32 %v582, %v5721
        %v5754 = vmul.f32 %v587, %v5722
        %v5755 = vmul.f32 %v590, %v5723
        %v5756 = vmul.f32 %v595, %v5724
        %v5757 = vmul.f32 %v598, %v5725
        %v5758 = vmul.f32 %v603, %v5726
        %v5759 = vmul.f32 %v606, %v5727
        %v5760 = vmul.f32 %v611, %v5728
        %v5761 = vmul.f32 %v614, %v5729
        %v5762 = vmul.f32 %v619, %v5730
        %v5763 = vmul.f32 %v622, %v5731
        %v5764 = vmul.f32 %v627, %v5732
        %v5765 = vmul.f32 %v630, %v5733
        %v5766 = vmul.f32 %v635, %v5734
        %v5767 = vmul.f32 %v638, %v5735
        %v5768 = vmul.f32 %v643, %v5736
        %v5769 = vmul.f32 %v646, %v5737
        %v5770 = vmul.f32 %v651, %v5738
        %v5771 = vmul.f32 %v654, %v5739
        %v5772 = vmul.f32 %v531, %v5674
        %v5773 = vmul.f32 %v534, %v5675
        %v5774 = vmul.f32 %v539, %v5676
        %v5775 = vmul.f32 %v542, %v5677
        %v5776 = vmul.f32 %v547, %v5678
        %v5777 = vmul.f32 %v550, %v5679
        %v5778 = vmul.f32 %v555, %v5680
        %v5779 = vmul.f32 %v558, %v5681
        %v5780 = vmul.f32 %v563, %v5682
        %v5781 = vmul.f32 %v566, %v5683
        %v5782 = vmul.f32 %v571, %v5684
        %v5783 = vmul.f32 %v574, %v5685
        %v5784 = vmul.f32 %v579, %v5686
        %v5785 = vmul.f32 %v582, %v5687
        %v5786 = vmul.f32 %v587, %v5688
        %v5787 = vmul.f32 %v590, %v5689
        %v5788 = vmul.f32 %v595, %v5690
        %v5789 = vmul.f32 %v598, %v5691
        %v5790 = vmul.f32 %v603, %v5692
        %v5791 = vmul.f32 %v606, %v5693
        %v5792 = vmul.f32 %v611, %v5694
        %v5793 = vmul.f32 %v614, %v5695
        %v5794 = vmul.f32 %v619, %v5696
        %v5795 = vmul.f32 %v622, %v5697
        %v5796 = vmul.f32 %v627, %v5698
        %v5797 = vmul.f32 %v630, %v5699
        %v5798 = vmul.f32 %v635, %v5700
        %v5799 = vmul.f32 %v638, %v5701
        %v5800 = vmul.f32 %v643, %v5702
        %v5801 = vmul.f32 %v646, %v5703
        %v5802 = vmul.f32 %v651, %v5704
        %v5803 = vmul.f32 %v654, %v5705
        %s5804 = scalar_lea.vmem [#allocation3], 512
        %v5805 = vld [vmem:[%s5804] sm:$0xff]
        %v5806 = vld [vmem:[%s5804 + $0x8] sm:$0xff]
        %v5807 = vld [vmem:[%s5804 + $0x10] sm:$0xff]
        %v5808 = vld [vmem:[%s5804 + $0x18] sm:$0xff]
        %v5809 = vld [vmem:[%s5804 + $0x20] sm:$0xff]
        %v5810 = vld [vmem:[%s5804 + $0x28] sm:$0xff]
        %v5811 = vld [vmem:[%s5804 + $0x30] sm:$0xff]
        %v5812 = vld [vmem:[%s5804 + $0x38] sm:$0xff]
        %v5813 = vld [vmem:[%s5804 + $0x40] sm:$0xff]
        %v5814 = vld [vmem:[%s5804 + $0x48] sm:$0xff]
        %v5815 = vld [vmem:[%s5804 + $0x50] sm:$0xff]
        %v5816 = vld [vmem:[%s5804 + $0x58] sm:$0xff]
        %v5817 = vld [vmem:[%s5804 + $0x60] sm:$0xff]
        %v5818 = vld [vmem:[%s5804 + $0x68] sm:$0xff]
        %v5819 = vld [vmem:[%s5804 + $0x70] sm:$0xff]
        %v5820 = vld [vmem:[%s5804 + $0x78] sm:$0xff]
        %v5821 = vld [vmem:[%s5804 + $0x80] sm:$0xff]
        %v5822 = vld [vmem:[%s5804 + $0x88] sm:$0xff]
        %v5823 = vld [vmem:[%s5804 + $0x90] sm:$0xff]
        %v5824 = vld [vmem:[%s5804 + $0x98] sm:$0xff]
        %v5825 = vld [vmem:[%s5804 + $0xa0] sm:$0xff]
        %v5826 = vld [vmem:[%s5804 + $0xa8] sm:$0xff]
        %v5827 = vld [vmem:[%s5804 + $0xb0] sm:$0xff]
        %v5828 = vld [vmem:[%s5804 + $0xb8] sm:$0xff]
        %v5829 = vld [vmem:[%s5804 + $0xc0] sm:$0xff]
        %v5830 = vld [vmem:[%s5804 + $0xc8] sm:$0xff]
        %v5831 = vld [vmem:[%s5804 + $0xd0] sm:$0xff]
        %v5832 = vld [vmem:[%s5804 + $0xd8] sm:$0xff]
        %v5833 = vld [vmem:[%s5804 + $0xe0] sm:$0xff]
        %v5834 = vld [vmem:[%s5804 + $0xe8] sm:$0xff]
        %v5835 = vld [vmem:[%s5804 + $0xf0] sm:$0xff]
        %v5836 = vld [vmem:[%s5804 + $0xf8] sm:$0xff]
        %5845 = vrot.lane.b32.xlu0 %v5740, 112
        %v5846 = vpop.permute.xlu0 %5845
        %5847 = vrot.lane.b32.xlu0 %v5741, 112
        %v5848 = vpop.permute.xlu0 %5847
        %5849 = vrot.lane.b32.xlu0 %v5742, 112
        %v5850 = vpop.permute.xlu0 %5849
        %5851 = vrot.lane.b32.xlu0 %v5743, 112
        %v5852 = vpop.permute.xlu0 %5851
        %5853 = vrot.lane.b32.xlu0 %v5744, 112
        %v5854 = vpop.permute.xlu0 %5853
        %5855 = vrot.lane.b32.xlu0 %v5745, 112
        %v5856 = vpop.permute.xlu0 %5855
        %5857 = vrot.lane.b32.xlu0 %v5746, 112
        %v5858 = vpop.permute.xlu0 %5857
        %5859 = vrot.lane.b32.xlu0 %v5747, 112
        %v5860 = vpop.permute.xlu0 %5859
        %5869 = vrot.lane.b32.xlu0 %v5772, 80
        %v5870 = vpop.permute.xlu0 %5869
        %5871 = vrot.lane.b32.xlu0 %v5773, 80
        %v5872 = vpop.permute.xlu0 %5871
        %5873 = vrot.lane.b32.xlu0 %v5774, 80
        %v5874 = vpop.permute.xlu0 %5873
        %5875 = vrot.lane.b32.xlu0 %v5775, 80
        %v5876 = vpop.permute.xlu0 %5875
        %5877 = vrot.lane.b32.xlu0 %v5776, 80
        %v5878 = vpop.permute.xlu0 %5877
        %5879 = vrot.lane.b32.xlu0 %v5777, 80
        %v5880 = vpop.permute.xlu0 %5879
        %5881 = vrot.lane.b32.xlu0 %v5778, 80
        %v5882 = vpop.permute.xlu0 %5881
        %5883 = vrot.lane.b32.xlu0 %v5779, 80
        %v5884 = vpop.permute.xlu0 %5883
        %v5885 = vsel %vm689, %v5846, 0
        %v5887 = vsel %vm689, %v5848, 0
        %v5889 = vsel %vm689, %v5850, 0
        %v5891 = vsel %vm689, %v5852, 0
        %v5893 = vsel %vm689, %v5854, 0
        %v5895 = vsel %vm689, %v5856, 0
        %v5897 = vsel %vm689, %v5858, 0
        %v5899 = vsel %vm689, %v5860, 0
        %v5901 = vsel %vm689, %v5870, 0
        %v5903 = vsel %vm689, %v5872, 0
        %v5905 = vsel %vm689, %v5874, 0
        %v5907 = vsel %vm689, %v5876, 0
        %v5909 = vsel %vm689, %v5878, 0
        %v5911 = vsel %vm689, %v5880, 0
        %v5913 = vsel %vm689, %v5882, 0
        %v5915 = vsel %vm689, %v5884, 0
        %5917 = vmatprep.subr.mxu0 0.0
        %5918 = vmatpush1.xpose.msra.mxu0 0.0
        %5919 = vmatprep.subr.mxu0 0.0
        %5920 = vmatpush1.xpose.msra.mxu0 0.0
        %5921 = vmatprep.subr.mxu0 0.0
        %5922 = vmatpush1.xpose.msra.mxu0 0.0
        %5923 = vmatprep.subr.mxu0 0.0
        %5924 = vmatpush1.xpose.msra.mxu0 0.0
        %5925 = vmatprep.subr.mxu0 0.0
        %5926 = vmatpush1.xpose.msra.mxu0 0.0
        %5927 = vmatprep.subr.mxu0 0.0
        %5928 = vmatpush1.xpose.msra.mxu0 0.0
        %5929 = vmatprep.subr.mxu0 0.0
        %5930 = vmatpush1.xpose.msra.mxu0 0.0
        %5931 = vmatprep.subr.mxu0 0.0
        %5932 = vmatpush1.xpose.msra.mxu0 0.0
        %5933 = vmatprep.subr.mxu0 0.0
        %5934 = vmatpush1.xpose.msra.mxu0 %v5915
        %5935 = vmatprep.subr.mxu0 0.0
        %5936 = vmatpush1.xpose.msra.mxu0 %v5913
        %5937 = vmatprep.subr.mxu0 0.0
        %5938 = vmatpush1.xpose.msra.mxu0 %v5911
        %5939 = vmatprep.subr.mxu0 0.0
        %5940 = vmatpush1.xpose.msra.mxu0 %v5909
        %5941 = vmatprep.subr.mxu0 0.0
        %5942 = vmatpush1.xpose.msra.mxu0 %v5907
        %5943 = vmatprep.subr.mxu0 0.0
        %5944 = vmatpush1.xpose.msra.mxu0 %v5905
        %5945 = vmatprep.subr.mxu0 0.0
        %5946 = vmatpush1.xpose.msra.mxu0 %v5903
        %5947 = vmatprep.subr.mxu0 0.0
        %5948 = vmatpush1.xpose.msra.mxu0 %v5901
        %5949 = vmatprep.subr.mxu0 0.0
        %5950 = vmatpush2.xpose.msra.mxu0 0.0
        %5951 = vmatprep.subr.mxu0 0.0
        %5952 = vmatpush2.xpose.msra.mxu0 0.0
        %5953 = vmatprep.subr.mxu0 0.0
        %5954 = vmatpush2.xpose.msra.mxu0 0.0
        %5955 = vmatprep.subr.mxu0 0.0
        %5956 = vmatpush2.xpose.msra.mxu0 0.0
        %5957 = vmatprep.subr.mxu0 0.0
        %5958 = vmatpush2.xpose.msra.mxu0 0.0
        %5959 = vmatprep.subr.mxu0 0.0
        %5960 = vmatpush2.xpose.msra.mxu0 0.0
        %5961 = vmatprep.subr.mxu0 0.0
        %5962 = vmatpush2.xpose.msra.mxu0 0.0
        %5963 = vmatprep.subr.mxu0 0.0
        %5964 = vmatpush2.xpose.msra.mxu0 0.0
        %5965 = vmatprep.subr.mxu0 0.0
        %5966 = vmatpush2.xpose.msra.mxu0 0.0
        %5967 = vmatprep.subr.mxu0 0.0
        %5968 = vmatpush2.xpose.msra.mxu0 0.0
        %5969 = vmatprep.subr.mxu0 0.0
        %5970 = vmatpush2.xpose.msra.mxu0 0.0
        %5971 = vmatprep.subr.mxu0 0.0
        %5972 = vmatpush2.xpose.msra.mxu0 0.0
        %5973 = vmatprep.subr.mxu0 0.0
        %5974 = vmatpush2.xpose.msra.mxu0 0.0
        %5975 = vmatprep.subr.mxu0 0.0
        %5976 = vmatpush2.xpose.msra.mxu0 0.0
        %5977 = vmatprep.subr.mxu0 0.0
        %5978 = vmatpush2.xpose.msra.mxu0 0.0
        %5979 = vmatprep.subr.mxu0 0.0
        %5980 = vmatpush2.xpose.msra.mxu0 0.0
        %5981 = vmatprep.mubr.f32.mxu0 0.0
        %5982 = vmatmul.mubr.f32.gmra.mxu0 %v5885
        %v5983 = vpop.f32.mrf.mxu0
        %v5984 = vadd.f32 %v5805, %v5983
        %v5985 = vpop.f32.mrf.mxu0
        %5986 = vmatprep.mubr.f32.mxu0 0.0
        %5987 = vmatmul.mubr.f32.gmra.mxu0 %v5887
        %v5988 = vpop.f32.mrf.mxu0
        %v5989 = vadd.f32 %v5806, %v5988
        %v5990 = vpop.f32.mrf.mxu0
        %5991 = vmatprep.mubr.f32.mxu0 0.0
        %5992 = vmatmul.mubr.f32.gmra.mxu0 %v5889
        %v5993 = vpop.f32.mrf.mxu0
        %v5994 = vadd.f32 %v5807, %v5993
        %v5995 = vpop.f32.mrf.mxu0
        %5996 = vmatprep.mubr.f32.mxu0 0.0
        %5997 = vmatmul.mubr.f32.gmra.mxu0 %v5891
        %v5998 = vpop.f32.mrf.mxu0
        %v5999 = vadd.f32 %v5808, %v5998
        %v6000 = vpop.f32.mrf.mxu0
        %6001 = vmatprep.mubr.f32.mxu0 0.0
        %6002 = vmatmul.mubr.f32.gmra.mxu0 %v5893
        %v6003 = vpop.f32.mrf.mxu0
        %v6004 = vadd.f32 %v5809, %v6003
        %v6005 = vpop.f32.mrf.mxu0
        %6006 = vmatprep.mubr.f32.mxu0 0.0
        %6007 = vmatmul.mubr.f32.gmra.mxu0 %v5895
        %v6008 = vpop.f32.mrf.mxu0
        %v6009 = vadd.f32 %v5810, %v6008
        %v6010 = vpop.f32.mrf.mxu0
        %6011 = vmatprep.mubr.f32.mxu0 0.0
        %6012 = vmatmul.mubr.f32.gmra.mxu0 %v5897
        %v6013 = vpop.f32.mrf.mxu0
        %v6014 = vadd.f32 %v5811, %v6013
        %v6015 = vpop.f32.mrf.mxu0
        %6016 = vmatprep.mubr.f32.mxu0 0.0
        %6017 = vmatmul.mubr.f32.gmra.mxu0 %v5899
        %v6018 = vpop.f32.mrf.mxu0
        %v6019 = vadd.f32 %v5812, %v6018
        %v6020 = vpop.f32.mrf.mxu0
        %6021 = vdwg.mxu0
        %6030 = vrot.lane.b32.xlu0 %v5748, 112
        %v6031 = vpop.permute.xlu0 %6030
        %6032 = vrot.lane.b32.xlu0 %v5749, 112
        %v6033 = vpop.permute.xlu0 %6032
        %6034 = vrot.lane.b32.xlu0 %v5750, 112
        %v6035 = vpop.permute.xlu0 %6034
        %6036 = vrot.lane.b32.xlu0 %v5751, 112
        %v6037 = vpop.permute.xlu0 %6036
        %6038 = vrot.lane.b32.xlu0 %v5752, 112
        %v6039 = vpop.permute.xlu0 %6038
        %6040 = vrot.lane.b32.xlu0 %v5753, 112
        %v6041 = vpop.permute.xlu0 %6040
        %6042 = vrot.lane.b32.xlu0 %v5754, 112
        %v6043 = vpop.permute.xlu0 %6042
        %6044 = vrot.lane.b32.xlu0 %v5755, 112
        %v6045 = vpop.permute.xlu0 %6044
        %6054 = vrot.lane.b32.xlu0 %v5780, 80
        %v6055 = vpop.permute.xlu0 %6054
        %6056 = vrot.lane.b32.xlu0 %v5781, 80
        %v6057 = vpop.permute.xlu0 %6056
        %6058 = vrot.lane.b32.xlu0 %v5782, 80
        %v6059 = vpop.permute.xlu0 %6058
        %6060 = vrot.lane.b32.xlu0 %v5783, 80
        %v6061 = vpop.permute.xlu0 %6060
        %6062 = vrot.lane.b32.xlu0 %v5784, 80
        %v6063 = vpop.permute.xlu0 %6062
        %6064 = vrot.lane.b32.xlu0 %v5785, 80
        %v6065 = vpop.permute.xlu0 %6064
        %6066 = vrot.lane.b32.xlu0 %v5786, 80
        %v6067 = vpop.permute.xlu0 %6066
        %6068 = vrot.lane.b32.xlu0 %v5787, 80
        %v6069 = vpop.permute.xlu0 %6068
        %v6070 = vsel %vm689, %v6031, 0
        %v6072 = vsel %vm689, %v6033, 0
        %v6074 = vsel %vm689, %v6035, 0
        %v6076 = vsel %vm689, %v6037, 0
        %v6078 = vsel %vm689, %v6039, 0
        %v6080 = vsel %vm689, %v6041, 0
        %v6082 = vsel %vm689, %v6043, 0
        %v6084 = vsel %vm689, %v6045, 0
        %v6086 = vsel %vm689, %v6055, 0
        %v6088 = vsel %vm689, %v6057, 0
        %v6090 = vsel %vm689, %v6059, 0
        %v6092 = vsel %vm689, %v6061, 0
        %v6094 = vsel %vm689, %v6063, 0
        %v6096 = vsel %vm689, %v6065, 0
        %v6098 = vsel %vm689, %v6067, 0
        %v6100 = vsel %vm689, %v6069, 0
        %6102 = vmatprep.subr.mxu0 0.0
        %6103 = vmatpush1.xpose.msra.mxu0 0.0
        %6104 = vmatprep.subr.mxu0 0.0
        %6105 = vmatpush1.xpose.msra.mxu0 0.0
        %6106 = vmatprep.subr.mxu0 0.0
        %6107 = vmatpush1.xpose.msra.mxu0 0.0
        %6108 = vmatprep.subr.mxu0 0.0
        %6109 = vmatpush1.xpose.msra.mxu0 0.0
        %6110 = vmatprep.subr.mxu0 0.0
        %6111 = vmatpush1.xpose.msra.mxu0 0.0
        %6112 = vmatprep.subr.mxu0 0.0
        %6113 = vmatpush1.xpose.msra.mxu0 0.0
        %6114 = vmatprep.subr.mxu0 0.0
        %6115 = vmatpush1.xpose.msra.mxu0 0.0
        %6116 = vmatprep.subr.mxu0 0.0
        %6117 = vmatpush1.xpose.msra.mxu0 0.0
        %6118 = vmatprep.subr.mxu0 0.0
        %6119 = vmatpush1.xpose.msra.mxu0 %v6100
        %6120 = vmatprep.subr.mxu0 0.0
        %6121 = vmatpush1.xpose.msra.mxu0 %v6098
        %6122 = vmatprep.subr.mxu0 0.0
        %6123 = vmatpush1.xpose.msra.mxu0 %v6096
        %6124 = vmatprep.subr.mxu0 0.0
        %6125 = vmatpush1.xpose.msra.mxu0 %v6094
        %6126 = vmatprep.subr.mxu0 0.0
        %6127 = vmatpush1.xpose.msra.mxu0 %v6092
        %6128 = vmatprep.subr.mxu0 0.0
        %6129 = vmatpush1.xpose.msra.mxu0 %v6090
        %6130 = vmatprep.subr.mxu0 0.0
        %6131 = vmatpush1.xpose.msra.mxu0 %v6088
        %6132 = vmatprep.subr.mxu0 0.0
        %6133 = vmatpush1.xpose.msra.mxu0 %v6086
        %6134 = vmatprep.subr.mxu0 0.0
        %6135 = vmatpush2.xpose.msra.mxu0 0.0
        %6136 = vmatprep.subr.mxu0 0.0
        %6137 = vmatpush2.xpose.msra.mxu0 0.0
        %6138 = vmatprep.subr.mxu0 0.0
        %6139 = vmatpush2.xpose.msra.mxu0 0.0
        %6140 = vmatprep.subr.mxu0 0.0
        %6141 = vmatpush2.xpose.msra.mxu0 0.0
        %6142 = vmatprep.subr.mxu0 0.0
        %6143 = vmatpush2.xpose.msra.mxu0 0.0
        %6144 = vmatprep.subr.mxu0 0.0
        %6145 = vmatpush2.xpose.msra.mxu0 0.0
        %6146 = vmatprep.subr.mxu0 0.0
        %6147 = vmatpush2.xpose.msra.mxu0 0.0
        %6148 = vmatprep.subr.mxu0 0.0
        %6149 = vmatpush2.xpose.msra.mxu0 0.0
        %6150 = vmatprep.subr.mxu0 0.0
        %6151 = vmatpush2.xpose.msra.mxu0 0.0
        %6152 = vmatprep.subr.mxu0 0.0
        %6153 = vmatpush2.xpose.msra.mxu0 0.0
        %6154 = vmatprep.subr.mxu0 0.0
        %6155 = vmatpush2.xpose.msra.mxu0 0.0
        %6156 = vmatprep.subr.mxu0 0.0
        %6157 = vmatpush2.xpose.msra.mxu0 0.0
        %6158 = vmatprep.subr.mxu0 0.0
        %6159 = vmatpush2.xpose.msra.mxu0 0.0
        %6160 = vmatprep.subr.mxu0 0.0
        %6161 = vmatpush2.xpose.msra.mxu0 0.0
        %6162 = vmatprep.subr.mxu0 0.0
        %6163 = vmatpush2.xpose.msra.mxu0 0.0
        %6164 = vmatprep.subr.mxu0 0.0
        %6165 = vmatpush2.xpose.msra.mxu0 0.0
        %6166 = vmatprep.mubr.f32.mxu0 0.0
        %6167 = vmatmul.mubr.f32.gmra.mxu0 %v6070
        %v6168 = vpop.f32.mrf.mxu0
        %v6169 = vadd.f32 %v5813, %v6168
        %v6170 = vpop.f32.mrf.mxu0
        %6171 = vmatprep.mubr.f32.mxu0 0.0
        %6172 = vmatmul.mubr.f32.gmra.mxu0 %v6072
        %v6173 = vpop.f32.mrf.mxu0
        %v6174 = vadd.f32 %v5814, %v6173
        %v6175 = vpop.f32.mrf.mxu0
        %6176 = vmatprep.mubr.f32.mxu0 0.0
        %6177 = vmatmul.mubr.f32.gmra.mxu0 %v6074
        %v6178 = vpop.f32.mrf.mxu0
        %v6179 = vadd.f32 %v5815, %v6178
        %v6180 = vpop.f32.mrf.mxu0
        %6181 = vmatprep.mubr.f32.mxu0 0.0
        %6182 = vmatmul.mubr.f32.gmra.mxu0 %v6076
        %v6183 = vpop.f32.mrf.mxu0
        %v6184 = vadd.f32 %v5816, %v6183
        %v6185 = vpop.f32.mrf.mxu0
        %6186 = vmatprep.mubr.f32.mxu0 0.0
        %6187 = vmatmul.mubr.f32.gmra.mxu0 %v6078
        %v6188 = vpop.f32.mrf.mxu0
        %v6189 = vadd.f32 %v5817, %v6188
        %v6190 = vpop.f32.mrf.mxu0
        %6191 = vmatprep.mubr.f32.mxu0 0.0
        %6192 = vmatmul.mubr.f32.gmra.mxu0 %v6080
        %v6193 = vpop.f32.mrf.mxu0
        %v6194 = vadd.f32 %v5818, %v6193
        %v6195 = vpop.f32.mrf.mxu0
        %6196 = vmatprep.mubr.f32.mxu0 0.0
        %6197 = vmatmul.mubr.f32.gmra.mxu0 %v6082
        %v6198 = vpop.f32.mrf.mxu0
        %v6199 = vadd.f32 %v5819, %v6198
        %v6200 = vpop.f32.mrf.mxu0
        %6201 = vmatprep.mubr.f32.mxu0 0.0
        %6202 = vmatmul.mubr.f32.gmra.mxu0 %v6084
        %v6203 = vpop.f32.mrf.mxu0
        %v6204 = vadd.f32 %v5820, %v6203
        %v6205 = vpop.f32.mrf.mxu0
        %6206 = vdwg.mxu0
        %6215 = vrot.lane.b32.xlu0 %v5756, 112
        %v6216 = vpop.permute.xlu0 %6215
        %6217 = vrot.lane.b32.xlu0 %v5757, 112
        %v6218 = vpop.permute.xlu0 %6217
        %6219 = vrot.lane.b32.xlu0 %v5758, 112
        %v6220 = vpop.permute.xlu0 %6219
        %6221 = vrot.lane.b32.xlu0 %v5759, 112
        %v6222 = vpop.permute.xlu0 %6221
        %6223 = vrot.lane.b32.xlu0 %v5760, 112
        %v6224 = vpop.permute.xlu0 %6223
        %6225 = vrot.lane.b32.xlu0 %v5761, 112
        %v6226 = vpop.permute.xlu0 %6225
        %6227 = vrot.lane.b32.xlu0 %v5762, 112
        %v6228 = vpop.permute.xlu0 %6227
        %6229 = vrot.lane.b32.xlu0 %v5763, 112
        %v6230 = vpop.permute.xlu0 %6229
        %6239 = vrot.lane.b32.xlu0 %v5788, 80
        %v6240 = vpop.permute.xlu0 %6239
        %6241 = vrot.lane.b32.xlu0 %v5789, 80
        %v6242 = vpop.permute.xlu0 %6241
        %6243 = vrot.lane.b32.xlu0 %v5790, 80
        %v6244 = vpop.permute.xlu0 %6243
        %6245 = vrot.lane.b32.xlu0 %v5791, 80
        %v6246 = vpop.permute.xlu0 %6245
        %6247 = vrot.lane.b32.xlu0 %v5792, 80
        %v6248 = vpop.permute.xlu0 %6247
        %6249 = vrot.lane.b32.xlu0 %v5793, 80
        %v6250 = vpop.permute.xlu0 %6249
        %6251 = vrot.lane.b32.xlu0 %v5794, 80
        %v6252 = vpop.permute.xlu0 %6251
        %6253 = vrot.lane.b32.xlu0 %v5795, 80
        %v6254 = vpop.permute.xlu0 %6253
        %v6255 = vsel %vm689, %v6216, 0
        %v6257 = vsel %vm689, %v6218, 0
        %v6259 = vsel %vm689, %v6220, 0
        %v6261 = vsel %vm689, %v6222, 0
        %v6263 = vsel %vm689, %v6224, 0
        %v6265 = vsel %vm689, %v6226, 0
        %v6267 = vsel %vm689, %v6228, 0
        %v6269 = vsel %vm689, %v6230, 0
        %v6271 = vsel %vm689, %v6240, 0
        %v6273 = vsel %vm689, %v6242, 0
        %v6275 = vsel %vm689, %v6244, 0
        %v6277 = vsel %vm689, %v6246, 0
        %v6279 = vsel %vm689, %v6248, 0
        %v6281 = vsel %vm689, %v6250, 0
        %v6283 = vsel %vm689, %v6252, 0
        %v6285 = vsel %vm689, %v6254, 0
        %6287 = vmatprep.subr.mxu0 0.0
        %6288 = vmatpush1.xpose.msra.mxu0 0.0
        %6289 = vmatprep.subr.mxu0 0.0
        %6290 = vmatpush1.xpose.msra.mxu0 0.0
        %6291 = vmatprep.subr.mxu0 0.0
        %6292 = vmatpush1.xpose.msra.mxu0 0.0
        %6293 = vmatprep.subr.mxu0 0.0
        %6294 = vmatpush1.xpose.msra.mxu0 0.0
        %6295 = vmatprep.subr.mxu0 0.0
        %6296 = vmatpush1.xpose.msra.mxu0 0.0
        %6297 = vmatprep.subr.mxu0 0.0
        %6298 = vmatpush1.xpose.msra.mxu0 0.0
        %6299 = vmatprep.subr.mxu0 0.0
        %6300 = vmatpush1.xpose.msra.mxu0 0.0
        %6301 = vmatprep.subr.mxu0 0.0
        %6302 = vmatpush1.xpose.msra.mxu0 0.0
        %6303 = vmatprep.subr.mxu0 0.0
        %6304 = vmatpush1.xpose.msra.mxu0 %v6285
        %6305 = vmatprep.subr.mxu0 0.0
        %6306 = vmatpush1.xpose.msra.mxu0 %v6283
        %6307 = vmatprep.subr.mxu0 0.0
        %6308 = vmatpush1.xpose.msra.mxu0 %v6281
        %6309 = vmatprep.subr.mxu0 0.0
        %6310 = vmatpush1.xpose.msra.mxu0 %v6279
        %6311 = vmatprep.subr.mxu0 0.0
        %6312 = vmatpush1.xpose.msra.mxu0 %v6277
        %6313 = vmatprep.subr.mxu0 0.0
        %6314 = vmatpush1.xpose.msra.mxu0 %v6275
        %6315 = vmatprep.subr.mxu0 0.0
        %6316 = vmatpush1.xpose.msra.mxu0 %v6273
        %6317 = vmatprep.subr.mxu0 0.0
        %6318 = vmatpush1.xpose.msra.mxu0 %v6271
        %6319 = vmatprep.subr.mxu0 0.0
        %6320 = vmatpush2.xpose.msra.mxu0 0.0
        %6321 = vmatprep.subr.mxu0 0.0
        %6322 = vmatpush2.xpose.msra.mxu0 0.0
        %6323 = vmatprep.subr.mxu0 0.0
        %6324 = vmatpush2.xpose.msra.mxu0 0.0
        %6325 = vmatprep.subr.mxu0 0.0
        %6326 = vmatpush2.xpose.msra.mxu0 0.0
        %6327 = vmatprep.subr.mxu0 0.0
        %6328 = vmatpush2.xpose.msra.mxu0 0.0
        %6329 = vmatprep.subr.mxu0 0.0
        %6330 = vmatpush2.xpose.msra.mxu0 0.0
        %6331 = vmatprep.subr.mxu0 0.0
        %6332 = vmatpush2.xpose.msra.mxu0 0.0
        %6333 = vmatprep.subr.mxu0 0.0
        %6334 = vmatpush2.xpose.msra.mxu0 0.0
        %6335 = vmatprep.subr.mxu0 0.0
        %6336 = vmatpush2.xpose.msra.mxu0 0.0
        %6337 = vmatprep.subr.mxu0 0.0
        %6338 = vmatpush2.xpose.msra.mxu0 0.0
        %6339 = vmatprep.subr.mxu0 0.0
        %6340 = vmatpush2.xpose.msra.mxu0 0.0
        %6341 = vmatprep.subr.mxu0 0.0
        %6342 = vmatpush2.xpose.msra.mxu0 0.0
        %6343 = vmatprep.subr.mxu0 0.0
        %6344 = vmatpush2.xpose.msra.mxu0 0.0
        %6345 = vmatprep.subr.mxu0 0.0
        %6346 = vmatpush2.xpose.msra.mxu0 0.0
        %6347 = vmatprep.subr.mxu0 0.0
        %6348 = vmatpush2.xpose.msra.mxu0 0.0
        %6349 = vmatprep.subr.mxu0 0.0
        %6350 = vmatpush2.xpose.msra.mxu0 0.0
        %6351 = vmatprep.mubr.f32.mxu0 0.0
        %6352 = vmatmul.mubr.f32.gmra.mxu0 %v6255
        %v6353 = vpop.f32.mrf.mxu0
        %v6354 = vadd.f32 %v5821, %v6353
        %v6355 = vpop.f32.mrf.mxu0
        %6356 = vmatprep.mubr.f32.mxu0 0.0
        %6357 = vmatmul.mubr.f32.gmra.mxu0 %v6257
        %v6358 = vpop.f32.mrf.mxu0
        %v6359 = vadd.f32 %v5822, %v6358
        %v6360 = vpop.f32.mrf.mxu0
        %6361 = vmatprep.mubr.f32.mxu0 0.0
        %6362 = vmatmul.mubr.f32.gmra.mxu0 %v6259
        %v6363 = vpop.f32.mrf.mxu0
        %v6364 = vadd.f32 %v5823, %v6363
        %v6365 = vpop.f32.mrf.mxu0
        %6366 = vmatprep.mubr.f32.mxu0 0.0
        %6367 = vmatmul.mubr.f32.gmra.mxu0 %v6261
        %v6368 = vpop.f32.mrf.mxu0
        %v6369 = vadd.f32 %v5824, %v6368
        %v6370 = vpop.f32.mrf.mxu0
        %6371 = vmatprep.mubr.f32.mxu0 0.0
        %6372 = vmatmul.mubr.f32.gmra.mxu0 %v6263
        %v6373 = vpop.f32.mrf.mxu0
        %v6374 = vadd.f32 %v5825, %v6373
        %v6375 = vpop.f32.mrf.mxu0
        %6376 = vmatprep.mubr.f32.mxu0 0.0
        %6377 = vmatmul.mubr.f32.gmra.mxu0 %v6265
        %v6378 = vpop.f32.mrf.mxu0
        %v6379 = vadd.f32 %v5826, %v6378
        %v6380 = vpop.f32.mrf.mxu0
        %6381 = vmatprep.mubr.f32.mxu0 0.0
        %6382 = vmatmul.mubr.f32.gmra.mxu0 %v6267
        %v6383 = vpop.f32.mrf.mxu0
        %v6384 = vadd.f32 %v5827, %v6383
        %v6385 = vpop.f32.mrf.mxu0
        %6386 = vmatprep.mubr.f32.mxu0 0.0
        %6387 = vmatmul.mubr.f32.gmra.mxu0 %v6269
        %v6388 = vpop.f32.mrf.mxu0
        %v6389 = vadd.f32 %v5828, %v6388
        %v6390 = vpop.f32.mrf.mxu0
        %6391 = vdwg.mxu0
        %6400 = vrot.lane.b32.xlu0 %v5764, 112
        %v6401 = vpop.permute.xlu0 %6400
        %6402 = vrot.lane.b32.xlu0 %v5765, 112
        %v6403 = vpop.permute.xlu0 %6402
        %6404 = vrot.lane.b32.xlu0 %v5766, 112
        %v6405 = vpop.permute.xlu0 %6404
        %6406 = vrot.lane.b32.xlu0 %v5767, 112
        %v6407 = vpop.permute.xlu0 %6406
        %6408 = vrot.lane.b32.xlu0 %v5768, 112
        %v6409 = vpop.permute.xlu0 %6408
        %6410 = vrot.lane.b32.xlu0 %v5769, 112
        %v6411 = vpop.permute.xlu0 %6410
        %6412 = vrot.lane.b32.xlu0 %v5770, 112
        %v6413 = vpop.permute.xlu0 %6412
        %6414 = vrot.lane.b32.xlu0 %v5771, 112
        %v6415 = vpop.permute.xlu0 %6414
        %6424 = vrot.lane.b32.xlu0 %v5796, 80
        %v6425 = vpop.permute.xlu0 %6424
        %6426 = vrot.lane.b32.xlu0 %v5797, 80
        %v6427 = vpop.permute.xlu0 %6426
        %6428 = vrot.lane.b32.xlu0 %v5798, 80
        %v6429 = vpop.permute.xlu0 %6428
        %6430 = vrot.lane.b32.xlu0 %v5799, 80
        %v6431 = vpop.permute.xlu0 %6430
        %6432 = vrot.lane.b32.xlu0 %v5800, 80
        %v6433 = vpop.permute.xlu0 %6432
        %6434 = vrot.lane.b32.xlu0 %v5801, 80
        %v6435 = vpop.permute.xlu0 %6434
        %6436 = vrot.lane.b32.xlu0 %v5802, 80
        %v6437 = vpop.permute.xlu0 %6436
        %6438 = vrot.lane.b32.xlu0 %v5803, 80
        %v6439 = vpop.permute.xlu0 %6438
        %v6440 = vsel %vm689, %v6401, 0
        %v6442 = vsel %vm689, %v6403, 0
        %v6444 = vsel %vm689, %v6405, 0
        %v6446 = vsel %vm689, %v6407, 0
        %v6448 = vsel %vm689, %v6409, 0
        %v6450 = vsel %vm689, %v6411, 0
        %v6452 = vsel %vm689, %v6413, 0
        %v6454 = vsel %vm689, %v6415, 0
        %v6456 = vsel %vm689, %v6425, 0
        %v6458 = vsel %vm689, %v6427, 0
        %v6460 = vsel %vm689, %v6429, 0
        %v6462 = vsel %vm689, %v6431, 0
        %v6464 = vsel %vm689, %v6433, 0
        %v6466 = vsel %vm689, %v6435, 0
        %v6468 = vsel %vm689, %v6437, 0
        %v6470 = vsel %vm689, %v6439, 0
        %6472 = vmatprep.subr.mxu0 0.0
        %6473 = vmatpush1.xpose.msra.mxu0 0.0
        %6474 = vmatprep.subr.mxu0 0.0
        %6475 = vmatpush1.xpose.msra.mxu0 0.0
        %6476 = vmatprep.subr.mxu0 0.0
        %6477 = vmatpush1.xpose.msra.mxu0 0.0
        %6478 = vmatprep.subr.mxu0 0.0
        %6479 = vmatpush1.xpose.msra.mxu0 0.0
        %6480 = vmatprep.subr.mxu0 0.0
        %6481 = vmatpush1.xpose.msra.mxu0 0.0
        %6482 = vmatprep.subr.mxu0 0.0
        %6483 = vmatpush1.xpose.msra.mxu0 0.0
        %6484 = vmatprep.subr.mxu0 0.0
        %6485 = vmatpush1.xpose.msra.mxu0 0.0
        %6486 = vmatprep.subr.mxu0 0.0
        %6487 = vmatpush1.xpose.msra.mxu0 0.0
        %6488 = vmatprep.subr.mxu0 0.0
        %6489 = vmatpush1.xpose.msra.mxu0 %v6470
        %6490 = vmatprep.subr.mxu0 0.0
        %6491 = vmatpush1.xpose.msra.mxu0 %v6468
        %6492 = vmatprep.subr.mxu0 0.0
        %6493 = vmatpush1.xpose.msra.mxu0 %v6466
        %6494 = vmatprep.subr.mxu0 0.0
        %6495 = vmatpush1.xpose.msra.mxu0 %v6464
        %6496 = vmatprep.subr.mxu0 0.0
        %6497 = vmatpush1.xpose.msra.mxu0 %v6462
        %6498 = vmatprep.subr.mxu0 0.0
        %6499 = vmatpush1.xpose.msra.mxu0 %v6460
        %6500 = vmatprep.subr.mxu0 0.0
        %6501 = vmatpush1.xpose.msra.mxu0 %v6458
        %6502 = vmatprep.subr.mxu0 0.0
        %6503 = vmatpush1.xpose.msra.mxu0 %v6456
        %6504 = vmatprep.subr.mxu0 0.0
        %6505 = vmatpush2.xpose.msra.mxu0 0.0
        %6506 = vmatprep.subr.mxu0 0.0
        %6507 = vmatpush2.xpose.msra.mxu0 0.0
        %6508 = vmatprep.subr.mxu0 0.0
        %6509 = vmatpush2.xpose.msra.mxu0 0.0
        %6510 = vmatprep.subr.mxu0 0.0
        %6511 = vmatpush2.xpose.msra.mxu0 0.0
        %6512 = vmatprep.subr.mxu0 0.0
        %6513 = vmatpush2.xpose.msra.mxu0 0.0
        %6514 = vmatprep.subr.mxu0 0.0
        %6515 = vmatpush2.xpose.msra.mxu0 0.0
        %6516 = vmatprep.subr.mxu0 0.0
        %6517 = vmatpush2.xpose.msra.mxu0 0.0
        %6518 = vmatprep.subr.mxu0 0.0
        %6519 = vmatpush2.xpose.msra.mxu0 0.0
        %6520 = vmatprep.subr.mxu0 0.0
        %6521 = vmatpush2.xpose.msra.mxu0 0.0
        %6522 = vmatprep.subr.mxu0 0.0
        %6523 = vmatpush2.xpose.msra.mxu0 0.0
        %6524 = vmatprep.subr.mxu0 0.0
        %6525 = vmatpush2.xpose.msra.mxu0 0.0
        %6526 = vmatprep.subr.mxu0 0.0
        %6527 = vmatpush2.xpose.msra.mxu0 0.0
        %6528 = vmatprep.subr.mxu0 0.0
        %6529 = vmatpush2.xpose.msra.mxu0 0.0
        %6530 = vmatprep.subr.mxu0 0.0
        %6531 = vmatpush2.xpose.msra.mxu0 0.0
        %6532 = vmatprep.subr.mxu0 0.0
        %6533 = vmatpush2.xpose.msra.mxu0 0.0
        %6534 = vmatprep.subr.mxu0 0.0
        %6535 = vmatpush2.xpose.msra.mxu0 0.0
        %6536 = vmatprep.mubr.f32.mxu0 0.0
        %6537 = vmatmul.mubr.f32.gmra.mxu0 %v6440
        %v6538 = vpop.f32.mrf.mxu0
        %v6539 = vadd.f32 %v5829, %v6538
        %v6540 = vpop.f32.mrf.mxu0
        %6541 = vmatprep.mubr.f32.mxu0 0.0
        %6542 = vmatmul.mubr.f32.gmra.mxu0 %v6442
        %v6543 = vpop.f32.mrf.mxu0
        %v6544 = vadd.f32 %v5830, %v6543
        %v6545 = vpop.f32.mrf.mxu0
        %6546 = vmatprep.mubr.f32.mxu0 0.0
        %6547 = vmatmul.mubr.f32.gmra.mxu0 %v6444
        %v6548 = vpop.f32.mrf.mxu0
        %v6549 = vadd.f32 %v5831, %v6548
        %v6550 = vpop.f32.mrf.mxu0
        %6551 = vmatprep.mubr.f32.mxu0 0.0
        %6552 = vmatmul.mubr.f32.gmra.mxu0 %v6446
        %v6553 = vpop.f32.mrf.mxu0
        %v6554 = vadd.f32 %v5832, %v6553
        %v6555 = vpop.f32.mrf.mxu0
        %6556 = vmatprep.mubr.f32.mxu0 0.0
        %6557 = vmatmul.mubr.f32.gmra.mxu0 %v6448
        %v6558 = vpop.f32.mrf.mxu0
        %v6559 = vadd.f32 %v5833, %v6558
        %v6560 = vpop.f32.mrf.mxu0
        %6561 = vmatprep.mubr.f32.mxu0 0.0
        %6562 = vmatmul.mubr.f32.gmra.mxu0 %v6450
        %v6563 = vpop.f32.mrf.mxu0
        %v6564 = vadd.f32 %v5834, %v6563
        %v6565 = vpop.f32.mrf.mxu0
        %6566 = vmatprep.mubr.f32.mxu0 0.0
        %6567 = vmatmul.mubr.f32.gmra.mxu0 %v6452
        %v6568 = vpop.f32.mrf.mxu0
        %v6569 = vadd.f32 %v5835, %v6568
        %v6570 = vpop.f32.mrf.mxu0
        %6571 = vmatprep.mubr.f32.mxu0 0.0
        %6572 = vmatmul.mubr.f32.gmra.mxu0 %v6454
        %v6573 = vpop.f32.mrf.mxu0
        %v6574 = vadd.f32 %v5836, %v6573
        %v6575 = vpop.f32.mrf.mxu0
        %6576 = vdwg.mxu0
        %v6577 = vsel %vm1944, %v5984, -inf
        %6578 = vmax.xlane.f32.xlu0 %v6577
        %v6579 = vpop.xlane.xlu0 %6578
        %v6580 = vsel %vm1944, %v5989, -inf
        %6581 = vmax.xlane.f32.xlu0 %v6580
        %v6582 = vpop.xlane.xlu0 %6581
        %v6583 = vsel %vm1944, %v5994, -inf
        %6584 = vmax.xlane.f32.xlu0 %v6583
        %v6585 = vpop.xlane.xlu0 %6584
        %v6586 = vsel %vm1944, %v5999, -inf
        %6587 = vmax.xlane.f32.xlu0 %v6586
        %v6588 = vpop.xlane.xlu0 %6587
        %v6589 = vsel %vm1944, %v6004, -inf
        %6590 = vmax.xlane.f32.xlu0 %v6589
        %v6591 = vpop.xlane.xlu0 %6590
        %v6592 = vsel %vm1944, %v6009, -inf
        %6593 = vmax.xlane.f32.xlu0 %v6592
        %v6594 = vpop.xlane.xlu0 %6593
        %v6595 = vsel %vm1944, %v6014, -inf
        %6596 = vmax.xlane.f32.xlu0 %v6595
        %v6597 = vpop.xlane.xlu0 %6596
        %v6598 = vsel %vm1944, %v6019, -inf
        %6599 = vmax.xlane.f32.xlu0 %v6598
        %v6600 = vpop.xlane.xlu0 %6599
        %v6601 = vsel %vm1944, %v6169, -inf
        %6602 = vmax.xlane.f32.xlu0 %v6601
        %v6603 = vpop.xlane.xlu0 %6602
        %v6604 = vsel %vm1944, %v6174, -inf
        %6605 = vmax.xlane.f32.xlu0 %v6604
        %v6606 = vpop.xlane.xlu0 %6605
        %v6607 = vsel %vm1944, %v6179, -inf
        %6608 = vmax.xlane.f32.xlu0 %v6607
        %v6609 = vpop.xlane.xlu0 %6608
        %v6610 = vsel %vm1944, %v6184, -inf
        %6611 = vmax.xlane.f32.xlu0 %v6610
        %v6612 = vpop.xlane.xlu0 %6611
        %v6613 = vsel %vm1944, %v6189, -inf
        %6614 = vmax.xlane.f32.xlu0 %v6613
        %v6615 = vpop.xlane.xlu0 %6614
        %v6616 = vsel %vm1944, %v6194, -inf
        %6617 = vmax.xlane.f32.xlu0 %v6616
        %v6618 = vpop.xlane.xlu0 %6617
        %v6619 = vsel %vm1944, %v6199, -inf
        %6620 = vmax.xlane.f32.xlu0 %v6619
        %v6621 = vpop.xlane.xlu0 %6620
        %v6622 = vsel %vm1944, %v6204, -inf
        %6623 = vmax.xlane.f32.xlu0 %v6622
        %v6624 = vpop.xlane.xlu0 %6623
        %v6625 = vsel %vm1944, %v6354, -inf
        %6626 = vmax.xlane.f32.xlu0 %v6625
        %v6627 = vpop.xlane.xlu0 %6626
        %v6628 = vsel %vm1944, %v6359, -inf
        %6629 = vmax.xlane.f32.xlu0 %v6628
        %v6630 = vpop.xlane.xlu0 %6629
        %v6631 = vsel %vm1944, %v6364, -inf
        %6632 = vmax.xlane.f32.xlu0 %v6631
        %v6633 = vpop.xlane.xlu0 %6632
        %v6634 = vsel %vm1944, %v6369, -inf
        %6635 = vmax.xlane.f32.xlu0 %v6634
        %v6636 = vpop.xlane.xlu0 %6635
        %v6637 = vsel %vm1944, %v6374, -inf
        %6638 = vmax.xlane.f32.xlu0 %v6637
        %v6639 = vpop.xlane.xlu0 %6638
        %v6640 = vsel %vm1944, %v6379, -inf
        %6641 = vmax.xlane.f32.xlu0 %v6640
        %v6642 = vpop.xlane.xlu0 %6641
        %v6643 = vsel %vm1944, %v6384, -inf
        %6644 = vmax.xlane.f32.xlu0 %v6643
        %v6645 = vpop.xlane.xlu0 %6644
        %v6646 = vsel %vm1944, %v6389, -inf
        %6647 = vmax.xlane.f32.xlu0 %v6646
        %v6648 = vpop.xlane.xlu0 %6647
        %v6649 = vsel %vm1944, %v6539, -inf
        %6650 = vmax.xlane.f32.xlu0 %v6649
        %v6651 = vpop.xlane.xlu0 %6650
        %v6652 = vsel %vm1944, %v6544, -inf
        %6653 = vmax.xlane.f32.xlu0 %v6652
        %v6654 = vpop.xlane.xlu0 %6653
        %v6655 = vsel %vm1944, %v6549, -inf
        %6656 = vmax.xlane.f32.xlu0 %v6655
        %v6657 = vpop.xlane.xlu0 %6656
        %v6658 = vsel %vm1944, %v6554, -inf
        %6659 = vmax.xlane.f32.xlu0 %v6658
        %v6660 = vpop.xlane.xlu0 %6659
        %v6661 = vsel %vm1944, %v6559, -inf
        %6662 = vmax.xlane.f32.xlu0 %v6661
        %v6663 = vpop.xlane.xlu0 %6662
        %v6664 = vsel %vm1944, %v6564, -inf
        %6665 = vmax.xlane.f32.xlu0 %v6664
        %v6666 = vpop.xlane.xlu0 %6665
        %v6667 = vsel %vm1944, %v6569, -inf
        %6668 = vmax.xlane.f32.xlu0 %v6667
        %v6669 = vpop.xlane.xlu0 %6668
        %v6670 = vsel %vm1944, %v6574, -inf
        %6671 = vmax.xlane.f32.xlu0 %v6670
        %v6672 = vpop.xlane.xlu0 %6671
        %v6673 = vsub.f32 %v5984, %v6579
        %v6674 = vsub.f32 %v5989, %v6582
        %v6675 = vsub.f32 %v5994, %v6585
        %v6676 = vsub.f32 %v5999, %v6588
        %v6677 = vsub.f32 %v6004, %v6591
        %v6678 = vsub.f32 %v6009, %v6594
        %v6679 = vsub.f32 %v6014, %v6597
        %v6680 = vsub.f32 %v6019, %v6600
        %v6681 = vsub.f32 %v6169, %v6603
        %v6682 = vsub.f32 %v6174, %v6606
        %v6683 = vsub.f32 %v6179, %v6609
        %v6684 = vsub.f32 %v6184, %v6612
        %v6685 = vsub.f32 %v6189, %v6615
        %v6686 = vsub.f32 %v6194, %v6618
        %v6687 = vsub.f32 %v6199, %v6621
        %v6688 = vsub.f32 %v6204, %v6624
        %v6689 = vsub.f32 %v6354, %v6627
        %v6690 = vsub.f32 %v6359, %v6630
        %v6691 = vsub.f32 %v6364, %v6633
        %v6692 = vsub.f32 %v6369, %v6636
        %v6693 = vsub.f32 %v6374, %v6639
        %v6694 = vsub.f32 %v6379, %v6642
        %v6695 = vsub.f32 %v6384, %v6645
        %v6696 = vsub.f32 %v6389, %v6648
        %v6697 = vsub.f32 %v6539, %v6651
        %v6698 = vsub.f32 %v6544, %v6654
        %v6699 = vsub.f32 %v6549, %v6657
        %v6700 = vsub.f32 %v6554, %v6660
        %v6701 = vsub.f32 %v6559, %v6663
        %v6702 = vsub.f32 %v6564, %v6666
        %v6703 = vsub.f32 %v6569, %v6669
        %v6704 = vsub.f32 %v6574, %v6672
        %v6705 = vmul.f32 %v6673, 1.442695
        %v6706 = vpow.pop %v6705
        %v6707 = vmul.f32 %v6674, 1.442695
        %v6708 = vpow.pop %v6707
        %v6709 = vmul.f32 %v6675, 1.442695
        %v6710 = vpow.pop %v6709
        %v6711 = vmul.f32 %v6676, 1.442695
        %v6712 = vpow.pop %v6711
        %v6713 = vmul.f32 %v6677, 1.442695
        %v6714 = vpow.pop %v6713
        %v6715 = vmul.f32 %v6678, 1.442695
        %v6716 = vpow.pop %v6715
        %v6717 = vmul.f32 %v6679, 1.442695
        %v6718 = vpow.pop %v6717
        %v6719 = vmul.f32 %v6680, 1.442695
        %v6720 = vpow.pop %v6719
        %v6721 = vmul.f32 %v6681, 1.442695
        %v6722 = vpow.pop %v6721
        %v6723 = vmul.f32 %v6682, 1.442695
        %v6724 = vpow.pop %v6723
        %v6725 = vmul.f32 %v6683, 1.442695
        %v6726 = vpow.pop %v6725
        %v6727 = vmul.f32 %v6684, 1.442695
        %v6728 = vpow.pop %v6727
        %v6729 = vmul.f32 %v6685, 1.442695
        %v6730 = vpow.pop %v6729
        %v6731 = vmul.f32 %v6686, 1.442695
        %v6732 = vpow.pop %v6731
        %v6733 = vmul.f32 %v6687, 1.442695
        %v6734 = vpow.pop %v6733
        %v6735 = vmul.f32 %v6688, 1.442695
        %v6736 = vpow.pop %v6735
        %v6737 = vmul.f32 %v6689, 1.442695
        %v6738 = vpow.pop %v6737
        %v6739 = vmul.f32 %v6690, 1.442695
        %v6740 = vpow.pop %v6739
        %v6741 = vmul.f32 %v6691, 1.442695
        %v6742 = vpow.pop %v6741
        %v6743 = vmul.f32 %v6692, 1.442695
        %v6744 = vpow.pop %v6743
        %v6745 = vmul.f32 %v6693, 1.442695
        %v6746 = vpow.pop %v6745
        %v6747 = vmul.f32 %v6694, 1.442695
        %v6748 = vpow.pop %v6747
        %v6749 = vmul.f32 %v6695, 1.442695
        %v6750 = vpow.pop %v6749
        %v6751 = vmul.f32 %v6696, 1.442695
        %v6752 = vpow.pop %v6751
        %v6753 = vmul.f32 %v6697, 1.442695
        %v6754 = vpow.pop %v6753
        %v6755 = vmul.f32 %v6698, 1.442695
        %v6756 = vpow.pop %v6755
        %v6757 = vmul.f32 %v6699, 1.442695
        %v6758 = vpow.pop %v6757
        %v6759 = vmul.f32 %v6700, 1.442695
        %v6760 = vpow.pop %v6759
        %v6761 = vmul.f32 %v6701, 1.442695
        %v6762 = vpow.pop %v6761
        %v6763 = vmul.f32 %v6702, 1.442695
        %v6764 = vpow.pop %v6763
        %v6765 = vmul.f32 %v6703, 1.442695
        %v6766 = vpow.pop %v6765
        %v6767 = vmul.f32 %v6704, 1.442695
        %v6768 = vpow.pop %v6767
        %v6769 = vsel %vm1944, %v6706, 0.0
        %6770 = vadd.xlane.f32.xlu0 %v6769
        %v6771 = vpop.xlane.xlu0 %6770
        %v6772 = vsel %vm1944, %v6708, 0.0
        %6773 = vadd.xlane.f32.xlu0 %v6772
        %v6774 = vpop.xlane.xlu0 %6773
        %v6775 = vsel %vm1944, %v6710, 0.0
        %6776 = vadd.xlane.f32.xlu0 %v6775
        %v6777 = vpop.xlane.xlu0 %6776
        %v6778 = vsel %vm1944, %v6712, 0.0
        %6779 = vadd.xlane.f32.xlu0 %v6778
        %v6780 = vpop.xlane.xlu0 %6779
        %v6781 = vsel %vm1944, %v6714, 0.0
        %6782 = vadd.xlane.f32.xlu0 %v6781
        %v6783 = vpop.xlane.xlu0 %6782
        %v6784 = vsel %vm1944, %v6716, 0.0
        %6785 = vadd.xlane.f32.xlu0 %v6784
        %v6786 = vpop.xlane.xlu0 %6785
        %v6787 = vsel %vm1944, %v6718, 0.0
        %6788 = vadd.xlane.f32.xlu0 %v6787
        %v6789 = vpop.xlane.xlu0 %6788
        %v6790 = vsel %vm1944, %v6720, 0.0
        %6791 = vadd.xlane.f32.xlu0 %v6790
        %v6792 = vpop.xlane.xlu0 %6791
        %v6793 = vsel %vm1944, %v6722, 0.0
        %6794 = vadd.xlane.f32.xlu0 %v6793
        %v6795 = vpop.xlane.xlu0 %6794
        %v6796 = vsel %vm1944, %v6724, 0.0
        %6797 = vadd.xlane.f32.xlu0 %v6796
        %v6798 = vpop.xlane.xlu0 %6797
        %v6799 = vsel %vm1944, %v6726, 0.0
        %6800 = vadd.xlane.f32.xlu0 %v6799
        %v6801 = vpop.xlane.xlu0 %6800
        %v6802 = vsel %vm1944, %v6728, 0.0
        %6803 = vadd.xlane.f32.xlu0 %v6802
        %v6804 = vpop.xlane.xlu0 %6803
        %v6805 = vsel %vm1944, %v6730, 0.0
        %6806 = vadd.xlane.f32.xlu0 %v6805
        %v6807 = vpop.xlane.xlu0 %6806
        %v6808 = vsel %vm1944, %v6732, 0.0
        %6809 = vadd.xlane.f32.xlu0 %v6808
        %v6810 = vpop.xlane.xlu0 %6809
        %v6811 = vsel %vm1944, %v6734, 0.0
        %6812 = vadd.xlane.f32.xlu0 %v6811
        %v6813 = vpop.xlane.xlu0 %6812
        %v6814 = vsel %vm1944, %v6736, 0.0
        %6815 = vadd.xlane.f32.xlu0 %v6814
        %v6816 = vpop.xlane.xlu0 %6815
        %v6817 = vsel %vm1944, %v6738, 0.0
        %6818 = vadd.xlane.f32.xlu0 %v6817
        %v6819 = vpop.xlane.xlu0 %6818
        %v6820 = vsel %vm1944, %v6740, 0.0
        %6821 = vadd.xlane.f32.xlu0 %v6820
        %v6822 = vpop.xlane.xlu0 %6821
        %v6823 = vsel %vm1944, %v6742, 0.0
        %6824 = vadd.xlane.f32.xlu0 %v6823
        %v6825 = vpop.xlane.xlu0 %6824
        %v6826 = vsel %vm1944, %v6744, 0.0
        %6827 = vadd.xlane.f32.xlu0 %v6826
        %v6828 = vpop.xlane.xlu0 %6827
        %v6829 = vsel %vm1944, %v6746, 0.0
        %6830 = vadd.xlane.f32.xlu0 %v6829
        %v6831 = vpop.xlane.xlu0 %6830
        %v6832 = vsel %vm1944, %v6748, 0.0
        %6833 = vadd.xlane.f32.xlu0 %v6832
        %v6834 = vpop.xlane.xlu0 %6833
        %v6835 = vsel %vm1944, %v6750, 0.0
        %6836 = vadd.xlane.f32.xlu0 %v6835
        %v6837 = vpop.xlane.xlu0 %6836
        %v6838 = vsel %vm1944, %v6752, 0.0
        %6839 = vadd.xlane.f32.xlu0 %v6838
        %v6840 = vpop.xlane.xlu0 %6839
        %v6841 = vsel %vm1944, %v6754, 0.0
        %6842 = vadd.xlane.f32.xlu0 %v6841
        %v6843 = vpop.xlane.xlu0 %6842
        %v6844 = vsel %vm1944, %v6756, 0.0
        %6845 = vadd.xlane.f32.xlu0 %v6844
        %v6846 = vpop.xlane.xlu0 %6845
        %v6847 = vsel %vm1944, %v6758, 0.0
        %6848 = vadd.xlane.f32.xlu0 %v6847
        %v6849 = vpop.xlane.xlu0 %6848
        %v6850 = vsel %vm1944, %v6760, 0.0
        %6851 = vadd.xlane.f32.xlu0 %v6850
        %v6852 = vpop.xlane.xlu0 %6851
        %v6853 = vsel %vm1944, %v6762, 0.0
        %6854 = vadd.xlane.f32.xlu0 %v6853
        %v6855 = vpop.xlane.xlu0 %6854
        %v6856 = vsel %vm1944, %v6764, 0.0
        %6857 = vadd.xlane.f32.xlu0 %v6856
        %v6858 = vpop.xlane.xlu0 %6857
        %v6859 = vsel %vm1944, %v6766, 0.0
        %6860 = vadd.xlane.f32.xlu0 %v6859
        %v6861 = vpop.xlane.xlu0 %6860
        %v6862 = vsel %vm1944, %v6768, 0.0
        %6863 = vadd.xlane.f32.xlu0 %v6862
        %v6864 = vpop.xlane.xlu0 %6863
        %v6865 = vrcp.pop %v6771
        %v6866 = vrcp.pop %v6774
        %v6867 = vrcp.pop %v6777
        %v6868 = vrcp.pop %v6780
        %v6869 = vrcp.pop %v6783
        %v6870 = vrcp.pop %v6786
        %v6871 = vrcp.pop %v6789
        %v6872 = vrcp.pop %v6792
        %v6873 = vrcp.pop %v6795
        %v6874 = vrcp.pop %v6798
        %v6875 = vrcp.pop %v6801
        %v6876 = vrcp.pop %v6804
        %v6877 = vrcp.pop %v6807
        %v6878 = vrcp.pop %v6810
        %v6879 = vrcp.pop %v6813
        %v6880 = vrcp.pop %v6816
        %v6881 = vrcp.pop %v6819
        %v6882 = vrcp.pop %v6822
        %v6883 = vrcp.pop %v6825
        %v6884 = vrcp.pop %v6828
        %v6885 = vrcp.pop %v6831
        %v6886 = vrcp.pop %v6834
        %v6887 = vrcp.pop %v6837
        %v6888 = vrcp.pop %v6840
        %v6889 = vrcp.pop %v6843
        %v6890 = vrcp.pop %v6846
        %v6891 = vrcp.pop %v6849
        %v6892 = vrcp.pop %v6852
        %v6893 = vrcp.pop %v6855
        %v6894 = vrcp.pop %v6858
        %v6895 = vrcp.pop %v6861
        %v6896 = vrcp.pop %v6864
        %v6897 = vmul.f32 %v6706, %v6865
        %v6898 = vmul.f32 %v6708, %v6866
        %v6899 = vmul.f32 %v6710, %v6867
        %v6900 = vmul.f32 %v6712, %v6868
        %v6901 = vmul.f32 %v6714, %v6869
        %v6902 = vmul.f32 %v6716, %v6870
        %v6903 = vmul.f32 %v6718, %v6871
        %v6904 = vmul.f32 %v6720, %v6872
        %v6905 = vmul.f32 %v6722, %v6873
        %v6906 = vmul.f32 %v6724, %v6874
        %v6907 = vmul.f32 %v6726, %v6875
        %v6908 = vmul.f32 %v6728, %v6876
        %v6909 = vmul.f32 %v6730, %v6877
        %v6910 = vmul.f32 %v6732, %v6878
        %v6911 = vmul.f32 %v6734, %v6879
        %v6912 = vmul.f32 %v6736, %v6880
        %v6913 = vmul.f32 %v6738, %v6881
        %v6914 = vmul.f32 %v6740, %v6882
        %v6915 = vmul.f32 %v6742, %v6883
        %v6916 = vmul.f32 %v6744, %v6884
        %v6917 = vmul.f32 %v6746, %v6885
        %v6918 = vmul.f32 %v6748, %v6886
        %v6919 = vmul.f32 %v6750, %v6887
        %v6920 = vmul.f32 %v6752, %v6888
        %v6921 = vmul.f32 %v6754, %v6889
        %v6922 = vmul.f32 %v6756, %v6890
        %v6923 = vmul.f32 %v6758, %v6891
        %v6924 = vmul.f32 %v6760, %v6892
        %v6925 = vmul.f32 %v6762, %v6893
        %v6926 = vmul.f32 %v6764, %v6894
        %v6927 = vmul.f32 %v6766, %v6895
        %v6928 = vmul.f32 %v6768, %v6896
        %v6929 = vpack.c.bf16 %v6898, %v6897
        %v6930 = vpack.c.bf16 %v6900, %v6899
        %v6931 = vpack.c.bf16 %v6902, %v6901
        %v6932 = vpack.c.bf16 %v6904, %v6903
        %v6933 = vpack.c.bf16 %v6906, %v6905
        %v6934 = vpack.c.bf16 %v6908, %v6907
        %v6935 = vpack.c.bf16 %v6910, %v6909
        %v6936 = vpack.c.bf16 %v6912, %v6911
        %v6937 = vpack.c.bf16 %v6914, %v6913
        %v6938 = vpack.c.bf16 %v6916, %v6915
        %v6939 = vpack.c.bf16 %v6918, %v6917
        %v6940 = vpack.c.bf16 %v6920, %v6919
        %v6941 = vpack.c.bf16 %v6922, %v6921
        %v6942 = vpack.c.bf16 %v6924, %v6923
        %v6943 = vpack.c.bf16 %v6926, %v6925
        %v6944 = vpack.c.bf16 %v6928, %v6927
        %6945 = vrot.lane.b32.xlu0 %v2313, 48
        %v6946 = vpop.permute.xlu0 %6945
        %6947 = vrot.lane.b32.xlu0 %v2314, 48
        %v6948 = vpop.permute.xlu0 %6947
        %6949 = vrot.lane.b32.xlu0 %v2315, 48
        %v6950 = vpop.permute.xlu0 %6949
        %6951 = vrot.lane.b32.xlu0 %v2316, 48
        %v6952 = vpop.permute.xlu0 %6951
        %v6958 = vsel %vm1944, %v6929, 0
        %v6961 = vsel %vm1944, %v6930, 0
        %v6964 = vsel %vm1944, %v6931, 0
        %v6967 = vsel %vm1944, %v6932, 0
        %6969 = vmatprep.subr.bf16.mxu0 0
        %6970 = vmatpush1.bf16.msra.mxu0 0
        %6971 = vmatprep.subr.bf16.mxu0 0
        %6972 = vmatpush1.bf16.msra.mxu0 0
        %6973 = vmatprep.subr.bf16.mxu0 0
        %6974 = vmatpush1.bf16.msra.mxu0 0
        %6975 = vmatprep.subr.bf16.mxu0 0
        %6976 = vmatpush1.bf16.msra.mxu0 0
        %6977 = vmatprep.subr.bf16.mxu0 0
        %6978 = vmatpush1.bf16.msra.mxu0 %v6952
        %6979 = vmatprep.subr.bf16.mxu0 0
        %6980 = vmatpush1.bf16.msra.mxu0 %v6950
        %6981 = vmatprep.subr.bf16.mxu0 0
        %6982 = vmatpush1.bf16.msra.mxu0 %v6948
        %6983 = vmatprep.subr.bf16.mxu0 0
        %6984 = vmatpush1.bf16.msra.mxu0 %v6946
        %6985 = vmatprep.subr.bf16.mxu0 0
        %6986 = vmatpush2.bf16.msra.mxu0 0
        %6987 = vmatprep.subr.bf16.mxu0 0
        %6988 = vmatpush2.bf16.msra.mxu0 0
        %6989 = vmatprep.subr.bf16.mxu0 0
        %6990 = vmatpush2.bf16.msra.mxu0 0
        %6991 = vmatprep.subr.bf16.mxu0 0
        %6992 = vmatpush2.bf16.msra.mxu0 0
        %6993 = vmatprep.subr.bf16.mxu0 0
        %6994 = vmatpush2.bf16.msra.mxu0 0
        %6995 = vmatprep.subr.bf16.mxu0 0
        %6996 = vmatpush2.bf16.msra.mxu0 0
        %6997 = vmatprep.subr.bf16.mxu0 0
        %6998 = vmatpush2.bf16.msra.mxu0 0
        %6999 = vmatprep.subr.bf16.mxu0 0
        %7000 = vmatpush2.bf16.msra.mxu0 0
        %7001 = vmatprep.mubr.bf16.mxu0 0
        %7002 = vmatmul.mubr.bf16.gmra.mxu0 %v6958
        %v7003 = vpop.f32.mrf.mxu0
        %v7004 = vadd.f32 0.0, %v7003
        %v7005 = vpop.f32.mrf.mxu0
        %v7006 = vpop.f32.mrf.mxu0
        %v7007 = vadd.f32 0.0, %v7006
        %v7008 = vpop.f32.mrf.mxu0
        %7009 = vmatprep.mubr.bf16.mxu0 0
        %7010 = vmatmul.mubr.bf16.gmra.mxu0 %v6961
        %v7011 = vpop.f32.mrf.mxu0
        %v7012 = vadd.f32 0.0, %v7011
        %v7013 = vpop.f32.mrf.mxu0
        %v7014 = vpop.f32.mrf.mxu0
        %v7015 = vadd.f32 0.0, %v7014
        %v7016 = vpop.f32.mrf.mxu0
        %7017 = vmatprep.mubr.bf16.mxu0 0
        %7018 = vmatmul.mubr.bf16.gmra.mxu0 %v6964
        %v7019 = vpop.f32.mrf.mxu0
        %v7020 = vadd.f32 0.0, %v7019
        %v7021 = vpop.f32.mrf.mxu0
        %v7022 = vpop.f32.mrf.mxu0
        %v7023 = vadd.f32 0.0, %v7022
        %v7024 = vpop.f32.mrf.mxu0
        %7025 = vmatprep.mubr.bf16.mxu0 0
        %7026 = vmatmul.mubr.bf16.gmra.mxu0 %v6967
        %v7027 = vpop.f32.mrf.mxu0
        %v7028 = vadd.f32 0.0, %v7027
        %v7029 = vpop.f32.mrf.mxu0
        %v7030 = vpop.f32.mrf.mxu0
        %v7031 = vadd.f32 0.0, %v7030
        %v7032 = vpop.f32.mrf.mxu0
        %7033 = vdwg.mxu0
        %7034 = vrot.lane.b32.xlu0 %v2317, 48
        %v7035 = vpop.permute.xlu0 %7034
        %7036 = vrot.lane.b32.xlu0 %v2318, 48
        %v7037 = vpop.permute.xlu0 %7036
        %7038 = vrot.lane.b32.xlu0 %v2319, 48
        %v7039 = vpop.permute.xlu0 %7038
        %7040 = vrot.lane.b32.xlu0 %v2320, 48
        %v7041 = vpop.permute.xlu0 %7040
        %v7047 = vsel %vm1944, %v6933, 0
        %v7050 = vsel %vm1944, %v6934, 0
        %v7053 = vsel %vm1944, %v6935, 0
        %v7056 = vsel %vm1944, %v6936, 0
        %7058 = vmatprep.subr.bf16.mxu0 0
        %7059 = vmatpush1.bf16.msra.mxu0 0
        %7060 = vmatprep.subr.bf16.mxu0 0
        %7061 = vmatpush1.bf16.msra.mxu0 0
        %7062 = vmatprep.subr.bf16.mxu0 0
        %7063 = vmatpush1.bf16.msra.mxu0 0
        %7064 = vmatprep.subr.bf16.mxu0 0
        %7065 = vmatpush1.bf16.msra.mxu0 0
        %7066 = vmatprep.subr.bf16.mxu0 0
        %7067 = vmatpush1.bf16.msra.mxu0 %v7041
        %7068 = vmatprep.subr.bf16.mxu0 0
        %7069 = vmatpush1.bf16.msra.mxu0 %v7039
        %7070 = vmatprep.subr.bf16.mxu0 0
        %7071 = vmatpush1.bf16.msra.mxu0 %v7037
        %7072 = vmatprep.subr.bf16.mxu0 0
        %7073 = vmatpush1.bf16.msra.mxu0 %v7035
        %7074 = vmatprep.subr.bf16.mxu0 0
        %7075 = vmatpush2.bf16.msra.mxu0 0
        %7076 = vmatprep.subr.bf16.mxu0 0
        %7077 = vmatpush2.bf16.msra.mxu0 0
        %7078 = vmatprep.subr.bf16.mxu0 0
        %7079 = vmatpush2.bf16.msra.mxu0 0
        %7080 = vmatprep.subr.bf16.mxu0 0
        %7081 = vmatpush2.bf16.msra.mxu0 0
        %7082 = vmatprep.subr.bf16.mxu0 0
        %7083 = vmatpush2.bf16.msra.mxu0 0
        %7084 = vmatprep.subr.bf16.mxu0 0
        %7085 = vmatpush2.bf16.msra.mxu0 0
        %7086 = vmatprep.subr.bf16.mxu0 0
        %7087 = vmatpush2.bf16.msra.mxu0 0
        %7088 = vmatprep.subr.bf16.mxu0 0
        %7089 = vmatpush2.bf16.msra.mxu0 0
        %7090 = vmatprep.mubr.bf16.mxu0 0
        %7091 = vmatmul.mubr.bf16.gmra.mxu0 %v7047
        %v7092 = vpop.f32.mrf.mxu0
        %v7093 = vadd.f32 0.0, %v7092
        %v7094 = vpop.f32.mrf.mxu0
        %v7095 = vpop.f32.mrf.mxu0
        %v7096 = vadd.f32 0.0, %v7095
        %v7097 = vpop.f32.mrf.mxu0
        %7098 = vmatprep.mubr.bf16.mxu0 0
        %7099 = vmatmul.mubr.bf16.gmra.mxu0 %v7050
        %v7100 = vpop.f32.mrf.mxu0
        %v7101 = vadd.f32 0.0, %v7100
        %v7102 = vpop.f32.mrf.mxu0
        %v7103 = vpop.f32.mrf.mxu0
        %v7104 = vadd.f32 0.0, %v7103
        %v7105 = vpop.f32.mrf.mxu0
        %7106 = vmatprep.mubr.bf16.mxu0 0
        %7107 = vmatmul.mubr.bf16.gmra.mxu0 %v7053
        %v7108 = vpop.f32.mrf.mxu0
        %v7109 = vadd.f32 0.0, %v7108
        %v7110 = vpop.f32.mrf.mxu0
        %v7111 = vpop.f32.mrf.mxu0
        %v7112 = vadd.f32 0.0, %v7111
        %v7113 = vpop.f32.mrf.mxu0
        %7114 = vmatprep.mubr.bf16.mxu0 0
        %7115 = vmatmul.mubr.bf16.gmra.mxu0 %v7056
        %v7116 = vpop.f32.mrf.mxu0
        %v7117 = vadd.f32 0.0, %v7116
        %v7118 = vpop.f32.mrf.mxu0
        %v7119 = vpop.f32.mrf.mxu0
        %v7120 = vadd.f32 0.0, %v7119
        %v7121 = vpop.f32.mrf.mxu0
        %7122 = vdwg.mxu0
        %7123 = vrot.lane.b32.xlu0 %v2321, 48
        %v7124 = vpop.permute.xlu0 %7123
        %7125 = vrot.lane.b32.xlu0 %v2322, 48
        %v7126 = vpop.permute.xlu0 %7125
        %7127 = vrot.lane.b32.xlu0 %v2323, 48
        %v7128 = vpop.permute.xlu0 %7127
        %7129 = vrot.lane.b32.xlu0 %v2324, 48
        %v7130 = vpop.permute.xlu0 %7129
        %v7136 = vsel %vm1944, %v6937, 0
        %v7139 = vsel %vm1944, %v6938, 0
        %v7142 = vsel %vm1944, %v6939, 0
        %v7145 = vsel %vm1944, %v6940, 0
        %7147 = vmatprep.subr.bf16.mxu0 0
        %7148 = vmatpush1.bf16.msra.mxu0 0
        %7149 = vmatprep.subr.bf16.mxu0 0
        %7150 = vmatpush1.bf16.msra.mxu0 0
        %7151 = vmatprep.subr.bf16.mxu0 0
        %7152 = vmatpush1.bf16.msra.mxu0 0
        %7153 = vmatprep.subr.bf16.mxu0 0
        %7154 = vmatpush1.bf16.msra.mxu0 0
        %7155 = vmatprep.subr.bf16.mxu0 0
        %7156 = vmatpush1.bf16.msra.mxu0 %v7130
        %7157 = vmatprep.subr.bf16.mxu0 0
        %7158 = vmatpush1.bf16.msra.mxu0 %v7128
        %7159 = vmatprep.subr.bf16.mxu0 0
        %7160 = vmatpush1.bf16.msra.mxu0 %v7126
        %7161 = vmatprep.subr.bf16.mxu0 0
        %7162 = vmatpush1.bf16.msra.mxu0 %v7124
        %7163 = vmatprep.subr.bf16.mxu0 0
        %7164 = vmatpush2.bf16.msra.mxu0 0
        %7165 = vmatprep.subr.bf16.mxu0 0
        %7166 = vmatpush2.bf16.msra.mxu0 0
        %7167 = vmatprep.subr.bf16.mxu0 0
        %7168 = vmatpush2.bf16.msra.mxu0 0
        %7169 = vmatprep.subr.bf16.mxu0 0
        %7170 = vmatpush2.bf16.msra.mxu0 0
        %7171 = vmatprep.subr.bf16.mxu0 0
        %7172 = vmatpush2.bf16.msra.mxu0 0
        %7173 = vmatprep.subr.bf16.mxu0 0
        %7174 = vmatpush2.bf16.msra.mxu0 0
        %7175 = vmatprep.subr.bf16.mxu0 0
        %7176 = vmatpush2.bf16.msra.mxu0 0
        %7177 = vmatprep.subr.bf16.mxu0 0
        %7178 = vmatpush2.bf16.msra.mxu0 0
        %7179 = vmatprep.mubr.bf16.mxu0 0
        %7180 = vmatmul.mubr.bf16.gmra.mxu0 %v7136
        %v7181 = vpop.f32.mrf.mxu0
        %v7182 = vadd.f32 0.0, %v7181
        %v7183 = vpop.f32.mrf.mxu0
        %v7184 = vpop.f32.mrf.mxu0
        %v7185 = vadd.f32 0.0, %v7184
        %v7186 = vpop.f32.mrf.mxu0
        %7187 = vmatprep.mubr.bf16.mxu0 0
        %7188 = vmatmul.mubr.bf16.gmra.mxu0 %v7139
        %v7189 = vpop.f32.mrf.mxu0
        %v7190 = vadd.f32 0.0, %v7189
        %v7191 = vpop.f32.mrf.mxu0
        %v7192 = vpop.f32.mrf.mxu0
        %v7193 = vadd.f32 0.0, %v7192
        %v7194 = vpop.f32.mrf.mxu0
        %7195 = vmatprep.mubr.bf16.mxu0 0
        %7196 = vmatmul.mubr.bf16.gmra.mxu0 %v7142
        %v7197 = vpop.f32.mrf.mxu0
        %v7198 = vadd.f32 0.0, %v7197
        %v7199 = vpop.f32.mrf.mxu0
        %v7200 = vpop.f32.mrf.mxu0
        %v7201 = vadd.f32 0.0, %v7200
        %v7202 = vpop.f32.mrf.mxu0
        %7203 = vmatprep.mubr.bf16.mxu0 0
        %7204 = vmatmul.mubr.bf16.gmra.mxu0 %v7145
        %v7205 = vpop.f32.mrf.mxu0
        %v7206 = vadd.f32 0.0, %v7205
        %v7207 = vpop.f32.mrf.mxu0
        %v7208 = vpop.f32.mrf.mxu0
        %v7209 = vadd.f32 0.0, %v7208
        %v7210 = vpop.f32.mrf.mxu0
        %7211 = vdwg.mxu0
        %7212 = vrot.lane.b32.xlu0 %v2325, 48
        %v7213 = vpop.permute.xlu0 %7212
        %7214 = vrot.lane.b32.xlu0 %v2326, 48
        %v7215 = vpop.permute.xlu0 %7214
        %7216 = vrot.lane.b32.xlu0 %v2327, 48
        %v7217 = vpop.permute.xlu0 %7216
        %7218 = vrot.lane.b32.xlu0 %v2328, 48
        %v7219 = vpop.permute.xlu0 %7218
        %v7225 = vsel %vm1944, %v6941, 0
        %v7228 = vsel %vm1944, %v6942, 0
        %v7231 = vsel %vm1944, %v6943, 0
        %v7234 = vsel %vm1944, %v6944, 0
        %7236 = vmatprep.subr.bf16.mxu0 0
        %7237 = vmatpush1.bf16.msra.mxu0 0
        %7238 = vmatprep.subr.bf16.mxu0 0
        %7239 = vmatpush1.bf16.msra.mxu0 0
        %7240 = vmatprep.subr.bf16.mxu0 0
        %7241 = vmatpush1.bf16.msra.mxu0 0
        %7242 = vmatprep.subr.bf16.mxu0 0
        %7243 = vmatpush1.bf16.msra.mxu0 0
        %7244 = vmatprep.subr.bf16.mxu0 0
        %7245 = vmatpush1.bf16.msra.mxu0 %v7219
        %7246 = vmatprep.subr.bf16.mxu0 0
        %7247 = vmatpush1.bf16.msra.mxu0 %v7217
        %7248 = vmatprep.subr.bf16.mxu0 0
        %7249 = vmatpush1.bf16.msra.mxu0 %v7215
        %7250 = vmatprep.subr.bf16.mxu0 0
        %7251 = vmatpush1.bf16.msra.mxu0 %v7213
        %7252 = vmatprep.subr.bf16.mxu0 0
        %7253 = vmatpush2.bf16.msra.mxu0 0
        %7254 = vmatprep.subr.bf16.mxu0 0
        %7255 = vmatpush2.bf16.msra.mxu0 0
        %7256 = vmatprep.subr.bf16.mxu0 0
        %7257 = vmatpush2.bf16.msra.mxu0 0
        %7258 = vmatprep.subr.bf16.mxu0 0
        %7259 = vmatpush2.bf16.msra.mxu0 0
        %7260 = vmatprep.subr.bf16.mxu0 0
        %7261 = vmatpush2.bf16.msra.mxu0 0
        %7262 = vmatprep.subr.bf16.mxu0 0
        %7263 = vmatpush2.bf16.msra.mxu0 0
        %7264 = vmatprep.subr.bf16.mxu0 0
        %7265 = vmatpush2.bf16.msra.mxu0 0
        %7266 = vmatprep.subr.bf16.mxu0 0
        %7267 = vmatpush2.bf16.msra.mxu0 0
        %7268 = vmatprep.mubr.bf16.mxu0 0
        %7269 = vmatmul.mubr.bf16.gmra.mxu0 %v7225
        %v7270 = vpop.f32.mrf.mxu0
        %v7271 = vadd.f32 0.0, %v7270
        %v7272 = vpop.f32.mrf.mxu0
        %v7273 = vpop.f32.mrf.mxu0
        %v7274 = vadd.f32 0.0, %v7273
        %v7275 = vpop.f32.mrf.mxu0
        %7276 = vmatprep.mubr.bf16.mxu0 0
        %7277 = vmatmul.mubr.bf16.gmra.mxu0 %v7228
        %v7278 = vpop.f32.mrf.mxu0
        %v7279 = vadd.f32 0.0, %v7278
        %v7280 = vpop.f32.mrf.mxu0
        %v7281 = vpop.f32.mrf.mxu0
        %v7282 = vadd.f32 0.0, %v7281
        %v7283 = vpop.f32.mrf.mxu0
        %7284 = vmatprep.mubr.bf16.mxu0 0
        %7285 = vmatmul.mubr.bf16.gmra.mxu0 %v7231
        %v7286 = vpop.f32.mrf.mxu0
        %v7287 = vadd.f32 0.0, %v7286
        %v7288 = vpop.f32.mrf.mxu0
        %v7289 = vpop.f32.mrf.mxu0
        %v7290 = vadd.f32 0.0, %v7289
        %v7291 = vpop.f32.mrf.mxu0
        %7292 = vmatprep.mubr.bf16.mxu0 0
        %7293 = vmatmul.mubr.bf16.gmra.mxu0 %v7234
        %v7294 = vpop.f32.mrf.mxu0
        %v7295 = vadd.f32 0.0, %v7294
        %v7296 = vpop.f32.mrf.mxu0
        %v7297 = vpop.f32.mrf.mxu0
        %v7298 = vadd.f32 0.0, %v7297
        %v7299 = vpop.f32.mrf.mxu0
        %7300 = vdwg.mxu0
        %v7301 = vpack.c.bf16 %v7007, %v7004
        %v7302 = vpack.c.bf16 %v7015, %v7012
        %v7303 = vpack.c.bf16 %v7023, %v7020
        %v7304 = vpack.c.bf16 %v7031, %v7028
        %v7305 = vpack.c.bf16 %v7096, %v7093
        %v7306 = vpack.c.bf16 %v7104, %v7101
        %v7307 = vpack.c.bf16 %v7112, %v7109
        %v7308 = vpack.c.bf16 %v7120, %v7117
        %v7309 = vpack.c.bf16 %v7185, %v7182
        %v7310 = vpack.c.bf16 %v7193, %v7190
        %v7311 = vpack.c.bf16 %v7201, %v7198
        %v7312 = vpack.c.bf16 %v7209, %v7206
        %v7313 = vpack.c.bf16 %v7274, %v7271
        %v7314 = vpack.c.bf16 %v7282, %v7279
        %v7315 = vpack.c.bf16 %v7290, %v7287
        %v7316 = vpack.c.bf16 %v7298, %v7295
        %v7333 = vunpack.c.l.b16 %v7301
        %v7334 = vunpack.c.h.b16 %v7301
        %v7335 = vunpack.c.l.b16 %v7302
        %v7336 = vunpack.c.h.b16 %v7302
        %v7337 = vunpack.c.l.b16 %v7303
        %v7338 = vunpack.c.h.b16 %v7303
        %v7339 = vunpack.c.l.b16 %v7304
        %v7340 = vunpack.c.h.b16 %v7304
        %v7341 = vunpack.c.l.b16 %v7305
        %v7342 = vunpack.c.h.b16 %v7305
        %v7343 = vunpack.c.l.b16 %v7306
        %v7344 = vunpack.c.h.b16 %v7306
        %v7345 = vunpack.c.l.b16 %v7307
        %v7346 = vunpack.c.h.b16 %v7307
        %v7347 = vunpack.c.l.b16 %v7308
        %v7348 = vunpack.c.h.b16 %v7308
        %v7349 = vunpack.c.l.b16 %v7309
        %v7350 = vunpack.c.h.b16 %v7309
        %v7351 = vunpack.c.l.b16 %v7310
        %v7352 = vunpack.c.h.b16 %v7310
        %v7353 = vunpack.c.l.b16 %v7311
        %v7354 = vunpack.c.h.b16 %v7311
        %v7355 = vunpack.c.l.b16 %v7312
        %v7356 = vunpack.c.h.b16 %v7312
        %v7357 = vunpack.c.l.b16 %v7313
        %v7358 = vunpack.c.h.b16 %v7313
        %v7359 = vunpack.c.l.b16 %v7314
        %v7360 = vunpack.c.h.b16 %v7314
        %v7361 = vunpack.c.l.b16 %v7315
        %v7362 = vunpack.c.h.b16 %v7315
        %v7363 = vunpack.c.l.b16 %v7316
        %v7364 = vunpack.c.h.b16 %v7316
        %v7365 = vpack.c.b16 %v7333, %v7333
        %v7366 = vpack.c.b16 %v7334, %v7334
        %v7367 = vpack.c.b16 %v7335, %v7335
        %v7368 = vpack.c.b16 %v7336, %v7336
        %v7369 = vpack.c.b16 %v7337, %v7337
        %v7370 = vpack.c.b16 %v7338, %v7338
        %v7371 = vpack.c.b16 %v7339, %v7339
        %v7372 = vpack.c.b16 %v7340, %v7340
        %v7373 = vpack.c.b16 %v7341, %v7341
        %v7374 = vpack.c.b16 %v7342, %v7342
        %v7375 = vpack.c.b16 %v7343, %v7343
        %v7376 = vpack.c.b16 %v7344, %v7344
        %v7377 = vpack.c.b16 %v7345, %v7345
        %v7378 = vpack.c.b16 %v7346, %v7346
        %v7379 = vpack.c.b16 %v7347, %v7347
        %v7380 = vpack.c.b16 %v7348, %v7348
        %v7381 = vpack.c.b16 %v7349, %v7349
        %v7382 = vpack.c.b16 %v7350, %v7350
        %v7383 = vpack.c.b16 %v7351, %v7351
        %v7384 = vpack.c.b16 %v7352, %v7352
        %v7385 = vpack.c.b16 %v7353, %v7353
        %v7386 = vpack.c.b16 %v7354, %v7354
        %v7387 = vpack.c.b16 %v7355, %v7355
        %v7388 = vpack.c.b16 %v7356, %v7356
        %v7389 = vpack.c.b16 %v7357, %v7357
        %v7390 = vpack.c.b16 %v7358, %v7358
        %v7391 = vpack.c.b16 %v7359, %v7359
        %v7392 = vpack.c.b16 %v7360, %v7360
        %v7393 = vpack.c.b16 %v7361, %v7361
        %v7394 = vpack.c.b16 %v7362, %v7362
        %v7395 = vpack.c.b16 %v7363, %v7363
        %v7396 = vpack.c.b16 %v7364, %v7364
        %7397 = vrot.lane.b32.xlu0 %v7365, 16
        %v7398 = vpop.permute.xlu0 %7397
        %7399 = vrot.lane.b32.xlu0 %v7366, 16
        %v7400 = vpop.permute.xlu0 %7399
        %7401 = vrot.lane.b32.xlu0 %v7367, 16
        %v7402 = vpop.permute.xlu0 %7401
        %7403 = vrot.lane.b32.xlu0 %v7368, 16
        %v7404 = vpop.permute.xlu0 %7403
        %7405 = vrot.lane.b32.xlu0 %v7369, 16
        %v7406 = vpop.permute.xlu0 %7405
        %7407 = vrot.lane.b32.xlu0 %v7370, 16
        %v7408 = vpop.permute.xlu0 %7407
        %7409 = vrot.lane.b32.xlu0 %v7371, 16
        %v7410 = vpop.permute.xlu0 %7409
        %7411 = vrot.lane.b32.xlu0 %v7372, 16
        %v7412 = vpop.permute.xlu0 %7411
        %7413 = vrot.lane.b32.xlu0 %v7373, 16
        %v7414 = vpop.permute.xlu0 %7413
        %7415 = vrot.lane.b32.xlu0 %v7374, 16
        %v7416 = vpop.permute.xlu0 %7415
        %7417 = vrot.lane.b32.xlu0 %v7375, 16
        %v7418 = vpop.permute.xlu0 %7417
        %7419 = vrot.lane.b32.xlu0 %v7376, 16
        %v7420 = vpop.permute.xlu0 %7419
        %7421 = vrot.lane.b32.xlu0 %v7377, 16
        %v7422 = vpop.permute.xlu0 %7421
        %7423 = vrot.lane.b32.xlu0 %v7378, 16
        %v7424 = vpop.permute.xlu0 %7423
        %7425 = vrot.lane.b32.xlu0 %v7379, 16
        %v7426 = vpop.permute.xlu0 %7425
        %7427 = vrot.lane.b32.xlu0 %v7380, 16
        %v7428 = vpop.permute.xlu0 %7427
        %7429 = vrot.lane.b32.xlu0 %v7381, 16
        %v7430 = vpop.permute.xlu0 %7429
        %7431 = vrot.lane.b32.xlu0 %v7382, 16
        %v7432 = vpop.permute.xlu0 %7431
        %7433 = vrot.lane.b32.xlu0 %v7383, 16
        %v7434 = vpop.permute.xlu0 %7433
        %7435 = vrot.lane.b32.xlu0 %v7384, 16
        %v7436 = vpop.permute.xlu0 %7435
        %7437 = vrot.lane.b32.xlu0 %v7385, 16
        %v7438 = vpop.permute.xlu0 %7437
        %7439 = vrot.lane.b32.xlu0 %v7386, 16
        %v7440 = vpop.permute.xlu0 %7439
        %7441 = vrot.lane.b32.xlu0 %v7387, 16
        %v7442 = vpop.permute.xlu0 %7441
        %7443 = vrot.lane.b32.xlu0 %v7388, 16
        %v7444 = vpop.permute.xlu0 %7443
        %7445 = vrot.lane.b32.xlu0 %v7389, 16
        %v7446 = vpop.permute.xlu0 %7445
        %7447 = vrot.lane.b32.xlu0 %v7390, 16
        %v7448 = vpop.permute.xlu0 %7447
        %7449 = vrot.lane.b32.xlu0 %v7391, 16
        %v7450 = vpop.permute.xlu0 %7449
        %7451 = vrot.lane.b32.xlu0 %v7392, 16
        %v7452 = vpop.permute.xlu0 %7451
        %7453 = vrot.lane.b32.xlu0 %v7393, 16
        %v7454 = vpop.permute.xlu0 %7453
        %7455 = vrot.lane.b32.xlu0 %v7394, 16
        %v7456 = vpop.permute.xlu0 %7455
        %7457 = vrot.lane.b32.xlu0 %v7395, 16
        %v7458 = vpop.permute.xlu0 %7457
        %7459 = vrot.lane.b32.xlu0 %v7396, 16
        %v7460 = vpop.permute.xlu0 %7459
        %vm7493 = vcmask 191616
        %7494 = vst.msk [vmem:[#allocation2] sm:$0xf] %vm7493, %v7398
        %7495 = vst.msk [vmem:[#allocation2 + $0x4] sm:$0xf] %vm7493, %v7400
        %7496 = vst.msk [vmem:[#allocation2 + $0x8] sm:$0xf] %vm7493, %v7402
        %7497 = vst.msk [vmem:[#allocation2 + $0xc] sm:$0xf] %vm7493, %v7404
        %7498 = vst.msk [vmem:[#allocation2 + $0x10] sm:$0xf] %vm7493, %v7406
        %7499 = vst.msk [vmem:[#allocation2 + $0x14] sm:$0xf] %vm7493, %v7408
        %7500 = vst.msk [vmem:[#allocation2 + $0x18] sm:$0xf] %vm7493, %v7410
        %7501 = vst.msk [vmem:[#allocation2 + $0x1c] sm:$0xf] %vm7493, %v7412
        %7502 = vst.msk [vmem:[#allocation2 + $0x20] sm:$0xf] %vm7493, %v7414
        %7503 = vst.msk [vmem:[#allocation2 + $0x24] sm:$0xf] %vm7493, %v7416
        %7504 = vst.msk [vmem:[#allocation2 + $0x28] sm:$0xf] %vm7493, %v7418
        %7505 = vst.msk [vmem:[#allocation2 + $0x2c] sm:$0xf] %vm7493, %v7420
        %7506 = vst.msk [vmem:[#allocation2 + $0x30] sm:$0xf] %vm7493, %v7422
        %7507 = vst.msk [vmem:[#allocation2 + $0x34] sm:$0xf] %vm7493, %v7424
        %7508 = vst.msk [vmem:[#allocation2 + $0x38] sm:$0xf] %vm7493, %v7426
        %7509 = vst.msk [vmem:[#allocation2 + $0x3c] sm:$0xf] %vm7493, %v7428
        %7510 = vst.msk [vmem:[#allocation2 + $0x40] sm:$0xf] %vm7493, %v7430
        %7511 = vst.msk [vmem:[#allocation2 + $0x44] sm:$0xf] %vm7493, %v7432
        %7512 = vst.msk [vmem:[#allocation2 + $0x48] sm:$0xf] %vm7493, %v7434
        %7513 = vst.msk [vmem:[#allocation2 + $0x4c] sm:$0xf] %vm7493, %v7436
        %7514 = vst.msk [vmem:[#allocation2 + $0x50] sm:$0xf] %vm7493, %v7438
        %7515 = vst.msk [vmem:[#allocation2 + $0x54] sm:$0xf] %vm7493, %v7440
        %7516 = vst.msk [vmem:[#allocation2 + $0x58] sm:$0xf] %vm7493, %v7442
        %7517 = vst.msk [vmem:[#allocation2 + $0x5c] sm:$0xf] %vm7493, %v7444
        %7518 = vst.msk [vmem:[#allocation2 + $0x60] sm:$0xf] %vm7493, %v7446
        %7519 = vst.msk [vmem:[#allocation2 + $0x64] sm:$0xf] %vm7493, %v7448
        %7520 = vst.msk [vmem:[#allocation2 + $0x68] sm:$0xf] %vm7493, %v7450
        %7521 = vst.msk [vmem:[#allocation2 + $0x6c] sm:$0xf] %vm7493, %v7452
        %7522 = vst.msk [vmem:[#allocation2 + $0x70] sm:$0xf] %vm7493, %v7454
        %7523 = vst.msk [vmem:[#allocation2 + $0x74] sm:$0xf] %vm7493, %v7456
        %7524 = vst.msk [vmem:[#allocation2 + $0x78] sm:$0xf] %vm7493, %v7458
        %7525 = vst.msk [vmem:[#allocation2 + $0x7c] sm:$0xf] %vm7493, %v7460
        %7526 = vrot.lane.b32.xlu0 %v657, 104
        %v7527 = vpop.permute.xlu0 %7526
        %7528 = vrot.lane.b32.xlu0 %v658, 104
        %v7529 = vpop.permute.xlu0 %7528
        %7530 = vrot.lane.b32.xlu0 %v659, 104
        %v7531 = vpop.permute.xlu0 %7530
        %7532 = vrot.lane.b32.xlu0 %v660, 104
        %v7533 = vpop.permute.xlu0 %7532
        %7534 = vrot.lane.b32.xlu0 %v661, 104
        %v7535 = vpop.permute.xlu0 %7534
        %7536 = vrot.lane.b32.xlu0 %v662, 104
        %v7537 = vpop.permute.xlu0 %7536
        %7538 = vrot.lane.b32.xlu0 %v663, 104
        %v7539 = vpop.permute.xlu0 %7538
        %7540 = vrot.lane.b32.xlu0 %v664, 104
        %v7541 = vpop.permute.xlu0 %7540
        %7542 = vrot.lane.b32.xlu0 %v665, 104
        %v7543 = vpop.permute.xlu0 %7542
        %7544 = vrot.lane.b32.xlu0 %v666, 104
        %v7545 = vpop.permute.xlu0 %7544
        %7546 = vrot.lane.b32.xlu0 %v667, 104
        %v7547 = vpop.permute.xlu0 %7546
        %7548 = vrot.lane.b32.xlu0 %v668, 104
        %v7549 = vpop.permute.xlu0 %7548
        %7550 = vrot.lane.b32.xlu0 %v669, 104
        %v7551 = vpop.permute.xlu0 %7550
        %7552 = vrot.lane.b32.xlu0 %v670, 104
        %v7553 = vpop.permute.xlu0 %7552
        %7554 = vrot.lane.b32.xlu0 %v671, 104
        %v7555 = vpop.permute.xlu0 %7554
        %7556 = vrot.lane.b32.xlu0 %v672, 104
        %v7557 = vpop.permute.xlu0 %7556
        %7558 = vrot.lane.b32.xlu0 %v673, 104
        %v7559 = vpop.permute.xlu0 %7558
        %7560 = vrot.lane.b32.xlu0 %v674, 104
        %v7561 = vpop.permute.xlu0 %7560
        %7562 = vrot.lane.b32.xlu0 %v675, 104
        %v7563 = vpop.permute.xlu0 %7562
        %7564 = vrot.lane.b32.xlu0 %v676, 104
        %v7565 = vpop.permute.xlu0 %7564
        %7566 = vrot.lane.b32.xlu0 %v677, 104
        %v7567 = vpop.permute.xlu0 %7566
        %7568 = vrot.lane.b32.xlu0 %v678, 104
        %v7569 = vpop.permute.xlu0 %7568
        %7570 = vrot.lane.b32.xlu0 %v679, 104
        %v7571 = vpop.permute.xlu0 %7570
        %7572 = vrot.lane.b32.xlu0 %v680, 104
        %v7573 = vpop.permute.xlu0 %7572
        %7574 = vrot.lane.b32.xlu0 %v681, 104
        %v7575 = vpop.permute.xlu0 %7574
        %7576 = vrot.lane.b32.xlu0 %v682, 104
        %v7577 = vpop.permute.xlu0 %7576
        %7578 = vrot.lane.b32.xlu0 %v683, 104
        %v7579 = vpop.permute.xlu0 %7578
        %7580 = vrot.lane.b32.xlu0 %v684, 104
        %v7581 = vpop.permute.xlu0 %7580
        %7582 = vrot.lane.b32.xlu0 %v685, 104
        %v7583 = vpop.permute.xlu0 %7582
        %7584 = vrot.lane.b32.xlu0 %v686, 104
        %v7585 = vpop.permute.xlu0 %7584
        %7586 = vrot.lane.b32.xlu0 %v687, 104
        %v7587 = vpop.permute.xlu0 %7586
        %7588 = vrot.lane.b32.xlu0 %v688, 104
        %v7589 = vpop.permute.xlu0 %7588
        %v7622 = vsel %vm689, %v7527, 0.0
        %7623 = vadd.xlane.f32.xlu0 %v7622
        %v7624 = vpop.xlane.xlu0 %7623
        %v7625 = vsel %vm689, %v7529, 0.0
        %7626 = vadd.xlane.f32.xlu0 %v7625
        %v7627 = vpop.xlane.xlu0 %7626
        %v7628 = vsel %vm689, %v7531, 0.0
        %7629 = vadd.xlane.f32.xlu0 %v7628
        %v7630 = vpop.xlane.xlu0 %7629
        %v7631 = vsel %vm689, %v7533, 0.0
        %7632 = vadd.xlane.f32.xlu0 %v7631
        %v7633 = vpop.xlane.xlu0 %7632
        %v7634 = vsel %vm689, %v7535, 0.0
        %7635 = vadd.xlane.f32.xlu0 %v7634
        %v7636 = vpop.xlane.xlu0 %7635
        %v7637 = vsel %vm689, %v7537, 0.0
        %7638 = vadd.xlane.f32.xlu0 %v7637
        %v7639 = vpop.xlane.xlu0 %7638
        %v7640 = vsel %vm689, %v7539, 0.0
        %7641 = vadd.xlane.f32.xlu0 %v7640
        %v7642 = vpop.xlane.xlu0 %7641
        %v7643 = vsel %vm689, %v7541, 0.0
        %7644 = vadd.xlane.f32.xlu0 %v7643
        %v7645 = vpop.xlane.xlu0 %7644
        %v7646 = vsel %vm689, %v7543, 0.0
        %7647 = vadd.xlane.f32.xlu0 %v7646
        %v7648 = vpop.xlane.xlu0 %7647
        %v7649 = vsel %vm689, %v7545, 0.0
        %7650 = vadd.xlane.f32.xlu0 %v7649
        %v7651 = vpop.xlane.xlu0 %7650
        %v7652 = vsel %vm689, %v7547, 0.0
        %7653 = vadd.xlane.f32.xlu0 %v7652
        %v7654 = vpop.xlane.xlu0 %7653
        %v7655 = vsel %vm689, %v7549, 0.0
        %7656 = vadd.xlane.f32.xlu0 %v7655
        %v7657 = vpop.xlane.xlu0 %7656
        %v7658 = vsel %vm689, %v7551, 0.0
        %7659 = vadd.xlane.f32.xlu0 %v7658
        %v7660 = vpop.xlane.xlu0 %7659
        %v7661 = vsel %vm689, %v7553, 0.0
        %7662 = vadd.xlane.f32.xlu0 %v7661
        %v7663 = vpop.xlane.xlu0 %7662
        %v7664 = vsel %vm689, %v7555, 0.0
        %7665 = vadd.xlane.f32.xlu0 %v7664
        %v7666 = vpop.xlane.xlu0 %7665
        %v7667 = vsel %vm689, %v7557, 0.0
        %7668 = vadd.xlane.f32.xlu0 %v7667
        %v7669 = vpop.xlane.xlu0 %7668
        %v7670 = vsel %vm689, %v7559, 0.0
        %7671 = vadd.xlane.f32.xlu0 %v7670
        %v7672 = vpop.xlane.xlu0 %7671
        %v7673 = vsel %vm689, %v7561, 0.0
        %7674 = vadd.xlane.f32.xlu0 %v7673
        %v7675 = vpop.xlane.xlu0 %7674
        %v7676 = vsel %vm689, %v7563, 0.0
        %7677 = vadd.xlane.f32.xlu0 %v7676
        %v7678 = vpop.xlane.xlu0 %7677
        %v7679 = vsel %vm689, %v7565, 0.0
        %7680 = vadd.xlane.f32.xlu0 %v7679
        %v7681 = vpop.xlane.xlu0 %7680
        %v7682 = vsel %vm689, %v7567, 0.0
        %7683 = vadd.xlane.f32.xlu0 %v7682
        %v7684 = vpop.xlane.xlu0 %7683
        %v7685 = vsel %vm689, %v7569, 0.0
        %7686 = vadd.xlane.f32.xlu0 %v7685
        %v7687 = vpop.xlane.xlu0 %7686
        %v7688 = vsel %vm689, %v7571, 0.0
        %7689 = vadd.xlane.f32.xlu0 %v7688
        %v7690 = vpop.xlane.xlu0 %7689
        %v7691 = vsel %vm689, %v7573, 0.0
        %7692 = vadd.xlane.f32.xlu0 %v7691
        %v7693 = vpop.xlane.xlu0 %7692
        %v7694 = vsel %vm689, %v7575, 0.0
        %7695 = vadd.xlane.f32.xlu0 %v7694
        %v7696 = vpop.xlane.xlu0 %7695
        %v7697 = vsel %vm689, %v7577, 0.0
        %7698 = vadd.xlane.f32.xlu0 %v7697
        %v7699 = vpop.xlane.xlu0 %7698
        %v7700 = vsel %vm689, %v7579, 0.0
        %7701 = vadd.xlane.f32.xlu0 %v7700
        %v7702 = vpop.xlane.xlu0 %7701
        %v7703 = vsel %vm689, %v7581, 0.0
        %7704 = vadd.xlane.f32.xlu0 %v7703
        %v7705 = vpop.xlane.xlu0 %7704
        %v7706 = vsel %vm689, %v7583, 0.0
        %7707 = vadd.xlane.f32.xlu0 %v7706
        %v7708 = vpop.xlane.xlu0 %7707
        %v7709 = vsel %vm689, %v7585, 0.0
        %7710 = vadd.xlane.f32.xlu0 %v7709
        %v7711 = vpop.xlane.xlu0 %7710
        %v7712 = vsel %vm689, %v7587, 0.0
        %7713 = vadd.xlane.f32.xlu0 %v7712
        %v7714 = vpop.xlane.xlu0 %7713
        %v7715 = vsel %vm689, %v7589, 0.0
        %7716 = vadd.xlane.f32.xlu0 %v7715
        %v7717 = vpop.xlane.xlu0 %7716
        %v7718 = vmax.f32 %v7624, 1e-24
        %v7719 = vmax.f32 %v7627, 1e-24
        %v7720 = vmax.f32 %v7630, 1e-24
        %v7721 = vmax.f32 %v7633, 1e-24
        %v7722 = vmax.f32 %v7636, 1e-24
        %v7723 = vmax.f32 %v7639, 1e-24
        %v7724 = vmax.f32 %v7642, 1e-24
        %v7725 = vmax.f32 %v7645, 1e-24
        %v7726 = vmax.f32 %v7648, 1e-24
        %v7727 = vmax.f32 %v7651, 1e-24
        %v7728 = vmax.f32 %v7654, 1e-24
        %v7729 = vmax.f32 %v7657, 1e-24
        %v7730 = vmax.f32 %v7660, 1e-24
        %v7731 = vmax.f32 %v7663, 1e-24
        %v7732 = vmax.f32 %v7666, 1e-24
        %v7733 = vmax.f32 %v7669, 1e-24
        %v7734 = vmax.f32 %v7672, 1e-24
        %v7735 = vmax.f32 %v7675, 1e-24
        %v7736 = vmax.f32 %v7678, 1e-24
        %v7737 = vmax.f32 %v7681, 1e-24
        %v7738 = vmax.f32 %v7684, 1e-24
        %v7739 = vmax.f32 %v7687, 1e-24
        %v7740 = vmax.f32 %v7690, 1e-24
        %v7741 = vmax.f32 %v7693, 1e-24
        %v7742 = vmax.f32 %v7696, 1e-24
        %v7743 = vmax.f32 %v7699, 1e-24
        %v7744 = vmax.f32 %v7702, 1e-24
        %v7745 = vmax.f32 %v7705, 1e-24
        %v7746 = vmax.f32 %v7708, 1e-24
        %v7747 = vmax.f32 %v7711, 1e-24
        %v7748 = vmax.f32 %v7714, 1e-24
        %v7749 = vmax.f32 %v7717, 1e-24
        %v7750 = vrsqrt.pop %v7718
        %v7751 = vrsqrt.pop %v7719
        %v7752 = vrsqrt.pop %v7720
        %v7753 = vrsqrt.pop %v7721
        %v7754 = vrsqrt.pop %v7722
        %v7755 = vrsqrt.pop %v7723
        %v7756 = vrsqrt.pop %v7724
        %v7757 = vrsqrt.pop %v7725
        %v7758 = vrsqrt.pop %v7726
        %v7759 = vrsqrt.pop %v7727
        %v7760 = vrsqrt.pop %v7728
        %v7761 = vrsqrt.pop %v7729
        %v7762 = vrsqrt.pop %v7730
        %v7763 = vrsqrt.pop %v7731
        %v7764 = vrsqrt.pop %v7732
        %v7765 = vrsqrt.pop %v7733
        %v7766 = vrsqrt.pop %v7734
        %v7767 = vrsqrt.pop %v7735
        %v7768 = vrsqrt.pop %v7736
        %v7769 = vrsqrt.pop %v7737
        %v7770 = vrsqrt.pop %v7738
        %v7771 = vrsqrt.pop %v7739
        %v7772 = vrsqrt.pop %v7740
        %v7773 = vrsqrt.pop %v7741
        %v7774 = vrsqrt.pop %v7742
        %v7775 = vrsqrt.pop %v7743
        %v7776 = vrsqrt.pop %v7744
        %v7777 = vrsqrt.pop %v7745
        %v7778 = vrsqrt.pop %v7746
        %v7779 = vrsqrt.pop %v7747
        %v7780 = vrsqrt.pop %v7748
        %v7781 = vrsqrt.pop %v7749
        %7782 = vrot.lane.b32.xlu0 %v657, 72
        %v7783 = vpop.permute.xlu0 %7782
        %7784 = vrot.lane.b32.xlu0 %v658, 72
        %v7785 = vpop.permute.xlu0 %7784
        %7786 = vrot.lane.b32.xlu0 %v659, 72
        %v7787 = vpop.permute.xlu0 %7786
        %7788 = vrot.lane.b32.xlu0 %v660, 72
        %v7789 = vpop.permute.xlu0 %7788
        %7790 = vrot.lane.b32.xlu0 %v661, 72
        %v7791 = vpop.permute.xlu0 %7790
        %7792 = vrot.lane.b32.xlu0 %v662, 72
        %v7793 = vpop.permute.xlu0 %7792
        %7794 = vrot.lane.b32.xlu0 %v663, 72
        %v7795 = vpop.permute.xlu0 %7794
        %7796 = vrot.lane.b32.xlu0 %v664, 72
        %v7797 = vpop.permute.xlu0 %7796
        %7798 = vrot.lane.b32.xlu0 %v665, 72
        %v7799 = vpop.permute.xlu0 %7798
        %7800 = vrot.lane.b32.xlu0 %v666, 72
        %v7801 = vpop.permute.xlu0 %7800
        %7802 = vrot.lane.b32.xlu0 %v667, 72
        %v7803 = vpop.permute.xlu0 %7802
        %7804 = vrot.lane.b32.xlu0 %v668, 72
        %v7805 = vpop.permute.xlu0 %7804
        %7806 = vrot.lane.b32.xlu0 %v669, 72
        %v7807 = vpop.permute.xlu0 %7806
        %7808 = vrot.lane.b32.xlu0 %v670, 72
        %v7809 = vpop.permute.xlu0 %7808
        %7810 = vrot.lane.b32.xlu0 %v671, 72
        %v7811 = vpop.permute.xlu0 %7810
        %7812 = vrot.lane.b32.xlu0 %v672, 72
        %v7813 = vpop.permute.xlu0 %7812
        %7814 = vrot.lane.b32.xlu0 %v673, 72
        %v7815 = vpop.permute.xlu0 %7814
        %7816 = vrot.lane.b32.xlu0 %v674, 72
        %v7817 = vpop.permute.xlu0 %7816
        %7818 = vrot.lane.b32.xlu0 %v675, 72
        %v7819 = vpop.permute.xlu0 %7818
        %7820 = vrot.lane.b32.xlu0 %v676, 72
        %v7821 = vpop.permute.xlu0 %7820
        %7822 = vrot.lane.b32.xlu0 %v677, 72
        %v7823 = vpop.permute.xlu0 %7822
        %7824 = vrot.lane.b32.xlu0 %v678, 72
        %v7825 = vpop.permute.xlu0 %7824
        %7826 = vrot.lane.b32.xlu0 %v679, 72
        %v7827 = vpop.permute.xlu0 %7826
        %7828 = vrot.lane.b32.xlu0 %v680, 72
        %v7829 = vpop.permute.xlu0 %7828
        %7830 = vrot.lane.b32.xlu0 %v681, 72
        %v7831 = vpop.permute.xlu0 %7830
        %7832 = vrot.lane.b32.xlu0 %v682, 72
        %v7833 = vpop.permute.xlu0 %7832
        %7834 = vrot.lane.b32.xlu0 %v683, 72
        %v7835 = vpop.permute.xlu0 %7834
        %7836 = vrot.lane.b32.xlu0 %v684, 72
        %v7837 = vpop.permute.xlu0 %7836
        %7838 = vrot.lane.b32.xlu0 %v685, 72
        %v7839 = vpop.permute.xlu0 %7838
        %7840 = vrot.lane.b32.xlu0 %v686, 72
        %v7841 = vpop.permute.xlu0 %7840
        %7842 = vrot.lane.b32.xlu0 %v687, 72
        %v7843 = vpop.permute.xlu0 %7842
        %7844 = vrot.lane.b32.xlu0 %v688, 72
        %v7845 = vpop.permute.xlu0 %7844
        %v7878 = vsel %vm689, %v7783, 0.0
        %7879 = vadd.xlane.f32.xlu0 %v7878
        %v7880 = vpop.xlane.xlu0 %7879
        %v7881 = vsel %vm689, %v7785, 0.0
        %7882 = vadd.xlane.f32.xlu0 %v7881
        %v7883 = vpop.xlane.xlu0 %7882
        %v7884 = vsel %vm689, %v7787, 0.0
        %7885 = vadd.xlane.f32.xlu0 %v7884
        %v7886 = vpop.xlane.xlu0 %7885
        %v7887 = vsel %vm689, %v7789, 0.0
        %7888 = vadd.xlane.f32.xlu0 %v7887
        %v7889 = vpop.xlane.xlu0 %7888
        %v7890 = vsel %vm689, %v7791, 0.0
        %7891 = vadd.xlane.f32.xlu0 %v7890
        %v7892 = vpop.xlane.xlu0 %7891
        %v7893 = vsel %vm689, %v7793, 0.0
        %7894 = vadd.xlane.f32.xlu0 %v7893
        %v7895 = vpop.xlane.xlu0 %7894
        %v7896 = vsel %vm689, %v7795, 0.0
        %7897 = vadd.xlane.f32.xlu0 %v7896
        %v7898 = vpop.xlane.xlu0 %7897
        %v7899 = vsel %vm689, %v7797, 0.0
        %7900 = vadd.xlane.f32.xlu0 %v7899
        %v7901 = vpop.xlane.xlu0 %7900
        %v7902 = vsel %vm689, %v7799, 0.0
        %7903 = vadd.xlane.f32.xlu0 %v7902
        %v7904 = vpop.xlane.xlu0 %7903
        %v7905 = vsel %vm689, %v7801, 0.0
        %7906 = vadd.xlane.f32.xlu0 %v7905
        %v7907 = vpop.xlane.xlu0 %7906
        %v7908 = vsel %vm689, %v7803, 0.0
        %7909 = vadd.xlane.f32.xlu0 %v7908
        %v7910 = vpop.xlane.xlu0 %7909
        %v7911 = vsel %vm689, %v7805, 0.0
        %7912 = vadd.xlane.f32.xlu0 %v7911
        %v7913 = vpop.xlane.xlu0 %7912
        %v7914 = vsel %vm689, %v7807, 0.0
        %7915 = vadd.xlane.f32.xlu0 %v7914
        %v7916 = vpop.xlane.xlu0 %7915
        %v7917 = vsel %vm689, %v7809, 0.0
        %7918 = vadd.xlane.f32.xlu0 %v7917
        %v7919 = vpop.xlane.xlu0 %7918
        %v7920 = vsel %vm689, %v7811, 0.0
        %7921 = vadd.xlane.f32.xlu0 %v7920
        %v7922 = vpop.xlane.xlu0 %7921
        %v7923 = vsel %vm689, %v7813, 0.0
        %7924 = vadd.xlane.f32.xlu0 %v7923
        %v7925 = vpop.xlane.xlu0 %7924
        %v7926 = vsel %vm689, %v7815, 0.0
        %7927 = vadd.xlane.f32.xlu0 %v7926
        %v7928 = vpop.xlane.xlu0 %7927
        %v7929 = vsel %vm689, %v7817, 0.0
        %7930 = vadd.xlane.f32.xlu0 %v7929
        %v7931 = vpop.xlane.xlu0 %7930
        %v7932 = vsel %vm689, %v7819, 0.0
        %7933 = vadd.xlane.f32.xlu0 %v7932
        %v7934 = vpop.xlane.xlu0 %7933
        %v7935 = vsel %vm689, %v7821, 0.0
        %7936 = vadd.xlane.f32.xlu0 %v7935
        %v7937 = vpop.xlane.xlu0 %7936
        %v7938 = vsel %vm689, %v7823, 0.0
        %7939 = vadd.xlane.f32.xlu0 %v7938
        %v7940 = vpop.xlane.xlu0 %7939
        %v7941 = vsel %vm689, %v7825, 0.0
        %7942 = vadd.xlane.f32.xlu0 %v7941
        %v7943 = vpop.xlane.xlu0 %7942
        %v7944 = vsel %vm689, %v7827, 0.0
        %7945 = vadd.xlane.f32.xlu0 %v7944
        %v7946 = vpop.xlane.xlu0 %7945
        %v7947 = vsel %vm689, %v7829, 0.0
        %7948 = vadd.xlane.f32.xlu0 %v7947
        %v7949 = vpop.xlane.xlu0 %7948
        %v7950 = vsel %vm689, %v7831, 0.0
        %7951 = vadd.xlane.f32.xlu0 %v7950
        %v7952 = vpop.xlane.xlu0 %7951
        %v7953 = vsel %vm689, %v7833, 0.0
        %7954 = vadd.xlane.f32.xlu0 %v7953
        %v7955 = vpop.xlane.xlu0 %7954
        %v7956 = vsel %vm689, %v7835, 0.0
        %7957 = vadd.xlane.f32.xlu0 %v7956
        %v7958 = vpop.xlane.xlu0 %7957
        %v7959 = vsel %vm689, %v7837, 0.0
        %7960 = vadd.xlane.f32.xlu0 %v7959
        %v7961 = vpop.xlane.xlu0 %7960
        %v7962 = vsel %vm689, %v7839, 0.0
        %7963 = vadd.xlane.f32.xlu0 %v7962
        %v7964 = vpop.xlane.xlu0 %7963
        %v7965 = vsel %vm689, %v7841, 0.0
        %7966 = vadd.xlane.f32.xlu0 %v7965
        %v7967 = vpop.xlane.xlu0 %7966
        %v7968 = vsel %vm689, %v7843, 0.0
        %7969 = vadd.xlane.f32.xlu0 %v7968
        %v7970 = vpop.xlane.xlu0 %7969
        %v7971 = vsel %vm689, %v7845, 0.0
        %7972 = vadd.xlane.f32.xlu0 %v7971
        %v7973 = vpop.xlane.xlu0 %7972
        %v7974 = vmax.f32 %v7880, 1e-24
        %v7975 = vmax.f32 %v7883, 1e-24
        %v7976 = vmax.f32 %v7886, 1e-24
        %v7977 = vmax.f32 %v7889, 1e-24
        %v7978 = vmax.f32 %v7892, 1e-24
        %v7979 = vmax.f32 %v7895, 1e-24
        %v7980 = vmax.f32 %v7898, 1e-24
        %v7981 = vmax.f32 %v7901, 1e-24
        %v7982 = vmax.f32 %v7904, 1e-24
        %v7983 = vmax.f32 %v7907, 1e-24
        %v7984 = vmax.f32 %v7910, 1e-24
        %v7985 = vmax.f32 %v7913, 1e-24
        %v7986 = vmax.f32 %v7916, 1e-24
        %v7987 = vmax.f32 %v7919, 1e-24
        %v7988 = vmax.f32 %v7922, 1e-24
        %v7989 = vmax.f32 %v7925, 1e-24
        %v7990 = vmax.f32 %v7928, 1e-24
        %v7991 = vmax.f32 %v7931, 1e-24
        %v7992 = vmax.f32 %v7934, 1e-24
        %v7993 = vmax.f32 %v7937, 1e-24
        %v7994 = vmax.f32 %v7940, 1e-24
        %v7995 = vmax.f32 %v7943, 1e-24
        %v7996 = vmax.f32 %v7946, 1e-24
        %v7997 = vmax.f32 %v7949, 1e-24
        %v7998 = vmax.f32 %v7952, 1e-24
        %v7999 = vmax.f32 %v7955, 1e-24
        %v8000 = vmax.f32 %v7958, 1e-24
        %v8001 = vmax.f32 %v7961, 1e-24
        %v8002 = vmax.f32 %v7964, 1e-24
        %v8003 = vmax.f32 %v7967, 1e-24
        %v8004 = vmax.f32 %v7970, 1e-24
        %v8005 = vmax.f32 %v7973, 1e-24
        %v8006 = vrsqrt.pop %v7974
        %v8007 = vrsqrt.pop %v7975
        %v8008 = vrsqrt.pop %v7976
        %v8009 = vrsqrt.pop %v7977
        %v8010 = vrsqrt.pop %v7978
        %v8011 = vrsqrt.pop %v7979
        %v8012 = vrsqrt.pop %v7980
        %v8013 = vrsqrt.pop %v7981
        %v8014 = vrsqrt.pop %v7982
        %v8015 = vrsqrt.pop %v7983
        %v8016 = vrsqrt.pop %v7984
        %v8017 = vrsqrt.pop %v7985
        %v8018 = vrsqrt.pop %v7986
        %v8019 = vrsqrt.pop %v7987
        %v8020 = vrsqrt.pop %v7988
        %v8021 = vrsqrt.pop %v7989
        %v8022 = vrsqrt.pop %v7990
        %v8023 = vrsqrt.pop %v7991
        %v8024 = vrsqrt.pop %v7992
        %v8025 = vrsqrt.pop %v7993
        %v8026 = vrsqrt.pop %v7994
        %v8027 = vrsqrt.pop %v7995
        %v8028 = vrsqrt.pop %v7996
        %v8029 = vrsqrt.pop %v7997
        %v8030 = vrsqrt.pop %v7998
        %v8031 = vrsqrt.pop %v7999
        %v8032 = vrsqrt.pop %v8000
        %v8033 = vrsqrt.pop %v8001
        %v8034 = vrsqrt.pop %v8002
        %v8035 = vrsqrt.pop %v8003
        %v8036 = vrsqrt.pop %v8004
        %v8037 = vrsqrt.pop %v8005
        %s8038 = sld [smem:[#allocation6 + $0x3]]
        %v8039 = vstv %s8038
        %v8040 = vmul.f32 %v7750, %v8039
        %v8041 = vmul.f32 %v7751, %v8039
        %v8042 = vmul.f32 %v7752, %v8039
        %v8043 = vmul.f32 %v7753, %v8039
        %v8044 = vmul.f32 %v7754, %v8039
        %v8045 = vmul.f32 %v7755, %v8039
        %v8046 = vmul.f32 %v7756, %v8039
        %v8047 = vmul.f32 %v7757, %v8039
        %v8048 = vmul.f32 %v7758, %v8039
        %v8049 = vmul.f32 %v7759, %v8039
        %v8050 = vmul.f32 %v7760, %v8039
        %v8051 = vmul.f32 %v7761, %v8039
        %v8052 = vmul.f32 %v7762, %v8039
        %v8053 = vmul.f32 %v7763, %v8039
        %v8054 = vmul.f32 %v7764, %v8039
        %v8055 = vmul.f32 %v7765, %v8039
        %v8056 = vmul.f32 %v7766, %v8039
        %v8057 = vmul.f32 %v7767, %v8039
        %v8058 = vmul.f32 %v7768, %v8039
        %v8059 = vmul.f32 %v7769, %v8039
        %v8060 = vmul.f32 %v7770, %v8039
        %v8061 = vmul.f32 %v7771, %v8039
        %v8062 = vmul.f32 %v7772, %v8039
        %v8063 = vmul.f32 %v7773, %v8039
        %v8064 = vmul.f32 %v7774, %v8039
        %v8065 = vmul.f32 %v7775, %v8039
        %v8066 = vmul.f32 %v7776, %v8039
        %v8067 = vmul.f32 %v7777, %v8039
        %v8068 = vmul.f32 %v7778, %v8039
        %v8069 = vmul.f32 %v7779, %v8039
        %v8070 = vmul.f32 %v7780, %v8039
        %v8071 = vmul.f32 %v7781, %v8039
        %v8072 = vmul.f32 %v531, %v8040
        %v8073 = vmul.f32 %v534, %v8041
        %v8074 = vmul.f32 %v539, %v8042
        %v8075 = vmul.f32 %v542, %v8043
        %v8076 = vmul.f32 %v547, %v8044
        %v8077 = vmul.f32 %v550, %v8045
        %v8078 = vmul.f32 %v555, %v8046
        %v8079 = vmul.f32 %v558, %v8047
        %v8080 = vmul.f32 %v563, %v8048
        %v8081 = vmul.f32 %v566, %v8049
        %v8082 = vmul.f32 %v571, %v8050
        %v8083 = vmul.f32 %v574, %v8051
        %v8084 = vmul.f32 %v579, %v8052
        %v8085 = vmul.f32 %v582, %v8053
        %v8086 = vmul.f32 %v587, %v8054
        %v8087 = vmul.f32 %v590, %v8055
        %v8088 = vmul.f32 %v595, %v8056
        %v8089 = vmul.f32 %v598, %v8057
        %v8090 = vmul.f32 %v603, %v8058
        %v8091 = vmul.f32 %v606, %v8059
        %v8092 = vmul.f32 %v611, %v8060
        %v8093 = vmul.f32 %v614, %v8061
        %v8094 = vmul.f32 %v619, %v8062
        %v8095 = vmul.f32 %v622, %v8063
        %v8096 = vmul.f32 %v627, %v8064
        %v8097 = vmul.f32 %v630, %v8065
        %v8098 = vmul.f32 %v635, %v8066
        %v8099 = vmul.f32 %v638, %v8067
        %v8100 = vmul.f32 %v643, %v8068
        %v8101 = vmul.f32 %v646, %v8069
        %v8102 = vmul.f32 %v651, %v8070
        %v8103 = vmul.f32 %v654, %v8071
        %v8104 = vmul.f32 %v531, %v8006
        %v8105 = vmul.f32 %v534, %v8007
        %v8106 = vmul.f32 %v539, %v8008
        %v8107 = vmul.f32 %v542, %v8009
        %v8108 = vmul.f32 %v547, %v8010
        %v8109 = vmul.f32 %v550, %v8011
        %v8110 = vmul.f32 %v555, %v8012
        %v8111 = vmul.f32 %v558, %v8013
        %v8112 = vmul.f32 %v563, %v8014
        %v8113 = vmul.f32 %v566, %v8015
        %v8114 = vmul.f32 %v571, %v8016
        %v8115 = vmul.f32 %v574, %v8017
        %v8116 = vmul.f32 %v579, %v8018
        %v8117 = vmul.f32 %v582, %v8019
        %v8118 = vmul.f32 %v587, %v8020
        %v8119 = vmul.f32 %v590, %v8021
        %v8120 = vmul.f32 %v595, %v8022
        %v8121 = vmul.f32 %v598, %v8023
        %v8122 = vmul.f32 %v603, %v8024
        %v8123 = vmul.f32 %v606, %v8025
        %v8124 = vmul.f32 %v611, %v8026
        %v8125 = vmul.f32 %v614, %v8027
        %v8126 = vmul.f32 %v619, %v8028
        %v8127 = vmul.f32 %v622, %v8029
        %v8128 = vmul.f32 %v627, %v8030
        %v8129 = vmul.f32 %v630, %v8031
        %v8130 = vmul.f32 %v635, %v8032
        %v8131 = vmul.f32 %v638, %v8033
        %v8132 = vmul.f32 %v643, %v8034
        %v8133 = vmul.f32 %v646, %v8035
        %v8134 = vmul.f32 %v651, %v8036
        %v8135 = vmul.f32 %v654, %v8037
        %s8136 = scalar_lea.vmem [#allocation3], 768
        %v8137 = vld [vmem:[%s8136] sm:$0xff]
        %v8138 = vld [vmem:[%s8136 + $0x8] sm:$0xff]
        %v8139 = vld [vmem:[%s8136 + $0x10] sm:$0xff]
        %v8140 = vld [vmem:[%s8136 + $0x18] sm:$0xff]
        %v8141 = vld [vmem:[%s8136 + $0x20] sm:$0xff]
        %v8142 = vld [vmem:[%s8136 + $0x28] sm:$0xff]
        %v8143 = vld [vmem:[%s8136 + $0x30] sm:$0xff]
        %v8144 = vld [vmem:[%s8136 + $0x38] sm:$0xff]
        %v8145 = vld [vmem:[%s8136 + $0x40] sm:$0xff]
        %v8146 = vld [vmem:[%s8136 + $0x48] sm:$0xff]
        %v8147 = vld [vmem:[%s8136 + $0x50] sm:$0xff]
        %v8148 = vld [vmem:[%s8136 + $0x58] sm:$0xff]
        %v8149 = vld [vmem:[%s8136 + $0x60] sm:$0xff]
        %v8150 = vld [vmem:[%s8136 + $0x68] sm:$0xff]
        %v8151 = vld [vmem:[%s8136 + $0x70] sm:$0xff]
        %v8152 = vld [vmem:[%s8136 + $0x78] sm:$0xff]
        %v8153 = vld [vmem:[%s8136 + $0x80] sm:$0xff]
        %v8154 = vld [vmem:[%s8136 + $0x88] sm:$0xff]
        %v8155 = vld [vmem:[%s8136 + $0x90] sm:$0xff]
        %v8156 = vld [vmem:[%s8136 + $0x98] sm:$0xff]
        %v8157 = vld [vmem:[%s8136 + $0xa0] sm:$0xff]
        %v8158 = vld [vmem:[%s8136 + $0xa8] sm:$0xff]
        %v8159 = vld [vmem:[%s8136 + $0xb0] sm:$0xff]
        %v8160 = vld [vmem:[%s8136 + $0xb8] sm:$0xff]
        %v8161 = vld [vmem:[%s8136 + $0xc0] sm:$0xff]
        %v8162 = vld [vmem:[%s8136 + $0xc8] sm:$0xff]
        %v8163 = vld [vmem:[%s8136 + $0xd0] sm:$0xff]
        %v8164 = vld [vmem:[%s8136 + $0xd8] sm:$0xff]
        %v8165 = vld [vmem:[%s8136 + $0xe0] sm:$0xff]
        %v8166 = vld [vmem:[%s8136 + $0xe8] sm:$0xff]
        %v8167 = vld [vmem:[%s8136 + $0xf0] sm:$0xff]
        %v8168 = vld [vmem:[%s8136 + $0xf8] sm:$0xff]
        %8177 = vrot.lane.b32.xlu0 %v8072, 104
        %v8178 = vpop.permute.xlu0 %8177
        %8179 = vrot.lane.b32.xlu0 %v8073, 104
        %v8180 = vpop.permute.xlu0 %8179
        %8181 = vrot.lane.b32.xlu0 %v8074, 104
        %v8182 = vpop.permute.xlu0 %8181
        %8183 = vrot.lane.b32.xlu0 %v8075, 104
        %v8184 = vpop.permute.xlu0 %8183
        %8185 = vrot.lane.b32.xlu0 %v8076, 104
        %v8186 = vpop.permute.xlu0 %8185
        %8187 = vrot.lane.b32.xlu0 %v8077, 104
        %v8188 = vpop.permute.xlu0 %8187
        %8189 = vrot.lane.b32.xlu0 %v8078, 104
        %v8190 = vpop.permute.xlu0 %8189
        %8191 = vrot.lane.b32.xlu0 %v8079, 104
        %v8192 = vpop.permute.xlu0 %8191
        %8201 = vrot.lane.b32.xlu0 %v8104, 72
        %v8202 = vpop.permute.xlu0 %8201
        %8203 = vrot.lane.b32.xlu0 %v8105, 72
        %v8204 = vpop.permute.xlu0 %8203
        %8205 = vrot.lane.b32.xlu0 %v8106, 72
        %v8206 = vpop.permute.xlu0 %8205
        %8207 = vrot.lane.b32.xlu0 %v8107, 72
        %v8208 = vpop.permute.xlu0 %8207
        %8209 = vrot.lane.b32.xlu0 %v8108, 72
        %v8210 = vpop.permute.xlu0 %8209
        %8211 = vrot.lane.b32.xlu0 %v8109, 72
        %v8212 = vpop.permute.xlu0 %8211
        %8213 = vrot.lane.b32.xlu0 %v8110, 72
        %v8214 = vpop.permute.xlu0 %8213
        %8215 = vrot.lane.b32.xlu0 %v8111, 72
        %v8216 = vpop.permute.xlu0 %8215
        %v8217 = vsel %vm689, %v8178, 0
        %v8219 = vsel %vm689, %v8180, 0
        %v8221 = vsel %vm689, %v8182, 0
        %v8223 = vsel %vm689, %v8184, 0
        %v8225 = vsel %vm689, %v8186, 0
        %v8227 = vsel %vm689, %v8188, 0
        %v8229 = vsel %vm689, %v8190, 0
        %v8231 = vsel %vm689, %v8192, 0
        %v8233 = vsel %vm689, %v8202, 0
        %v8235 = vsel %vm689, %v8204, 0
        %v8237 = vsel %vm689, %v8206, 0
        %v8239 = vsel %vm689, %v8208, 0
        %v8241 = vsel %vm689, %v8210, 0
        %v8243 = vsel %vm689, %v8212, 0
        %v8245 = vsel %vm689, %v8214, 0
        %v8247 = vsel %vm689, %v8216, 0
        %8249 = vmatprep.subr.mxu0 0.0
        %8250 = vmatpush1.xpose.msra.mxu0 0.0
        %8251 = vmatprep.subr.mxu0 0.0
        %8252 = vmatpush1.xpose.msra.mxu0 0.0
        %8253 = vmatprep.subr.mxu0 0.0
        %8254 = vmatpush1.xpose.msra.mxu0 0.0
        %8255 = vmatprep.subr.mxu0 0.0
        %8256 = vmatpush1.xpose.msra.mxu0 0.0
        %8257 = vmatprep.subr.mxu0 0.0
        %8258 = vmatpush1.xpose.msra.mxu0 0.0
        %8259 = vmatprep.subr.mxu0 0.0
        %8260 = vmatpush1.xpose.msra.mxu0 0.0
        %8261 = vmatprep.subr.mxu0 0.0
        %8262 = vmatpush1.xpose.msra.mxu0 0.0
        %8263 = vmatprep.subr.mxu0 0.0
        %8264 = vmatpush1.xpose.msra.mxu0 0.0
        %8265 = vmatprep.subr.mxu0 0.0
        %8266 = vmatpush1.xpose.msra.mxu0 %v8247
        %8267 = vmatprep.subr.mxu0 0.0
        %8268 = vmatpush1.xpose.msra.mxu0 %v8245
        %8269 = vmatprep.subr.mxu0 0.0
        %8270 = vmatpush1.xpose.msra.mxu0 %v8243
        %8271 = vmatprep.subr.mxu0 0.0
        %8272 = vmatpush1.xpose.msra.mxu0 %v8241
        %8273 = vmatprep.subr.mxu0 0.0
        %8274 = vmatpush1.xpose.msra.mxu0 %v8239
        %8275 = vmatprep.subr.mxu0 0.0
        %8276 = vmatpush1.xpose.msra.mxu0 %v8237
        %8277 = vmatprep.subr.mxu0 0.0
        %8278 = vmatpush1.xpose.msra.mxu0 %v8235
        %8279 = vmatprep.subr.mxu0 0.0
        %8280 = vmatpush1.xpose.msra.mxu0 %v8233
        %8281 = vmatprep.subr.mxu0 0.0
        %8282 = vmatpush2.xpose.msra.mxu0 0.0
        %8283 = vmatprep.subr.mxu0 0.0
        %8284 = vmatpush2.xpose.msra.mxu0 0.0
        %8285 = vmatprep.subr.mxu0 0.0
        %8286 = vmatpush2.xpose.msra.mxu0 0.0
        %8287 = vmatprep.subr.mxu0 0.0
        %8288 = vmatpush2.xpose.msra.mxu0 0.0
        %8289 = vmatprep.subr.mxu0 0.0
        %8290 = vmatpush2.xpose.msra.mxu0 0.0
        %8291 = vmatprep.subr.mxu0 0.0
        %8292 = vmatpush2.xpose.msra.mxu0 0.0
        %8293 = vmatprep.subr.mxu0 0.0
        %8294 = vmatpush2.xpose.msra.mxu0 0.0
        %8295 = vmatprep.subr.mxu0 0.0
        %8296 = vmatpush2.xpose.msra.mxu0 0.0
        %8297 = vmatprep.subr.mxu0 0.0
        %8298 = vmatpush2.xpose.msra.mxu0 0.0
        %8299 = vmatprep.subr.mxu0 0.0
        %8300 = vmatpush2.xpose.msra.mxu0 0.0
        %8301 = vmatprep.subr.mxu0 0.0
        %8302 = vmatpush2.xpose.msra.mxu0 0.0
        %8303 = vmatprep.subr.mxu0 0.0
        %8304 = vmatpush2.xpose.msra.mxu0 0.0
        %8305 = vmatprep.subr.mxu0 0.0
        %8306 = vmatpush2.xpose.msra.mxu0 0.0
        %8307 = vmatprep.subr.mxu0 0.0
        %8308 = vmatpush2.xpose.msra.mxu0 0.0
        %8309 = vmatprep.subr.mxu0 0.0
        %8310 = vmatpush2.xpose.msra.mxu0 0.0
        %8311 = vmatprep.subr.mxu0 0.0
        %8312 = vmatpush2.xpose.msra.mxu0 0.0
        %8313 = vmatprep.mubr.f32.mxu0 0.0
        %8314 = vmatmul.mubr.f32.gmra.mxu0 %v8217
        %v8315 = vpop.f32.mrf.mxu0
        %v8316 = vadd.f32 %v8137, %v8315
        %v8317 = vpop.f32.mrf.mxu0
        %8318 = vmatprep.mubr.f32.mxu0 0.0
        %8319 = vmatmul.mubr.f32.gmra.mxu0 %v8219
        %v8320 = vpop.f32.mrf.mxu0
        %v8321 = vadd.f32 %v8138, %v8320
        %v8322 = vpop.f32.mrf.mxu0
        %8323 = vmatprep.mubr.f32.mxu0 0.0
        %8324 = vmatmul.mubr.f32.gmra.mxu0 %v8221
        %v8325 = vpop.f32.mrf.mxu0
        %v8326 = vadd.f32 %v8139, %v8325
        %v8327 = vpop.f32.mrf.mxu0
        %8328 = vmatprep.mubr.f32.mxu0 0.0
        %8329 = vmatmul.mubr.f32.gmra.mxu0 %v8223
        %v8330 = vpop.f32.mrf.mxu0
        %v8331 = vadd.f32 %v8140, %v8330
        %v8332 = vpop.f32.mrf.mxu0
        %8333 = vmatprep.mubr.f32.mxu0 0.0
        %8334 = vmatmul.mubr.f32.gmra.mxu0 %v8225
        %v8335 = vpop.f32.mrf.mxu0
        %v8336 = vadd.f32 %v8141, %v8335
        %v8337 = vpop.f32.mrf.mxu0
        %8338 = vmatprep.mubr.f32.mxu0 0.0
        %8339 = vmatmul.mubr.f32.gmra.mxu0 %v8227
        %v8340 = vpop.f32.mrf.mxu0
        %v8341 = vadd.f32 %v8142, %v8340
        %v8342 = vpop.f32.mrf.mxu0
        %8343 = vmatprep.mubr.f32.mxu0 0.0
        %8344 = vmatmul.mubr.f32.gmra.mxu0 %v8229
        %v8345 = vpop.f32.mrf.mxu0
        %v8346 = vadd.f32 %v8143, %v8345
        %v8347 = vpop.f32.mrf.mxu0
        %8348 = vmatprep.mubr.f32.mxu0 0.0
        %8349 = vmatmul.mubr.f32.gmra.mxu0 %v8231
        %v8350 = vpop.f32.mrf.mxu0
        %v8351 = vadd.f32 %v8144, %v8350
        %v8352 = vpop.f32.mrf.mxu0
        %8353 = vdwg.mxu0
        %8362 = vrot.lane.b32.xlu0 %v8080, 104
        %v8363 = vpop.permute.xlu0 %8362
        %8364 = vrot.lane.b32.xlu0 %v8081, 104
        %v8365 = vpop.permute.xlu0 %8364
        %8366 = vrot.lane.b32.xlu0 %v8082, 104
        %v8367 = vpop.permute.xlu0 %8366
        %8368 = vrot.lane.b32.xlu0 %v8083, 104
        %v8369 = vpop.permute.xlu0 %8368
        %8370 = vrot.lane.b32.xlu0 %v8084, 104
        %v8371 = vpop.permute.xlu0 %8370
        %8372 = vrot.lane.b32.xlu0 %v8085, 104
        %v8373 = vpop.permute.xlu0 %8372
        %8374 = vrot.lane.b32.xlu0 %v8086, 104
        %v8375 = vpop.permute.xlu0 %8374
        %8376 = vrot.lane.b32.xlu0 %v8087, 104
        %v8377 = vpop.permute.xlu0 %8376
        %8386 = vrot.lane.b32.xlu0 %v8112, 72
        %v8387 = vpop.permute.xlu0 %8386
        %8388 = vrot.lane.b32.xlu0 %v8113, 72
        %v8389 = vpop.permute.xlu0 %8388
        %8390 = vrot.lane.b32.xlu0 %v8114, 72
        %v8391 = vpop.permute.xlu0 %8390
        %8392 = vrot.lane.b32.xlu0 %v8115, 72
        %v8393 = vpop.permute.xlu0 %8392
        %8394 = vrot.lane.b32.xlu0 %v8116, 72
        %v8395 = vpop.permute.xlu0 %8394
        %8396 = vrot.lane.b32.xlu0 %v8117, 72
        %v8397 = vpop.permute.xlu0 %8396
        %8398 = vrot.lane.b32.xlu0 %v8118, 72
        %v8399 = vpop.permute.xlu0 %8398
        %8400 = vrot.lane.b32.xlu0 %v8119, 72
        %v8401 = vpop.permute.xlu0 %8400
        %v8402 = vsel %vm689, %v8363, 0
        %v8404 = vsel %vm689, %v8365, 0
        %v8406 = vsel %vm689, %v8367, 0
        %v8408 = vsel %vm689, %v8369, 0
        %v8410 = vsel %vm689, %v8371, 0
        %v8412 = vsel %vm689, %v8373, 0
        %v8414 = vsel %vm689, %v8375, 0
        %v8416 = vsel %vm689, %v8377, 0
        %v8418 = vsel %vm689, %v8387, 0
        %v8420 = vsel %vm689, %v8389, 0
        %v8422 = vsel %vm689, %v8391, 0
        %v8424 = vsel %vm689, %v8393, 0
        %v8426 = vsel %vm689, %v8395, 0
        %v8428 = vsel %vm689, %v8397, 0
        %v8430 = vsel %vm689, %v8399, 0
        %v8432 = vsel %vm689, %v8401, 0
        %8434 = vmatprep.subr.mxu0 0.0
        %8435 = vmatpush1.xpose.msra.mxu0 0.0
        %8436 = vmatprep.subr.mxu0 0.0
        %8437 = vmatpush1.xpose.msra.mxu0 0.0
        %8438 = vmatprep.subr.mxu0 0.0
        %8439 = vmatpush1.xpose.msra.mxu0 0.0
        %8440 = vmatprep.subr.mxu0 0.0
        %8441 = vmatpush1.xpose.msra.mxu0 0.0
        %8442 = vmatprep.subr.mxu0 0.0
        %8443 = vmatpush1.xpose.msra.mxu0 0.0
        %8444 = vmatprep.subr.mxu0 0.0
        %8445 = vmatpush1.xpose.msra.mxu0 0.0
        %8446 = vmatprep.subr.mxu0 0.0
        %8447 = vmatpush1.xpose.msra.mxu0 0.0
        %8448 = vmatprep.subr.mxu0 0.0
        %8449 = vmatpush1.xpose.msra.mxu0 0.0
        %8450 = vmatprep.subr.mxu0 0.0
        %8451 = vmatpush1.xpose.msra.mxu0 %v8432
        %8452 = vmatprep.subr.mxu0 0.0
        %8453 = vmatpush1.xpose.msra.mxu0 %v8430
        %8454 = vmatprep.subr.mxu0 0.0
        %8455 = vmatpush1.xpose.msra.mxu0 %v8428
        %8456 = vmatprep.subr.mxu0 0.0
        %8457 = vmatpush1.xpose.msra.mxu0 %v8426
        %8458 = vmatprep.subr.mxu0 0.0
        %8459 = vmatpush1.xpose.msra.mxu0 %v8424
        %8460 = vmatprep.subr.mxu0 0.0
        %8461 = vmatpush1.xpose.msra.mxu0 %v8422
        %8462 = vmatprep.subr.mxu0 0.0
        %8463 = vmatpush1.xpose.msra.mxu0 %v8420
        %8464 = vmatprep.subr.mxu0 0.0
        %8465 = vmatpush1.xpose.msra.mxu0 %v8418
        %8466 = vmatprep.subr.mxu0 0.0
        %8467 = vmatpush2.xpose.msra.mxu0 0.0
        %8468 = vmatprep.subr.mxu0 0.0
        %8469 = vmatpush2.xpose.msra.mxu0 0.0
        %8470 = vmatprep.subr.mxu0 0.0
        %8471 = vmatpush2.xpose.msra.mxu0 0.0
        %8472 = vmatprep.subr.mxu0 0.0
        %8473 = vmatpush2.xpose.msra.mxu0 0.0
        %8474 = vmatprep.subr.mxu0 0.0
        %8475 = vmatpush2.xpose.msra.mxu0 0.0
        %8476 = vmatprep.subr.mxu0 0.0
        %8477 = vmatpush2.xpose.msra.mxu0 0.0
        %8478 = vmatprep.subr.mxu0 0.0
        %8479 = vmatpush2.xpose.msra.mxu0 0.0
        %8480 = vmatprep.subr.mxu0 0.0
        %8481 = vmatpush2.xpose.msra.mxu0 0.0
        %8482 = vmatprep.subr.mxu0 0.0
        %8483 = vmatpush2.xpose.msra.mxu0 0.0
        %8484 = vmatprep.subr.mxu0 0.0
        %8485 = vmatpush2.xpose.msra.mxu0 0.0
        %8486 = vmatprep.subr.mxu0 0.0
        %8487 = vmatpush2.xpose.msra.mxu0 0.0
        %8488 = vmatprep.subr.mxu0 0.0
        %8489 = vmatpush2.xpose.msra.mxu0 0.0
        %8490 = vmatprep.subr.mxu0 0.0
        %8491 = vmatpush2.xpose.msra.mxu0 0.0
        %8492 = vmatprep.subr.mxu0 0.0
        %8493 = vmatpush2.xpose.msra.mxu0 0.0
        %8494 = vmatprep.subr.mxu0 0.0
        %8495 = vmatpush2.xpose.msra.mxu0 0.0
        %8496 = vmatprep.subr.mxu0 0.0
        %8497 = vmatpush2.xpose.msra.mxu0 0.0
        %8498 = vmatprep.mubr.f32.mxu0 0.0
        %8499 = vmatmul.mubr.f32.gmra.mxu0 %v8402
        %v8500 = vpop.f32.mrf.mxu0
        %v8501 = vadd.f32 %v8145, %v8500
        %v8502 = vpop.f32.mrf.mxu0
        %8503 = vmatprep.mubr.f32.mxu0 0.0
        %8504 = vmatmul.mubr.f32.gmra.mxu0 %v8404
        %v8505 = vpop.f32.mrf.mxu0
        %v8506 = vadd.f32 %v8146, %v8505
        %v8507 = vpop.f32.mrf.mxu0
        %8508 = vmatprep.mubr.f32.mxu0 0.0
        %8509 = vmatmul.mubr.f32.gmra.mxu0 %v8406
        %v8510 = vpop.f32.mrf.mxu0
        %v8511 = vadd.f32 %v8147, %v8510
        %v8512 = vpop.f32.mrf.mxu0
        %8513 = vmatprep.mubr.f32.mxu0 0.0
        %8514 = vmatmul.mubr.f32.gmra.mxu0 %v8408
        %v8515 = vpop.f32.mrf.mxu0
        %v8516 = vadd.f32 %v8148, %v8515
        %v8517 = vpop.f32.mrf.mxu0
        %8518 = vmatprep.mubr.f32.mxu0 0.0
        %8519 = vmatmul.mubr.f32.gmra.mxu0 %v8410
        %v8520 = vpop.f32.mrf.mxu0
        %v8521 = vadd.f32 %v8149, %v8520
        %v8522 = vpop.f32.mrf.mxu0
        %8523 = vmatprep.mubr.f32.mxu0 0.0
        %8524 = vmatmul.mubr.f32.gmra.mxu0 %v8412
        %v8525 = vpop.f32.mrf.mxu0
        %v8526 = vadd.f32 %v8150, %v8525
        %v8527 = vpop.f32.mrf.mxu0
        %8528 = vmatprep.mubr.f32.mxu0 0.0
        %8529 = vmatmul.mubr.f32.gmra.mxu0 %v8414
        %v8530 = vpop.f32.mrf.mxu0
        %v8531 = vadd.f32 %v8151, %v8530
        %v8532 = vpop.f32.mrf.mxu0
        %8533 = vmatprep.mubr.f32.mxu0 0.0
        %8534 = vmatmul.mubr.f32.gmra.mxu0 %v8416
        %v8535 = vpop.f32.mrf.mxu0
        %v8536 = vadd.f32 %v8152, %v8535
        %v8537 = vpop.f32.mrf.mxu0
        %8538 = vdwg.mxu0
        %8547 = vrot.lane.b32.xlu0 %v8088, 104
        %v8548 = vpop.permute.xlu0 %8547
        %8549 = vrot.lane.b32.xlu0 %v8089, 104
        %v8550 = vpop.permute.xlu0 %8549
        %8551 = vrot.lane.b32.xlu0 %v8090, 104
        %v8552 = vpop.permute.xlu0 %8551
        %8553 = vrot.lane.b32.xlu0 %v8091, 104
        %v8554 = vpop.permute.xlu0 %8553
        %8555 = vrot.lane.b32.xlu0 %v8092, 104
        %v8556 = vpop.permute.xlu0 %8555
        %8557 = vrot.lane.b32.xlu0 %v8093, 104
        %v8558 = vpop.permute.xlu0 %8557
        %8559 = vrot.lane.b32.xlu0 %v8094, 104
        %v8560 = vpop.permute.xlu0 %8559
        %8561 = vrot.lane.b32.xlu0 %v8095, 104
        %v8562 = vpop.permute.xlu0 %8561
        %8571 = vrot.lane.b32.xlu0 %v8120, 72
        %v8572 = vpop.permute.xlu0 %8571
        %8573 = vrot.lane.b32.xlu0 %v8121, 72
        %v8574 = vpop.permute.xlu0 %8573
        %8575 = vrot.lane.b32.xlu0 %v8122, 72
        %v8576 = vpop.permute.xlu0 %8575
        %8577 = vrot.lane.b32.xlu0 %v8123, 72
        %v8578 = vpop.permute.xlu0 %8577
        %8579 = vrot.lane.b32.xlu0 %v8124, 72
        %v8580 = vpop.permute.xlu0 %8579
        %8581 = vrot.lane.b32.xlu0 %v8125, 72
        %v8582 = vpop.permute.xlu0 %8581
        %8583 = vrot.lane.b32.xlu0 %v8126, 72
        %v8584 = vpop.permute.xlu0 %8583
        %8585 = vrot.lane.b32.xlu0 %v8127, 72
        %v8586 = vpop.permute.xlu0 %8585
        %v8587 = vsel %vm689, %v8548, 0
        %v8589 = vsel %vm689, %v8550, 0
        %v8591 = vsel %vm689, %v8552, 0
        %v8593 = vsel %vm689, %v8554, 0
        %v8595 = vsel %vm689, %v8556, 0
        %v8597 = vsel %vm689, %v8558, 0
        %v8599 = vsel %vm689, %v8560, 0
        %v8601 = vsel %vm689, %v8562, 0
        %v8603 = vsel %vm689, %v8572, 0
        %v8605 = vsel %vm689, %v8574, 0
        %v8607 = vsel %vm689, %v8576, 0
        %v8609 = vsel %vm689, %v8578, 0
        %v8611 = vsel %vm689, %v8580, 0
        %v8613 = vsel %vm689, %v8582, 0
        %v8615 = vsel %vm689, %v8584, 0
        %v8617 = vsel %vm689, %v8586, 0
        %8619 = vmatprep.subr.mxu0 0.0
        %8620 = vmatpush1.xpose.msra.mxu0 0.0
        %8621 = vmatprep.subr.mxu0 0.0
        %8622 = vmatpush1.xpose.msra.mxu0 0.0
        %8623 = vmatprep.subr.mxu0 0.0
        %8624 = vmatpush1.xpose.msra.mxu0 0.0
        %8625 = vmatprep.subr.mxu0 0.0
        %8626 = vmatpush1.xpose.msra.mxu0 0.0
        %8627 = vmatprep.subr.mxu0 0.0
        %8628 = vmatpush1.xpose.msra.mxu0 0.0
        %8629 = vmatprep.subr.mxu0 0.0
        %8630 = vmatpush1.xpose.msra.mxu0 0.0
        %8631 = vmatprep.subr.mxu0 0.0
        %8632 = vmatpush1.xpose.msra.mxu0 0.0
        %8633 = vmatprep.subr.mxu0 0.0
        %8634 = vmatpush1.xpose.msra.mxu0 0.0
        %8635 = vmatprep.subr.mxu0 0.0
        %8636 = vmatpush1.xpose.msra.mxu0 %v8617
        %8637 = vmatprep.subr.mxu0 0.0
        %8638 = vmatpush1.xpose.msra.mxu0 %v8615
        %8639 = vmatprep.subr.mxu0 0.0
        %8640 = vmatpush1.xpose.msra.mxu0 %v8613
        %8641 = vmatprep.subr.mxu0 0.0
        %8642 = vmatpush1.xpose.msra.mxu0 %v8611
        %8643 = vmatprep.subr.mxu0 0.0
        %8644 = vmatpush1.xpose.msra.mxu0 %v8609
        %8645 = vmatprep.subr.mxu0 0.0
        %8646 = vmatpush1.xpose.msra.mxu0 %v8607
        %8647 = vmatprep.subr.mxu0 0.0
        %8648 = vmatpush1.xpose.msra.mxu0 %v8605
        %8649 = vmatprep.subr.mxu0 0.0
        %8650 = vmatpush1.xpose.msra.mxu0 %v8603
        %8651 = vmatprep.subr.mxu0 0.0
        %8652 = vmatpush2.xpose.msra.mxu0 0.0
        %8653 = vmatprep.subr.mxu0 0.0
        %8654 = vmatpush2.xpose.msra.mxu0 0.0
        %8655 = vmatprep.subr.mxu0 0.0
        %8656 = vmatpush2.xpose.msra.mxu0 0.0
        %8657 = vmatprep.subr.mxu0 0.0
        %8658 = vmatpush2.xpose.msra.mxu0 0.0
        %8659 = vmatprep.subr.mxu0 0.0
        %8660 = vmatpush2.xpose.msra.mxu0 0.0
        %8661 = vmatprep.subr.mxu0 0.0
        %8662 = vmatpush2.xpose.msra.mxu0 0.0
        %8663 = vmatprep.subr.mxu0 0.0
        %8664 = vmatpush2.xpose.msra.mxu0 0.0
        %8665 = vmatprep.subr.mxu0 0.0
        %8666 = vmatpush2.xpose.msra.mxu0 0.0
        %8667 = vmatprep.subr.mxu0 0.0
        %8668 = vmatpush2.xpose.msra.mxu0 0.0
        %8669 = vmatprep.subr.mxu0 0.0
        %8670 = vmatpush2.xpose.msra.mxu0 0.0
        %8671 = vmatprep.subr.mxu0 0.0
        %8672 = vmatpush2.xpose.msra.mxu0 0.0
        %8673 = vmatprep.subr.mxu0 0.0
        %8674 = vmatpush2.xpose.msra.mxu0 0.0
        %8675 = vmatprep.subr.mxu0 0.0
        %8676 = vmatpush2.xpose.msra.mxu0 0.0
        %8677 = vmatprep.subr.mxu0 0.0
        %8678 = vmatpush2.xpose.msra.mxu0 0.0
        %8679 = vmatprep.subr.mxu0 0.0
        %8680 = vmatpush2.xpose.msra.mxu0 0.0
        %8681 = vmatprep.subr.mxu0 0.0
        %8682 = vmatpush2.xpose.msra.mxu0 0.0
        %8683 = vmatprep.mubr.f32.mxu0 0.0
        %8684 = vmatmul.mubr.f32.gmra.mxu0 %v8587
        %v8685 = vpop.f32.mrf.mxu0
        %v8686 = vadd.f32 %v8153, %v8685
        %v8687 = vpop.f32.mrf.mxu0
        %8688 = vmatprep.mubr.f32.mxu0 0.0
        %8689 = vmatmul.mubr.f32.gmra.mxu0 %v8589
        %v8690 = vpop.f32.mrf.mxu0
        %v8691 = vadd.f32 %v8154, %v8690
        %v8692 = vpop.f32.mrf.mxu0
        %8693 = vmatprep.mubr.f32.mxu0 0.0
        %8694 = vmatmul.mubr.f32.gmra.mxu0 %v8591
        %v8695 = vpop.f32.mrf.mxu0
        %v8696 = vadd.f32 %v8155, %v8695
        %v8697 = vpop.f32.mrf.mxu0
        %8698 = vmatprep.mubr.f32.mxu0 0.0
        %8699 = vmatmul.mubr.f32.gmra.mxu0 %v8593
        %v8700 = vpop.f32.mrf.mxu0
        %v8701 = vadd.f32 %v8156, %v8700
        %v8702 = vpop.f32.mrf.mxu0
        %8703 = vmatprep.mubr.f32.mxu0 0.0
        %8704 = vmatmul.mubr.f32.gmra.mxu0 %v8595
        %v8705 = vpop.f32.mrf.mxu0
        %v8706 = vadd.f32 %v8157, %v8705
        %v8707 = vpop.f32.mrf.mxu0
        %8708 = vmatprep.mubr.f32.mxu0 0.0
        %8709 = vmatmul.mubr.f32.gmra.mxu0 %v8597
        %v8710 = vpop.f32.mrf.mxu0
        %v8711 = vadd.f32 %v8158, %v8710
        %v8712 = vpop.f32.mrf.mxu0
        %8713 = vmatprep.mubr.f32.mxu0 0.0
        %8714 = vmatmul.mubr.f32.gmra.mxu0 %v8599
        %v8715 = vpop.f32.mrf.mxu0
        %v8716 = vadd.f32 %v8159, %v8715
        %v8717 = vpop.f32.mrf.mxu0
        %8718 = vmatprep.mubr.f32.mxu0 0.0
        %8719 = vmatmul.mubr.f32.gmra.mxu0 %v8601
        %v8720 = vpop.f32.mrf.mxu0
        %v8721 = vadd.f32 %v8160, %v8720
        %v8722 = vpop.f32.mrf.mxu0
        %8723 = vdwg.mxu0
        %8732 = vrot.lane.b32.xlu0 %v8096, 104
        %v8733 = vpop.permute.xlu0 %8732
        %8734 = vrot.lane.b32.xlu0 %v8097, 104
        %v8735 = vpop.permute.xlu0 %8734
        %8736 = vrot.lane.b32.xlu0 %v8098, 104
        %v8737 = vpop.permute.xlu0 %8736
        %8738 = vrot.lane.b32.xlu0 %v8099, 104
        %v8739 = vpop.permute.xlu0 %8738
        %8740 = vrot.lane.b32.xlu0 %v8100, 104
        %v8741 = vpop.permute.xlu0 %8740
        %8742 = vrot.lane.b32.xlu0 %v8101, 104
        %v8743 = vpop.permute.xlu0 %8742
        %8744 = vrot.lane.b32.xlu0 %v8102, 104
        %v8745 = vpop.permute.xlu0 %8744
        %8746 = vrot.lane.b32.xlu0 %v8103, 104
        %v8747 = vpop.permute.xlu0 %8746
        %8756 = vrot.lane.b32.xlu0 %v8128, 72
        %v8757 = vpop.permute.xlu0 %8756
        %8758 = vrot.lane.b32.xlu0 %v8129, 72
        %v8759 = vpop.permute.xlu0 %8758
        %8760 = vrot.lane.b32.xlu0 %v8130, 72
        %v8761 = vpop.permute.xlu0 %8760
        %8762 = vrot.lane.b32.xlu0 %v8131, 72
        %v8763 = vpop.permute.xlu0 %8762
        %8764 = vrot.lane.b32.xlu0 %v8132, 72
        %v8765 = vpop.permute.xlu0 %8764
        %8766 = vrot.lane.b32.xlu0 %v8133, 72
        %v8767 = vpop.permute.xlu0 %8766
        %8768 = vrot.lane.b32.xlu0 %v8134, 72
        %v8769 = vpop.permute.xlu0 %8768
        %8770 = vrot.lane.b32.xlu0 %v8135, 72
        %v8771 = vpop.permute.xlu0 %8770
        %v8772 = vsel %vm689, %v8733, 0
        %v8774 = vsel %vm689, %v8735, 0
        %v8776 = vsel %vm689, %v8737, 0
        %v8778 = vsel %vm689, %v8739, 0
        %v8780 = vsel %vm689, %v8741, 0
        %v8782 = vsel %vm689, %v8743, 0
        %v8784 = vsel %vm689, %v8745, 0
        %v8786 = vsel %vm689, %v8747, 0
        %v8788 = vsel %vm689, %v8757, 0
        %v8790 = vsel %vm689, %v8759, 0
        %v8792 = vsel %vm689, %v8761, 0
        %v8794 = vsel %vm689, %v8763, 0
        %v8796 = vsel %vm689, %v8765, 0
        %v8798 = vsel %vm689, %v8767, 0
        %v8800 = vsel %vm689, %v8769, 0
        %v8802 = vsel %vm689, %v8771, 0
        %8804 = vmatprep.subr.mxu0 0.0
        %8805 = vmatpush1.xpose.msra.mxu0 0.0
        %8806 = vmatprep.subr.mxu0 0.0
        %8807 = vmatpush1.xpose.msra.mxu0 0.0
        %8808 = vmatprep.subr.mxu0 0.0
        %8809 = vmatpush1.xpose.msra.mxu0 0.0
        %8810 = vmatprep.subr.mxu0 0.0
        %8811 = vmatpush1.xpose.msra.mxu0 0.0
        %8812 = vmatprep.subr.mxu0 0.0
        %8813 = vmatpush1.xpose.msra.mxu0 0.0
        %8814 = vmatprep.subr.mxu0 0.0
        %8815 = vmatpush1.xpose.msra.mxu0 0.0
        %8816 = vmatprep.subr.mxu0 0.0
        %8817 = vmatpush1.xpose.msra.mxu0 0.0
        %8818 = vmatprep.subr.mxu0 0.0
        %8819 = vmatpush1.xpose.msra.mxu0 0.0
        %8820 = vmatprep.subr.mxu0 0.0
        %8821 = vmatpush1.xpose.msra.mxu0 %v8802
        %8822 = vmatprep.subr.mxu0 0.0
        %8823 = vmatpush1.xpose.msra.mxu0 %v8800
        %8824 = vmatprep.subr.mxu0 0.0
        %8825 = vmatpush1.xpose.msra.mxu0 %v8798
        %8826 = vmatprep.subr.mxu0 0.0
        %8827 = vmatpush1.xpose.msra.mxu0 %v8796
        %8828 = vmatprep.subr.mxu0 0.0
        %8829 = vmatpush1.xpose.msra.mxu0 %v8794
        %8830 = vmatprep.subr.mxu0 0.0
        %8831 = vmatpush1.xpose.msra.mxu0 %v8792
        %8832 = vmatprep.subr.mxu0 0.0
        %8833 = vmatpush1.xpose.msra.mxu0 %v8790
        %8834 = vmatprep.subr.mxu0 0.0
        %8835 = vmatpush1.xpose.msra.mxu0 %v8788
        %8836 = vmatprep.subr.mxu0 0.0
        %8837 = vmatpush2.xpose.msra.mxu0 0.0
        %8838 = vmatprep.subr.mxu0 0.0
        %8839 = vmatpush2.xpose.msra.mxu0 0.0
        %8840 = vmatprep.subr.mxu0 0.0
        %8841 = vmatpush2.xpose.msra.mxu0 0.0
        %8842 = vmatprep.subr.mxu0 0.0
        %8843 = vmatpush2.xpose.msra.mxu0 0.0
        %8844 = vmatprep.subr.mxu0 0.0
        %8845 = vmatpush2.xpose.msra.mxu0 0.0
        %8846 = vmatprep.subr.mxu0 0.0
        %8847 = vmatpush2.xpose.msra.mxu0 0.0
        %8848 = vmatprep.subr.mxu0 0.0
        %8849 = vmatpush2.xpose.msra.mxu0 0.0
        %8850 = vmatprep.subr.mxu0 0.0
        %8851 = vmatpush2.xpose.msra.mxu0 0.0
        %8852 = vmatprep.subr.mxu0 0.0
        %8853 = vmatpush2.xpose.msra.mxu0 0.0
        %8854 = vmatprep.subr.mxu0 0.0
        %8855 = vmatpush2.xpose.msra.mxu0 0.0
        %8856 = vmatprep.subr.mxu0 0.0
        %8857 = vmatpush2.xpose.msra.mxu0 0.0
        %8858 = vmatprep.subr.mxu0 0.0
        %8859 = vmatpush2.xpose.msra.mxu0 0.0
        %8860 = vmatprep.subr.mxu0 0.0
        %8861 = vmatpush2.xpose.msra.mxu0 0.0
        %8862 = vmatprep.subr.mxu0 0.0
        %8863 = vmatpush2.xpose.msra.mxu0 0.0
        %8864 = vmatprep.subr.mxu0 0.0
        %8865 = vmatpush2.xpose.msra.mxu0 0.0
        %8866 = vmatprep.subr.mxu0 0.0
        %8867 = vmatpush2.xpose.msra.mxu0 0.0
        %8868 = vmatprep.mubr.f32.mxu0 0.0
        %8869 = vmatmul.mubr.f32.gmra.mxu0 %v8772
        %v8870 = vpop.f32.mrf.mxu0
        %v8871 = vadd.f32 %v8161, %v8870
        %v8872 = vpop.f32.mrf.mxu0
        %8873 = vmatprep.mubr.f32.mxu0 0.0
        %8874 = vmatmul.mubr.f32.gmra.mxu0 %v8774
        %v8875 = vpop.f32.mrf.mxu0
        %v8876 = vadd.f32 %v8162, %v8875
        %v8877 = vpop.f32.mrf.mxu0
        %8878 = vmatprep.mubr.f32.mxu0 0.0
        %8879 = vmatmul.mubr.f32.gmra.mxu0 %v8776
        %v8880 = vpop.f32.mrf.mxu0
        %v8881 = vadd.f32 %v8163, %v8880
        %v8882 = vpop.f32.mrf.mxu0
        %8883 = vmatprep.mubr.f32.mxu0 0.0
        %8884 = vmatmul.mubr.f32.gmra.mxu0 %v8778
        %v8885 = vpop.f32.mrf.mxu0
        %v8886 = vadd.f32 %v8164, %v8885
        %v8887 = vpop.f32.mrf.mxu0
        %8888 = vmatprep.mubr.f32.mxu0 0.0
        %8889 = vmatmul.mubr.f32.gmra.mxu0 %v8780
        %v8890 = vpop.f32.mrf.mxu0
        %v8891 = vadd.f32 %v8165, %v8890
        %v8892 = vpop.f32.mrf.mxu0
        %8893 = vmatprep.mubr.f32.mxu0 0.0
        %8894 = vmatmul.mubr.f32.gmra.mxu0 %v8782
        %v8895 = vpop.f32.mrf.mxu0
        %v8896 = vadd.f32 %v8166, %v8895
        %v8897 = vpop.f32.mrf.mxu0
        %8898 = vmatprep.mubr.f32.mxu0 0.0
        %8899 = vmatmul.mubr.f32.gmra.mxu0 %v8784
        %v8900 = vpop.f32.mrf.mxu0
        %v8901 = vadd.f32 %v8167, %v8900
        %v8902 = vpop.f32.mrf.mxu0
        %8903 = vmatprep.mubr.f32.mxu0 0.0
        %8904 = vmatmul.mubr.f32.gmra.mxu0 %v8786
        %v8905 = vpop.f32.mrf.mxu0
        %v8906 = vadd.f32 %v8168, %v8905
        %v8907 = vpop.f32.mrf.mxu0
        %8908 = vdwg.mxu0
        %v8909 = vsel %vm1944, %v8316, -inf
        %8910 = vmax.xlane.f32.xlu0 %v8909
        %v8911 = vpop.xlane.xlu0 %8910
        %v8912 = vsel %vm1944, %v8321, -inf
        %8913 = vmax.xlane.f32.xlu0 %v8912
        %v8914 = vpop.xlane.xlu0 %8913
        %v8915 = vsel %vm1944, %v8326, -inf
        %8916 = vmax.xlane.f32.xlu0 %v8915
        %v8917 = vpop.xlane.xlu0 %8916
        %v8918 = vsel %vm1944, %v8331, -inf
        %8919 = vmax.xlane.f32.xlu0 %v8918
        %v8920 = vpop.xlane.xlu0 %8919
        %v8921 = vsel %vm1944, %v8336, -inf
        %8922 = vmax.xlane.f32.xlu0 %v8921
        %v8923 = vpop.xlane.xlu0 %8922
        %v8924 = vsel %vm1944, %v8341, -inf
        %8925 = vmax.xlane.f32.xlu0 %v8924
        %v8926 = vpop.xlane.xlu0 %8925
        %v8927 = vsel %vm1944, %v8346, -inf
        %8928 = vmax.xlane.f32.xlu0 %v8927
        %v8929 = vpop.xlane.xlu0 %8928
        %v8930 = vsel %vm1944, %v8351, -inf
        %8931 = vmax.xlane.f32.xlu0 %v8930
        %v8932 = vpop.xlane.xlu0 %8931
        %v8933 = vsel %vm1944, %v8501, -inf
        %8934 = vmax.xlane.f32.xlu0 %v8933
        %v8935 = vpop.xlane.xlu0 %8934
        %v8936 = vsel %vm1944, %v8506, -inf
        %8937 = vmax.xlane.f32.xlu0 %v8936
        %v8938 = vpop.xlane.xlu0 %8937
        %v8939 = vsel %vm1944, %v8511, -inf
        %8940 = vmax.xlane.f32.xlu0 %v8939
        %v8941 = vpop.xlane.xlu0 %8940
        %v8942 = vsel %vm1944, %v8516, -inf
        %8943 = vmax.xlane.f32.xlu0 %v8942
        %v8944 = vpop.xlane.xlu0 %8943
        %v8945 = vsel %vm1944, %v8521, -inf
        %8946 = vmax.xlane.f32.xlu0 %v8945
        %v8947 = vpop.xlane.xlu0 %8946
        %v8948 = vsel %vm1944, %v8526, -inf
        %8949 = vmax.xlane.f32.xlu0 %v8948
        %v8950 = vpop.xlane.xlu0 %8949
        %v8951 = vsel %vm1944, %v8531, -inf
        %8952 = vmax.xlane.f32.xlu0 %v8951
        %v8953 = vpop.xlane.xlu0 %8952
        %v8954 = vsel %vm1944, %v8536, -inf
        %8955 = vmax.xlane.f32.xlu0 %v8954
        %v8956 = vpop.xlane.xlu0 %8955
        %v8957 = vsel %vm1944, %v8686, -inf
        %8958 = vmax.xlane.f32.xlu0 %v8957
        %v8959 = vpop.xlane.xlu0 %8958
        %v8960 = vsel %vm1944, %v8691, -inf
        %8961 = vmax.xlane.f32.xlu0 %v8960
        %v8962 = vpop.xlane.xlu0 %8961
        %v8963 = vsel %vm1944, %v8696, -inf
        %8964 = vmax.xlane.f32.xlu0 %v8963
        %v8965 = vpop.xlane.xlu0 %8964
        %v8966 = vsel %vm1944, %v8701, -inf
        %8967 = vmax.xlane.f32.xlu0 %v8966
        %v8968 = vpop.xlane.xlu0 %8967
        %v8969 = vsel %vm1944, %v8706, -inf
        %8970 = vmax.xlane.f32.xlu0 %v8969
        %v8971 = vpop.xlane.xlu0 %8970
        %v8972 = vsel %vm1944, %v8711, -inf
        %8973 = vmax.xlane.f32.xlu0 %v8972
        %v8974 = vpop.xlane.xlu0 %8973
        %v8975 = vsel %vm1944, %v8716, -inf
        %8976 = vmax.xlane.f32.xlu0 %v8975
        %v8977 = vpop.xlane.xlu0 %8976
        %v8978 = vsel %vm1944, %v8721, -inf
        %8979 = vmax.xlane.f32.xlu0 %v8978
        %v8980 = vpop.xlane.xlu0 %8979
        %v8981 = vsel %vm1944, %v8871, -inf
        %8982 = vmax.xlane.f32.xlu0 %v8981
        %v8983 = vpop.xlane.xlu0 %8982
        %v8984 = vsel %vm1944, %v8876, -inf
        %8985 = vmax.xlane.f32.xlu0 %v8984
        %v8986 = vpop.xlane.xlu0 %8985
        %v8987 = vsel %vm1944, %v8881, -inf
        %8988 = vmax.xlane.f32.xlu0 %v8987
        %v8989 = vpop.xlane.xlu0 %8988
        %v8990 = vsel %vm1944, %v8886, -inf
        %8991 = vmax.xlane.f32.xlu0 %v8990
        %v8992 = vpop.xlane.xlu0 %8991
        %v8993 = vsel %vm1944, %v8891, -inf
        %8994 = vmax.xlane.f32.xlu0 %v8993
        %v8995 = vpop.xlane.xlu0 %8994
        %v8996 = vsel %vm1944, %v8896, -inf
        %8997 = vmax.xlane.f32.xlu0 %v8996
        %v8998 = vpop.xlane.xlu0 %8997
        %v8999 = vsel %vm1944, %v8901, -inf
        %9000 = vmax.xlane.f32.xlu0 %v8999
        %v9001 = vpop.xlane.xlu0 %9000
        %v9002 = vsel %vm1944, %v8906, -inf
        %9003 = vmax.xlane.f32.xlu0 %v9002
        %v9004 = vpop.xlane.xlu0 %9003
        %v9005 = vsub.f32 %v8316, %v8911
        %v9006 = vsub.f32 %v8321, %v8914
        %v9007 = vsub.f32 %v8326, %v8917
        %v9008 = vsub.f32 %v8331, %v8920
        %v9009 = vsub.f32 %v8336, %v8923
        %v9010 = vsub.f32 %v8341, %v8926
        %v9011 = vsub.f32 %v8346, %v8929
        %v9012 = vsub.f32 %v8351, %v8932
        %v9013 = vsub.f32 %v8501, %v8935
        %v9014 = vsub.f32 %v8506, %v8938
        %v9015 = vsub.f32 %v8511, %v8941
        %v9016 = vsub.f32 %v8516, %v8944
        %v9017 = vsub.f32 %v8521, %v8947
        %v9018 = vsub.f32 %v8526, %v8950
        %v9019 = vsub.f32 %v8531, %v8953
        %v9020 = vsub.f32 %v8536, %v8956
        %v9021 = vsub.f32 %v8686, %v8959
        %v9022 = vsub.f32 %v8691, %v8962
        %v9023 = vsub.f32 %v8696, %v8965
        %v9024 = vsub.f32 %v8701, %v8968
        %v9025 = vsub.f32 %v8706, %v8971
        %v9026 = vsub.f32 %v8711, %v8974
        %v9027 = vsub.f32 %v8716, %v8977
        %v9028 = vsub.f32 %v8721, %v8980
        %v9029 = vsub.f32 %v8871, %v8983
        %v9030 = vsub.f32 %v8876, %v8986
        %v9031 = vsub.f32 %v8881, %v8989
        %v9032 = vsub.f32 %v8886, %v8992
        %v9033 = vsub.f32 %v8891, %v8995
        %v9034 = vsub.f32 %v8896, %v8998
        %v9035 = vsub.f32 %v8901, %v9001
        %v9036 = vsub.f32 %v8906, %v9004
        %v9037 = vmul.f32 %v9005, 1.442695
        %v9038 = vpow.pop %v9037
        %v9039 = vmul.f32 %v9006, 1.442695
        %v9040 = vpow.pop %v9039
        %v9041 = vmul.f32 %v9007, 1.442695
        %v9042 = vpow.pop %v9041
        %v9043 = vmul.f32 %v9008, 1.442695
        %v9044 = vpow.pop %v9043
        %v9045 = vmul.f32 %v9009, 1.442695
        %v9046 = vpow.pop %v9045
        %v9047 = vmul.f32 %v9010, 1.442695
        %v9048 = vpow.pop %v9047
        %v9049 = vmul.f32 %v9011, 1.442695
        %v9050 = vpow.pop %v9049
        %v9051 = vmul.f32 %v9012, 1.442695
        %v9052 = vpow.pop %v9051
        %v9053 = vmul.f32 %v9013, 1.442695
        %v9054 = vpow.pop %v9053
        %v9055 = vmul.f32 %v9014, 1.442695
        %v9056 = vpow.pop %v9055
        %v9057 = vmul.f32 %v9015, 1.442695
        %v9058 = vpow.pop %v9057
        %v9059 = vmul.f32 %v9016, 1.442695
        %v9060 = vpow.pop %v9059
        %v9061 = vmul.f32 %v9017, 1.442695
        %v9062 = vpow.pop %v9061
        %v9063 = vmul.f32 %v9018, 1.442695
        %v9064 = vpow.pop %v9063
        %v9065 = vmul.f32 %v9019, 1.442695
        %v9066 = vpow.pop %v9065
        %v9067 = vmul.f32 %v9020, 1.442695
        %v9068 = vpow.pop %v9067
        %v9069 = vmul.f32 %v9021, 1.442695
        %v9070 = vpow.pop %v9069
        %v9071 = vmul.f32 %v9022, 1.442695
        %v9072 = vpow.pop %v9071
        %v9073 = vmul.f32 %v9023, 1.442695
        %v9074 = vpow.pop %v9073
        %v9075 = vmul.f32 %v9024, 1.442695
        %v9076 = vpow.pop %v9075
        %v9077 = vmul.f32 %v9025, 1.442695
        %v9078 = vpow.pop %v9077
        %v9079 = vmul.f32 %v9026, 1.442695
        %v9080 = vpow.pop %v9079
        %v9081 = vmul.f32 %v9027, 1.442695
        %v9082 = vpow.pop %v9081
        %v9083 = vmul.f32 %v9028, 1.442695
        %v9084 = vpow.pop %v9083
        %v9085 = vmul.f32 %v9029, 1.442695
        %v9086 = vpow.pop %v9085
        %v9087 = vmul.f32 %v9030, 1.442695
        %v9088 = vpow.pop %v9087
        %v9089 = vmul.f32 %v9031, 1.442695
        %v9090 = vpow.pop %v9089
        %v9091 = vmul.f32 %v9032, 1.442695
        %v9092 = vpow.pop %v9091
        %v9093 = vmul.f32 %v9033, 1.442695
        %v9094 = vpow.pop %v9093
        %v9095 = vmul.f32 %v9034, 1.442695
        %v9096 = vpow.pop %v9095
        %v9097 = vmul.f32 %v9035, 1.442695
        %v9098 = vpow.pop %v9097
        %v9099 = vmul.f32 %v9036, 1.442695
        %v9100 = vpow.pop %v9099
        %v9101 = vsel %vm1944, %v9038, 0.0
        %9102 = vadd.xlane.f32.xlu0 %v9101
        %v9103 = vpop.xlane.xlu0 %9102
        %v9104 = vsel %vm1944, %v9040, 0.0
        %9105 = vadd.xlane.f32.xlu0 %v9104
        %v9106 = vpop.xlane.xlu0 %9105
        %v9107 = vsel %vm1944, %v9042, 0.0
        %9108 = vadd.xlane.f32.xlu0 %v9107
        %v9109 = vpop.xlane.xlu0 %9108
        %v9110 = vsel %vm1944, %v9044, 0.0
        %9111 = vadd.xlane.f32.xlu0 %v9110
        %v9112 = vpop.xlane.xlu0 %9111
        %v9113 = vsel %vm1944, %v9046, 0.0
        %9114 = vadd.xlane.f32.xlu0 %v9113
        %v9115 = vpop.xlane.xlu0 %9114
        %v9116 = vsel %vm1944, %v9048, 0.0
        %9117 = vadd.xlane.f32.xlu0 %v9116
        %v9118 = vpop.xlane.xlu0 %9117
        %v9119 = vsel %vm1944, %v9050, 0.0
        %9120 = vadd.xlane.f32.xlu0 %v9119
        %v9121 = vpop.xlane.xlu0 %9120
        %v9122 = vsel %vm1944, %v9052, 0.0
        %9123 = vadd.xlane.f32.xlu0 %v9122
        %v9124 = vpop.xlane.xlu0 %9123
        %v9125 = vsel %vm1944, %v9054, 0.0
        %9126 = vadd.xlane.f32.xlu0 %v9125
        %v9127 = vpop.xlane.xlu0 %9126
        %v9128 = vsel %vm1944, %v9056, 0.0
        %9129 = vadd.xlane.f32.xlu0 %v9128
        %v9130 = vpop.xlane.xlu0 %9129
        %v9131 = vsel %vm1944, %v9058, 0.0
        %9132 = vadd.xlane.f32.xlu0 %v9131
        %v9133 = vpop.xlane.xlu0 %9132
        %v9134 = vsel %vm1944, %v9060, 0.0
        %9135 = vadd.xlane.f32.xlu0 %v9134
        %v9136 = vpop.xlane.xlu0 %9135
        %v9137 = vsel %vm1944, %v9062, 0.0
        %9138 = vadd.xlane.f32.xlu0 %v9137
        %v9139 = vpop.xlane.xlu0 %9138
        %v9140 = vsel %vm1944, %v9064, 0.0
        %9141 = vadd.xlane.f32.xlu0 %v9140
        %v9142 = vpop.xlane.xlu0 %9141
        %v9143 = vsel %vm1944, %v9066, 0.0
        %9144 = vadd.xlane.f32.xlu0 %v9143
        %v9145 = vpop.xlane.xlu0 %9144
        %v9146 = vsel %vm1944, %v9068, 0.0
        %9147 = vadd.xlane.f32.xlu0 %v9146
        %v9148 = vpop.xlane.xlu0 %9147
        %v9149 = vsel %vm1944, %v9070, 0.0
        %9150 = vadd.xlane.f32.xlu0 %v9149
        %v9151 = vpop.xlane.xlu0 %9150
        %v9152 = vsel %vm1944, %v9072, 0.0
        %9153 = vadd.xlane.f32.xlu0 %v9152
        %v9154 = vpop.xlane.xlu0 %9153
        %v9155 = vsel %vm1944, %v9074, 0.0
        %9156 = vadd.xlane.f32.xlu0 %v9155
        %v9157 = vpop.xlane.xlu0 %9156
        %v9158 = vsel %vm1944, %v9076, 0.0
        %9159 = vadd.xlane.f32.xlu0 %v9158
        %v9160 = vpop.xlane.xlu0 %9159
        %v9161 = vsel %vm1944, %v9078, 0.0
        %9162 = vadd.xlane.f32.xlu0 %v9161
        %v9163 = vpop.xlane.xlu0 %9162
        %v9164 = vsel %vm1944, %v9080, 0.0
        %9165 = vadd.xlane.f32.xlu0 %v9164
        %v9166 = vpop.xlane.xlu0 %9165
        %v9167 = vsel %vm1944, %v9082, 0.0
        %9168 = vadd.xlane.f32.xlu0 %v9167
        %v9169 = vpop.xlane.xlu0 %9168
        %v9170 = vsel %vm1944, %v9084, 0.0
        %9171 = vadd.xlane.f32.xlu0 %v9170
        %v9172 = vpop.xlane.xlu0 %9171
        %v9173 = vsel %vm1944, %v9086, 0.0
        %9174 = vadd.xlane.f32.xlu0 %v9173
        %v9175 = vpop.xlane.xlu0 %9174
        %v9176 = vsel %vm1944, %v9088, 0.0
        %9177 = vadd.xlane.f32.xlu0 %v9176
        %v9178 = vpop.xlane.xlu0 %9177
        %v9179 = vsel %vm1944, %v9090, 0.0
        %9180 = vadd.xlane.f32.xlu0 %v9179
        %v9181 = vpop.xlane.xlu0 %9180
        %v9182 = vsel %vm1944, %v9092, 0.0
        %9183 = vadd.xlane.f32.xlu0 %v9182
        %v9184 = vpop.xlane.xlu0 %9183
        %v9185 = vsel %vm1944, %v9094, 0.0
        %9186 = vadd.xlane.f32.xlu0 %v9185
        %v9187 = vpop.xlane.xlu0 %9186
        %v9188 = vsel %vm1944, %v9096, 0.0
        %9189 = vadd.xlane.f32.xlu0 %v9188
        %v9190 = vpop.xlane.xlu0 %9189
        %v9191 = vsel %vm1944, %v9098, 0.0
        %9192 = vadd.xlane.f32.xlu0 %v9191
        %v9193 = vpop.xlane.xlu0 %9192
        %v9194 = vsel %vm1944, %v9100, 0.0
        %9195 = vadd.xlane.f32.xlu0 %v9194
        %v9196 = vpop.xlane.xlu0 %9195
        %v9197 = vrcp.pop %v9103
        %v9198 = vrcp.pop %v9106
        %v9199 = vrcp.pop %v9109
        %v9200 = vrcp.pop %v9112
        %v9201 = vrcp.pop %v9115
        %v9202 = vrcp.pop %v9118
        %v9203 = vrcp.pop %v9121
        %v9204 = vrcp.pop %v9124
        %v9205 = vrcp.pop %v9127
        %v9206 = vrcp.pop %v9130
        %v9207 = vrcp.pop %v9133
        %v9208 = vrcp.pop %v9136
        %v9209 = vrcp.pop %v9139
        %v9210 = vrcp.pop %v9142
        %v9211 = vrcp.pop %v9145
        %v9212 = vrcp.pop %v9148
        %v9213 = vrcp.pop %v9151
        %v9214 = vrcp.pop %v9154
        %v9215 = vrcp.pop %v9157
        %v9216 = vrcp.pop %v9160
        %v9217 = vrcp.pop %v9163
        %v9218 = vrcp.pop %v9166
        %v9219 = vrcp.pop %v9169
        %v9220 = vrcp.pop %v9172
        %v9221 = vrcp.pop %v9175
        %v9222 = vrcp.pop %v9178
        %v9223 = vrcp.pop %v9181
        %v9224 = vrcp.pop %v9184
        %v9225 = vrcp.pop %v9187
        %v9226 = vrcp.pop %v9190
        %v9227 = vrcp.pop %v9193
        %v9228 = vrcp.pop %v9196
        %v9229 = vmul.f32 %v9038, %v9197
        %v9230 = vmul.f32 %v9040, %v9198
        %v9231 = vmul.f32 %v9042, %v9199
        %v9232 = vmul.f32 %v9044, %v9200
        %v9233 = vmul.f32 %v9046, %v9201
        %v9234 = vmul.f32 %v9048, %v9202
        %v9235 = vmul.f32 %v9050, %v9203
        %v9236 = vmul.f32 %v9052, %v9204
        %v9237 = vmul.f32 %v9054, %v9205
        %v9238 = vmul.f32 %v9056, %v9206
        %v9239 = vmul.f32 %v9058, %v9207
        %v9240 = vmul.f32 %v9060, %v9208
        %v9241 = vmul.f32 %v9062, %v9209
        %v9242 = vmul.f32 %v9064, %v9210
        %v9243 = vmul.f32 %v9066, %v9211
        %v9244 = vmul.f32 %v9068, %v9212
        %v9245 = vmul.f32 %v9070, %v9213
        %v9246 = vmul.f32 %v9072, %v9214
        %v9247 = vmul.f32 %v9074, %v9215
        %v9248 = vmul.f32 %v9076, %v9216
        %v9249 = vmul.f32 %v9078, %v9217
        %v9250 = vmul.f32 %v9080, %v9218
        %v9251 = vmul.f32 %v9082, %v9219
        %v9252 = vmul.f32 %v9084, %v9220
        %v9253 = vmul.f32 %v9086, %v9221
        %v9254 = vmul.f32 %v9088, %v9222
        %v9255 = vmul.f32 %v9090, %v9223
        %v9256 = vmul.f32 %v9092, %v9224
        %v9257 = vmul.f32 %v9094, %v9225
        %v9258 = vmul.f32 %v9096, %v9226
        %v9259 = vmul.f32 %v9098, %v9227
        %v9260 = vmul.f32 %v9100, %v9228
        %v9261 = vpack.c.bf16 %v9230, %v9229
        %v9262 = vpack.c.bf16 %v9232, %v9231
        %v9263 = vpack.c.bf16 %v9234, %v9233
        %v9264 = vpack.c.bf16 %v9236, %v9235
        %v9265 = vpack.c.bf16 %v9238, %v9237
        %v9266 = vpack.c.bf16 %v9240, %v9239
        %v9267 = vpack.c.bf16 %v9242, %v9241
        %v9268 = vpack.c.bf16 %v9244, %v9243
        %v9269 = vpack.c.bf16 %v9246, %v9245
        %v9270 = vpack.c.bf16 %v9248, %v9247
        %v9271 = vpack.c.bf16 %v9250, %v9249
        %v9272 = vpack.c.bf16 %v9252, %v9251
        %v9273 = vpack.c.bf16 %v9254, %v9253
        %v9274 = vpack.c.bf16 %v9256, %v9255
        %v9275 = vpack.c.bf16 %v9258, %v9257
        %v9276 = vpack.c.bf16 %v9260, %v9259
        %9277 = vrot.lane.b32.xlu0 %v2313, 40
        %v9278 = vpop.permute.xlu0 %9277
        %9279 = vrot.lane.b32.xlu0 %v2314, 40
        %v9280 = vpop.permute.xlu0 %9279
        %9281 = vrot.lane.b32.xlu0 %v2315, 40
        %v9282 = vpop.permute.xlu0 %9281
        %9283 = vrot.lane.b32.xlu0 %v2316, 40
        %v9284 = vpop.permute.xlu0 %9283
        %v9290 = vsel %vm1944, %v9261, 0
        %v9293 = vsel %vm1944, %v9262, 0
        %v9296 = vsel %vm1944, %v9263, 0
        %v9299 = vsel %vm1944, %v9264, 0
        %9301 = vmatprep.subr.bf16.mxu0 0
        %9302 = vmatpush1.bf16.msra.mxu0 0
        %9303 = vmatprep.subr.bf16.mxu0 0
        %9304 = vmatpush1.bf16.msra.mxu0 0
        %9305 = vmatprep.subr.bf16.mxu0 0
        %9306 = vmatpush1.bf16.msra.mxu0 0
        %9307 = vmatprep.subr.bf16.mxu0 0
        %9308 = vmatpush1.bf16.msra.mxu0 0
        %9309 = vmatprep.subr.bf16.mxu0 0
        %9310 = vmatpush1.bf16.msra.mxu0 %v9284
        %9311 = vmatprep.subr.bf16.mxu0 0
        %9312 = vmatpush1.bf16.msra.mxu0 %v9282
        %9313 = vmatprep.subr.bf16.mxu0 0
        %9314 = vmatpush1.bf16.msra.mxu0 %v9280
        %9315 = vmatprep.subr.bf16.mxu0 0
        %9316 = vmatpush1.bf16.msra.mxu0 %v9278
        %9317 = vmatprep.subr.bf16.mxu0 0
        %9318 = vmatpush2.bf16.msra.mxu0 0
        %9319 = vmatprep.subr.bf16.mxu0 0
        %9320 = vmatpush2.bf16.msra.mxu0 0
        %9321 = vmatprep.subr.bf16.mxu0 0
        %9322 = vmatpush2.bf16.msra.mxu0 0
        %9323 = vmatprep.subr.bf16.mxu0 0
        %9324 = vmatpush2.bf16.msra.mxu0 0
        %9325 = vmatprep.subr.bf16.mxu0 0
        %9326 = vmatpush2.bf16.msra.mxu0 0
        %9327 = vmatprep.subr.bf16.mxu0 0
        %9328 = vmatpush2.bf16.msra.mxu0 0
        %9329 = vmatprep.subr.bf16.mxu0 0
        %9330 = vmatpush2.bf16.msra.mxu0 0
        %9331 = vmatprep.subr.bf16.mxu0 0
        %9332 = vmatpush2.bf16.msra.mxu0 0
        %9333 = vmatprep.mubr.bf16.mxu0 0
        %9334 = vmatmul.mubr.bf16.gmra.mxu0 %v9290
        %v9335 = vpop.f32.mrf.mxu0
        %v9336 = vadd.f32 0.0, %v9335
        %v9337 = vpop.f32.mrf.mxu0
        %v9338 = vpop.f32.mrf.mxu0
        %v9339 = vadd.f32 0.0, %v9338
        %v9340 = vpop.f32.mrf.mxu0
        %9341 = vmatprep.mubr.bf16.mxu0 0
        %9342 = vmatmul.mubr.bf16.gmra.mxu0 %v9293
        %v9343 = vpop.f32.mrf.mxu0
        %v9344 = vadd.f32 0.0, %v9343
        %v9345 = vpop.f32.mrf.mxu0
        %v9346 = vpop.f32.mrf.mxu0
        %v9347 = vadd.f32 0.0, %v9346
        %v9348 = vpop.f32.mrf.mxu0
        %9349 = vmatprep.mubr.bf16.mxu0 0
        %9350 = vmatmul.mubr.bf16.gmra.mxu0 %v9296
        %v9351 = vpop.f32.mrf.mxu0
        %v9352 = vadd.f32 0.0, %v9351
        %v9353 = vpop.f32.mrf.mxu0
        %v9354 = vpop.f32.mrf.mxu0
        %v9355 = vadd.f32 0.0, %v9354
        %v9356 = vpop.f32.mrf.mxu0
        %9357 = vmatprep.mubr.bf16.mxu0 0
        %9358 = vmatmul.mubr.bf16.gmra.mxu0 %v9299
        %v9359 = vpop.f32.mrf.mxu0
        %v9360 = vadd.f32 0.0, %v9359
        %v9361 = vpop.f32.mrf.mxu0
        %v9362 = vpop.f32.mrf.mxu0
        %v9363 = vadd.f32 0.0, %v9362
        %v9364 = vpop.f32.mrf.mxu0
        %9365 = vdwg.mxu0
        %9366 = vrot.lane.b32.xlu0 %v2317, 40
        %v9367 = vpop.permute.xlu0 %9366
        %9368 = vrot.lane.b32.xlu0 %v2318, 40
        %v9369 = vpop.permute.xlu0 %9368
        %9370 = vrot.lane.b32.xlu0 %v2319, 40
        %v9371 = vpop.permute.xlu0 %9370
        %9372 = vrot.lane.b32.xlu0 %v2320, 40
        %v9373 = vpop.permute.xlu0 %9372
        %v9379 = vsel %vm1944, %v9265, 0
        %v9382 = vsel %vm1944, %v9266, 0
        %v9385 = vsel %vm1944, %v9267, 0
        %v9388 = vsel %vm1944, %v9268, 0
        %9390 = vmatprep.subr.bf16.mxu0 0
        %9391 = vmatpush1.bf16.msra.mxu0 0
        %9392 = vmatprep.subr.bf16.mxu0 0
        %9393 = vmatpush1.bf16.msra.mxu0 0
        %9394 = vmatprep.subr.bf16.mxu0 0
        %9395 = vmatpush1.bf16.msra.mxu0 0
        %9396 = vmatprep.subr.bf16.mxu0 0
        %9397 = vmatpush1.bf16.msra.mxu0 0
        %9398 = vmatprep.subr.bf16.mxu0 0
        %9399 = vmatpush1.bf16.msra.mxu0 %v9373
        %9400 = vmatprep.subr.bf16.mxu0 0
        %9401 = vmatpush1.bf16.msra.mxu0 %v9371
        %9402 = vmatprep.subr.bf16.mxu0 0
        %9403 = vmatpush1.bf16.msra.mxu0 %v9369
        %9404 = vmatprep.subr.bf16.mxu0 0
        %9405 = vmatpush1.bf16.msra.mxu0 %v9367
        %9406 = vmatprep.subr.bf16.mxu0 0
        %9407 = vmatpush2.bf16.msra.mxu0 0
        %9408 = vmatprep.subr.bf16.mxu0 0
        %9409 = vmatpush2.bf16.msra.mxu0 0
        %9410 = vmatprep.subr.bf16.mxu0 0
        %9411 = vmatpush2.bf16.msra.mxu0 0
        %9412 = vmatprep.subr.bf16.mxu0 0
        %9413 = vmatpush2.bf16.msra.mxu0 0
        %9414 = vmatprep.subr.bf16.mxu0 0
        %9415 = vmatpush2.bf16.msra.mxu0 0
        %9416 = vmatprep.subr.bf16.mxu0 0
        %9417 = vmatpush2.bf16.msra.mxu0 0
        %9418 = vmatprep.subr.bf16.mxu0 0
        %9419 = vmatpush2.bf16.msra.mxu0 0
        %9420 = vmatprep.subr.bf16.mxu0 0
        %9421 = vmatpush2.bf16.msra.mxu0 0
        %9422 = vmatprep.mubr.bf16.mxu0 0
        %9423 = vmatmul.mubr.bf16.gmra.mxu0 %v9379
        %v9424 = vpop.f32.mrf.mxu0
        %v9425 = vadd.f32 0.0, %v9424
        %v9426 = vpop.f32.mrf.mxu0
        %v9427 = vpop.f32.mrf.mxu0
        %v9428 = vadd.f32 0.0, %v9427
        %v9429 = vpop.f32.mrf.mxu0
        %9430 = vmatprep.mubr.bf16.mxu0 0
        %9431 = vmatmul.mubr.bf16.gmra.mxu0 %v9382
        %v9432 = vpop.f32.mrf.mxu0
        %v9433 = vadd.f32 0.0, %v9432
        %v9434 = vpop.f32.mrf.mxu0
        %v9435 = vpop.f32.mrf.mxu0
        %v9436 = vadd.f32 0.0, %v9435
        %v9437 = vpop.f32.mrf.mxu0
        %9438 = vmatprep.mubr.bf16.mxu0 0
        %9439 = vmatmul.mubr.bf16.gmra.mxu0 %v9385
        %v9440 = vpop.f32.mrf.mxu0
        %v9441 = vadd.f32 0.0, %v9440
        %v9442 = vpop.f32.mrf.mxu0
        %v9443 = vpop.f32.mrf.mxu0
        %v9444 = vadd.f32 0.0, %v9443
        %v9445 = vpop.f32.mrf.mxu0
        %9446 = vmatprep.mubr.bf16.mxu0 0
        %9447 = vmatmul.mubr.bf16.gmra.mxu0 %v9388
        %v9448 = vpop.f32.mrf.mxu0
        %v9449 = vadd.f32 0.0, %v9448
        %v9450 = vpop.f32.mrf.mxu0
        %v9451 = vpop.f32.mrf.mxu0
        %v9452 = vadd.f32 0.0, %v9451
        %v9453 = vpop.f32.mrf.mxu0
        %9454 = vdwg.mxu0
        %9455 = vrot.lane.b32.xlu0 %v2321, 40
        %v9456 = vpop.permute.xlu0 %9455
        %9457 = vrot.lane.b32.xlu0 %v2322, 40
        %v9458 = vpop.permute.xlu0 %9457
        %9459 = vrot.lane.b32.xlu0 %v2323, 40
        %v9460 = vpop.permute.xlu0 %9459
        %9461 = vrot.lane.b32.xlu0 %v2324, 40
        %v9462 = vpop.permute.xlu0 %9461
        %v9468 = vsel %vm1944, %v9269, 0
        %v9471 = vsel %vm1944, %v9270, 0
        %v9474 = vsel %vm1944, %v9271, 0
        %v9477 = vsel %vm1944, %v9272, 0
        %9479 = vmatprep.subr.bf16.mxu0 0
        %9480 = vmatpush1.bf16.msra.mxu0 0
        %9481 = vmatprep.subr.bf16.mxu0 0
        %9482 = vmatpush1.bf16.msra.mxu0 0
        %9483 = vmatprep.subr.bf16.mxu0 0
        %9484 = vmatpush1.bf16.msra.mxu0 0
        %9485 = vmatprep.subr.bf16.mxu0 0
        %9486 = vmatpush1.bf16.msra.mxu0 0
        %9487 = vmatprep.subr.bf16.mxu0 0
        %9488 = vmatpush1.bf16.msra.mxu0 %v9462
        %9489 = vmatprep.subr.bf16.mxu0 0
        %9490 = vmatpush1.bf16.msra.mxu0 %v9460
        %9491 = vmatprep.subr.bf16.mxu0 0
        %9492 = vmatpush1.bf16.msra.mxu0 %v9458
        %9493 = vmatprep.subr.bf16.mxu0 0
        %9494 = vmatpush1.bf16.msra.mxu0 %v9456
        %9495 = vmatprep.subr.bf16.mxu0 0
        %9496 = vmatpush2.bf16.msra.mxu0 0
        %9497 = vmatprep.subr.bf16.mxu0 0
        %9498 = vmatpush2.bf16.msra.mxu0 0
        %9499 = vmatprep.subr.bf16.mxu0 0
        %9500 = vmatpush2.bf16.msra.mxu0 0
        %9501 = vmatprep.subr.bf16.mxu0 0
        %9502 = vmatpush2.bf16.msra.mxu0 0
        %9503 = vmatprep.subr.bf16.mxu0 0
        %9504 = vmatpush2.bf16.msra.mxu0 0
        %9505 = vmatprep.subr.bf16.mxu0 0
        %9506 = vmatpush2.bf16.msra.mxu0 0
        %9507 = vmatprep.subr.bf16.mxu0 0
        %9508 = vmatpush2.bf16.msra.mxu0 0
        %9509 = vmatprep.subr.bf16.mxu0 0
        %9510 = vmatpush2.bf16.msra.mxu0 0
        %9511 = vmatprep.mubr.bf16.mxu0 0
        %9512 = vmatmul.mubr.bf16.gmra.mxu0 %v9468
        %v9513 = vpop.f32.mrf.mxu0
        %v9514 = vadd.f32 0.0, %v9513
        %v9515 = vpop.f32.mrf.mxu0
        %v9516 = vpop.f32.mrf.mxu0
        %v9517 = vadd.f32 0.0, %v9516
        %v9518 = vpop.f32.mrf.mxu0
        %9519 = vmatprep.mubr.bf16.mxu0 0
        %9520 = vmatmul.mubr.bf16.gmra.mxu0 %v9471
        %v9521 = vpop.f32.mrf.mxu0
        %v9522 = vadd.f32 0.0, %v9521
        %v9523 = vpop.f32.mrf.mxu0
        %v9524 = vpop.f32.mrf.mxu0
        %v9525 = vadd.f32 0.0, %v9524
        %v9526 = vpop.f32.mrf.mxu0
        %9527 = vmatprep.mubr.bf16.mxu0 0
        %9528 = vmatmul.mubr.bf16.gmra.mxu0 %v9474
        %v9529 = vpop.f32.mrf.mxu0
        %v9530 = vadd.f32 0.0, %v9529
        %v9531 = vpop.f32.mrf.mxu0
        %v9532 = vpop.f32.mrf.mxu0
        %v9533 = vadd.f32 0.0, %v9532
        %v9534 = vpop.f32.mrf.mxu0
        %9535 = vmatprep.mubr.bf16.mxu0 0
        %9536 = vmatmul.mubr.bf16.gmra.mxu0 %v9477
        %v9537 = vpop.f32.mrf.mxu0
        %v9538 = vadd.f32 0.0, %v9537
        %v9539 = vpop.f32.mrf.mxu0
        %v9540 = vpop.f32.mrf.mxu0
        %v9541 = vadd.f32 0.0, %v9540
        %v9542 = vpop.f32.mrf.mxu0
        %9543 = vdwg.mxu0
        %9544 = vrot.lane.b32.xlu0 %v2325, 40
        %v9545 = vpop.permute.xlu0 %9544
        %9546 = vrot.lane.b32.xlu0 %v2326, 40
        %v9547 = vpop.permute.xlu0 %9546
        %9548 = vrot.lane.b32.xlu0 %v2327, 40
        %v9549 = vpop.permute.xlu0 %9548
        %9550 = vrot.lane.b32.xlu0 %v2328, 40
        %v9551 = vpop.permute.xlu0 %9550
        %v9557 = vsel %vm1944, %v9273, 0
        %v9560 = vsel %vm1944, %v9274, 0
        %v9563 = vsel %vm1944, %v9275, 0
        %v9566 = vsel %vm1944, %v9276, 0
        %9568 = vmatprep.subr.bf16.mxu0 0
        %9569 = vmatpush1.bf16.msra.mxu0 0
        %9570 = vmatprep.subr.bf16.mxu0 0
        %9571 = vmatpush1.bf16.msra.mxu0 0
        %9572 = vmatprep.subr.bf16.mxu0 0
        %9573 = vmatpush1.bf16.msra.mxu0 0
        %9574 = vmatprep.subr.bf16.mxu0 0
        %9575 = vmatpush1.bf16.msra.mxu0 0
        %9576 = vmatprep.subr.bf16.mxu0 0
        %9577 = vmatpush1.bf16.msra.mxu0 %v9551
        %9578 = vmatprep.subr.bf16.mxu0 0
        %9579 = vmatpush1.bf16.msra.mxu0 %v9549
        %9580 = vmatprep.subr.bf16.mxu0 0
        %9581 = vmatpush1.bf16.msra.mxu0 %v9547
        %9582 = vmatprep.subr.bf16.mxu0 0
        %9583 = vmatpush1.bf16.msra.mxu0 %v9545
        %9584 = vmatprep.subr.bf16.mxu0 0
        %9585 = vmatpush2.bf16.msra.mxu0 0
        %9586 = vmatprep.subr.bf16.mxu0 0
        %9587 = vmatpush2.bf16.msra.mxu0 0
        %9588 = vmatprep.subr.bf16.mxu0 0
        %9589 = vmatpush2.bf16.msra.mxu0 0
        %9590 = vmatprep.subr.bf16.mxu0 0
        %9591 = vmatpush2.bf16.msra.mxu0 0
        %9592 = vmatprep.subr.bf16.mxu0 0
        %9593 = vmatpush2.bf16.msra.mxu0 0
        %9594 = vmatprep.subr.bf16.mxu0 0
        %9595 = vmatpush2.bf16.msra.mxu0 0
        %9596 = vmatprep.subr.bf16.mxu0 0
        %9597 = vmatpush2.bf16.msra.mxu0 0
        %9598 = vmatprep.subr.bf16.mxu0 0
        %9599 = vmatpush2.bf16.msra.mxu0 0
        %9600 = vmatprep.mubr.bf16.mxu0 0
        %9601 = vmatmul.mubr.bf16.gmra.mxu0 %v9557
        %v9602 = vpop.f32.mrf.mxu0
        %v9603 = vadd.f32 0.0, %v9602
        %v9604 = vpop.f32.mrf.mxu0
        %v9605 = vpop.f32.mrf.mxu0
        %v9606 = vadd.f32 0.0, %v9605
        %v9607 = vpop.f32.mrf.mxu0
        %9608 = vmatprep.mubr.bf16.mxu0 0
        %9609 = vmatmul.mubr.bf16.gmra.mxu0 %v9560
        %v9610 = vpop.f32.mrf.mxu0
        %v9611 = vadd.f32 0.0, %v9610
        %v9612 = vpop.f32.mrf.mxu0
        %v9613 = vpop.f32.mrf.mxu0
        %v9614 = vadd.f32 0.0, %v9613
        %v9615 = vpop.f32.mrf.mxu0
        %9616 = vmatprep.mubr.bf16.mxu0 0
        %9617 = vmatmul.mubr.bf16.gmra.mxu0 %v9563
        %v9618 = vpop.f32.mrf.mxu0
        %v9619 = vadd.f32 0.0, %v9618
        %v9620 = vpop.f32.mrf.mxu0
        %v9621 = vpop.f32.mrf.mxu0
        %v9622 = vadd.f32 0.0, %v9621
        %v9623 = vpop.f32.mrf.mxu0
        %9624 = vmatprep.mubr.bf16.mxu0 0
        %9625 = vmatmul.mubr.bf16.gmra.mxu0 %v9566
        %v9626 = vpop.f32.mrf.mxu0
        %v9627 = vadd.f32 0.0, %v9626
        %v9628 = vpop.f32.mrf.mxu0
        %v9629 = vpop.f32.mrf.mxu0
        %v9630 = vadd.f32 0.0, %v9629
        %v9631 = vpop.f32.mrf.mxu0
        %9632 = vdwg.mxu0
        %v9633 = vpack.c.bf16 %v9339, %v9336
        %v9634 = vpack.c.bf16 %v9347, %v9344
        %v9635 = vpack.c.bf16 %v9355, %v9352
        %v9636 = vpack.c.bf16 %v9363, %v9360
        %v9637 = vpack.c.bf16 %v9428, %v9425
        %v9638 = vpack.c.bf16 %v9436, %v9433
        %v9639 = vpack.c.bf16 %v9444, %v9441
        %v9640 = vpack.c.bf16 %v9452, %v9449
        %v9641 = vpack.c.bf16 %v9517, %v9514
        %v9642 = vpack.c.bf16 %v9525, %v9522
        %v9643 = vpack.c.bf16 %v9533, %v9530
        %v9644 = vpack.c.bf16 %v9541, %v9538
        %v9645 = vpack.c.bf16 %v9606, %v9603
        %v9646 = vpack.c.bf16 %v9614, %v9611
        %v9647 = vpack.c.bf16 %v9622, %v9619
        %v9648 = vpack.c.bf16 %v9630, %v9627
        %v9665 = vunpack.c.l.b16 %v9633
        %v9666 = vunpack.c.h.b16 %v9633
        %v9667 = vunpack.c.l.b16 %v9634
        %v9668 = vunpack.c.h.b16 %v9634
        %v9669 = vunpack.c.l.b16 %v9635
        %v9670 = vunpack.c.h.b16 %v9635
        %v9671 = vunpack.c.l.b16 %v9636
        %v9672 = vunpack.c.h.b16 %v9636
        %v9673 = vunpack.c.l.b16 %v9637
        %v9674 = vunpack.c.h.b16 %v9637
        %v9675 = vunpack.c.l.b16 %v9638
        %v9676 = vunpack.c.h.b16 %v9638
        %v9677 = vunpack.c.l.b16 %v9639
        %v9678 = vunpack.c.h.b16 %v9639
        %v9679 = vunpack.c.l.b16 %v9640
        %v9680 = vunpack.c.h.b16 %v9640
        %v9681 = vunpack.c.l.b16 %v9641
        %v9682 = vunpack.c.h.b16 %v9641
        %v9683 = vunpack.c.l.b16 %v9642
        %v9684 = vunpack.c.h.b16 %v9642
        %v9685 = vunpack.c.l.b16 %v9643
        %v9686 = vunpack.c.h.b16 %v9643
        %v9687 = vunpack.c.l.b16 %v9644
        %v9688 = vunpack.c.h.b16 %v9644
        %v9689 = vunpack.c.l.b16 %v9645
        %v9690 = vunpack.c.h.b16 %v9645
        %v9691 = vunpack.c.l.b16 %v9646
        %v9692 = vunpack.c.h.b16 %v9646
        %v9693 = vunpack.c.l.b16 %v9647
        %v9694 = vunpack.c.h.b16 %v9647
        %v9695 = vunpack.c.l.b16 %v9648
        %v9696 = vunpack.c.h.b16 %v9648
        %v9697 = vpack.c.b16 %v9665, %v9665
        %v9698 = vpack.c.b16 %v9666, %v9666
        %v9699 = vpack.c.b16 %v9667, %v9667
        %v9700 = vpack.c.b16 %v9668, %v9668
        %v9701 = vpack.c.b16 %v9669, %v9669
        %v9702 = vpack.c.b16 %v9670, %v9670
        %v9703 = vpack.c.b16 %v9671, %v9671
        %v9704 = vpack.c.b16 %v9672, %v9672
        %v9705 = vpack.c.b16 %v9673, %v9673
        %v9706 = vpack.c.b16 %v9674, %v9674
        %v9707 = vpack.c.b16 %v9675, %v9675
        %v9708 = vpack.c.b16 %v9676, %v9676
        %v9709 = vpack.c.b16 %v9677, %v9677
        %v9710 = vpack.c.b16 %v9678, %v9678
        %v9711 = vpack.c.b16 %v9679, %v9679
        %v9712 = vpack.c.b16 %v9680, %v9680
        %v9713 = vpack.c.b16 %v9681, %v9681
        %v9714 = vpack.c.b16 %v9682, %v9682
        %v9715 = vpack.c.b16 %v9683, %v9683
        %v9716 = vpack.c.b16 %v9684, %v9684
        %v9717 = vpack.c.b16 %v9685, %v9685
        %v9718 = vpack.c.b16 %v9686, %v9686
        %v9719 = vpack.c.b16 %v9687, %v9687
        %v9720 = vpack.c.b16 %v9688, %v9688
        %v9721 = vpack.c.b16 %v9689, %v9689
        %v9722 = vpack.c.b16 %v9690, %v9690
        %v9723 = vpack.c.b16 %v9691, %v9691
        %v9724 = vpack.c.b16 %v9692, %v9692
        %v9725 = vpack.c.b16 %v9693, %v9693
        %v9726 = vpack.c.b16 %v9694, %v9694
        %v9727 = vpack.c.b16 %v9695, %v9695
        %v9728 = vpack.c.b16 %v9696, %v9696
        %9729 = vrot.lane.b32.xlu0 %v9697, 24
        %v9730 = vpop.permute.xlu0 %9729
        %9731 = vrot.lane.b32.xlu0 %v9698, 24
        %v9732 = vpop.permute.xlu0 %9731
        %9733 = vrot.lane.b32.xlu0 %v9699, 24
        %v9734 = vpop.permute.xlu0 %9733
        %9735 = vrot.lane.b32.xlu0 %v9700, 24
        %v9736 = vpop.permute.xlu0 %9735
        %9737 = vrot.lane.b32.xlu0 %v9701, 24
        %v9738 = vpop.permute.xlu0 %9737
        %9739 = vrot.lane.b32.xlu0 %v9702, 24
        %v9740 = vpop.permute.xlu0 %9739
        %9741 = vrot.lane.b32.xlu0 %v9703, 24
        %v9742 = vpop.permute.xlu0 %9741
        %9743 = vrot.lane.b32.xlu0 %v9704, 24
        %v9744 = vpop.permute.xlu0 %9743
        %9745 = vrot.lane.b32.xlu0 %v9705, 24
        %v9746 = vpop.permute.xlu0 %9745
        %9747 = vrot.lane.b32.xlu0 %v9706, 24
        %v9748 = vpop.permute.xlu0 %9747
        %9749 = vrot.lane.b32.xlu0 %v9707, 24
        %v9750 = vpop.permute.xlu0 %9749
        %9751 = vrot.lane.b32.xlu0 %v9708, 24
        %v9752 = vpop.permute.xlu0 %9751
        %9753 = vrot.lane.b32.xlu0 %v9709, 24
        %v9754 = vpop.permute.xlu0 %9753
        %9755 = vrot.lane.b32.xlu0 %v9710, 24
        %v9756 = vpop.permute.xlu0 %9755
        %9757 = vrot.lane.b32.xlu0 %v9711, 24
        %v9758 = vpop.permute.xlu0 %9757
        %9759 = vrot.lane.b32.xlu0 %v9712, 24
        %v9760 = vpop.permute.xlu0 %9759
        %9761 = vrot.lane.b32.xlu0 %v9713, 24
        %v9762 = vpop.permute.xlu0 %9761
        %9763 = vrot.lane.b32.xlu0 %v9714, 24
        %v9764 = vpop.permute.xlu0 %9763
        %9765 = vrot.lane.b32.xlu0 %v9715, 24
        %v9766 = vpop.permute.xlu0 %9765
        %9767 = vrot.lane.b32.xlu0 %v9716, 24
        %v9768 = vpop.permute.xlu0 %9767
        %9769 = vrot.lane.b32.xlu0 %v9717, 24
        %v9770 = vpop.permute.xlu0 %9769
        %9771 = vrot.lane.b32.xlu0 %v9718, 24
        %v9772 = vpop.permute.xlu0 %9771
        %9773 = vrot.lane.b32.xlu0 %v9719, 24
        %v9774 = vpop.permute.xlu0 %9773
        %9775 = vrot.lane.b32.xlu0 %v9720, 24
        %v9776 = vpop.permute.xlu0 %9775
        %9777 = vrot.lane.b32.xlu0 %v9721, 24
        %v9778 = vpop.permute.xlu0 %9777
        %9779 = vrot.lane.b32.xlu0 %v9722, 24
        %v9780 = vpop.permute.xlu0 %9779
        %9781 = vrot.lane.b32.xlu0 %v9723, 24
        %v9782 = vpop.permute.xlu0 %9781
        %9783 = vrot.lane.b32.xlu0 %v9724, 24
        %v9784 = vpop.permute.xlu0 %9783
        %9785 = vrot.lane.b32.xlu0 %v9725, 24
        %v9786 = vpop.permute.xlu0 %9785
        %9787 = vrot.lane.b32.xlu0 %v9726, 24
        %v9788 = vpop.permute.xlu0 %9787
        %9789 = vrot.lane.b32.xlu0 %v9727, 24
        %v9790 = vpop.permute.xlu0 %9789
        %9791 = vrot.lane.b32.xlu0 %v9728, 24
        %v9792 = vpop.permute.xlu0 %9791
        %vm9825 = vcmask 257216
        %9826 = vst.msk [vmem:[#allocation2] sm:$0xf] %vm9825, %v9730
        %9827 = vst.msk [vmem:[#allocation2 + $0x4] sm:$0xf] %vm9825, %v9732
        %9828 = vst.msk [vmem:[#allocation2 + $0x8] sm:$0xf] %vm9825, %v9734
        %9829 = vst.msk [vmem:[#allocation2 + $0xc] sm:$0xf] %vm9825, %v9736
        %9830 = vst.msk [vmem:[#allocation2 + $0x10] sm:$0xf] %vm9825, %v9738
        %9831 = vst.msk [vmem:[#allocation2 + $0x14] sm:$0xf] %vm9825, %v9740
        %9832 = vst.msk [vmem:[#allocation2 + $0x18] sm:$0xf] %vm9825, %v9742
        %9833 = vst.msk [vmem:[#allocation2 + $0x1c] sm:$0xf] %vm9825, %v9744
        %9834 = vst.msk [vmem:[#allocation2 + $0x20] sm:$0xf] %vm9825, %v9746
        %9835 = vst.msk [vmem:[#allocation2 + $0x24] sm:$0xf] %vm9825, %v9748
        %9836 = vst.msk [vmem:[#allocation2 + $0x28] sm:$0xf] %vm9825, %v9750
        %9837 = vst.msk [vmem:[#allocation2 + $0x2c] sm:$0xf] %vm9825, %v9752
        %9838 = vst.msk [vmem:[#allocation2 + $0x30] sm:$0xf] %vm9825, %v9754
        %9839 = vst.msk [vmem:[#allocation2 + $0x34] sm:$0xf] %vm9825, %v9756
        %9840 = vst.msk [vmem:[#allocation2 + $0x38] sm:$0xf] %vm9825, %v9758
        %9841 = vst.msk [vmem:[#allocation2 + $0x3c] sm:$0xf] %vm9825, %v9760
        %9842 = vst.msk [vmem:[#allocation2 + $0x40] sm:$0xf] %vm9825, %v9762
        %9843 = vst.msk [vmem:[#allocation2 + $0x44] sm:$0xf] %vm9825, %v9764
        %9844 = vst.msk [vmem:[#allocation2 + $0x48] sm:$0xf] %vm9825, %v9766
        %9845 = vst.msk [vmem:[#allocation2 + $0x4c] sm:$0xf] %vm9825, %v9768
        %9846 = vst.msk [vmem:[#allocation2 + $0x50] sm:$0xf] %vm9825, %v9770
        %9847 = vst.msk [vmem:[#allocation2 + $0x54] sm:$0xf] %vm9825, %v9772
        %9848 = vst.msk [vmem:[#allocation2 + $0x58] sm:$0xf] %vm9825, %v9774
        %9849 = vst.msk [vmem:[#allocation2 + $0x5c] sm:$0xf] %vm9825, %v9776
        %9850 = vst.msk [vmem:[#allocation2 + $0x60] sm:$0xf] %vm9825, %v9778
        %9851 = vst.msk [vmem:[#allocation2 + $0x64] sm:$0xf] %vm9825, %v9780
        %9852 = vst.msk [vmem:[#allocation2 + $0x68] sm:$0xf] %vm9825, %v9782
        %9853 = vst.msk [vmem:[#allocation2 + $0x6c] sm:$0xf] %vm9825, %v9784
        %9854 = vst.msk [vmem:[#allocation2 + $0x70] sm:$0xf] %vm9825, %v9786
        %9855 = vst.msk [vmem:[#allocation2 + $0x74] sm:$0xf] %vm9825, %v9788
        %9856 = vst.msk [vmem:[#allocation2 + $0x78] sm:$0xf] %vm9825, %v9790
        %9857 = vst.msk [vmem:[#allocation2 + $0x7c] sm:$0xf] %vm9825, %v9792
        %v9858 = vld [vmem:[#allocation2] sm:$0xf]
        %v9859 = vld [vmem:[#allocation2 + $0x4] sm:$0xf]
        %v9860 = vld [vmem:[#allocation2 + $0x8] sm:$0xf]
        %v9861 = vld [vmem:[#allocation2 + $0xc] sm:$0xf]
        %v9862 = vld [vmem:[#allocation2 + $0x10] sm:$0xf]
        %v9863 = vld [vmem:[#allocation2 + $0x14] sm:$0xf]
        %v9864 = vld [vmem:[#allocation2 + $0x18] sm:$0xf]
        %v9865 = vld [vmem:[#allocation2 + $0x1c] sm:$0xf]
        %v9866 = vld [vmem:[#allocation2 + $0x20] sm:$0xf]
        %v9867 = vld [vmem:[#allocation2 + $0x24] sm:$0xf]
        %v9868 = vld [vmem:[#allocation2 + $0x28] sm:$0xf]
        %v9869 = vld [vmem:[#allocation2 + $0x2c] sm:$0xf]
        %v9870 = vld [vmem:[#allocation2 + $0x30] sm:$0xf]
        %v9871 = vld [vmem:[#allocation2 + $0x34] sm:$0xf]
        %v9872 = vld [vmem:[#allocation2 + $0x38] sm:$0xf]
        %v9873 = vld [vmem:[#allocation2 + $0x3c] sm:$0xf]
        %v9874 = vld [vmem:[#allocation2 + $0x40] sm:$0xf]
        %v9875 = vld [vmem:[#allocation2 + $0x44] sm:$0xf]
        %v9876 = vld [vmem:[#allocation2 + $0x48] sm:$0xf]
        %v9877 = vld [vmem:[#allocation2 + $0x4c] sm:$0xf]
        %v9878 = vld [vmem:[#allocation2 + $0x50] sm:$0xf]
        %v9879 = vld [vmem:[#allocation2 + $0x54] sm:$0xf]
        %v9880 = vld [vmem:[#allocation2 + $0x58] sm:$0xf]
        %v9881 = vld [vmem:[#allocation2 + $0x5c] sm:$0xf]
        %v9882 = vld [vmem:[#allocation2 + $0x60] sm:$0xf]
        %v9883 = vld [vmem:[#allocation2 + $0x64] sm:$0xf]
        %v9884 = vld [vmem:[#allocation2 + $0x68] sm:$0xf]
        %v9885 = vld [vmem:[#allocation2 + $0x6c] sm:$0xf]
        %v9886 = vld [vmem:[#allocation2 + $0x70] sm:$0xf]
        %v9887 = vld [vmem:[#allocation2 + $0x74] sm:$0xf]
        %v9888 = vld [vmem:[#allocation2 + $0x78] sm:$0xf]
        %v9889 = vld [vmem:[#allocation2 + $0x7c] sm:$0xf]
        %v9890 = vld [vmem:[%s3] sm:$0xf]
        %v9891 = vld [vmem:[%s3 + $0x4] sm:$0xf]
        %v9892 = vld [vmem:[%s3 + $0x8] sm:$0xf]
        %v9893 = vld [vmem:[%s3 + $0xc] sm:$0xf]
        %v9894 = vld [vmem:[%s4] sm:$0x1]
        %v9896 = vlaneseq
        %v9897 = vshrl.u32 %v9896, 7
        %v9898 = vsub.s32 0, %v9897
        %v9899 = vrot.slane %v9894, %v9898
        %v9933 = vunpack.c.l.b16 %v9858
        %v9934 = vunpack.c.l.b16 %v9859
        %v9935 = vunpack.c.l.b16 %v9860
        %v9936 = vunpack.c.l.b16 %v9861
        %v9937 = vunpack.c.l.b16 %v9862
        %v9938 = vunpack.c.l.b16 %v9863
        %v9939 = vunpack.c.l.b16 %v9864
        %v9940 = vunpack.c.l.b16 %v9865
        %v9941 = vunpack.c.l.b16 %v9866
        %v9942 = vunpack.c.l.b16 %v9867
        %v9943 = vunpack.c.l.b16 %v9868
        %v9944 = vunpack.c.l.b16 %v9869
        %v9945 = vunpack.c.l.b16 %v9870
        %v9946 = vunpack.c.l.b16 %v9871
        %v9947 = vunpack.c.l.b16 %v9872
        %v9948 = vunpack.c.l.b16 %v9873
        %v9949 = vunpack.c.l.b16 %v9874
        %v9950 = vunpack.c.l.b16 %v9875
        %v9951 = vunpack.c.l.b16 %v9876
        %v9952 = vunpack.c.l.b16 %v9877
        %v9953 = vunpack.c.l.b16 %v9878
        %v9954 = vunpack.c.l.b16 %v9879
        %v9955 = vunpack.c.l.b16 %v9880
        %v9956 = vunpack.c.l.b16 %v9881
        %v9957 = vunpack.c.l.b16 %v9882
        %v9958 = vunpack.c.l.b16 %v9883
        %v9959 = vunpack.c.l.b16 %v9884
        %v9960 = vunpack.c.l.b16 %v9885
        %v9961 = vunpack.c.l.b16 %v9886
        %v9962 = vunpack.c.l.b16 %v9887
        %v9963 = vunpack.c.l.b16 %v9888
        %v9964 = vunpack.c.l.b16 %v9889
        %v9965 = vpack.c.b16 %v9934, %v9933
        %v9966 = vpack.c.b16 %v9936, %v9935
        %v9967 = vpack.c.b16 %v9938, %v9937
        %v9968 = vpack.c.b16 %v9940, %v9939
        %v9969 = vpack.c.b16 %v9942, %v9941
        %v9970 = vpack.c.b16 %v9944, %v9943
        %v9971 = vpack.c.b16 %v9946, %v9945
        %v9972 = vpack.c.b16 %v9948, %v9947
        %v9973 = vpack.c.b16 %v9950, %v9949
        %v9974 = vpack.c.b16 %v9952, %v9951
        %v9975 = vpack.c.b16 %v9954, %v9953
        %v9976 = vpack.c.b16 %v9956, %v9955
        %v9977 = vpack.c.b16 %v9958, %v9957
        %v9978 = vpack.c.b16 %v9960, %v9959
        %v9979 = vpack.c.b16 %v9962, %v9961
        %v9980 = vpack.c.b16 %v9964, %v9963
        %v9985 = vunpack.c.l.b16 %v9890
        %v9986 = vunpack.c.l.b16 %v9891
        %v9987 = vunpack.c.l.b16 %v9892
        %v9988 = vunpack.c.l.b16 %v9893
        %v9989 = vpack.c.b16 %v9986, %v9985
        %v9990 = vpack.c.b16 %v9988, %v9987
        %v9994 = vsel %vm447, %v9965, 0
        %v9997 = vsel %vm447, %v9966, 0
        %v10000 = vsel %vm447, %v9967, 0
        %v10003 = vsel %vm447, %v9968, 0
        %v10006 = vsel %vm447, %v9969, 0
        %v10009 = vsel %vm447, %v9970, 0
        %v10012 = vsel %vm447, %v9971, 0
        %v10015 = vsel %vm447, %v9972, 0
        %v10018 = vsel %vm447, %v9973, 0
        %v10021 = vsel %vm447, %v9974, 0
        %v10024 = vsel %vm447, %v9975, 0
        %v10027 = vsel %vm447, %v9976, 0
        %v10030 = vsel %vm447, %v9977, 0
        %v10033 = vsel %vm447, %v9978, 0
        %v10036 = vsel %vm447, %v9979, 0
        %v10039 = vsel %vm447, %v9980, 0
        %10041 = vmatprep.subr.bf16.mxu0 0
        %10042 = vmatpush1.bf16.msra.mxu0 0
        %10043 = vmatprep.subr.bf16.mxu0 0
        %10044 = vmatpush1.bf16.msra.mxu0 0
        %10045 = vmatprep.subr.bf16.mxu0 0
        %10046 = vmatpush1.bf16.msra.mxu0 0
        %10047 = vmatprep.subr.bf16.mxu0 0
        %10048 = vmatpush1.bf16.msra.mxu0 0
        %10049 = vmatprep.subr.bf16.mxu0 0
        %10050 = vmatpush1.bf16.msra.mxu0 0
        %10051 = vmatprep.subr.bf16.mxu0 0
        %10052 = vmatpush1.bf16.msra.mxu0 0
        %10053 = vmatprep.subr.bf16.mxu0 0
        %10054 = vmatpush1.bf16.msra.mxu0 %v9990
        %10055 = vmatprep.subr.bf16.mxu0 0
        %10056 = vmatpush1.bf16.msra.mxu0 %v9989
        %10057 = vmatprep.subr.bf16.mxu0 0
        %10058 = vmatpush2.bf16.msra.mxu0 0
        %10059 = vmatprep.subr.bf16.mxu0 0
        %10060 = vmatpush2.bf16.msra.mxu0 0
        %10061 = vmatprep.subr.bf16.mxu0 0
        %10062 = vmatpush2.bf16.msra.mxu0 0
        %10063 = vmatprep.subr.bf16.mxu0 0
        %10064 = vmatpush2.bf16.msra.mxu0 0
        %10065 = vmatprep.subr.bf16.mxu0 0
        %10066 = vmatpush2.bf16.msra.mxu0 0
        %10067 = vmatprep.subr.bf16.mxu0 0
        %10068 = vmatpush2.bf16.msra.mxu0 0
        %10069 = vmatprep.subr.bf16.mxu0 0
        %10070 = vmatpush2.bf16.msra.mxu0 0
        %10071 = vmatprep.subr.bf16.mxu0 0
        %10072 = vmatpush2.bf16.msra.mxu0 0
        %10073 = vmatprep.mubr.bf16.mxu0 0
        %10074 = vmatmul.mubr.bf16.gmra.mxu0 %v9994
        %v10075 = vpop.f32.mrf.mxu0
        %v10076 = vadd.f32 %v9899, %v10075
        %v10077 = vpop.f32.mrf.mxu0
        %v10078 = vpop.f32.mrf.mxu0
        %v10079 = vadd.f32 %v9899, %v10078
        %v10080 = vpop.f32.mrf.mxu0
        %10081 = vmatprep.mubr.bf16.mxu0 0
        %10082 = vmatmul.mubr.bf16.gmra.mxu0 %v9997
        %v10083 = vpop.f32.mrf.mxu0
        %v10084 = vadd.f32 %v9899, %v10083
        %v10085 = vpop.f32.mrf.mxu0
        %v10086 = vpop.f32.mrf.mxu0
        %v10087 = vadd.f32 %v9899, %v10086
        %v10088 = vpop.f32.mrf.mxu0
        %10089 = vmatprep.mubr.bf16.mxu0 0
        %10090 = vmatmul.mubr.bf16.gmra.mxu0 %v10000
        %v10091 = vpop.f32.mrf.mxu0
        %v10092 = vadd.f32 %v9899, %v10091
        %v10093 = vpop.f32.mrf.mxu0
        %v10094 = vpop.f32.mrf.mxu0
        %v10095 = vadd.f32 %v9899, %v10094
        %v10096 = vpop.f32.mrf.mxu0
        %10097 = vmatprep.mubr.bf16.mxu0 0
        %10098 = vmatmul.mubr.bf16.gmra.mxu0 %v10003
        %v10099 = vpop.f32.mrf.mxu0
        %v10100 = vadd.f32 %v9899, %v10099
        %v10101 = vpop.f32.mrf.mxu0
        %v10102 = vpop.f32.mrf.mxu0
        %v10103 = vadd.f32 %v9899, %v10102
        %v10104 = vpop.f32.mrf.mxu0
        %10105 = vmatprep.mubr.bf16.mxu0 0
        %10106 = vmatmul.mubr.bf16.gmra.mxu0 %v10006
        %v10107 = vpop.f32.mrf.mxu0
        %v10108 = vadd.f32 %v9899, %v10107
        %v10109 = vpop.f32.mrf.mxu0
        %v10110 = vpop.f32.mrf.mxu0
        %v10111 = vadd.f32 %v9899, %v10110
        %v10112 = vpop.f32.mrf.mxu0
        %10113 = vmatprep.mubr.bf16.mxu0 0
        %10114 = vmatmul.mubr.bf16.gmra.mxu0 %v10009
        %v10115 = vpop.f32.mrf.mxu0
        %v10116 = vadd.f32 %v9899, %v10115
        %v10117 = vpop.f32.mrf.mxu0
        %v10118 = vpop.f32.mrf.mxu0
        %v10119 = vadd.f32 %v9899, %v10118
        %v10120 = vpop.f32.mrf.mxu0
        %10121 = vmatprep.mubr.bf16.mxu0 0
        %10122 = vmatmul.mubr.bf16.gmra.mxu0 %v10012
        %v10123 = vpop.f32.mrf.mxu0
        %v10124 = vadd.f32 %v9899, %v10123
        %v10125 = vpop.f32.mrf.mxu0
        %v10126 = vpop.f32.mrf.mxu0
        %v10127 = vadd.f32 %v9899, %v10126
        %v10128 = vpop.f32.mrf.mxu0
        %10129 = vmatprep.mubr.bf16.mxu0 0
        %10130 = vmatmul.mubr.bf16.gmra.mxu0 %v10015
        %v10131 = vpop.f32.mrf.mxu0
        %v10132 = vadd.f32 %v9899, %v10131
        %v10133 = vpop.f32.mrf.mxu0
        %v10134 = vpop.f32.mrf.mxu0
        %v10135 = vadd.f32 %v9899, %v10134
        %v10136 = vpop.f32.mrf.mxu0
        %10137 = vmatprep.mubr.bf16.mxu0 0
        %10138 = vmatmul.mubr.bf16.gmra.mxu0 %v10018
        %v10139 = vpop.f32.mrf.mxu0
        %v10140 = vadd.f32 %v9899, %v10139
        %v10141 = vpop.f32.mrf.mxu0
        %v10142 = vpop.f32.mrf.mxu0
        %v10143 = vadd.f32 %v9899, %v10142
        %v10144 = vpop.f32.mrf.mxu0
        %10145 = vmatprep.mubr.bf16.mxu0 0
        %10146 = vmatmul.mubr.bf16.gmra.mxu0 %v10021
        %v10147 = vpop.f32.mrf.mxu0
        %v10148 = vadd.f32 %v9899, %v10147
        %v10149 = vpop.f32.mrf.mxu0
        %v10150 = vpop.f32.mrf.mxu0
        %v10151 = vadd.f32 %v9899, %v10150
        %v10152 = vpop.f32.mrf.mxu0
        %10153 = vmatprep.mubr.bf16.mxu0 0
        %10154 = vmatmul.mubr.bf16.gmra.mxu0 %v10024
        %v10155 = vpop.f32.mrf.mxu0
        %v10156 = vadd.f32 %v9899, %v10155
        %v10157 = vpop.f32.mrf.mxu0
        %v10158 = vpop.f32.mrf.mxu0
        %v10159 = vadd.f32 %v9899, %v10158
        %v10160 = vpop.f32.mrf.mxu0
        %10161 = vmatprep.mubr.bf16.mxu0 0
        %10162 = vmatmul.mubr.bf16.gmra.mxu0 %v10027
        %v10163 = vpop.f32.mrf.mxu0
        %v10164 = vadd.f32 %v9899, %v10163
        %v10165 = vpop.f32.mrf.mxu0
        %v10166 = vpop.f32.mrf.mxu0
        %v10167 = vadd.f32 %v9899, %v10166
        %v10168 = vpop.f32.mrf.mxu0
        %10169 = vmatprep.mubr.bf16.mxu0 0
        %10170 = vmatmul.mubr.bf16.gmra.mxu0 %v10030
        %v10171 = vpop.f32.mrf.mxu0
        %v10172 = vadd.f32 %v9899, %v10171
        %v10173 = vpop.f32.mrf.mxu0
        %v10174 = vpop.f32.mrf.mxu0
        %v10175 = vadd.f32 %v9899, %v10174
        %v10176 = vpop.f32.mrf.mxu0
        %10177 = vmatprep.mubr.bf16.mxu0 0
        %10178 = vmatmul.mubr.bf16.gmra.mxu0 %v10033
        %v10179 = vpop.f32.mrf.mxu0
        %v10180 = vadd.f32 %v9899, %v10179
        %v10181 = vpop.f32.mrf.mxu0
        %v10182 = vpop.f32.mrf.mxu0
        %v10183 = vadd.f32 %v9899, %v10182
        %v10184 = vpop.f32.mrf.mxu0
        %10185 = vmatprep.mubr.bf16.mxu0 0
        %10186 = vmatmul.mubr.bf16.gmra.mxu0 %v10036
        %v10187 = vpop.f32.mrf.mxu0
        %v10188 = vadd.f32 %v9899, %v10187
        %v10189 = vpop.f32.mrf.mxu0
        %v10190 = vpop.f32.mrf.mxu0
        %v10191 = vadd.f32 %v9899, %v10190
        %v10192 = vpop.f32.mrf.mxu0
        %10193 = vmatprep.mubr.bf16.mxu0 0
        %10194 = vmatmul.mubr.bf16.gmra.mxu0 %v10039
        %v10195 = vpop.f32.mrf.mxu0
        %v10196 = vadd.f32 %v9899, %v10195
        %v10197 = vpop.f32.mrf.mxu0
        %v10198 = vpop.f32.mrf.mxu0
        %v10199 = vadd.f32 %v9899, %v10198
        %v10200 = vpop.f32.mrf.mxu0
        %10201 = vdwg.mxu0
        %10202 = vst.msk [vmem:[%s309] sm:$0xff] %vm447, %v10076
        %10203 = vst.msk [vmem:[%s309 + $0x8] sm:$0xff] %vm447, %v10079
        %10204 = vst.msk [vmem:[%s309 + $0x10] sm:$0xff] %vm447, %v10084
        %10205 = vst.msk [vmem:[%s309 + $0x18] sm:$0xff] %vm447, %v10087
        %10206 = vst.msk [vmem:[%s309 + $0x20] sm:$0xff] %vm447, %v10092
        %10207 = vst.msk [vmem:[%s309 + $0x28] sm:$0xff] %vm447, %v10095
        %10208 = vst.msk [vmem:[%s309 + $0x30] sm:$0xff] %vm447, %v10100
        %10209 = vst.msk [vmem:[%s309 + $0x38] sm:$0xff] %vm447, %v10103
        %10210 = vst.msk [vmem:[%s309 + $0x40] sm:$0xff] %vm447, %v10108
        %10211 = vst.msk [vmem:[%s309 + $0x48] sm:$0xff] %vm447, %v10111
        %10212 = vst.msk [vmem:[%s309 + $0x50] sm:$0xff] %vm447, %v10116
        %10213 = vst.msk [vmem:[%s309 + $0x58] sm:$0xff] %vm447, %v10119
        %10214 = vst.msk [vmem:[%s309 + $0x60] sm:$0xff] %vm447, %v10124
        %10215 = vst.msk [vmem:[%s309 + $0x68] sm:$0xff] %vm447, %v10127
        %10216 = vst.msk [vmem:[%s309 + $0x70] sm:$0xff] %vm447, %v10132
        %10217 = vst.msk [vmem:[%s309 + $0x78] sm:$0xff] %vm447, %v10135
        %10218 = vst.msk [vmem:[%s309 + $0x80] sm:$0xff] %vm447, %v10140
        %10219 = vst.msk [vmem:[%s309 + $0x88] sm:$0xff] %vm447, %v10143
        %10220 = vst.msk [vmem:[%s309 + $0x90] sm:$0xff] %vm447, %v10148
        %10221 = vst.msk [vmem:[%s309 + $0x98] sm:$0xff] %vm447, %v10151
        %10222 = vst.msk [vmem:[%s309 + $0xa0] sm:$0xff] %vm447, %v10156
        %10223 = vst.msk [vmem:[%s309 + $0xa8] sm:$0xff] %vm447, %v10159
        %10224 = vst.msk [vmem:[%s309 + $0xb0] sm:$0xff] %vm447, %v10164
        %10225 = vst.msk [vmem:[%s309 + $0xb8] sm:$0xff] %vm447, %v10167
        %10226 = vst.msk [vmem:[%s309 + $0xc0] sm:$0xff] %vm447, %v10172
        %10227 = vst.msk [vmem:[%s309 + $0xc8] sm:$0xff] %vm447, %v10175
        %10228 = vst.msk [vmem:[%s309 + $0xd0] sm:$0xff] %vm447, %v10180
        %10229 = vst.msk [vmem:[%s309 + $0xd8] sm:$0xff] %vm447, %v10183
        %10230 = vst.msk [vmem:[%s309 + $0xe0] sm:$0xff] %vm447, %v10188
        %10231 = vst.msk [vmem:[%s309 + $0xe8] sm:$0xff] %vm447, %v10191
        %10232 = vst.msk [vmem:[%s309 + $0xf0] sm:$0xff] %vm447, %v10196
        %10233 = vst.msk [vmem:[%s309 + $0xf8] sm:$0xff] %vm447, %v10199
        %s10234 = smul.u32 32, %s20
        %p10235 = scmp.lt.s32.totalorder %s10234, 63
        %s10236 = scalar_select %p10235, %s10234, 63
        %s10237 = smul.addr %s10236, 8
        %s10238 = scalar_lea.vmem %s7, %s10237
        // Predicated region
        $region57: #{tpu_custom_call.1} parent=47 // pred_check
          %p10239 = pneg %p190
        $region58: #{tpu_custom_call.1} parent=47 // pred_check_branch
          %10241 = sbr.rel (%p10239) target = $region60
        $region59: #{tpu_custom_call.1} parent=47 // pred_region
          %s10242 = smul.u32 32, %s20
        $region60: #{tpu_custom_call.1} parent=47 // pred_fallthru
          _
      $region48: #{tpu_custom_call.1} parent=5 // pred_fallthru
        _
      %p10243 = scmp.le.s32.totalorder 2, %s15
      // Predicated region
      $region61: #{tpu_custom_call.1} parent=5 // pred_check
        %p10244 = pneg %p10243
      $region62: #{tpu_custom_call.1} parent=5 // pred_check_branch
        %10246 = sbr.rel (%p10244) target = $region64
      $region63: #{tpu_custom_call.1} parent=5 // pred_region
        %s10247 = ssub.s32 %s15, 2
        // Predicated region
        $region65: #{tpu_custom_call.1} parent=63 // pred_check
          %p10248 = pneg %p196
        $region66: #{tpu_custom_call.1} parent=63 // pred_check_branch
          %10250 = sbr.rel (%p10248) target = $region68
        $region67: #{tpu_custom_call.1} parent=63 // pred_region
          %s10251 = smul.u32 32, %s21
          %p10252 = scmp.lt.s32.totalorder %s10251, 63
          %s10253 = scalar_select %p10252, %s10251, 63
          %s10254 = smul.addr %s10253, 8
          %s10255 = scalar_lea.vmem %s7, %s10254
        $region68: #{tpu_custom_call.1} parent=63 // pred_fallthru
          _
      $region64: #{tpu_custom_call.1} parent=5 // pred_fallthru
        _
    $region6: #{tpu_custom_call.1} parent=1 // loop_footer
      %s19 = sadd.s32 1, %s15
    $region7: #{tpu_custom_call.1} parent=1 // loop_footer_branch
      %14 = sbr.rel target = $region3
    $region8: #{tpu_custom_call.1} parent=1 // loop_exit
      _
    %10256 = vsyncpa [#allocation4], 1
    %s10257 = scalar_lea.sflag [#allocation4], 1
    %10258 = vsyncpa %s10257, 1
    %10259 = vsyncpa [#allocation5], 1
    %s10260 = scalar_lea.sflag [#allocation5], 1
    %10261 = vsyncpa %s10260, 1

</llo_original>
